<compile_context>
chip_gen: v7x
topology: tpu7x:2x2x1
jax: 0.10.0
libtpu: 0.0.40
codegen_flags: <defaults>
</compile_context>

<pallas_src>
import functools

import jax
import jax.numpy as jnp
from jax import lax
from jax.experimental import pallas as pl
from jax.experimental.pallas import tpu as pltpu

_VMEM = pl.BlockSpec(memory_space=pltpu.MemorySpace.VMEM)


# ----------------------------------------------------------------------------
# Fused Pallas kernel: layer0 (folded) + all stacked LSTM layers (wavefront) + fc
# ----------------------------------------------------------------------------
def _fused_lstm_kernel(x0_ref, wih0_ref, wih_ref, whh_ref, bias_ref,
                       h0_ref, c0_ref, wf_ref, bf_ref, out_ref, gates0_ref):
    # x0:    (T*BP, K0P)       time-major, batch-padded input (layer0 folded into wih0)
    # wih0:  (K0P, 4H) bf16    folded+g-scaled first-layer input weights
    # wih:   (L-1, H, 4H) bf16 input weights of layers 1..L-1 (g-scaled)
    # whh:   (L, H, 4H) bf16   recurrent weights (g-scaled)
    # bias:  (L, 1, 4H) f32    b_ih+b_hh per layer (layer0 carries the folded layer0 bias)
    # h0/c0: (L, BP, H) f32    initial hidden/cell states (batch-padded)
    # wf:    (H, NOUT_PAD) bf16, bf: (1, NOUT_PAD) f32  final fc, lane-padded to 128
    # out:   (T*BP, NOUT_PAD) f32
    # gates0:(T*BP, 4H) f32    VMEM scratch holding the hoisted layer-0 projection
    L = whh_ref.shape[0]
    G = whh_ref.shape[2]          # 4*H
    H = G // 4
    BP = h0_ref.shape[1]          # padded batch (multiple of 8 sublanes)
    TBP = x0_ref.shape[0]
    T = TBP // BP

    # Lane mask selecting the cell-gate lanes [2H, 3H); hoisted out of all loops.
    lane = lax.broadcasted_iota(jnp.int32, (BP, G), dimension=1)
    is_g = (lane >= 2 * H) & (lane < 3 * H)

    # Layer-0 input projection hoisted off the recurrent chain (one matmul),
    # staged in VMEM scratch and loaded per-step (keeps vreg pressure low).
    gates0_ref[...] = (
        jnp.dot(x0_ref[...].astype(jnp.bfloat16), wih0_ref[...],
                preferred_element_type=jnp.float32)
        + bias_ref[0]
    )

    wf = wf_ref[...]              # (H, NOUT_PAD) bf16
    bf = bf_ref[...]              # (1, NOUT_PAD) f32

    def cell(pre, c_prev):
        # g-gate columns were pre-scaled x2 at pack time, so a single full-vreg
        # sigmoid + a VPU blend replaces sigmoid+tanh on the EUP.
        s = jax.nn.sigmoid(pre)
        acts = jnp.where(is_g, 2.0 * s - 1.0, s)
        i_g = acts[:, 0 * H:1 * H]
        f_g = acts[:, 1 * H:2 * H]
        g_g = acts[:, 2 * H:3 * H]
        o_g = acts[:, 3 * H:4 * H]
        c_new = f_g * c_prev + i_g * g_g
        h_new = o_g * jnp.tanh(c_new)
        return h_new, c_new

    h = [h0_ref[l] for l in range(L)]     # (BP, H) f32 per layer
    c = [c0_ref[l] for l in range(L)]

    # Layer-time wavefront: at step s, every active layer l (t = s - l) only needs
    # values produced at step s-1 (h_{l-1}(t) and its own h_l(t-1)), so all of them
    # are independent and their tiny matmuls overlap in the MXU pipeline.
    for s in range(T + L - 1):            # static -> fully unrolled
        new_h = list(h)
        new_c = list(c)
        for l in range(L):
            t = s - l
            if not (0 <= t < T):
                continue
            h_b = h[l].astype(jnp.bfloat16)
            if l == 0:
                pre = gates0_ref[pl.ds(t * BP, BP), :] + jnp.dot(
                    h_b, whh_ref[0], preferred_element_type=jnp.float32)
            else:
                x_b = h[l - 1].astype(jnp.bfloat16)   # h_{l-1}(t), from step s-1
                pre = (bias_ref[l]
                       + jnp.dot(x_b, wih_ref[l - 1],
                                 preferred_element_type=jnp.float32)
                       + jnp.dot(h_b, whh_ref[l],
                                 preferred_element_type=jnp.float32))
            hn, cn = cell(pre, c[l])
            new_h[l] = hn
            new_c[l] = cn
            if l == L - 1:
                # fc per step, off the critical chain; lane-dense (128-wide) store.
                out_ref[pl.ds(t * BP, BP), :] = (
                    jnp.dot(hn.astype(jnp.bfloat16), wf,
                            preferred_element_type=jnp.float32) + bf)
        h = new_h
        c = new_c


# ----------------------------------------------------------------------------
# One-time parameter packing (outside the jitted forward path)
# ----------------------------------------------------------------------------
def pack_params(params, hiddens, *, batch_size):
    w0, b0 = params["layer0"]                          # (U, 1), (1, 1)
    stacks = [params["layer1"]] + list(params["layer2"])
    layers = [lp for st in stacks for lp in st]        # [(wih_t, whh_t, bias), ...]
    L = len(layers)
    H = layers[0][1].shape[0]                          # whh_t: (H, 4H)
    G = 4 * H
    F = layers[0][0].shape[0]                          # wih1_t: (F, 4H)
    U = w0.shape[0]
    wf, bf = params["fc"]                              # (H, NOUT), (1, NOUT)
    NOUT = wf.shape[1]

    B = batch_size
    BP = ((B + 7) // 8) * 8                            # pad batch to 8 sublanes
    K0P = ((F * U + 127) // 128) * 128                 # lane-pad first-layer input
    NOUT_PAD = ((NOUT + 127) // 128) * 128             # lane-dense fc output

    # Scale the cell-gate (g) columns by 2: tanh(x) = 2*sigmoid(2x) - 1 in-kernel.
    gscale = jnp.concatenate([jnp.ones((2 * H,), jnp.float32),
                              jnp.full((H,), 2.0, jnp.float32),
                              jnp.ones((H,), jnp.float32)])

    def scale_g(w):
        return w * gscale[None, :]

    # Fold layer0 (Linear(num_uid,1) + Flatten) into the first LSTM W_ih / bias.
    wih1_t, _, b1 = layers[0]
    w_fold = (wih1_t[:, None, :] * w0[None, :, 0, None]).reshape(F * U, G)
    b_fold = b1 + b0[0, 0] * jnp.sum(wih1_t, axis=0, keepdims=True)

    wih0 = jnp.pad(scale_g(w_fold), ((0, K0P - F * U), (0, 0))).astype(jnp.bfloat16)
    whh = jnp.stack([scale_g(wh) for (_, wh, _) in layers]).astype(jnp.bfloat16)
    if L > 1:
        wih = jnp.stack([scale_g(wt) for (wt, _, _) in layers[1:]]).astype(jnp.bfloat16)
    else:
        wih = jnp.zeros((1, H, G), jnp.bfloat16)       # unused when L == 1
    bias = jnp.stack([scale_g(b_fold)] + [scale_g(b) for (_, _, b) in layers[1:]])

    h0 = jnp.concatenate([h for (h, _) in hiddens], axis=0)   # (L, B, H)
    c0 = jnp.concatenate([c for (_, c) in hiddens], axis=0)
    h0 = jnp.pad(h0, ((0, 0), (0, BP - B), (0, 0)))
    c0 = jnp.pad(c0, ((0, 0), (0, BP - B), (0, 0)))

    wf_p = jnp.pad(wf, ((0, 0), (0, NOUT_PAD - NOUT))).astype(jnp.bfloat16)
    bf_p = jnp.pad(bf, ((0, 0), (0, NOUT_PAD - NOUT)))

    return dict(wih0=wih0, wih=wih, whh=whh, bias=bias,
                h0=h0, c0=c0, wf=wf_p, bf=bf_p)


# ----------------------------------------------------------------------------
# Jitted forward: x layout plumbing + pallas_call + output slice only
# ----------------------------------------------------------------------------
@functools.partial(jax.jit, static_argnames=("num_output",))
def lstm_base_forward(x, packed, *, num_output):
    """x: (B, T, num_uid, num_feat) float32 -> (B, T, num_output) float32."""
    B, T, U, F = x.shape
    L, BP, H = packed["h0"].shape
    G = 4 * H
    K0P = packed["wih0"].shape[0]
    NOUT_PAD = packed["wf"].shape[1]

    # Input: time-major, batch-padded, (feat, uid) flattened, lane-padded to K0P.
    xt = jnp.transpose(x, (1, 0, 3, 2)).reshape(T, B, F * U)      # (T, B, F*U)
    xt = jnp.pad(xt, ((0, 0), (0, BP - B), (0, K0P - F * U)))     # (T, BP, K0P)
    x0 = xt.reshape(T * BP, K0P)

    flops = (2 * T * BP * K0P * G                   # hoisted layer-0 projection
             + 2 * L * T * BP * H * G               # recurrent matmuls
             + 2 * (L - 1) * T * BP * H * G         # in-chain input projections
             + 2 * T * BP * H * NOUT_PAD)           # fc
    transcendentals = L * T * BP * (G + H)
    bytes_accessed = (x0.size * 4
                      + packed["wih0"].size * 2 + packed["wih"].size * 2
                      + packed["whh"].size * 2 + packed["bias"].size * 4
                      + packed["h0"].size * 4 + packed["c0"].size * 4
                      + packed["wf"].size * 2 + packed["bf"].size * 4
                      + T * BP * NOUT_PAD * 4)

    out_flat = pl.pallas_call(
        _fused_lstm_kernel,
        out_shape=jax.ShapeDtypeStruct((T * BP, NOUT_PAD), jnp.float32),
        in_specs=[_VMEM] * 9,
        out_specs=_VMEM,
        scratch_shapes=[pltpu.VMEM((T * BP, G), jnp.float32)],
        cost_estimate=pl.CostEstimate(flops=flops,
                                      transcendentals=transcendentals,
                                      bytes_accessed=bytes_accessed),
    )(x0, packed["wih0"], packed["wih"], packed["whh"], packed["bias"],
      packed["h0"], packed["c0"], packed["wf"], packed["bf"])

    out = out_flat.reshape(T, BP, NOUT_PAD)[:, :B, :num_output]   # drop padding
    return jnp.transpose(out, (1, 0, 2))                          # (B, T, NOUT)


# ----------------------------------------------------------------------------
# Pure-JAX reference (original module math; same bf16-operand / f32-accum choice)
# ----------------------------------------------------------------------------
def _reference_forward(x, params, hiddens):
    w0, b0 = params["layer0"]
    stacks = [params["layer1"]] + list(params["layer2"])
    wf, bf = params["fc"]
    B, T, U, F = x.shape
    H = stacks[0][0][1].shape[0]

    def bdot(a, b):
        return jnp.dot(a.astype(jnp.bfloat16), b.astype(jnp.bfloat16),
                       preferred_element_type=jnp.float32)

    # layer0: transpose(2,3) -> Linear(U,1) -> Flatten
    seq = jnp.einsum("btuf,u->btf", x, w0[:, 0]) + b0[0, 0]
    for stack_i, stack in enumerate(stacks):
        h0, c0 = hiddens[stack_i]
        for li, (wih_t, whh_t, b) in enumerate(stack):
            h, c = h0[li], c0[li]
            outs = []
            for t in range(T):
                pre = bdot(seq[:, t], wih_t) + bdot(h, whh_t) + b
                i_g = jax.nn.sigmoid(pre[:, 0 * H:1 * H])
                f_g = jax.nn.sigmoid(pre[:, 1 * H:2 * H])
                g_g = jnp.tanh(pre[:, 2 * H:3 * H])
                o_g = jax.nn.sigmoid(pre[:, 3 * H:4 * H])
                c = f_g * c + i_g * g_g
                h = o_g * jnp.tanh(c)
                outs.append(h)
            seq = jnp.stack(outs, axis=1)
    y = bdot(seq.reshape(B * T, H), wf).reshape(B, T, -1) + bf
    return y


# ----------------------------------------------------------------------------
# Parameter / hidden-state initialization (deterministic, synthetic)
# ----------------------------------------------------------------------------
def init_linear_params(key, in_features, out_features):
    k = 1.0 / jnp.sqrt(jnp.float32(in_features))
    k1, k2 = jax.random.split(key)
    # stored already transposed for the kernel: (in, out)
    w = jax.random.uniform(k1, (in_features, out_features), jnp.float32, -k, k)
    b = jax.random.uniform(k2, (1, out_features), jnp.float32, -k, k)
    return w, b


def init_lstm_params(key, input_size, hidden_size, num_layers):
    """Per-layer params pre-arranged for the kernel:
       (W_ih^T (D_in,4H), W_hh^T (H,4H), b_ih+b_hh (1,4H))."""
    k = 1.0 / jnp.sqrt(jnp.float32(hidden_size))
    layers = []
    for l in range(num_layers):
        d_in = input_size if l == 0 else hidden_size
        key, k1, k2, k3, k4 = jax.random.split(key, 5)
        w_ih = jax.random.uniform(k1, (4 * hidden_size, d_in), jnp.float32, -k, k)
        w_hh = jax.random.uniform(k2, (4 * hidden_size, hidden_size), jnp.float32, -k, k)
        b_ih = jax.random.uniform(k3, (4 * hidden_size,), jnp.float32, -k, k)
        b_hh = jax.random.uniform(k4, (4 * hidden_size,), jnp.float32, -k, k)
        layers.append((w_ih.T, w_hh.T, (b_ih + b_hh)[None, :]))
    return layers


# ----------------------------------------------------------------------------
if __name__ == "__main__":
    # Module hyper-parameters (small, consistent with the forward pass).
    num_feat, num_uid, num_output = 4, 6, 3
    num_blocks, num_layers, width = 2, 2, 32
    batch_size, time_length = 2, 7   # self.time_length = 7

    root = jax.random.PRNGKey(0)
    k_x, k_l0, k_l1, k_fc, k_blocks, k_hidden = jax.random.split(root, 6)

    # Input: (B, T, num_uid, num_feat)
    x = jax.random.normal(
        k_x, (batch_size, time_length, num_uid, num_feat), jnp.float32
    )

    params = {
        "layer0": init_linear_params(k_l0, num_uid, 1),
        "layer1": init_lstm_params(k_l1, num_feat, width, num_layers),
        "layer2": [
            init_lstm_params(kb, width, width, num_layers)
            for kb in jax.random.split(k_blocks, num_blocks)
        ],
        "fc": init_linear_params(k_fc, width, num_output),
    }

    # TODO(synk): reference re-samples hidden states each forward via torch.randn;
    # here they come from a fixed PRNGKey.
    hidden_shape = (num_layers, batch_size, width)
    hkeys = jax.random.split(k_hidden, 2 * (1 + num_blocks))
    hiddens = [
        (
            jax.random.normal(hkeys[2 * i], hidden_shape, jnp.float32),
            jax.random.normal(hkeys[2 * i + 1], hidden_shape, jnp.float32),
        )
        for i in range(1 + num_blocks)
    ]

    # One-time parameter packing, OUTSIDE the jitted per-call forward path.
    packed = pack_params(params, hiddens, batch_size=batch_size)

    out = lstm_base_forward(x, packed, num_output=num_output)
    out = jax.block_until_ready(out)

    assert out.shape == (batch_size, time_length, num_output), out.shape
    assert out.dtype == jnp.float32
    assert bool(jnp.all(jnp.isfinite(out)))

    ref = _reference_forward(x, params, hiddens)
    assert bool(jnp.allclose(out, ref, atol=3e-2, rtol=3e-2)), \
        float(jnp.max(jnp.abs(out - ref)))

    print("KERNEL_OK")
</pallas_src>

<mosaic_0001>
module attributes {stable_mosaic.version = 11 : i64} {
  func.func @_fused_lstm_kernel(%arg0: memref<56x128xf32, #tpu.memory_space<vmem>>, %arg1: memref<128x128xbf16, #tpu.memory_space<vmem>>, %arg2: memref<5x32x128xbf16, #tpu.memory_space<vmem>>, %arg3: memref<6x32x128xbf16, #tpu.memory_space<vmem>>, %arg4: memref<6x1x128xf32, #tpu.memory_space<vmem>>, %arg5: memref<6x8x32xf32, #tpu.memory_space<vmem>>, %arg6: memref<6x8x32xf32, #tpu.memory_space<vmem>>, %arg7: memref<32x128xbf16, #tpu.memory_space<vmem>>, %arg8: memref<1x128xf32, #tpu.memory_space<vmem>>, %arg9: memref<56x128xf32, #tpu.memory_space<vmem>>, %arg10: memref<56x128xf32, #tpu.memory_space<vmem>>) attributes {dimension_semantics = [], scalar_prefetch = 0 : i64, scratch_operands = 1 : i64, tpu.core_type = #tpu.core_type<tc>} {
    %0 = tpu.iota {dimensions = array<i32: 1>} : vector<8x128xi32>
    %c64_i32 = arith.constant 64 : i32
    %1 = vector.broadcast %c64_i32 : i32 to vector<8x128xi32>
    %2 = arith.cmpi sge, %0, %1 : vector<8x128xi32>
    %c96_i32 = arith.constant 96 : i32
    %3 = vector.broadcast %c96_i32 : i32 to vector<8x128xi32>
    %4 = arith.cmpi slt, %0, %3 : vector<8x128xi32>
    %5 = arith.andi %2, %4 : vector<8x128xi1>
    %c0 = arith.constant 0 : index
    %c0_0 = arith.constant 0 : index
    %6 = vector.load %arg0[%c0, %c0_0] : memref<56x128xf32, #tpu.memory_space<vmem>>, vector<56x128xf32>
    %7 = arith.truncf %6 : vector<56x128xf32> to vector<56x128xbf16>
    %c0_1 = arith.constant 0 : index
    %c0_2 = arith.constant 0 : index
    %8 = vector.load %arg1[%c0_1, %c0_2] : memref<128x128xbf16, #tpu.memory_space<vmem>>, vector<128x128xbf16>
    %cst = arith.constant dense<0.000000e+00> : vector<56x128xf32>
    %9 = tpu.matmul %7, %8, %cst {dimension_numbers = #tpu.dot_dimension_numbers<[1], [0], [0], [1], [0, 0, 1, 1], [], []>} : vector<56x128xbf16>, vector<128x128xbf16>, vector<56x128xf32> -> vector<56x128xf32>
    %c0_3 = arith.constant 0 : index
    %c0_4 = arith.constant 0 : index
    %c0_5 = arith.constant 0 : index
    %10 = vector.load %arg4[%c0_3, %c0_4, %c0_5] : memref<6x1x128xf32, #tpu.memory_space<vmem>>, vector<1x1x128xf32>
    %11 = vector.shape_cast %10 : vector<1x1x128xf32> to vector<1x128xf32>
    %12 = vector.broadcast %11 : vector<1x128xf32> to vector<56x128xf32>
    %13 = arith.addf %9, %12 : vector<56x128xf32>
    %c0_6 = arith.constant 0 : index
    %c0_7 = arith.constant 0 : index
    %14 = vector.load %arg10[%c0_6, %c0_7] : memref<56x128xf32, #tpu.memory_space<vmem>>, vector<56x128xf32>
    tpu.vector_store %arg10[%c0_6, %c0_7], %13 {strides = array<i32>} : memref<56x128xf32, #tpu.memory_space<vmem>>, vector<56x128xf32>,
    %c0_8 = arith.constant 0 : index
    %c0_9 = arith.constant 0 : index
    %15 = vector.load %arg7[%c0_8, %c0_9] : memref<32x128xbf16, #tpu.memory_space<vmem>>, vector<32x128xbf16>
    %c0_10 = arith.constant 0 : index
    %c0_11 = arith.constant 0 : index
    %16 = vector.load %arg8[%c0_10, %c0_11] : memref<1x128xf32, #tpu.memory_space<vmem>>, vector<1x128xf32>
    %c0_12 = arith.constant 0 : index
    %c0_13 = arith.constant 0 : index
    %c0_14 = arith.constant 0 : index
    %17 = vector.load %arg5[%c0_12, %c0_13, %c0_14] : memref<6x8x32xf32, #tpu.memory_space<vmem>>, vector<1x8x32xf32>
    %18 = vector.shape_cast %17 : vector<1x8x32xf32> to vector<8x32xf32>
    %c1 = arith.constant 1 : index
    %c0_15 = arith.constant 0 : index
    %c0_16 = arith.constant 0 : index
    %19 = vector.load %arg5[%c1, %c0_15, %c0_16] : memref<6x8x32xf32, #tpu.memory_space<vmem>>, vector<1x8x32xf32>
    %20 = vector.shape_cast %19 : vector<1x8x32xf32> to vector<8x32xf32>
    %c2 = arith.constant 2 : index
    %c0_17 = arith.constant 0 : index
    %c0_18 = arith.constant 0 : index
    %21 = vector.load %arg5[%c2, %c0_17, %c0_18] : memref<6x8x32xf32, #tpu.memory_space<vmem>>, vector<1x8x32xf32>
    %22 = vector.shape_cast %21 : vector<1x8x32xf32> to vector<8x32xf32>
    %c3 = arith.constant 3 : index
    %c0_19 = arith.constant 0 : index
    %c0_20 = arith.constant 0 : index
    %23 = vector.load %arg5[%c3, %c0_19, %c0_20] : memref<6x8x32xf32, #tpu.memory_space<vmem>>, vector<1x8x32xf32>
    %24 = vector.shape_cast %23 : vector<1x8x32xf32> to vector<8x32xf32>
    %c4 = arith.constant 4 : index
    %c0_21 = arith.constant 0 : index
    %c0_22 = arith.constant 0 : index
    %25 = vector.load %arg5[%c4, %c0_21, %c0_22] : memref<6x8x32xf32, #tpu.memory_space<vmem>>, vector<1x8x32xf32>
    %26 = vector.shape_cast %25 : vector<1x8x32xf32> to vector<8x32xf32>
    %c5 = arith.constant 5 : index
    %c0_23 = arith.constant 0 : index
    %c0_24 = arith.constant 0 : index
    %27 = vector.load %arg5[%c5, %c0_23, %c0_24] : memref<6x8x32xf32, #tpu.memory_space<vmem>>, vector<1x8x32xf32>
    %28 = vector.shape_cast %27 : vector<1x8x32xf32> to vector<8x32xf32>
    %c0_25 = arith.constant 0 : index
    %c0_26 = arith.constant 0 : index
    %c0_27 = arith.constant 0 : index
    %29 = vector.load %arg6[%c0_25, %c0_26, %c0_27] : memref<6x8x32xf32, #tpu.memory_space<vmem>>, vector<1x8x32xf32>
    %30 = vector.shape_cast %29 : vector<1x8x32xf32> to vector<8x32xf32>
    %c1_28 = arith.constant 1 : index
    %c0_29 = arith.constant 0 : index
    %c0_30 = arith.constant 0 : index
    %31 = vector.load %arg6[%c1_28, %c0_29, %c0_30] : memref<6x8x32xf32, #tpu.memory_space<vmem>>, vector<1x8x32xf32>
    %32 = vector.shape_cast %31 : vector<1x8x32xf32> to vector<8x32xf32>
    %c2_31 = arith.constant 2 : index
    %c0_32 = arith.constant 0 : index
    %c0_33 = arith.constant 0 : index
    %33 = vector.load %arg6[%c2_31, %c0_32, %c0_33] : memref<6x8x32xf32, #tpu.memory_space<vmem>>, vector<1x8x32xf32>
    %34 = vector.shape_cast %33 : vector<1x8x32xf32> to vector<8x32xf32>
    %c3_34 = arith.constant 3 : index
    %c0_35 = arith.constant 0 : index
    %c0_36 = arith.constant 0 : index
    %35 = vector.load %arg6[%c3_34, %c0_35, %c0_36] : memref<6x8x32xf32, #tpu.memory_space<vmem>>, vector<1x8x32xf32>
    %36 = vector.shape_cast %35 : vector<1x8x32xf32> to vector<8x32xf32>
    %c4_37 = arith.constant 4 : index
    %c0_38 = arith.constant 0 : index
    %c0_39 = arith.constant 0 : index
    %37 = vector.load %arg6[%c4_37, %c0_38, %c0_39] : memref<6x8x32xf32, #tpu.memory_space<vmem>>, vector<1x8x32xf32>
    %38 = vector.shape_cast %37 : vector<1x8x32xf32> to vector<8x32xf32>
    %c5_40 = arith.constant 5 : index
    %c0_41 = arith.constant 0 : index
    %c0_42 = arith.constant 0 : index
    %39 = vector.load %arg6[%c5_40, %c0_41, %c0_42] : memref<6x8x32xf32, #tpu.memory_space<vmem>>, vector<1x8x32xf32>
    %40 = vector.shape_cast %39 : vector<1x8x32xf32> to vector<8x32xf32>
    %41 = arith.truncf %18 : vector<8x32xf32> to vector<8x32xbf16>
    %c0_43 = arith.constant 0 : index
    %c0_44 = arith.constant 0 : index
    %42 = vector.load %arg10[%c0_43, %c0_44] : memref<56x128xf32, #tpu.memory_space<vmem>>, vector<8x128xf32>
    %c0_45 = arith.constant 0 : index
    %c0_46 = arith.constant 0 : index
    %c0_47 = arith.constant 0 : index
    %43 = vector.load %arg3[%c0_45, %c0_46, %c0_47] : memref<6x32x128xbf16, #tpu.memory_space<vmem>>, vector<1x32x128xbf16>
    %44 = vector.shape_cast %43 : vector<1x32x128xbf16> to vector<32x128xbf16>
    %cst_48 = arith.constant dense<0.000000e+00> : vector<8x128xf32>
    %45 = tpu.matmul %41, %44, %cst_48 {dimension_numbers = #tpu.dot_dimension_numbers<[1], [0], [0], [1], [0, 0, 1, 1], [], []>} : vector<8x32xbf16>, vector<32x128xbf16>, vector<8x128xf32> -> vector<8x128xf32>
    %46 = arith.addf %42, %45 : vector<8x128xf32>
    %47 = arith.negf %46 : vector<8x128xf32>
    %48 = math.exp %47 : vector<8x128xf32>
    %cst_49 = arith.constant 1.000000e+00 : f32
    %49 = vector.broadcast %cst_49 : f32 to vector<8x128xf32>
    %50 = arith.addf %49, %48 : vector<8x128xf32>
    %51 = arith.divf %49, %50 : vector<8x128xf32>
    %cst_50 = arith.constant 2.000000e+00 : f32
    %52 = vector.broadcast %cst_50 : f32 to vector<8x128xf32>
    %53 = arith.mulf %52, %51 : vector<8x128xf32>
    %cst_51 = arith.constant 1.000000e+00 : f32
    %54 = vector.broadcast %cst_51 : f32 to vector<8x128xf32>
    %55 = arith.subf %53, %54 : vector<8x128xf32>
    %56 = arith.select %5, %55, %51 : vector<8x128xi1>, vector<8x128xf32>
    %57 = vector.extract_strided_slice %56 {offsets = [0, 0], sizes = [8, 32], strides = [1, 1]} : vector<8x128xf32> to vector<8x32xf32>
    %58 = vector.extract_strided_slice %56 {offsets = [0, 32], sizes = [8, 32], strides = [1, 1]} : vector<8x128xf32> to vector<8x32xf32>
    %59 = vector.extract_strided_slice %56 {offsets = [0, 64], sizes = [8, 32], strides = [1, 1]} : vector<8x128xf32> to vector<8x32xf32>
    %60 = vector.extract_strided_slice %56 {offsets = [0, 96], sizes = [8, 32], strides = [1, 1]} : vector<8x128xf32> to vector<8x32xf32>
    %61 = arith.mulf %58, %30 : vector<8x32xf32>
    %62 = arith.mulf %57, %59 : vector<8x32xf32>
    %63 = arith.addf %61, %62 : vector<8x32xf32>
    %64 = math.tanh %63 : vector<8x32xf32>
    %65 = arith.mulf %60, %64 : vector<8x32xf32>
    %66 = arith.truncf %65 : vector<8x32xf32> to vector<8x32xbf16>
    %c8 = arith.constant 8 : index
    %c0_52 = arith.constant 0 : index
    %67 = vector.load %arg10[%c8, %c0_52] : memref<56x128xf32, #tpu.memory_space<vmem>>, vector<8x128xf32>
    %c0_53 = arith.constant 0 : index
    %c0_54 = arith.constant 0 : index
    %c0_55 = arith.constant 0 : index
    %68 = vector.load %arg3[%c0_53, %c0_54, %c0_55] : memref<6x32x128xbf16, #tpu.memory_space<vmem>>, vector<1x32x128xbf16>
    %69 = vector.shape_cast %68 : vector<1x32x128xbf16> to vector<32x128xbf16>
    %cst_56 = arith.constant dense<0.000000e+00> : vector<8x128xf32>
    %70 = tpu.matmul %66, %69, %cst_56 {dimension_numbers = #tpu.dot_dimension_numbers<[1], [0], [0], [1], [0, 0, 1, 1], [], []>} : vector<8x32xbf16>, vector<32x128xbf16>, vector<8x128xf32> -> vector<8x128xf32>
    %71 = arith.addf %67, %70 : vector<8x128xf32>
    %72 = arith.negf %71 : vector<8x128xf32>
    %73 = math.exp %72 : vector<8x128xf32>
    %cst_57 = arith.constant 1.000000e+00 : f32
    %74 = vector.broadcast %cst_57 : f32 to vector<8x128xf32>
    %75 = arith.addf %74, %73 : vector<8x128xf32>
    %76 = arith.divf %74, %75 : vector<8x128xf32>
    %cst_58 = arith.constant 2.000000e+00 : f32
    %77 = vector.broadcast %cst_58 : f32 to vector<8x128xf32>
    %78 = arith.mulf %77, %76 : vector<8x128xf32>
    %cst_59 = arith.constant 1.000000e+00 : f32
    %79 = vector.broadcast %cst_59 : f32 to vector<8x128xf32>
    %80 = arith.subf %78, %79 : vector<8x128xf32>
    %81 = arith.select %5, %80, %76 : vector<8x128xi1>, vector<8x128xf32>
    %82 = vector.extract_strided_slice %81 {offsets = [0, 0], sizes = [8, 32], strides = [1, 1]} : vector<8x128xf32> to vector<8x32xf32>
    %83 = vector.extract_strided_slice %81 {offsets = [0, 32], sizes = [8, 32], strides = [1, 1]} : vector<8x128xf32> to vector<8x32xf32>
    %84 = vector.extract_strided_slice %81 {offsets = [0, 64], sizes = [8, 32], strides = [1, 1]} : vector<8x128xf32> to vector<8x32xf32>
    %85 = vector.extract_strided_slice %81 {offsets = [0, 96], sizes = [8, 32], strides = [1, 1]} : vector<8x128xf32> to vector<8x32xf32>
    %86 = arith.mulf %83, %63 : vector<8x32xf32>
    %87 = arith.mulf %82, %84 : vector<8x32xf32>
    %88 = arith.addf %86, %87 : vector<8x32xf32>
    %89 = math.tanh %88 : vector<8x32xf32>
    %90 = arith.mulf %85, %89 : vector<8x32xf32>
    %91 = arith.truncf %20 : vector<8x32xf32> to vector<8x32xbf16>
    %92 = arith.truncf %65 : vector<8x32xf32> to vector<8x32xbf16>
    %c1_60 = arith.constant 1 : index
    %c0_61 = arith.constant 0 : index
    %c0_62 = arith.constant 0 : index
    %93 = vector.load %arg4[%c1_60, %c0_61, %c0_62] : memref<6x1x128xf32, #tpu.memory_space<vmem>>, vector<1x1x128xf32>
    %94 = vector.shape_cast %93 : vector<1x1x128xf32> to vector<1x128xf32>
    %c0_63 = arith.constant 0 : index
    %c0_64 = arith.constant 0 : index
    %c0_65 = arith.constant 0 : index
    %95 = vector.load %arg2[%c0_63, %c0_64, %c0_65] : memref<5x32x128xbf16, #tpu.memory_space<vmem>>, vector<1x32x128xbf16>
    %96 = vector.shape_cast %95 : vector<1x32x128xbf16> to vector<32x128xbf16>
    %cst_66 = arith.constant dense<0.000000e+00> : vector<8x128xf32>
    %97 = tpu.matmul %92, %96, %cst_66 {dimension_numbers = #tpu.dot_dimension_numbers<[1], [0], [0], [1], [0, 0, 1, 1], [], []>} : vector<8x32xbf16>, vector<32x128xbf16>, vector<8x128xf32> -> vector<8x128xf32>
    %98 = vector.broadcast %94 : vector<1x128xf32> to vector<8x128xf32>
    %99 = arith.addf %98, %97 : vector<8x128xf32>
    %c1_67 = arith.constant 1 : index
    %c0_68 = arith.constant 0 : index
    %c0_69 = arith.constant 0 : index
    %100 = vector.load %arg3[%c1_67, %c0_68, %c0_69] : memref<6x32x128xbf16, #tpu.memory_space<vmem>>, vector<1x32x128xbf16>
    %101 = vector.shape_cast %100 : vector<1x32x128xbf16> to vector<32x128xbf16>
    %cst_70 = arith.constant dense<0.000000e+00> : vector<8x128xf32>
    %102 = tpu.matmul %91, %101, %cst_70 {dimension_numbers = #tpu.dot_dimension_numbers<[1], [0], [0], [1], [0, 0, 1, 1], [], []>} : vector<8x32xbf16>, vector<32x128xbf16>, vector<8x128xf32> -> vector<8x128xf32>
    %103 = arith.addf %99, %102 : vector<8x128xf32>
    %104 = arith.negf %103 : vector<8x128xf32>
    %105 = math.exp %104 : vector<8x128xf32>
    %cst_71 = arith.constant 1.000000e+00 : f32
    %106 = vector.broadcast %cst_71 : f32 to vector<8x128xf32>
    %107 = arith.addf %106, %105 : vector<8x128xf32>
    %108 = arith.divf %106, %107 : vector<8x128xf32>
    %cst_72 = arith.constant 2.000000e+00 : f32
    %109 = vector.broadcast %cst_72 : f32 to vector<8x128xf32>
    %110 = arith.mulf %109, %108 : vector<8x128xf32>
    %cst_73 = arith.constant 1.000000e+00 : f32
    %111 = vector.broadcast %cst_73 : f32 to vector<8x128xf32>
    %112 = arith.subf %110, %111 : vector<8x128xf32>
    %113 = arith.select %5, %112, %108 : vector<8x128xi1>, vector<8x128xf32>
    %114 = vector.extract_strided_slice %113 {offsets = [0, 0], sizes = [8, 32], strides = [1, 1]} : vector<8x128xf32> to vector<8x32xf32>
    %115 = vector.extract_strided_slice %113 {offsets = [0, 32], sizes = [8, 32], strides = [1, 1]} : vector<8x128xf32> to vector<8x32xf32>
    %116 = vector.extract_strided_slice %113 {offsets = [0, 64], sizes = [8, 32], strides = [1, 1]} : vector<8x128xf32> to vector<8x32xf32>
    %117 = vector.extract_strided_slice %113 {offsets = [0, 96], sizes = [8, 32], strides = [1, 1]} : vector<8x128xf32> to vector<8x32xf32>
    %118 = arith.mulf %115, %32 : vector<8x32xf32>
    %119 = arith.mulf %114, %116 : vector<8x32xf32>
    %120 = arith.addf %118, %119 : vector<8x32xf32>
    %121 = math.tanh %120 : vector<8x32xf32>
    %122 = arith.mulf %117, %121 : vector<8x32xf32>
    %123 = arith.truncf %90 : vector<8x32xf32> to vector<8x32xbf16>
    %c16 = arith.constant 16 : index
    %c0_74 = arith.constant 0 : index
    %124 = vector.load %arg10[%c16, %c0_74] : memref<56x128xf32, #tpu.memory_space<vmem>>, vector<8x128xf32>
    %c0_75 = arith.constant 0 : index
    %c0_76 = arith.constant 0 : index
    %c0_77 = arith.constant 0 : index
    %125 = vector.load %arg3[%c0_75, %c0_76, %c0_77] : memref<6x32x128xbf16, #tpu.memory_space<vmem>>, vector<1x32x128xbf16>
    %126 = vector.shape_cast %125 : vector<1x32x128xbf16> to vector<32x128xbf16>
    %cst_78 = arith.constant dense<0.000000e+00> : vector<8x128xf32>
    %127 = tpu.matmul %123, %126, %cst_78 {dimension_numbers = #tpu.dot_dimension_numbers<[1], [0], [0], [1], [0, 0, 1, 1], [], []>} : vector<8x32xbf16>, vector<32x128xbf16>, vector<8x128xf32> -> vector<8x128xf32>
    %128 = arith.addf %124, %127 : vector<8x128xf32>
    %129 = arith.negf %128 : vector<8x128xf32>
    %130 = math.exp %129 : vector<8x128xf32>
    %cst_79 = arith.constant 1.000000e+00 : f32
    %131 = vector.broadcast %cst_79 : f32 to vector<8x128xf32>
    %132 = arith.addf %131, %130 : vector<8x128xf32>
    %133 = arith.divf %131, %132 : vector<8x128xf32>
    %cst_80 = arith.constant 2.000000e+00 : f32
    %134 = vector.broadcast %cst_80 : f32 to vector<8x128xf32>
    %135 = arith.mulf %134, %133 : vector<8x128xf32>
    %cst_81 = arith.constant 1.000000e+00 : f32
    %136 = vector.broadcast %cst_81 : f32 to vector<8x128xf32>
    %137 = arith.subf %135, %136 : vector<8x128xf32>
    %138 = arith.select %5, %137, %133 : vector<8x128xi1>, vector<8x128xf32>
    %139 = vector.extract_strided_slice %138 {offsets = [0, 0], sizes = [8, 32], strides = [1, 1]} : vector<8x128xf32> to vector<8x32xf32>
    %140 = vector.extract_strided_slice %138 {offsets = [0, 32], sizes = [8, 32], strides = [1, 1]} : vector<8x128xf32> to vector<8x32xf32>
    %141 = vector.extract_strided_slice %138 {offsets = [0, 64], sizes = [8, 32], strides = [1, 1]} : vector<8x128xf32> to vector<8x32xf32>
    %142 = vector.extract_strided_slice %138 {offsets = [0, 96], sizes = [8, 32], strides = [1, 1]} : vector<8x128xf32> to vector<8x32xf32>
    %143 = arith.mulf %140, %88 : vector<8x32xf32>
    %144 = arith.mulf %139, %141 : vector<8x32xf32>
    %145 = arith.addf %143, %144 : vector<8x32xf32>
    %146 = math.tanh %145 : vector<8x32xf32>
    %147 = arith.mulf %142, %146 : vector<8x32xf32>
    %148 = arith.truncf %122 : vector<8x32xf32> to vector<8x32xbf16>
    %149 = arith.truncf %90 : vector<8x32xf32> to vector<8x32xbf16>
    %c1_82 = arith.constant 1 : index
    %c0_83 = arith.constant 0 : index
    %c0_84 = arith.constant 0 : index
    %150 = vector.load %arg4[%c1_82, %c0_83, %c0_84] : memref<6x1x128xf32, #tpu.memory_space<vmem>>, vector<1x1x128xf32>
    %151 = vector.shape_cast %150 : vector<1x1x128xf32> to vector<1x128xf32>
    %c0_85 = arith.constant 0 : index
    %c0_86 = arith.constant 0 : index
    %c0_87 = arith.constant 0 : index
    %152 = vector.load %arg2[%c0_85, %c0_86, %c0_87] : memref<5x32x128xbf16, #tpu.memory_space<vmem>>, vector<1x32x128xbf16>
    %153 = vector.shape_cast %152 : vector<1x32x128xbf16> to vector<32x128xbf16>
    %cst_88 = arith.constant dense<0.000000e+00> : vector<8x128xf32>
    %154 = tpu.matmul %149, %153, %cst_88 {dimension_numbers = #tpu.dot_dimension_numbers<[1], [0], [0], [1], [0, 0, 1, 1], [], []>} : vector<8x32xbf16>, vector<32x128xbf16>, vector<8x128xf32> -> vector<8x128xf32>
    %155 = vector.broadcast %151 : vector<1x128xf32> to vector<8x128xf32>
    %156 = arith.addf %155, %154 : vector<8x128xf32>
    %c1_89 = arith.constant 1 : index
    %c0_90 = arith.constant 0 : index
    %c0_91 = arith.constant 0 : index
    %157 = vector.load %arg3[%c1_89, %c0_90, %c0_91] : memref<6x32x128xbf16, #tpu.memory_space<vmem>>, vector<1x32x128xbf16>
    %158 = vector.shape_cast %157 : vector<1x32x128xbf16> to vector<32x128xbf16>
    %cst_92 = arith.constant dense<0.000000e+00> : vector<8x128xf32>
    %159 = tpu.matmul %148, %158, %cst_92 {dimension_numbers = #tpu.dot_dimension_numbers<[1], [0], [0], [1], [0, 0, 1, 1], [], []>} : vector<8x32xbf16>, vector<32x128xbf16>, vector<8x128xf32> -> vector<8x128xf32>
    %160 = arith.addf %156, %159 : vector<8x128xf32>
    %161 = arith.negf %160 : vector<8x128xf32>
    %162 = math.exp %161 : vector<8x128xf32>
    %cst_93 = arith.constant 1.000000e+00 : f32
    %163 = vector.broadcast %cst_93 : f32 to vector<8x128xf32>
    %164 = arith.addf %163, %162 : vector<8x128xf32>
    %165 = arith.divf %163, %164 : vector<8x128xf32>
    %cst_94 = arith.constant 2.000000e+00 : f32
    %166 = vector.broadcast %cst_94 : f32 to vector<8x128xf32>
    %167 = arith.mulf %166, %165 : vector<8x128xf32>
    %cst_95 = arith.constant 1.000000e+00 : f32
    %168 = vector.broadcast %cst_95 : f32 to vector<8x128xf32>
    %169 = arith.subf %167, %168 : vector<8x128xf32>
    %170 = arith.select %5, %169, %165 : vector<8x128xi1>, vector<8x128xf32>
    %171 = vector.extract_strided_slice %170 {offsets = [0, 0], sizes = [8, 32], strides = [1, 1]} : vector<8x128xf32> to vector<8x32xf32>
    %172 = vector.extract_strided_slice %170 {offsets = [0, 32], sizes = [8, 32], strides = [1, 1]} : vector<8x128xf32> to vector<8x32xf32>
    %173 = vector.extract_strided_slice %170 {offsets = [0, 64], sizes = [8, 32], strides = [1, 1]} : vector<8x128xf32> to vector<8x32xf32>
    %174 = vector.extract_strided_slice %170 {offsets = [0, 96], sizes = [8, 32], strides = [1, 1]} : vector<8x128xf32> to vector<8x32xf32>
    %175 = arith.mulf %172, %120 : vector<8x32xf32>
    %176 = arith.mulf %171, %173 : vector<8x32xf32>
    %177 = arith.addf %175, %176 : vector<8x32xf32>
    %178 = math.tanh %177 : vector<8x32xf32>
    %179 = arith.mulf %174, %178 : vector<8x32xf32>
    %180 = arith.truncf %22 : vector<8x32xf32> to vector<8x32xbf16>
    %181 = arith.truncf %122 : vector<8x32xf32> to vector<8x32xbf16>
    %c2_96 = arith.constant 2 : index
    %c0_97 = arith.constant 0 : index
    %c0_98 = arith.constant 0 : index
    %182 = vector.load %arg4[%c2_96, %c0_97, %c0_98] : memref<6x1x128xf32, #tpu.memory_space<vmem>>, vector<1x1x128xf32>
    %183 = vector.shape_cast %182 : vector<1x1x128xf32> to vector<1x128xf32>
    %c1_99 = arith.constant 1 : index
    %c0_100 = arith.constant 0 : index
    %c0_101 = arith.constant 0 : index
    %184 = vector.load %arg2[%c1_99, %c0_100, %c0_101] : memref<5x32x128xbf16, #tpu.memory_space<vmem>>, vector<1x32x128xbf16>
    %185 = vector.shape_cast %184 : vector<1x32x128xbf16> to vector<32x128xbf16>
    %cst_102 = arith.constant dense<0.000000e+00> : vector<8x128xf32>
    %186 = tpu.matmul %181, %185, %cst_102 {dimension_numbers = #tpu.dot_dimension_numbers<[1], [0], [0], [1], [0, 0, 1, 1], [], []>} : vector<8x32xbf16>, vector<32x128xbf16>, vector<8x128xf32> -> vector<8x128xf32>
    %187 = vector.broadcast %183 : vector<1x128xf32> to vector<8x128xf32>
    %188 = arith.addf %187, %186 : vector<8x128xf32>
    %c2_103 = arith.constant 2 : index
    %c0_104 = arith.constant 0 : index
    %c0_105 = arith.constant 0 : index
    %189 = vector.load %arg3[%c2_103, %c0_104, %c0_105] : memref<6x32x128xbf16, #tpu.memory_space<vmem>>, vector<1x32x128xbf16>
    %190 = vector.shape_cast %189 : vector<1x32x128xbf16> to vector<32x128xbf16>
    %cst_106 = arith.constant dense<0.000000e+00> : vector<8x128xf32>
    %191 = tpu.matmul %180, %190, %cst_106 {dimension_numbers = #tpu.dot_dimension_numbers<[1], [0], [0], [1], [0, 0, 1, 1], [], []>} : vector<8x32xbf16>, vector<32x128xbf16>, vector<8x128xf32> -> vector<8x128xf32>
    %192 = arith.addf %188, %191 : vector<8x128xf32>
    %193 = arith.negf %192 : vector<8x128xf32>
    %194 = math.exp %193 : vector<8x128xf32>
    %cst_107 = arith.constant 1.000000e+00 : f32
    %195 = vector.broadcast %cst_107 : f32 to vector<8x128xf32>
    %196 = arith.addf %195, %194 : vector<8x128xf32>
    %197 = arith.divf %195, %196 : vector<8x128xf32>
    %cst_108 = arith.constant 2.000000e+00 : f32
    %198 = vector.broadcast %cst_108 : f32 to vector<8x128xf32>
    %199 = arith.mulf %198, %197 : vector<8x128xf32>
    %cst_109 = arith.constant 1.000000e+00 : f32
    %200 = vector.broadcast %cst_109 : f32 to vector<8x128xf32>
    %201 = arith.subf %199, %200 : vector<8x128xf32>
    %202 = arith.select %5, %201, %197 : vector<8x128xi1>, vector<8x128xf32>
    %203 = vector.extract_strided_slice %202 {offsets = [0, 0], sizes = [8, 32], strides = [1, 1]} : vector<8x128xf32> to vector<8x32xf32>
    %204 = vector.extract_strided_slice %202 {offsets = [0, 32], sizes = [8, 32], strides = [1, 1]} : vector<8x128xf32> to vector<8x32xf32>
    %205 = vector.extract_strided_slice %202 {offsets = [0, 64], sizes = [8, 32], strides = [1, 1]} : vector<8x128xf32> to vector<8x32xf32>
    %206 = vector.extract_strided_slice %202 {offsets = [0, 96], sizes = [8, 32], strides = [1, 1]} : vector<8x128xf32> to vector<8x32xf32>
    %207 = arith.mulf %204, %34 : vector<8x32xf32>
    %208 = arith.mulf %203, %205 : vector<8x32xf32>
    %209 = arith.addf %207, %208 : vector<8x32xf32>
    %210 = math.tanh %209 : vector<8x32xf32>
    %211 = arith.mulf %206, %210 : vector<8x32xf32>
    %212 = arith.truncf %147 : vector<8x32xf32> to vector<8x32xbf16>
    %c24 = arith.constant 24 : index
    %c0_110 = arith.constant 0 : index
    %213 = vector.load %arg10[%c24, %c0_110] : memref<56x128xf32, #tpu.memory_space<vmem>>, vector<8x128xf32>
    %c0_111 = arith.constant 0 : index
    %c0_112 = arith.constant 0 : index
    %c0_113 = arith.constant 0 : index
    %214 = vector.load %arg3[%c0_111, %c0_112, %c0_113] : memref<6x32x128xbf16, #tpu.memory_space<vmem>>, vector<1x32x128xbf16>
    %215 = vector.shape_cast %214 : vector<1x32x128xbf16> to vector<32x128xbf16>
    %cst_114 = arith.constant dense<0.000000e+00> : vector<8x128xf32>
    %216 = tpu.matmul %212, %215, %cst_114 {dimension_numbers = #tpu.dot_dimension_numbers<[1], [0], [0], [1], [0, 0, 1, 1], [], []>} : vector<8x32xbf16>, vector<32x128xbf16>, vector<8x128xf32> -> vector<8x128xf32>
    %217 = arith.addf %213, %216 : vector<8x128xf32>
    %218 = arith.negf %217 : vector<8x128xf32>
    %219 = math.exp %218 : vector<8x128xf32>
    %cst_115 = arith.constant 1.000000e+00 : f32
    %220 = vector.broadcast %cst_115 : f32 to vector<8x128xf32>
    %221 = arith.addf %220, %219 : vector<8x128xf32>
    %222 = arith.divf %220, %221 : vector<8x128xf32>
    %cst_116 = arith.constant 2.000000e+00 : f32
    %223 = vector.broadcast %cst_116 : f32 to vector<8x128xf32>
    %224 = arith.mulf %223, %222 : vector<8x128xf32>
    %cst_117 = arith.constant 1.000000e+00 : f32
    %225 = vector.broadcast %cst_117 : f32 to vector<8x128xf32>
    %226 = arith.subf %224, %225 : vector<8x128xf32>
    %227 = arith.select %5, %226, %222 : vector<8x128xi1>, vector<8x128xf32>
    %228 = vector.extract_strided_slice %227 {offsets = [0, 0], sizes = [8, 32], strides = [1, 1]} : vector<8x128xf32> to vector<8x32xf32>
    %229 = vector.extract_strided_slice %227 {offsets = [0, 32], sizes = [8, 32], strides = [1, 1]} : vector<8x128xf32> to vector<8x32xf32>
    %230 = vector.extract_strided_slice %227 {offsets = [0, 64], sizes = [8, 32], strides = [1, 1]} : vector<8x128xf32> to vector<8x32xf32>
    %231 = vector.extract_strided_slice %227 {offsets = [0, 96], sizes = [8, 32], strides = [1, 1]} : vector<8x128xf32> to vector<8x32xf32>
    %232 = arith.mulf %229, %145 : vector<8x32xf32>
    %233 = arith.mulf %228, %230 : vector<8x32xf32>
    %234 = arith.addf %232, %233 : vector<8x32xf32>
    %235 = math.tanh %234 : vector<8x32xf32>
    %236 = arith.mulf %231, %235 : vector<8x32xf32>
    %237 = arith.truncf %179 : vector<8x32xf32> to vector<8x32xbf16>
    %238 = arith.truncf %147 : vector<8x32xf32> to vector<8x32xbf16>
    %c1_118 = arith.constant 1 : index
    %c0_119 = arith.constant 0 : index
    %c0_120 = arith.constant 0 : index
    %239 = vector.load %arg4[%c1_118, %c0_119, %c0_120] : memref<6x1x128xf32, #tpu.memory_space<vmem>>, vector<1x1x128xf32>
    %240 = vector.shape_cast %239 : vector<1x1x128xf32> to vector<1x128xf32>
    %c0_121 = arith.constant 0 : index
    %c0_122 = arith.constant 0 : index
    %c0_123 = arith.constant 0 : index
    %241 = vector.load %arg2[%c0_121, %c0_122, %c0_123] : memref<5x32x128xbf16, #tpu.memory_space<vmem>>, vector<1x32x128xbf16>
    %242 = vector.shape_cast %241 : vector<1x32x128xbf16> to vector<32x128xbf16>
    %cst_124 = arith.constant dense<0.000000e+00> : vector<8x128xf32>
    %243 = tpu.matmul %238, %242, %cst_124 {dimension_numbers = #tpu.dot_dimension_numbers<[1], [0], [0], [1], [0, 0, 1, 1], [], []>} : vector<8x32xbf16>, vector<32x128xbf16>, vector<8x128xf32> -> vector<8x128xf32>
    %244 = vector.broadcast %240 : vector<1x128xf32> to vector<8x128xf32>
    %245 = arith.addf %244, %243 : vector<8x128xf32>
    %c1_125 = arith.constant 1 : index
    %c0_126 = arith.constant 0 : index
    %c0_127 = arith.constant 0 : index
    %246 = vector.load %arg3[%c1_125, %c0_126, %c0_127] : memref<6x32x128xbf16, #tpu.memory_space<vmem>>, vector<1x32x128xbf16>
    %247 = vector.shape_cast %246 : vector<1x32x128xbf16> to vector<32x128xbf16>
    %cst_128 = arith.constant dense<0.000000e+00> : vector<8x128xf32>
    %248 = tpu.matmul %237, %247, %cst_128 {dimension_numbers = #tpu.dot_dimension_numbers<[1], [0], [0], [1], [0, 0, 1, 1], [], []>} : vector<8x32xbf16>, vector<32x128xbf16>, vector<8x128xf32> -> vector<8x128xf32>
    %249 = arith.addf %245, %248 : vector<8x128xf32>
    %250 = arith.negf %249 : vector<8x128xf32>
    %251 = math.exp %250 : vector<8x128xf32>
    %cst_129 = arith.constant 1.000000e+00 : f32
    %252 = vector.broadcast %cst_129 : f32 to vector<8x128xf32>
    %253 = arith.addf %252, %251 : vector<8x128xf32>
    %254 = arith.divf %252, %253 : vector<8x128xf32>
    %cst_130 = arith.constant 2.000000e+00 : f32
    %255 = vector.broadcast %cst_130 : f32 to vector<8x128xf32>
    %256 = arith.mulf %255, %254 : vector<8x128xf32>
    %cst_131 = arith.constant 1.000000e+00 : f32
    %257 = vector.broadcast %cst_131 : f32 to vector<8x128xf32>
    %258 = arith.subf %256, %257 : vector<8x128xf32>
    %259 = arith.select %5, %258, %254 : vector<8x128xi1>, vector<8x128xf32>
    %260 = vector.extract_strided_slice %259 {offsets = [0, 0], sizes = [8, 32], strides = [1, 1]} : vector<8x128xf32> to vector<8x32xf32>
    %261 = vector.extract_strided_slice %259 {offsets = [0, 32], sizes = [8, 32], strides = [1, 1]} : vector<8x128xf32> to vector<8x32xf32>
    %262 = vector.extract_strided_slice %259 {offsets = [0, 64], sizes = [8, 32], strides = [1, 1]} : vector<8x128xf32> to vector<8x32xf32>
    %263 = vector.extract_strided_slice %259 {offsets = [0, 96], sizes = [8, 32], strides = [1, 1]} : vector<8x128xf32> to vector<8x32xf32>
    %264 = arith.mulf %261, %177 : vector<8x32xf32>
    %265 = arith.mulf %260, %262 : vector<8x32xf32>
    %266 = arith.addf %264, %265 : vector<8x32xf32>
    %267 = math.tanh %266 : vector<8x32xf32>
    %268 = arith.mulf %263, %267 : vector<8x32xf32>
    %269 = arith.truncf %211 : vector<8x32xf32> to vector<8x32xbf16>
    %270 = arith.truncf %179 : vector<8x32xf32> to vector<8x32xbf16>
    %c2_132 = arith.constant 2 : index
    %c0_133 = arith.constant 0 : index
    %c0_134 = arith.constant 0 : index
    %271 = vector.load %arg4[%c2_132, %c0_133, %c0_134] : memref<6x1x128xf32, #tpu.memory_space<vmem>>, vector<1x1x128xf32>
    %272 = vector.shape_cast %271 : vector<1x1x128xf32> to vector<1x128xf32>
    %c1_135 = arith.constant 1 : index
    %c0_136 = arith.constant 0 : index
    %c0_137 = arith.constant 0 : index
    %273 = vector.load %arg2[%c1_135, %c0_136, %c0_137] : memref<5x32x128xbf16, #tpu.memory_space<vmem>>, vector<1x32x128xbf16>
    %274 = vector.shape_cast %273 : vector<1x32x128xbf16> to vector<32x128xbf16>
    %cst_138 = arith.constant dense<0.000000e+00> : vector<8x128xf32>
    %275 = tpu.matmul %270, %274, %cst_138 {dimension_numbers = #tpu.dot_dimension_numbers<[1], [0], [0], [1], [0, 0, 1, 1], [], []>} : vector<8x32xbf16>, vector<32x128xbf16>, vector<8x128xf32> -> vector<8x128xf32>
    %276 = vector.broadcast %272 : vector<1x128xf32> to vector<8x128xf32>
    %277 = arith.addf %276, %275 : vector<8x128xf32>
    %c2_139 = arith.constant 2 : index
    %c0_140 = arith.constant 0 : index
    %c0_141 = arith.constant 0 : index
    %278 = vector.load %arg3[%c2_139, %c0_140, %c0_141] : memref<6x32x128xbf16, #tpu.memory_space<vmem>>, vector<1x32x128xbf16>
    %279 = vector.shape_cast %278 : vector<1x32x128xbf16> to vector<32x128xbf16>
    %cst_142 = arith.constant dense<0.000000e+00> : vector<8x128xf32>
    %280 = tpu.matmul %269, %279, %cst_142 {dimension_numbers = #tpu.dot_dimension_numbers<[1], [0], [0], [1], [0, 0, 1, 1], [], []>} : vector<8x32xbf16>, vector<32x128xbf16>, vector<8x128xf32> -> vector<8x128xf32>
    %281 = arith.addf %277, %280 : vector<8x128xf32>
    %282 = arith.negf %281 : vector<8x128xf32>
    %283 = math.exp %282 : vector<8x128xf32>
    %cst_143 = arith.constant 1.000000e+00 : f32
    %284 = vector.broadcast %cst_143 : f32 to vector<8x128xf32>
    %285 = arith.addf %284, %283 : vector<8x128xf32>
    %286 = arith.divf %284, %285 : vector<8x128xf32>
    %cst_144 = arith.constant 2.000000e+00 : f32
    %287 = vector.broadcast %cst_144 : f32 to vector<8x128xf32>
    %288 = arith.mulf %287, %286 : vector<8x128xf32>
    %cst_145 = arith.constant 1.000000e+00 : f32
    %289 = vector.broadcast %cst_145 : f32 to vector<8x128xf32>
    %290 = arith.subf %288, %289 : vector<8x128xf32>
    %291 = arith.select %5, %290, %286 : vector<8x128xi1>, vector<8x128xf32>
    %292 = vector.extract_strided_slice %291 {offsets = [0, 0], sizes = [8, 32], strides = [1, 1]} : vector<8x128xf32> to vector<8x32xf32>
    %293 = vector.extract_strided_slice %291 {offsets = [0, 32], sizes = [8, 32], strides = [1, 1]} : vector<8x128xf32> to vector<8x32xf32>
    %294 = vector.extract_strided_slice %291 {offsets = [0, 64], sizes = [8, 32], strides = [1, 1]} : vector<8x128xf32> to vector<8x32xf32>
    %295 = vector.extract_strided_slice %291 {offsets = [0, 96], sizes = [8, 32], strides = [1, 1]} : vector<8x128xf32> to vector<8x32xf32>
    %296 = arith.mulf %293, %209 : vector<8x32xf32>
    %297 = arith.mulf %292, %294 : vector<8x32xf32>
    %298 = arith.addf %296, %297 : vector<8x32xf32>
    %299 = math.tanh %298 : vector<8x32xf32>
    %300 = arith.mulf %295, %299 : vector<8x32xf32>
    %301 = arith.truncf %24 : vector<8x32xf32> to vector<8x32xbf16>
    %302 = arith.truncf %211 : vector<8x32xf32> to vector<8x32xbf16>
    %c3_146 = arith.constant 3 : index
    %c0_147 = arith.constant 0 : index
    %c0_148 = arith.constant 0 : index
    %303 = vector.load %arg4[%c3_146, %c0_147, %c0_148] : memref<6x1x128xf32, #tpu.memory_space<vmem>>, vector<1x1x128xf32>
    %304 = vector.shape_cast %303 : vector<1x1x128xf32> to vector<1x128xf32>
    %c2_149 = arith.constant 2 : index
    %c0_150 = arith.constant 0 : index
    %c0_151 = arith.constant 0 : index
    %305 = vector.load %arg2[%c2_149, %c0_150, %c0_151] : memref<5x32x128xbf16, #tpu.memory_space<vmem>>, vector<1x32x128xbf16>
    %306 = vector.shape_cast %305 : vector<1x32x128xbf16> to vector<32x128xbf16>
    %cst_152 = arith.constant dense<0.000000e+00> : vector<8x128xf32>
    %307 = tpu.matmul %302, %306, %cst_152 {dimension_numbers = #tpu.dot_dimension_numbers<[1], [0], [0], [1], [0, 0, 1, 1], [], []>} : vector<8x32xbf16>, vector<32x128xbf16>, vector<8x128xf32> -> vector<8x128xf32>
    %308 = vector.broadcast %304 : vector<1x128xf32> to vector<8x128xf32>
    %309 = arith.addf %308, %307 : vector<8x128xf32>
    %c3_153 = arith.constant 3 : index
    %c0_154 = arith.constant 0 : index
    %c0_155 = arith.constant 0 : index
    %310 = vector.load %arg3[%c3_153, %c0_154, %c0_155] : memref<6x32x128xbf16, #tpu.memory_space<vmem>>, vector<1x32x128xbf16>
    %311 = vector.shape_cast %310 : vector<1x32x128xbf16> to vector<32x128xbf16>
    %cst_156 = arith.constant dense<0.000000e+00> : vector<8x128xf32>
    %312 = tpu.matmul %301, %311, %cst_156 {dimension_numbers = #tpu.dot_dimension_numbers<[1], [0], [0], [1], [0, 0, 1, 1], [], []>} : vector<8x32xbf16>, vector<32x128xbf16>, vector<8x128xf32> -> vector<8x128xf32>
    %313 = arith.addf %309, %312 : vector<8x128xf32>
    %314 = arith.negf %313 : vector<8x128xf32>
    %315 = math.exp %314 : vector<8x128xf32>
    %cst_157 = arith.constant 1.000000e+00 : f32
    %316 = vector.broadcast %cst_157 : f32 to vector<8x128xf32>
    %317 = arith.addf %316, %315 : vector<8x128xf32>
    %318 = arith.divf %316, %317 : vector<8x128xf32>
    %cst_158 = arith.constant 2.000000e+00 : f32
    %319 = vector.broadcast %cst_158 : f32 to vector<8x128xf32>
    %320 = arith.mulf %319, %318 : vector<8x128xf32>
    %cst_159 = arith.constant 1.000000e+00 : f32
    %321 = vector.broadcast %cst_159 : f32 to vector<8x128xf32>
    %322 = arith.subf %320, %321 : vector<8x128xf32>
    %323 = arith.select %5, %322, %318 : vector<8x128xi1>, vector<8x128xf32>
    %324 = vector.extract_strided_slice %323 {offsets = [0, 0], sizes = [8, 32], strides = [1, 1]} : vector<8x128xf32> to vector<8x32xf32>
    %325 = vector.extract_strided_slice %323 {offsets = [0, 32], sizes = [8, 32], strides = [1, 1]} : vector<8x128xf32> to vector<8x32xf32>
    %326 = vector.extract_strided_slice %323 {offsets = [0, 64], sizes = [8, 32], strides = [1, 1]} : vector<8x128xf32> to vector<8x32xf32>
    %327 = vector.extract_strided_slice %323 {offsets = [0, 96], sizes = [8, 32], strides = [1, 1]} : vector<8x128xf32> to vector<8x32xf32>
    %328 = arith.mulf %325, %36 : vector<8x32xf32>
    %329 = arith.mulf %324, %326 : vector<8x32xf32>
    %330 = arith.addf %328, %329 : vector<8x32xf32>
    %331 = math.tanh %330 : vector<8x32xf32>
    %332 = arith.mulf %327, %331 : vector<8x32xf32>
    %333 = arith.truncf %236 : vector<8x32xf32> to vector<8x32xbf16>
    %c32 = arith.constant 32 : index
    %c0_160 = arith.constant 0 : index
    %334 = vector.load %arg10[%c32, %c0_160] : memref<56x128xf32, #tpu.memory_space<vmem>>, vector<8x128xf32>
    %c0_161 = arith.constant 0 : index
    %c0_162 = arith.constant 0 : index
    %c0_163 = arith.constant 0 : index
    %335 = vector.load %arg3[%c0_161, %c0_162, %c0_163] : memref<6x32x128xbf16, #tpu.memory_space<vmem>>, vector<1x32x128xbf16>
    %336 = vector.shape_cast %335 : vector<1x32x128xbf16> to vector<32x128xbf16>
    %cst_164 = arith.constant dense<0.000000e+00> : vector<8x128xf32>
    %337 = tpu.matmul %333, %336, %cst_164 {dimension_numbers = #tpu.dot_dimension_numbers<[1], [0], [0], [1], [0, 0, 1, 1], [], []>} : vector<8x32xbf16>, vector<32x128xbf16>, vector<8x128xf32> -> vector<8x128xf32>
    %338 = arith.addf %334, %337 : vector<8x128xf32>
    %339 = arith.negf %338 : vector<8x128xf32>
    %340 = math.exp %339 : vector<8x128xf32>
    %cst_165 = arith.constant 1.000000e+00 : f32
    %341 = vector.broadcast %cst_165 : f32 to vector<8x128xf32>
    %342 = arith.addf %341, %340 : vector<8x128xf32>
    %343 = arith.divf %341, %342 : vector<8x128xf32>
    %cst_166 = arith.constant 2.000000e+00 : f32
    %344 = vector.broadcast %cst_166 : f32 to vector<8x128xf32>
    %345 = arith.mulf %344, %343 : vector<8x128xf32>
    %cst_167 = arith.constant 1.000000e+00 : f32
    %346 = vector.broadcast %cst_167 : f32 to vector<8x128xf32>
    %347 = arith.subf %345, %346 : vector<8x128xf32>
    %348 = arith.select %5, %347, %343 : vector<8x128xi1>, vector<8x128xf32>
    %349 = vector.extract_strided_slice %348 {offsets = [0, 0], sizes = [8, 32], strides = [1, 1]} : vector<8x128xf32> to vector<8x32xf32>
    %350 = vector.extract_strided_slice %348 {offsets = [0, 32], sizes = [8, 32], strides = [1, 1]} : vector<8x128xf32> to vector<8x32xf32>
    %351 = vector.extract_strided_slice %348 {offsets = [0, 64], sizes = [8, 32], strides = [1, 1]} : vector<8x128xf32> to vector<8x32xf32>
    %352 = vector.extract_strided_slice %348 {offsets = [0, 96], sizes = [8, 32], strides = [1, 1]} : vector<8x128xf32> to vector<8x32xf32>
    %353 = arith.mulf %350, %234 : vector<8x32xf32>
    %354 = arith.mulf %349, %351 : vector<8x32xf32>
    %355 = arith.addf %353, %354 : vector<8x32xf32>
    %356 = math.tanh %355 : vector<8x32xf32>
    %357 = arith.mulf %352, %356 : vector<8x32xf32>
    %358 = arith.truncf %268 : vector<8x32xf32> to vector<8x32xbf16>
    %359 = arith.truncf %236 : vector<8x32xf32> to vector<8x32xbf16>
    %c1_168 = arith.constant 1 : index
    %c0_169 = arith.constant 0 : index
    %c0_170 = arith.constant 0 : index
    %360 = vector.load %arg4[%c1_168, %c0_169, %c0_170] : memref<6x1x128xf32, #tpu.memory_space<vmem>>, vector<1x1x128xf32>
    %361 = vector.shape_cast %360 : vector<1x1x128xf32> to vector<1x128xf32>
    %c0_171 = arith.constant 0 : index
    %c0_172 = arith.constant 0 : index
    %c0_173 = arith.constant 0 : index
    %362 = vector.load %arg2[%c0_171, %c0_172, %c0_173] : memref<5x32x128xbf16, #tpu.memory_space<vmem>>, vector<1x32x128xbf16>
    %363 = vector.shape_cast %362 : vector<1x32x128xbf16> to vector<32x128xbf16>
    %cst_174 = arith.constant dense<0.000000e+00> : vector<8x128xf32>
    %364 = tpu.matmul %359, %363, %cst_174 {dimension_numbers = #tpu.dot_dimension_numbers<[1], [0], [0], [1], [0, 0, 1, 1], [], []>} : vector<8x32xbf16>, vector<32x128xbf16>, vector<8x128xf32> -> vector<8x128xf32>
    %365 = vector.broadcast %361 : vector<1x128xf32> to vector<8x128xf32>
    %366 = arith.addf %365, %364 : vector<8x128xf32>
    %c1_175 = arith.constant 1 : index
    %c0_176 = arith.constant 0 : index
    %c0_177 = arith.constant 0 : index
    %367 = vector.load %arg3[%c1_175, %c0_176, %c0_177] : memref<6x32x128xbf16, #tpu.memory_space<vmem>>, vector<1x32x128xbf16>
    %368 = vector.shape_cast %367 : vector<1x32x128xbf16> to vector<32x128xbf16>
    %cst_178 = arith.constant dense<0.000000e+00> : vector<8x128xf32>
    %369 = tpu.matmul %358, %368, %cst_178 {dimension_numbers = #tpu.dot_dimension_numbers<[1], [0], [0], [1], [0, 0, 1, 1], [], []>} : vector<8x32xbf16>, vector<32x128xbf16>, vector<8x128xf32> -> vector<8x128xf32>
    %370 = arith.addf %366, %369 : vector<8x128xf32>
    %371 = arith.negf %370 : vector<8x128xf32>
    %372 = math.exp %371 : vector<8x128xf32>
    %cst_179 = arith.constant 1.000000e+00 : f32
    %373 = vector.broadcast %cst_179 : f32 to vector<8x128xf32>
    %374 = arith.addf %373, %372 : vector<8x128xf32>
    %375 = arith.divf %373, %374 : vector<8x128xf32>
    %cst_180 = arith.constant 2.000000e+00 : f32
    %376 = vector.broadcast %cst_180 : f32 to vector<8x128xf32>
    %377 = arith.mulf %376, %375 : vector<8x128xf32>
    %cst_181 = arith.constant 1.000000e+00 : f32
    %378 = vector.broadcast %cst_181 : f32 to vector<8x128xf32>
    %379 = arith.subf %377, %378 : vector<8x128xf32>
    %380 = arith.select %5, %379, %375 : vector<8x128xi1>, vector<8x128xf32>
    %381 = vector.extract_strided_slice %380 {offsets = [0, 0], sizes = [8, 32], strides = [1, 1]} : vector<8x128xf32> to vector<8x32xf32>
    %382 = vector.extract_strided_slice %380 {offsets = [0, 32], sizes = [8, 32], strides = [1, 1]} : vector<8x128xf32> to vector<8x32xf32>
    %383 = vector.extract_strided_slice %380 {offsets = [0, 64], sizes = [8, 32], strides = [1, 1]} : vector<8x128xf32> to vector<8x32xf32>
    %384 = vector.extract_strided_slice %380 {offsets = [0, 96], sizes = [8, 32], strides = [1, 1]} : vector<8x128xf32> to vector<8x32xf32>
    %385 = arith.mulf %382, %266 : vector<8x32xf32>
    %386 = arith.mulf %381, %383 : vector<8x32xf32>
    %387 = arith.addf %385, %386 : vector<8x32xf32>
    %388 = math.tanh %387 : vector<8x32xf32>
    %389 = arith.mulf %384, %388 : vector<8x32xf32>
    %390 = arith.truncf %300 : vector<8x32xf32> to vector<8x32xbf16>
    %391 = arith.truncf %268 : vector<8x32xf32> to vector<8x32xbf16>
    %c2_182 = arith.constant 2 : index
    %c0_183 = arith.constant 0 : index
    %c0_184 = arith.constant 0 : index
    %392 = vector.load %arg4[%c2_182, %c0_183, %c0_184] : memref<6x1x128xf32, #tpu.memory_space<vmem>>, vector<1x1x128xf32>
    %393 = vector.shape_cast %392 : vector<1x1x128xf32> to vector<1x128xf32>
    %c1_185 = arith.constant 1 : index
    %c0_186 = arith.constant 0 : index
    %c0_187 = arith.constant 0 : index
    %394 = vector.load %arg2[%c1_185, %c0_186, %c0_187] : memref<5x32x128xbf16, #tpu.memory_space<vmem>>, vector<1x32x128xbf16>
    %395 = vector.shape_cast %394 : vector<1x32x128xbf16> to vector<32x128xbf16>
    %cst_188 = arith.constant dense<0.000000e+00> : vector<8x128xf32>
    %396 = tpu.matmul %391, %395, %cst_188 {dimension_numbers = #tpu.dot_dimension_numbers<[1], [0], [0], [1], [0, 0, 1, 1], [], []>} : vector<8x32xbf16>, vector<32x128xbf16>, vector<8x128xf32> -> vector<8x128xf32>
    %397 = vector.broadcast %393 : vector<1x128xf32> to vector<8x128xf32>
    %398 = arith.addf %397, %396 : vector<8x128xf32>
    %c2_189 = arith.constant 2 : index
    %c0_190 = arith.constant 0 : index
    %c0_191 = arith.constant 0 : index
    %399 = vector.load %arg3[%c2_189, %c0_190, %c0_191] : memref<6x32x128xbf16, #tpu.memory_space<vmem>>, vector<1x32x128xbf16>
    %400 = vector.shape_cast %399 : vector<1x32x128xbf16> to vector<32x128xbf16>
    %cst_192 = arith.constant dense<0.000000e+00> : vector<8x128xf32>
    %401 = tpu.matmul %390, %400, %cst_192 {dimension_numbers = #tpu.dot_dimension_numbers<[1], [0], [0], [1], [0, 0, 1, 1], [], []>} : vector<8x32xbf16>, vector<32x128xbf16>, vector<8x128xf32> -> vector<8x128xf32>
    %402 = arith.addf %398, %401 : vector<8x128xf32>
    %403 = arith.negf %402 : vector<8x128xf32>
    %404 = math.exp %403 : vector<8x128xf32>
    %cst_193 = arith.constant 1.000000e+00 : f32
    %405 = vector.broadcast %cst_193 : f32 to vector<8x128xf32>
    %406 = arith.addf %405, %404 : vector<8x128xf32>
    %407 = arith.divf %405, %406 : vector<8x128xf32>
    %cst_194 = arith.constant 2.000000e+00 : f32
    %408 = vector.broadcast %cst_194 : f32 to vector<8x128xf32>
    %409 = arith.mulf %408, %407 : vector<8x128xf32>
    %cst_195 = arith.constant 1.000000e+00 : f32
    %410 = vector.broadcast %cst_195 : f32 to vector<8x128xf32>
    %411 = arith.subf %409, %410 : vector<8x128xf32>
    %412 = arith.select %5, %411, %407 : vector<8x128xi1>, vector<8x128xf32>
    %413 = vector.extract_strided_slice %412 {offsets = [0, 0], sizes = [8, 32], strides = [1, 1]} : vector<8x128xf32> to vector<8x32xf32>
    %414 = vector.extract_strided_slice %412 {offsets = [0, 32], sizes = [8, 32], strides = [1, 1]} : vector<8x128xf32> to vector<8x32xf32>
    %415 = vector.extract_strided_slice %412 {offsets = [0, 64], sizes = [8, 32], strides = [1, 1]} : vector<8x128xf32> to vector<8x32xf32>
    %416 = vector.extract_strided_slice %412 {offsets = [0, 96], sizes = [8, 32], strides = [1, 1]} : vector<8x128xf32> to vector<8x32xf32>
    %417 = arith.mulf %414, %298 : vector<8x32xf32>
    %418 = arith.mulf %413, %415 : vector<8x32xf32>
    %419 = arith.addf %417, %418 : vector<8x32xf32>
    %420 = math.tanh %419 : vector<8x32xf32>
    %421 = arith.mulf %416, %420 : vector<8x32xf32>
    %422 = arith.truncf %332 : vector<8x32xf32> to vector<8x32xbf16>
    %423 = arith.truncf %300 : vector<8x32xf32> to vector<8x32xbf16>
    %c3_196 = arith.constant 3 : index
    %c0_197 = arith.constant 0 : index
    %c0_198 = arith.constant 0 : index
    %424 = vector.load %arg4[%c3_196, %c0_197, %c0_198] : memref<6x1x128xf32, #tpu.memory_space<vmem>>, vector<1x1x128xf32>
    %425 = vector.shape_cast %424 : vector<1x1x128xf32> to vector<1x128xf32>
    %c2_199 = arith.constant 2 : index
    %c0_200 = arith.constant 0 : index
    %c0_201 = arith.constant 0 : index
    %426 = vector.load %arg2[%c2_199, %c0_200, %c0_201] : memref<5x32x128xbf16, #tpu.memory_space<vmem>>, vector<1x32x128xbf16>
    %427 = vector.shape_cast %426 : vector<1x32x128xbf16> to vector<32x128xbf16>
    %cst_202 = arith.constant dense<0.000000e+00> : vector<8x128xf32>
    %428 = tpu.matmul %423, %427, %cst_202 {dimension_numbers = #tpu.dot_dimension_numbers<[1], [0], [0], [1], [0, 0, 1, 1], [], []>} : vector<8x32xbf16>, vector<32x128xbf16>, vector<8x128xf32> -> vector<8x128xf32>
    %429 = vector.broadcast %425 : vector<1x128xf32> to vector<8x128xf32>
    %430 = arith.addf %429, %428 : vector<8x128xf32>
    %c3_203 = arith.constant 3 : index
    %c0_204 = arith.constant 0 : index
    %c0_205 = arith.constant 0 : index
    %431 = vector.load %arg3[%c3_203, %c0_204, %c0_205] : memref<6x32x128xbf16, #tpu.memory_space<vmem>>, vector<1x32x128xbf16>
    %432 = vector.shape_cast %431 : vector<1x32x128xbf16> to vector<32x128xbf16>
    %cst_206 = arith.constant dense<0.000000e+00> : vector<8x128xf32>
    %433 = tpu.matmul %422, %432, %cst_206 {dimension_numbers = #tpu.dot_dimension_numbers<[1], [0], [0], [1], [0, 0, 1, 1], [], []>} : vector<8x32xbf16>, vector<32x128xbf16>, vector<8x128xf32> -> vector<8x128xf32>
    %434 = arith.addf %430, %433 : vector<8x128xf32>
    %435 = arith.negf %434 : vector<8x128xf32>
    %436 = math.exp %435 : vector<8x128xf32>
    %cst_207 = arith.constant 1.000000e+00 : f32
    %437 = vector.broadcast %cst_207 : f32 to vector<8x128xf32>
    %438 = arith.addf %437, %436 : vector<8x128xf32>
    %439 = arith.divf %437, %438 : vector<8x128xf32>
    %cst_208 = arith.constant 2.000000e+00 : f32
    %440 = vector.broadcast %cst_208 : f32 to vector<8x128xf32>
    %441 = arith.mulf %440, %439 : vector<8x128xf32>
    %cst_209 = arith.constant 1.000000e+00 : f32
    %442 = vector.broadcast %cst_209 : f32 to vector<8x128xf32>
    %443 = arith.subf %441, %442 : vector<8x128xf32>
    %444 = arith.select %5, %443, %439 : vector<8x128xi1>, vector<8x128xf32>
    %445 = vector.extract_strided_slice %444 {offsets = [0, 0], sizes = [8, 32], strides = [1, 1]} : vector<8x128xf32> to vector<8x32xf32>
    %446 = vector.extract_strided_slice %444 {offsets = [0, 32], sizes = [8, 32], strides = [1, 1]} : vector<8x128xf32> to vector<8x32xf32>
    %447 = vector.extract_strided_slice %444 {offsets = [0, 64], sizes = [8, 32], strides = [1, 1]} : vector<8x128xf32> to vector<8x32xf32>
    %448 = vector.extract_strided_slice %444 {offsets = [0, 96], sizes = [8, 32], strides = [1, 1]} : vector<8x128xf32> to vector<8x32xf32>
    %449 = arith.mulf %446, %330 : vector<8x32xf32>
    %450 = arith.mulf %445, %447 : vector<8x32xf32>
    %451 = arith.addf %449, %450 : vector<8x32xf32>
    %452 = math.tanh %451 : vector<8x32xf32>
    %453 = arith.mulf %448, %452 : vector<8x32xf32>
    %454 = arith.truncf %26 : vector<8x32xf32> to vector<8x32xbf16>
    %455 = arith.truncf %332 : vector<8x32xf32> to vector<8x32xbf16>
    %c4_210 = arith.constant 4 : index
    %c0_211 = arith.constant 0 : index
    %c0_212 = arith.constant 0 : index
    %456 = vector.load %arg4[%c4_210, %c0_211, %c0_212] : memref<6x1x128xf32, #tpu.memory_space<vmem>>, vector<1x1x128xf32>
    %457 = vector.shape_cast %456 : vector<1x1x128xf32> to vector<1x128xf32>
    %c3_213 = arith.constant 3 : index
    %c0_214 = arith.constant 0 : index
    %c0_215 = arith.constant 0 : index
    %458 = vector.load %arg2[%c3_213, %c0_214, %c0_215] : memref<5x32x128xbf16, #tpu.memory_space<vmem>>, vector<1x32x128xbf16>
    %459 = vector.shape_cast %458 : vector<1x32x128xbf16> to vector<32x128xbf16>
    %cst_216 = arith.constant dense<0.000000e+00> : vector<8x128xf32>
    %460 = tpu.matmul %455, %459, %cst_216 {dimension_numbers = #tpu.dot_dimension_numbers<[1], [0], [0], [1], [0, 0, 1, 1], [], []>} : vector<8x32xbf16>, vector<32x128xbf16>, vector<8x128xf32> -> vector<8x128xf32>
    %461 = vector.broadcast %457 : vector<1x128xf32> to vector<8x128xf32>
    %462 = arith.addf %461, %460 : vector<8x128xf32>
    %c4_217 = arith.constant 4 : index
    %c0_218 = arith.constant 0 : index
    %c0_219 = arith.constant 0 : index
    %463 = vector.load %arg3[%c4_217, %c0_218, %c0_219] : memref<6x32x128xbf16, #tpu.memory_space<vmem>>, vector<1x32x128xbf16>
    %464 = vector.shape_cast %463 : vector<1x32x128xbf16> to vector<32x128xbf16>
    %cst_220 = arith.constant dense<0.000000e+00> : vector<8x128xf32>
    %465 = tpu.matmul %454, %464, %cst_220 {dimension_numbers = #tpu.dot_dimension_numbers<[1], [0], [0], [1], [0, 0, 1, 1], [], []>} : vector<8x32xbf16>, vector<32x128xbf16>, vector<8x128xf32> -> vector<8x128xf32>
    %466 = arith.addf %462, %465 : vector<8x128xf32>
    %467 = arith.negf %466 : vector<8x128xf32>
    %468 = math.exp %467 : vector<8x128xf32>
    %cst_221 = arith.constant 1.000000e+00 : f32
    %469 = vector.broadcast %cst_221 : f32 to vector<8x128xf32>
    %470 = arith.addf %469, %468 : vector<8x128xf32>
    %471 = arith.divf %469, %470 : vector<8x128xf32>
    %cst_222 = arith.constant 2.000000e+00 : f32
    %472 = vector.broadcast %cst_222 : f32 to vector<8x128xf32>
    %473 = arith.mulf %472, %471 : vector<8x128xf32>
    %cst_223 = arith.constant 1.000000e+00 : f32
    %474 = vector.broadcast %cst_223 : f32 to vector<8x128xf32>
    %475 = arith.subf %473, %474 : vector<8x128xf32>
    %476 = arith.select %5, %475, %471 : vector<8x128xi1>, vector<8x128xf32>
    %477 = vector.extract_strided_slice %476 {offsets = [0, 0], sizes = [8, 32], strides = [1, 1]} : vector<8x128xf32> to vector<8x32xf32>
    %478 = vector.extract_strided_slice %476 {offsets = [0, 32], sizes = [8, 32], strides = [1, 1]} : vector<8x128xf32> to vector<8x32xf32>
    %479 = vector.extract_strided_slice %476 {offsets = [0, 64], sizes = [8, 32], strides = [1, 1]} : vector<8x128xf32> to vector<8x32xf32>
    %480 = vector.extract_strided_slice %476 {offsets = [0, 96], sizes = [8, 32], strides = [1, 1]} : vector<8x128xf32> to vector<8x32xf32>
    %481 = arith.mulf %478, %38 : vector<8x32xf32>
    %482 = arith.mulf %477, %479 : vector<8x32xf32>
    %483 = arith.addf %481, %482 : vector<8x32xf32>
    %484 = math.tanh %483 : vector<8x32xf32>
    %485 = arith.mulf %480, %484 : vector<8x32xf32>
    %486 = arith.truncf %357 : vector<8x32xf32> to vector<8x32xbf16>
    %c40 = arith.constant 40 : index
    %c0_224 = arith.constant 0 : index
    %487 = vector.load %arg10[%c40, %c0_224] : memref<56x128xf32, #tpu.memory_space<vmem>>, vector<8x128xf32>
    %c0_225 = arith.constant 0 : index
    %c0_226 = arith.constant 0 : index
    %c0_227 = arith.constant 0 : index
    %488 = vector.load %arg3[%c0_225, %c0_226, %c0_227] : memref<6x32x128xbf16, #tpu.memory_space<vmem>>, vector<1x32x128xbf16>
    %489 = vector.shape_cast %488 : vector<1x32x128xbf16> to vector<32x128xbf16>
    %cst_228 = arith.constant dense<0.000000e+00> : vector<8x128xf32>
    %490 = tpu.matmul %486, %489, %cst_228 {dimension_numbers = #tpu.dot_dimension_numbers<[1], [0], [0], [1], [0, 0, 1, 1], [], []>} : vector<8x32xbf16>, vector<32x128xbf16>, vector<8x128xf32> -> vector<8x128xf32>
    %491 = arith.addf %487, %490 : vector<8x128xf32>
    %492 = arith.negf %491 : vector<8x128xf32>
    %493 = math.exp %492 : vector<8x128xf32>
    %cst_229 = arith.constant 1.000000e+00 : f32
    %494 = vector.broadcast %cst_229 : f32 to vector<8x128xf32>
    %495 = arith.addf %494, %493 : vector<8x128xf32>
    %496 = arith.divf %494, %495 : vector<8x128xf32>
    %cst_230 = arith.constant 2.000000e+00 : f32
    %497 = vector.broadcast %cst_230 : f32 to vector<8x128xf32>
    %498 = arith.mulf %497, %496 : vector<8x128xf32>
    %cst_231 = arith.constant 1.000000e+00 : f32
    %499 = vector.broadcast %cst_231 : f32 to vector<8x128xf32>
    %500 = arith.subf %498, %499 : vector<8x128xf32>
    %501 = arith.select %5, %500, %496 : vector<8x128xi1>, vector<8x128xf32>
    %502 = vector.extract_strided_slice %501 {offsets = [0, 0], sizes = [8, 32], strides = [1, 1]} : vector<8x128xf32> to vector<8x32xf32>
    %503 = vector.extract_strided_slice %501 {offsets = [0, 32], sizes = [8, 32], strides = [1, 1]} : vector<8x128xf32> to vector<8x32xf32>
    %504 = vector.extract_strided_slice %501 {offsets = [0, 64], sizes = [8, 32], strides = [1, 1]} : vector<8x128xf32> to vector<8x32xf32>
    %505 = vector.extract_strided_slice %501 {offsets = [0, 96], sizes = [8, 32], strides = [1, 1]} : vector<8x128xf32> to vector<8x32xf32>
    %506 = arith.mulf %503, %355 : vector<8x32xf32>
    %507 = arith.mulf %502, %504 : vector<8x32xf32>
    %508 = arith.addf %506, %507 : vector<8x32xf32>
    %509 = math.tanh %508 : vector<8x32xf32>
    %510 = arith.mulf %505, %509 : vector<8x32xf32>
    %511 = arith.truncf %389 : vector<8x32xf32> to vector<8x32xbf16>
    %512 = arith.truncf %357 : vector<8x32xf32> to vector<8x32xbf16>
    %c1_232 = arith.constant 1 : index
    %c0_233 = arith.constant 0 : index
    %c0_234 = arith.constant 0 : index
    %513 = vector.load %arg4[%c1_232, %c0_233, %c0_234] : memref<6x1x128xf32, #tpu.memory_space<vmem>>, vector<1x1x128xf32>
    %514 = vector.shape_cast %513 : vector<1x1x128xf32> to vector<1x128xf32>
    %c0_235 = arith.constant 0 : index
    %c0_236 = arith.constant 0 : index
    %c0_237 = arith.constant 0 : index
    %515 = vector.load %arg2[%c0_235, %c0_236, %c0_237] : memref<5x32x128xbf16, #tpu.memory_space<vmem>>, vector<1x32x128xbf16>
    %516 = vector.shape_cast %515 : vector<1x32x128xbf16> to vector<32x128xbf16>
    %cst_238 = arith.constant dense<0.000000e+00> : vector<8x128xf32>
    %517 = tpu.matmul %512, %516, %cst_238 {dimension_numbers = #tpu.dot_dimension_numbers<[1], [0], [0], [1], [0, 0, 1, 1], [], []>} : vector<8x32xbf16>, vector<32x128xbf16>, vector<8x128xf32> -> vector<8x128xf32>
    %518 = vector.broadcast %514 : vector<1x128xf32> to vector<8x128xf32>
    %519 = arith.addf %518, %517 : vector<8x128xf32>
    %c1_239 = arith.constant 1 : index
    %c0_240 = arith.constant 0 : index
    %c0_241 = arith.constant 0 : index
    %520 = vector.load %arg3[%c1_239, %c0_240, %c0_241] : memref<6x32x128xbf16, #tpu.memory_space<vmem>>, vector<1x32x128xbf16>
    %521 = vector.shape_cast %520 : vector<1x32x128xbf16> to vector<32x128xbf16>
    %cst_242 = arith.constant dense<0.000000e+00> : vector<8x128xf32>
    %522 = tpu.matmul %511, %521, %cst_242 {dimension_numbers = #tpu.dot_dimension_numbers<[1], [0], [0], [1], [0, 0, 1, 1], [], []>} : vector<8x32xbf16>, vector<32x128xbf16>, vector<8x128xf32> -> vector<8x128xf32>
    %523 = arith.addf %519, %522 : vector<8x128xf32>
    %524 = arith.negf %523 : vector<8x128xf32>
    %525 = math.exp %524 : vector<8x128xf32>
    %cst_243 = arith.constant 1.000000e+00 : f32
    %526 = vector.broadcast %cst_243 : f32 to vector<8x128xf32>
    %527 = arith.addf %526, %525 : vector<8x128xf32>
    %528 = arith.divf %526, %527 : vector<8x128xf32>
    %cst_244 = arith.constant 2.000000e+00 : f32
    %529 = vector.broadcast %cst_244 : f32 to vector<8x128xf32>
    %530 = arith.mulf %529, %528 : vector<8x128xf32>
    %cst_245 = arith.constant 1.000000e+00 : f32
    %531 = vector.broadcast %cst_245 : f32 to vector<8x128xf32>
    %532 = arith.subf %530, %531 : vector<8x128xf32>
    %533 = arith.select %5, %532, %528 : vector<8x128xi1>, vector<8x128xf32>
    %534 = vector.extract_strided_slice %533 {offsets = [0, 0], sizes = [8, 32], strides = [1, 1]} : vector<8x128xf32> to vector<8x32xf32>
    %535 = vector.extract_strided_slice %533 {offsets = [0, 32], sizes = [8, 32], strides = [1, 1]} : vector<8x128xf32> to vector<8x32xf32>
    %536 = vector.extract_strided_slice %533 {offsets = [0, 64], sizes = [8, 32], strides = [1, 1]} : vector<8x128xf32> to vector<8x32xf32>
    %537 = vector.extract_strided_slice %533 {offsets = [0, 96], sizes = [8, 32], strides = [1, 1]} : vector<8x128xf32> to vector<8x32xf32>
    %538 = arith.mulf %535, %387 : vector<8x32xf32>
    %539 = arith.mulf %534, %536 : vector<8x32xf32>
    %540 = arith.addf %538, %539 : vector<8x32xf32>
    %541 = math.tanh %540 : vector<8x32xf32>
    %542 = arith.mulf %537, %541 : vector<8x32xf32>
    %543 = arith.truncf %421 : vector<8x32xf32> to vector<8x32xbf16>
    %544 = arith.truncf %389 : vector<8x32xf32> to vector<8x32xbf16>
    %c2_246 = arith.constant 2 : index
    %c0_247 = arith.constant 0 : index
    %c0_248 = arith.constant 0 : index
    %545 = vector.load %arg4[%c2_246, %c0_247, %c0_248] : memref<6x1x128xf32, #tpu.memory_space<vmem>>, vector<1x1x128xf32>
    %546 = vector.shape_cast %545 : vector<1x1x128xf32> to vector<1x128xf32>
    %c1_249 = arith.constant 1 : index
    %c0_250 = arith.constant 0 : index
    %c0_251 = arith.constant 0 : index
    %547 = vector.load %arg2[%c1_249, %c0_250, %c0_251] : memref<5x32x128xbf16, #tpu.memory_space<vmem>>, vector<1x32x128xbf16>
    %548 = vector.shape_cast %547 : vector<1x32x128xbf16> to vector<32x128xbf16>
    %cst_252 = arith.constant dense<0.000000e+00> : vector<8x128xf32>
    %549 = tpu.matmul %544, %548, %cst_252 {dimension_numbers = #tpu.dot_dimension_numbers<[1], [0], [0], [1], [0, 0, 1, 1], [], []>} : vector<8x32xbf16>, vector<32x128xbf16>, vector<8x128xf32> -> vector<8x128xf32>
    %550 = vector.broadcast %546 : vector<1x128xf32> to vector<8x128xf32>
    %551 = arith.addf %550, %549 : vector<8x128xf32>
    %c2_253 = arith.constant 2 : index
    %c0_254 = arith.constant 0 : index
    %c0_255 = arith.constant 0 : index
    %552 = vector.load %arg3[%c2_253, %c0_254, %c0_255] : memref<6x32x128xbf16, #tpu.memory_space<vmem>>, vector<1x32x128xbf16>
    %553 = vector.shape_cast %552 : vector<1x32x128xbf16> to vector<32x128xbf16>
    %cst_256 = arith.constant dense<0.000000e+00> : vector<8x128xf32>
    %554 = tpu.matmul %543, %553, %cst_256 {dimension_numbers = #tpu.dot_dimension_numbers<[1], [0], [0], [1], [0, 0, 1, 1], [], []>} : vector<8x32xbf16>, vector<32x128xbf16>, vector<8x128xf32> -> vector<8x128xf32>
    %555 = arith.addf %551, %554 : vector<8x128xf32>
    %556 = arith.negf %555 : vector<8x128xf32>
    %557 = math.exp %556 : vector<8x128xf32>
    %cst_257 = arith.constant 1.000000e+00 : f32
    %558 = vector.broadcast %cst_257 : f32 to vector<8x128xf32>
    %559 = arith.addf %558, %557 : vector<8x128xf32>
    %560 = arith.divf %558, %559 : vector<8x128xf32>
    %cst_258 = arith.constant 2.000000e+00 : f32
    %561 = vector.broadcast %cst_258 : f32 to vector<8x128xf32>
    %562 = arith.mulf %561, %560 : vector<8x128xf32>
    %cst_259 = arith.constant 1.000000e+00 : f32
    %563 = vector.broadcast %cst_259 : f32 to vector<8x128xf32>
    %564 = arith.subf %562, %563 : vector<8x128xf32>
    %565 = arith.select %5, %564, %560 : vector<8x128xi1>, vector<8x128xf32>
    %566 = vector.extract_strided_slice %565 {offsets = [0, 0], sizes = [8, 32], strides = [1, 1]} : vector<8x128xf32> to vector<8x32xf32>
    %567 = vector.extract_strided_slice %565 {offsets = [0, 32], sizes = [8, 32], strides = [1, 1]} : vector<8x128xf32> to vector<8x32xf32>
    %568 = vector.extract_strided_slice %565 {offsets = [0, 64], sizes = [8, 32], strides = [1, 1]} : vector<8x128xf32> to vector<8x32xf32>
    %569 = vector.extract_strided_slice %565 {offsets = [0, 96], sizes = [8, 32], strides = [1, 1]} : vector<8x128xf32> to vector<8x32xf32>
    %570 = arith.mulf %567, %419 : vector<8x32xf32>
    %571 = arith.mulf %566, %568 : vector<8x32xf32>
    %572 = arith.addf %570, %571 : vector<8x32xf32>
    %573 = math.tanh %572 : vector<8x32xf32>
    %574 = arith.mulf %569, %573 : vector<8x32xf32>
    %575 = arith.truncf %453 : vector<8x32xf32> to vector<8x32xbf16>
    %576 = arith.truncf %421 : vector<8x32xf32> to vector<8x32xbf16>
    %c3_260 = arith.constant 3 : index
    %c0_261 = arith.constant 0 : index
    %c0_262 = arith.constant 0 : index
    %577 = vector.load %arg4[%c3_260, %c0_261, %c0_262] : memref<6x1x128xf32, #tpu.memory_space<vmem>>, vector<1x1x128xf32>
    %578 = vector.shape_cast %577 : vector<1x1x128xf32> to vector<1x128xf32>
    %c2_263 = arith.constant 2 : index
    %c0_264 = arith.constant 0 : index
    %c0_265 = arith.constant 0 : index
    %579 = vector.load %arg2[%c2_263, %c0_264, %c0_265] : memref<5x32x128xbf16, #tpu.memory_space<vmem>>, vector<1x32x128xbf16>
    %580 = vector.shape_cast %579 : vector<1x32x128xbf16> to vector<32x128xbf16>
    %cst_266 = arith.constant dense<0.000000e+00> : vector<8x128xf32>
    %581 = tpu.matmul %576, %580, %cst_266 {dimension_numbers = #tpu.dot_dimension_numbers<[1], [0], [0], [1], [0, 0, 1, 1], [], []>} : vector<8x32xbf16>, vector<32x128xbf16>, vector<8x128xf32> -> vector<8x128xf32>
    %582 = vector.broadcast %578 : vector<1x128xf32> to vector<8x128xf32>
    %583 = arith.addf %582, %581 : vector<8x128xf32>
    %c3_267 = arith.constant 3 : index
    %c0_268 = arith.constant 0 : index
    %c0_269 = arith.constant 0 : index
    %584 = vector.load %arg3[%c3_267, %c0_268, %c0_269] : memref<6x32x128xbf16, #tpu.memory_space<vmem>>, vector<1x32x128xbf16>
    %585 = vector.shape_cast %584 : vector<1x32x128xbf16> to vector<32x128xbf16>
    %cst_270 = arith.constant dense<0.000000e+00> : vector<8x128xf32>
    %586 = tpu.matmul %575, %585, %cst_270 {dimension_numbers = #tpu.dot_dimension_numbers<[1], [0], [0], [1], [0, 0, 1, 1], [], []>} : vector<8x32xbf16>, vector<32x128xbf16>, vector<8x128xf32> -> vector<8x128xf32>
    %587 = arith.addf %583, %586 : vector<8x128xf32>
    %588 = arith.negf %587 : vector<8x128xf32>
    %589 = math.exp %588 : vector<8x128xf32>
    %cst_271 = arith.constant 1.000000e+00 : f32
    %590 = vector.broadcast %cst_271 : f32 to vector<8x128xf32>
    %591 = arith.addf %590, %589 : vector<8x128xf32>
    %592 = arith.divf %590, %591 : vector<8x128xf32>
    %cst_272 = arith.constant 2.000000e+00 : f32
    %593 = vector.broadcast %cst_272 : f32 to vector<8x128xf32>
    %594 = arith.mulf %593, %592 : vector<8x128xf32>
    %cst_273 = arith.constant 1.000000e+00 : f32
    %595 = vector.broadcast %cst_273 : f32 to vector<8x128xf32>
    %596 = arith.subf %594, %595 : vector<8x128xf32>
    %597 = arith.select %5, %596, %592 : vector<8x128xi1>, vector<8x128xf32>
    %598 = vector.extract_strided_slice %597 {offsets = [0, 0], sizes = [8, 32], strides = [1, 1]} : vector<8x128xf32> to vector<8x32xf32>
    %599 = vector.extract_strided_slice %597 {offsets = [0, 32], sizes = [8, 32], strides = [1, 1]} : vector<8x128xf32> to vector<8x32xf32>
    %600 = vector.extract_strided_slice %597 {offsets = [0, 64], sizes = [8, 32], strides = [1, 1]} : vector<8x128xf32> to vector<8x32xf32>
    %601 = vector.extract_strided_slice %597 {offsets = [0, 96], sizes = [8, 32], strides = [1, 1]} : vector<8x128xf32> to vector<8x32xf32>
    %602 = arith.mulf %599, %451 : vector<8x32xf32>
    %603 = arith.mulf %598, %600 : vector<8x32xf32>
    %604 = arith.addf %602, %603 : vector<8x32xf32>
    %605 = math.tanh %604 : vector<8x32xf32>
    %606 = arith.mulf %601, %605 : vector<8x32xf32>
    %607 = arith.truncf %485 : vector<8x32xf32> to vector<8x32xbf16>
    %608 = arith.truncf %453 : vector<8x32xf32> to vector<8x32xbf16>
    %c4_274 = arith.constant 4 : index
    %c0_275 = arith.constant 0 : index
    %c0_276 = arith.constant 0 : index
    %609 = vector.load %arg4[%c4_274, %c0_275, %c0_276] : memref<6x1x128xf32, #tpu.memory_space<vmem>>, vector<1x1x128xf32>
    %610 = vector.shape_cast %609 : vector<1x1x128xf32> to vector<1x128xf32>
    %c3_277 = arith.constant 3 : index
    %c0_278 = arith.constant 0 : index
    %c0_279 = arith.constant 0 : index
    %611 = vector.load %arg2[%c3_277, %c0_278, %c0_279] : memref<5x32x128xbf16, #tpu.memory_space<vmem>>, vector<1x32x128xbf16>
    %612 = vector.shape_cast %611 : vector<1x32x128xbf16> to vector<32x128xbf16>
    %cst_280 = arith.constant dense<0.000000e+00> : vector<8x128xf32>
    %613 = tpu.matmul %608, %612, %cst_280 {dimension_numbers = #tpu.dot_dimension_numbers<[1], [0], [0], [1], [0, 0, 1, 1], [], []>} : vector<8x32xbf16>, vector<32x128xbf16>, vector<8x128xf32> -> vector<8x128xf32>
    %614 = vector.broadcast %610 : vector<1x128xf32> to vector<8x128xf32>
    %615 = arith.addf %614, %613 : vector<8x128xf32>
    %c4_281 = arith.constant 4 : index
    %c0_282 = arith.constant 0 : index
    %c0_283 = arith.constant 0 : index
    %616 = vector.load %arg3[%c4_281, %c0_282, %c0_283] : memref<6x32x128xbf16, #tpu.memory_space<vmem>>, vector<1x32x128xbf16>
    %617 = vector.shape_cast %616 : vector<1x32x128xbf16> to vector<32x128xbf16>
    %cst_284 = arith.constant dense<0.000000e+00> : vector<8x128xf32>
    %618 = tpu.matmul %607, %617, %cst_284 {dimension_numbers = #tpu.dot_dimension_numbers<[1], [0], [0], [1], [0, 0, 1, 1], [], []>} : vector<8x32xbf16>, vector<32x128xbf16>, vector<8x128xf32> -> vector<8x128xf32>
    %619 = arith.addf %615, %618 : vector<8x128xf32>
    %620 = arith.negf %619 : vector<8x128xf32>
    %621 = math.exp %620 : vector<8x128xf32>
    %cst_285 = arith.constant 1.000000e+00 : f32
    %622 = vector.broadcast %cst_285 : f32 to vector<8x128xf32>
    %623 = arith.addf %622, %621 : vector<8x128xf32>
    %624 = arith.divf %622, %623 : vector<8x128xf32>
    %cst_286 = arith.constant 2.000000e+00 : f32
    %625 = vector.broadcast %cst_286 : f32 to vector<8x128xf32>
    %626 = arith.mulf %625, %624 : vector<8x128xf32>
    %cst_287 = arith.constant 1.000000e+00 : f32
    %627 = vector.broadcast %cst_287 : f32 to vector<8x128xf32>
    %628 = arith.subf %626, %627 : vector<8x128xf32>
    %629 = arith.select %5, %628, %624 : vector<8x128xi1>, vector<8x128xf32>
    %630 = vector.extract_strided_slice %629 {offsets = [0, 0], sizes = [8, 32], strides = [1, 1]} : vector<8x128xf32> to vector<8x32xf32>
    %631 = vector.extract_strided_slice %629 {offsets = [0, 32], sizes = [8, 32], strides = [1, 1]} : vector<8x128xf32> to vector<8x32xf32>
    %632 = vector.extract_strided_slice %629 {offsets = [0, 64], sizes = [8, 32], strides = [1, 1]} : vector<8x128xf32> to vector<8x32xf32>
    %633 = vector.extract_strided_slice %629 {offsets = [0, 96], sizes = [8, 32], strides = [1, 1]} : vector<8x128xf32> to vector<8x32xf32>
    %634 = arith.mulf %631, %483 : vector<8x32xf32>
    %635 = arith.mulf %630, %632 : vector<8x32xf32>
    %636 = arith.addf %634, %635 : vector<8x32xf32>
    %637 = math.tanh %636 : vector<8x32xf32>
    %638 = arith.mulf %633, %637 : vector<8x32xf32>
    %639 = arith.truncf %28 : vector<8x32xf32> to vector<8x32xbf16>
    %640 = arith.truncf %485 : vector<8x32xf32> to vector<8x32xbf16>
    %c5_288 = arith.constant 5 : index
    %c0_289 = arith.constant 0 : index
    %c0_290 = arith.constant 0 : index
    %641 = vector.load %arg4[%c5_288, %c0_289, %c0_290] : memref<6x1x128xf32, #tpu.memory_space<vmem>>, vector<1x1x128xf32>
    %642 = vector.shape_cast %641 : vector<1x1x128xf32> to vector<1x128xf32>
    %c4_291 = arith.constant 4 : index
    %c0_292 = arith.constant 0 : index
    %c0_293 = arith.constant 0 : index
    %643 = vector.load %arg2[%c4_291, %c0_292, %c0_293] : memref<5x32x128xbf16, #tpu.memory_space<vmem>>, vector<1x32x128xbf16>
    %644 = vector.shape_cast %643 : vector<1x32x128xbf16> to vector<32x128xbf16>
    %cst_294 = arith.constant dense<0.000000e+00> : vector<8x128xf32>
    %645 = tpu.matmul %640, %644, %cst_294 {dimension_numbers = #tpu.dot_dimension_numbers<[1], [0], [0], [1], [0, 0, 1, 1], [], []>} : vector<8x32xbf16>, vector<32x128xbf16>, vector<8x128xf32> -> vector<8x128xf32>
    %646 = vector.broadcast %642 : vector<1x128xf32> to vector<8x128xf32>
    %647 = arith.addf %646, %645 : vector<8x128xf32>
    %c5_295 = arith.constant 5 : index
    %c0_296 = arith.constant 0 : index
    %c0_297 = arith.constant 0 : index
    %648 = vector.load %arg3[%c5_295, %c0_296, %c0_297] : memref<6x32x128xbf16, #tpu.memory_space<vmem>>, vector<1x32x128xbf16>
    %649 = vector.shape_cast %648 : vector<1x32x128xbf16> to vector<32x128xbf16>
    %cst_298 = arith.constant dense<0.000000e+00> : vector<8x128xf32>
    %650 = tpu.matmul %639, %649, %cst_298 {dimension_numbers = #tpu.dot_dimension_numbers<[1], [0], [0], [1], [0, 0, 1, 1], [], []>} : vector<8x32xbf16>, vector<32x128xbf16>, vector<8x128xf32> -> vector<8x128xf32>
    %651 = arith.addf %647, %650 : vector<8x128xf32>
    %652 = arith.negf %651 : vector<8x128xf32>
    %653 = math.exp %652 : vector<8x128xf32>
    %cst_299 = arith.constant 1.000000e+00 : f32
    %654 = vector.broadcast %cst_299 : f32 to vector<8x128xf32>
    %655 = arith.addf %654, %653 : vector<8x128xf32>
    %656 = arith.divf %654, %655 : vector<8x128xf32>
    %cst_300 = arith.constant 2.000000e+00 : f32
    %657 = vector.broadcast %cst_300 : f32 to vector<8x128xf32>
    %658 = arith.mulf %657, %656 : vector<8x128xf32>
    %cst_301 = arith.constant 1.000000e+00 : f32
    %659 = vector.broadcast %cst_301 : f32 to vector<8x128xf32>
    %660 = arith.subf %658, %659 : vector<8x128xf32>
    %661 = arith.select %5, %660, %656 : vector<8x128xi1>, vector<8x128xf32>
    %662 = vector.extract_strided_slice %661 {offsets = [0, 0], sizes = [8, 32], strides = [1, 1]} : vector<8x128xf32> to vector<8x32xf32>
    %663 = vector.extract_strided_slice %661 {offsets = [0, 32], sizes = [8, 32], strides = [1, 1]} : vector<8x128xf32> to vector<8x32xf32>
    %664 = vector.extract_strided_slice %661 {offsets = [0, 64], sizes = [8, 32], strides = [1, 1]} : vector<8x128xf32> to vector<8x32xf32>
    %665 = vector.extract_strided_slice %661 {offsets = [0, 96], sizes = [8, 32], strides = [1, 1]} : vector<8x128xf32> to vector<8x32xf32>
    %666 = arith.mulf %663, %40 : vector<8x32xf32>
    %667 = arith.mulf %662, %664 : vector<8x32xf32>
    %668 = arith.addf %666, %667 : vector<8x32xf32>
    %669 = math.tanh %668 : vector<8x32xf32>
    %670 = arith.mulf %665, %669 : vector<8x32xf32>
    %671 = arith.truncf %670 : vector<8x32xf32> to vector<8x32xbf16>
    %cst_302 = arith.constant dense<0.000000e+00> : vector<8x128xf32>
    %672 = tpu.matmul %671, %15, %cst_302 {dimension_numbers = #tpu.dot_dimension_numbers<[1], [0], [0], [1], [0, 0, 1, 1], [], []>} : vector<8x32xbf16>, vector<32x128xbf16>, vector<8x128xf32> -> vector<8x128xf32>
    %673 = vector.broadcast %16 : vector<1x128xf32> to vector<8x128xf32>
    %674 = arith.addf %672, %673 : vector<8x128xf32>
    %c0_303 = arith.constant 0 : index
    %c0_304 = arith.constant 0 : index
    %675 = vector.load %arg9[%c0_303, %c0_304] : memref<56x128xf32, #tpu.memory_space<vmem>>, vector<8x128xf32>
    tpu.vector_store %arg9[%c0_303, %c0_304], %674 {strides = array<i32>} : memref<56x128xf32, #tpu.memory_space<vmem>>, vector<8x128xf32>,
    %676 = arith.truncf %510 : vector<8x32xf32> to vector<8x32xbf16>
    %c48 = arith.constant 48 : index
    %c0_305 = arith.constant 0 : index
    %677 = vector.load %arg10[%c48, %c0_305] : memref<56x128xf32, #tpu.memory_space<vmem>>, vector<8x128xf32>
    %c0_306 = arith.constant 0 : index
    %c0_307 = arith.constant 0 : index
    %c0_308 = arith.constant 0 : index
    %678 = vector.load %arg3[%c0_306, %c0_307, %c0_308] : memref<6x32x128xbf16, #tpu.memory_space<vmem>>, vector<1x32x128xbf16>
    %679 = vector.shape_cast %678 : vector<1x32x128xbf16> to vector<32x128xbf16>
    %cst_309 = arith.constant dense<0.000000e+00> : vector<8x128xf32>
    %680 = tpu.matmul %676, %679, %cst_309 {dimension_numbers = #tpu.dot_dimension_numbers<[1], [0], [0], [1], [0, 0, 1, 1], [], []>} : vector<8x32xbf16>, vector<32x128xbf16>, vector<8x128xf32> -> vector<8x128xf32>
    %681 = arith.addf %677, %680 : vector<8x128xf32>
    %682 = arith.negf %681 : vector<8x128xf32>
    %683 = math.exp %682 : vector<8x128xf32>
    %cst_310 = arith.constant 1.000000e+00 : f32
    %684 = vector.broadcast %cst_310 : f32 to vector<8x128xf32>
    %685 = arith.addf %684, %683 : vector<8x128xf32>
    %686 = arith.divf %684, %685 : vector<8x128xf32>
    %cst_311 = arith.constant 2.000000e+00 : f32
    %687 = vector.broadcast %cst_311 : f32 to vector<8x128xf32>
    %688 = arith.mulf %687, %686 : vector<8x128xf32>
    %cst_312 = arith.constant 1.000000e+00 : f32
    %689 = vector.broadcast %cst_312 : f32 to vector<8x128xf32>
    %690 = arith.subf %688, %689 : vector<8x128xf32>
    %691 = arith.select %5, %690, %686 : vector<8x128xi1>, vector<8x128xf32>
    %692 = vector.extract_strided_slice %691 {offsets = [0, 0], sizes = [8, 32], strides = [1, 1]} : vector<8x128xf32> to vector<8x32xf32>
    %693 = vector.extract_strided_slice %691 {offsets = [0, 32], sizes = [8, 32], strides = [1, 1]} : vector<8x128xf32> to vector<8x32xf32>
    %694 = vector.extract_strided_slice %691 {offsets = [0, 64], sizes = [8, 32], strides = [1, 1]} : vector<8x128xf32> to vector<8x32xf32>
    %695 = vector.extract_strided_slice %691 {offsets = [0, 96], sizes = [8, 32], strides = [1, 1]} : vector<8x128xf32> to vector<8x32xf32>
    %696 = arith.mulf %693, %508 : vector<8x32xf32>
    %697 = arith.mulf %692, %694 : vector<8x32xf32>
    %698 = arith.addf %696, %697 : vector<8x32xf32>
    %699 = math.tanh %698 : vector<8x32xf32>
    %700 = arith.mulf %695, %699 : vector<8x32xf32>
    %701 = arith.truncf %542 : vector<8x32xf32> to vector<8x32xbf16>
    %702 = arith.truncf %510 : vector<8x32xf32> to vector<8x32xbf16>
    %c1_313 = arith.constant 1 : index
    %c0_314 = arith.constant 0 : index
    %c0_315 = arith.constant 0 : index
    %703 = vector.load %arg4[%c1_313, %c0_314, %c0_315] : memref<6x1x128xf32, #tpu.memory_space<vmem>>, vector<1x1x128xf32>
    %704 = vector.shape_cast %703 : vector<1x1x128xf32> to vector<1x128xf32>
    %c0_316 = arith.constant 0 : index
    %c0_317 = arith.constant 0 : index
    %c0_318 = arith.constant 0 : index
    %705 = vector.load %arg2[%c0_316, %c0_317, %c0_318] : memref<5x32x128xbf16, #tpu.memory_space<vmem>>, vector<1x32x128xbf16>
    %706 = vector.shape_cast %705 : vector<1x32x128xbf16> to vector<32x128xbf16>
    %cst_319 = arith.constant dense<0.000000e+00> : vector<8x128xf32>
    %707 = tpu.matmul %702, %706, %cst_319 {dimension_numbers = #tpu.dot_dimension_numbers<[1], [0], [0], [1], [0, 0, 1, 1], [], []>} : vector<8x32xbf16>, vector<32x128xbf16>, vector<8x128xf32> -> vector<8x128xf32>
    %708 = vector.broadcast %704 : vector<1x128xf32> to vector<8x128xf32>
    %709 = arith.addf %708, %707 : vector<8x128xf32>
    %c1_320 = arith.constant 1 : index
    %c0_321 = arith.constant 0 : index
    %c0_322 = arith.constant 0 : index
    %710 = vector.load %arg3[%c1_320, %c0_321, %c0_322] : memref<6x32x128xbf16, #tpu.memory_space<vmem>>, vector<1x32x128xbf16>
    %711 = vector.shape_cast %710 : vector<1x32x128xbf16> to vector<32x128xbf16>
    %cst_323 = arith.constant dense<0.000000e+00> : vector<8x128xf32>
    %712 = tpu.matmul %701, %711, %cst_323 {dimension_numbers = #tpu.dot_dimension_numbers<[1], [0], [0], [1], [0, 0, 1, 1], [], []>} : vector<8x32xbf16>, vector<32x128xbf16>, vector<8x128xf32> -> vector<8x128xf32>
    %713 = arith.addf %709, %712 : vector<8x128xf32>
    %714 = arith.negf %713 : vector<8x128xf32>
    %715 = math.exp %714 : vector<8x128xf32>
    %cst_324 = arith.constant 1.000000e+00 : f32
    %716 = vector.broadcast %cst_324 : f32 to vector<8x128xf32>
    %717 = arith.addf %716, %715 : vector<8x128xf32>
    %718 = arith.divf %716, %717 : vector<8x128xf32>
    %cst_325 = arith.constant 2.000000e+00 : f32
    %719 = vector.broadcast %cst_325 : f32 to vector<8x128xf32>
    %720 = arith.mulf %719, %718 : vector<8x128xf32>
    %cst_326 = arith.constant 1.000000e+00 : f32
    %721 = vector.broadcast %cst_326 : f32 to vector<8x128xf32>
    %722 = arith.subf %720, %721 : vector<8x128xf32>
    %723 = arith.select %5, %722, %718 : vector<8x128xi1>, vector<8x128xf32>
    %724 = vector.extract_strided_slice %723 {offsets = [0, 0], sizes = [8, 32], strides = [1, 1]} : vector<8x128xf32> to vector<8x32xf32>
    %725 = vector.extract_strided_slice %723 {offsets = [0, 32], sizes = [8, 32], strides = [1, 1]} : vector<8x128xf32> to vector<8x32xf32>
    %726 = vector.extract_strided_slice %723 {offsets = [0, 64], sizes = [8, 32], strides = [1, 1]} : vector<8x128xf32> to vector<8x32xf32>
    %727 = vector.extract_strided_slice %723 {offsets = [0, 96], sizes = [8, 32], strides = [1, 1]} : vector<8x128xf32> to vector<8x32xf32>
    %728 = arith.mulf %725, %540 : vector<8x32xf32>
    %729 = arith.mulf %724, %726 : vector<8x32xf32>
    %730 = arith.addf %728, %729 : vector<8x32xf32>
    %731 = math.tanh %730 : vector<8x32xf32>
    %732 = arith.mulf %727, %731 : vector<8x32xf32>
    %733 = arith.truncf %574 : vector<8x32xf32> to vector<8x32xbf16>
    %734 = arith.truncf %542 : vector<8x32xf32> to vector<8x32xbf16>
    %c2_327 = arith.constant 2 : index
    %c0_328 = arith.constant 0 : index
    %c0_329 = arith.constant 0 : index
    %735 = vector.load %arg4[%c2_327, %c0_328, %c0_329] : memref<6x1x128xf32, #tpu.memory_space<vmem>>, vector<1x1x128xf32>
    %736 = vector.shape_cast %735 : vector<1x1x128xf32> to vector<1x128xf32>
    %c1_330 = arith.constant 1 : index
    %c0_331 = arith.constant 0 : index
    %c0_332 = arith.constant 0 : index
    %737 = vector.load %arg2[%c1_330, %c0_331, %c0_332] : memref<5x32x128xbf16, #tpu.memory_space<vmem>>, vector<1x32x128xbf16>
    %738 = vector.shape_cast %737 : vector<1x32x128xbf16> to vector<32x128xbf16>
    %cst_333 = arith.constant dense<0.000000e+00> : vector<8x128xf32>
    %739 = tpu.matmul %734, %738, %cst_333 {dimension_numbers = #tpu.dot_dimension_numbers<[1], [0], [0], [1], [0, 0, 1, 1], [], []>} : vector<8x32xbf16>, vector<32x128xbf16>, vector<8x128xf32> -> vector<8x128xf32>
    %740 = vector.broadcast %736 : vector<1x128xf32> to vector<8x128xf32>
    %741 = arith.addf %740, %739 : vector<8x128xf32>
    %c2_334 = arith.constant 2 : index
    %c0_335 = arith.constant 0 : index
    %c0_336 = arith.constant 0 : index
    %742 = vector.load %arg3[%c2_334, %c0_335, %c0_336] : memref<6x32x128xbf16, #tpu.memory_space<vmem>>, vector<1x32x128xbf16>
    %743 = vector.shape_cast %742 : vector<1x32x128xbf16> to vector<32x128xbf16>
    %cst_337 = arith.constant dense<0.000000e+00> : vector<8x128xf32>
    %744 = tpu.matmul %733, %743, %cst_337 {dimension_numbers = #tpu.dot_dimension_numbers<[1], [0], [0], [1], [0, 0, 1, 1], [], []>} : vector<8x32xbf16>, vector<32x128xbf16>, vector<8x128xf32> -> vector<8x128xf32>
    %745 = arith.addf %741, %744 : vector<8x128xf32>
    %746 = arith.negf %745 : vector<8x128xf32>
    %747 = math.exp %746 : vector<8x128xf32>
    %cst_338 = arith.constant 1.000000e+00 : f32
    %748 = vector.broadcast %cst_338 : f32 to vector<8x128xf32>
    %749 = arith.addf %748, %747 : vector<8x128xf32>
    %750 = arith.divf %748, %749 : vector<8x128xf32>
    %cst_339 = arith.constant 2.000000e+00 : f32
    %751 = vector.broadcast %cst_339 : f32 to vector<8x128xf32>
    %752 = arith.mulf %751, %750 : vector<8x128xf32>
    %cst_340 = arith.constant 1.000000e+00 : f32
    %753 = vector.broadcast %cst_340 : f32 to vector<8x128xf32>
    %754 = arith.subf %752, %753 : vector<8x128xf32>
    %755 = arith.select %5, %754, %750 : vector<8x128xi1>, vector<8x128xf32>
    %756 = vector.extract_strided_slice %755 {offsets = [0, 0], sizes = [8, 32], strides = [1, 1]} : vector<8x128xf32> to vector<8x32xf32>
    %757 = vector.extract_strided_slice %755 {offsets = [0, 32], sizes = [8, 32], strides = [1, 1]} : vector<8x128xf32> to vector<8x32xf32>
    %758 = vector.extract_strided_slice %755 {offsets = [0, 64], sizes = [8, 32], strides = [1, 1]} : vector<8x128xf32> to vector<8x32xf32>
    %759 = vector.extract_strided_slice %755 {offsets = [0, 96], sizes = [8, 32], strides = [1, 1]} : vector<8x128xf32> to vector<8x32xf32>
    %760 = arith.mulf %757, %572 : vector<8x32xf32>
    %761 = arith.mulf %756, %758 : vector<8x32xf32>
    %762 = arith.addf %760, %761 : vector<8x32xf32>
    %763 = math.tanh %762 : vector<8x32xf32>
    %764 = arith.mulf %759, %763 : vector<8x32xf32>
    %765 = arith.truncf %606 : vector<8x32xf32> to vector<8x32xbf16>
    %766 = arith.truncf %574 : vector<8x32xf32> to vector<8x32xbf16>
    %c3_341 = arith.constant 3 : index
    %c0_342 = arith.constant 0 : index
    %c0_343 = arith.constant 0 : index
    %767 = vector.load %arg4[%c3_341, %c0_342, %c0_343] : memref<6x1x128xf32, #tpu.memory_space<vmem>>, vector<1x1x128xf32>
    %768 = vector.shape_cast %767 : vector<1x1x128xf32> to vector<1x128xf32>
    %c2_344 = arith.constant 2 : index
    %c0_345 = arith.constant 0 : index
    %c0_346 = arith.constant 0 : index
    %769 = vector.load %arg2[%c2_344, %c0_345, %c0_346] : memref<5x32x128xbf16, #tpu.memory_space<vmem>>, vector<1x32x128xbf16>
    %770 = vector.shape_cast %769 : vector<1x32x128xbf16> to vector<32x128xbf16>
    %cst_347 = arith.constant dense<0.000000e+00> : vector<8x128xf32>
    %771 = tpu.matmul %766, %770, %cst_347 {dimension_numbers = #tpu.dot_dimension_numbers<[1], [0], [0], [1], [0, 0, 1, 1], [], []>} : vector<8x32xbf16>, vector<32x128xbf16>, vector<8x128xf32> -> vector<8x128xf32>
    %772 = vector.broadcast %768 : vector<1x128xf32> to vector<8x128xf32>
    %773 = arith.addf %772, %771 : vector<8x128xf32>
    %c3_348 = arith.constant 3 : index
    %c0_349 = arith.constant 0 : index
    %c0_350 = arith.constant 0 : index
    %774 = vector.load %arg3[%c3_348, %c0_349, %c0_350] : memref<6x32x128xbf16, #tpu.memory_space<vmem>>, vector<1x32x128xbf16>
    %775 = vector.shape_cast %774 : vector<1x32x128xbf16> to vector<32x128xbf16>
    %cst_351 = arith.constant dense<0.000000e+00> : vector<8x128xf32>
    %776 = tpu.matmul %765, %775, %cst_351 {dimension_numbers = #tpu.dot_dimension_numbers<[1], [0], [0], [1], [0, 0, 1, 1], [], []>} : vector<8x32xbf16>, vector<32x128xbf16>, vector<8x128xf32> -> vector<8x128xf32>
    %777 = arith.addf %773, %776 : vector<8x128xf32>
    %778 = arith.negf %777 : vector<8x128xf32>
    %779 = math.exp %778 : vector<8x128xf32>
    %cst_352 = arith.constant 1.000000e+00 : f32
    %780 = vector.broadcast %cst_352 : f32 to vector<8x128xf32>
    %781 = arith.addf %780, %779 : vector<8x128xf32>
    %782 = arith.divf %780, %781 : vector<8x128xf32>
    %cst_353 = arith.constant 2.000000e+00 : f32
    %783 = vector.broadcast %cst_353 : f32 to vector<8x128xf32>
    %784 = arith.mulf %783, %782 : vector<8x128xf32>
    %cst_354 = arith.constant 1.000000e+00 : f32
    %785 = vector.broadcast %cst_354 : f32 to vector<8x128xf32>
    %786 = arith.subf %784, %785 : vector<8x128xf32>
    %787 = arith.select %5, %786, %782 : vector<8x128xi1>, vector<8x128xf32>
    %788 = vector.extract_strided_slice %787 {offsets = [0, 0], sizes = [8, 32], strides = [1, 1]} : vector<8x128xf32> to vector<8x32xf32>
    %789 = vector.extract_strided_slice %787 {offsets = [0, 32], sizes = [8, 32], strides = [1, 1]} : vector<8x128xf32> to vector<8x32xf32>
    %790 = vector.extract_strided_slice %787 {offsets = [0, 64], sizes = [8, 32], strides = [1, 1]} : vector<8x128xf32> to vector<8x32xf32>
    %791 = vector.extract_strided_slice %787 {offsets = [0, 96], sizes = [8, 32], strides = [1, 1]} : vector<8x128xf32> to vector<8x32xf32>
    %792 = arith.mulf %789, %604 : vector<8x32xf32>
    %793 = arith.mulf %788, %790 : vector<8x32xf32>
    %794 = arith.addf %792, %793 : vector<8x32xf32>
    %795 = math.tanh %794 : vector<8x32xf32>
    %796 = arith.mulf %791, %795 : vector<8x32xf32>
    %797 = arith.truncf %638 : vector<8x32xf32> to vector<8x32xbf16>
    %798 = arith.truncf %606 : vector<8x32xf32> to vector<8x32xbf16>
    %c4_355 = arith.constant 4 : index
    %c0_356 = arith.constant 0 : index
    %c0_357 = arith.constant 0 : index
    %799 = vector.load %arg4[%c4_355, %c0_356, %c0_357] : memref<6x1x128xf32, #tpu.memory_space<vmem>>, vector<1x1x128xf32>
    %800 = vector.shape_cast %799 : vector<1x1x128xf32> to vector<1x128xf32>
    %c3_358 = arith.constant 3 : index
    %c0_359 = arith.constant 0 : index
    %c0_360 = arith.constant 0 : index
    %801 = vector.load %arg2[%c3_358, %c0_359, %c0_360] : memref<5x32x128xbf16, #tpu.memory_space<vmem>>, vector<1x32x128xbf16>
    %802 = vector.shape_cast %801 : vector<1x32x128xbf16> to vector<32x128xbf16>
    %cst_361 = arith.constant dense<0.000000e+00> : vector<8x128xf32>
    %803 = tpu.matmul %798, %802, %cst_361 {dimension_numbers = #tpu.dot_dimension_numbers<[1], [0], [0], [1], [0, 0, 1, 1], [], []>} : vector<8x32xbf16>, vector<32x128xbf16>, vector<8x128xf32> -> vector<8x128xf32>
    %804 = vector.broadcast %800 : vector<1x128xf32> to vector<8x128xf32>
    %805 = arith.addf %804, %803 : vector<8x128xf32>
    %c4_362 = arith.constant 4 : index
    %c0_363 = arith.constant 0 : index
    %c0_364 = arith.constant 0 : index
    %806 = vector.load %arg3[%c4_362, %c0_363, %c0_364] : memref<6x32x128xbf16, #tpu.memory_space<vmem>>, vector<1x32x128xbf16>
    %807 = vector.shape_cast %806 : vector<1x32x128xbf16> to vector<32x128xbf16>
    %cst_365 = arith.constant dense<0.000000e+00> : vector<8x128xf32>
    %808 = tpu.matmul %797, %807, %cst_365 {dimension_numbers = #tpu.dot_dimension_numbers<[1], [0], [0], [1], [0, 0, 1, 1], [], []>} : vector<8x32xbf16>, vector<32x128xbf16>, vector<8x128xf32> -> vector<8x128xf32>
    %809 = arith.addf %805, %808 : vector<8x128xf32>
    %810 = arith.negf %809 : vector<8x128xf32>
    %811 = math.exp %810 : vector<8x128xf32>
    %cst_366 = arith.constant 1.000000e+00 : f32
    %812 = vector.broadcast %cst_366 : f32 to vector<8x128xf32>
    %813 = arith.addf %812, %811 : vector<8x128xf32>
    %814 = arith.divf %812, %813 : vector<8x128xf32>
    %cst_367 = arith.constant 2.000000e+00 : f32
    %815 = vector.broadcast %cst_367 : f32 to vector<8x128xf32>
    %816 = arith.mulf %815, %814 : vector<8x128xf32>
    %cst_368 = arith.constant 1.000000e+00 : f32
    %817 = vector.broadcast %cst_368 : f32 to vector<8x128xf32>
    %818 = arith.subf %816, %817 : vector<8x128xf32>
    %819 = arith.select %5, %818, %814 : vector<8x128xi1>, vector<8x128xf32>
    %820 = vector.extract_strided_slice %819 {offsets = [0, 0], sizes = [8, 32], strides = [1, 1]} : vector<8x128xf32> to vector<8x32xf32>
    %821 = vector.extract_strided_slice %819 {offsets = [0, 32], sizes = [8, 32], strides = [1, 1]} : vector<8x128xf32> to vector<8x32xf32>
    %822 = vector.extract_strided_slice %819 {offsets = [0, 64], sizes = [8, 32], strides = [1, 1]} : vector<8x128xf32> to vector<8x32xf32>
    %823 = vector.extract_strided_slice %819 {offsets = [0, 96], sizes = [8, 32], strides = [1, 1]} : vector<8x128xf32> to vector<8x32xf32>
    %824 = arith.mulf %821, %636 : vector<8x32xf32>
    %825 = arith.mulf %820, %822 : vector<8x32xf32>
    %826 = arith.addf %824, %825 : vector<8x32xf32>
    %827 = math.tanh %826 : vector<8x32xf32>
    %828 = arith.mulf %823, %827 : vector<8x32xf32>
    %829 = arith.truncf %670 : vector<8x32xf32> to vector<8x32xbf16>
    %830 = arith.truncf %638 : vector<8x32xf32> to vector<8x32xbf16>
    %c5_369 = arith.constant 5 : index
    %c0_370 = arith.constant 0 : index
    %c0_371 = arith.constant 0 : index
    %831 = vector.load %arg4[%c5_369, %c0_370, %c0_371] : memref<6x1x128xf32, #tpu.memory_space<vmem>>, vector<1x1x128xf32>
    %832 = vector.shape_cast %831 : vector<1x1x128xf32> to vector<1x128xf32>
    %c4_372 = arith.constant 4 : index
    %c0_373 = arith.constant 0 : index
    %c0_374 = arith.constant 0 : index
    %833 = vector.load %arg2[%c4_372, %c0_373, %c0_374] : memref<5x32x128xbf16, #tpu.memory_space<vmem>>, vector<1x32x128xbf16>
    %834 = vector.shape_cast %833 : vector<1x32x128xbf16> to vector<32x128xbf16>
    %cst_375 = arith.constant dense<0.000000e+00> : vector<8x128xf32>
    %835 = tpu.matmul %830, %834, %cst_375 {dimension_numbers = #tpu.dot_dimension_numbers<[1], [0], [0], [1], [0, 0, 1, 1], [], []>} : vector<8x32xbf16>, vector<32x128xbf16>, vector<8x128xf32> -> vector<8x128xf32>
    %836 = vector.broadcast %832 : vector<1x128xf32> to vector<8x128xf32>
    %837 = arith.addf %836, %835 : vector<8x128xf32>
    %c5_376 = arith.constant 5 : index
    %c0_377 = arith.constant 0 : index
    %c0_378 = arith.constant 0 : index
    %838 = vector.load %arg3[%c5_376, %c0_377, %c0_378] : memref<6x32x128xbf16, #tpu.memory_space<vmem>>, vector<1x32x128xbf16>
    %839 = vector.shape_cast %838 : vector<1x32x128xbf16> to vector<32x128xbf16>
    %cst_379 = arith.constant dense<0.000000e+00> : vector<8x128xf32>
    %840 = tpu.matmul %829, %839, %cst_379 {dimension_numbers = #tpu.dot_dimension_numbers<[1], [0], [0], [1], [0, 0, 1, 1], [], []>} : vector<8x32xbf16>, vector<32x128xbf16>, vector<8x128xf32> -> vector<8x128xf32>
    %841 = arith.addf %837, %840 : vector<8x128xf32>
    %842 = arith.negf %841 : vector<8x128xf32>
    %843 = math.exp %842 : vector<8x128xf32>
    %cst_380 = arith.constant 1.000000e+00 : f32
    %844 = vector.broadcast %cst_380 : f32 to vector<8x128xf32>
    %845 = arith.addf %844, %843 : vector<8x128xf32>
    %846 = arith.divf %844, %845 : vector<8x128xf32>
    %cst_381 = arith.constant 2.000000e+00 : f32
    %847 = vector.broadcast %cst_381 : f32 to vector<8x128xf32>
    %848 = arith.mulf %847, %846 : vector<8x128xf32>
    %cst_382 = arith.constant 1.000000e+00 : f32
    %849 = vector.broadcast %cst_382 : f32 to vector<8x128xf32>
    %850 = arith.subf %848, %849 : vector<8x128xf32>
    %851 = arith.select %5, %850, %846 : vector<8x128xi1>, vector<8x128xf32>
    %852 = vector.extract_strided_slice %851 {offsets = [0, 0], sizes = [8, 32], strides = [1, 1]} : vector<8x128xf32> to vector<8x32xf32>
    %853 = vector.extract_strided_slice %851 {offsets = [0, 32], sizes = [8, 32], strides = [1, 1]} : vector<8x128xf32> to vector<8x32xf32>
    %854 = vector.extract_strided_slice %851 {offsets = [0, 64], sizes = [8, 32], strides = [1, 1]} : vector<8x128xf32> to vector<8x32xf32>
    %855 = vector.extract_strided_slice %851 {offsets = [0, 96], sizes = [8, 32], strides = [1, 1]} : vector<8x128xf32> to vector<8x32xf32>
    %856 = arith.mulf %853, %668 : vector<8x32xf32>
    %857 = arith.mulf %852, %854 : vector<8x32xf32>
    %858 = arith.addf %856, %857 : vector<8x32xf32>
    %859 = math.tanh %858 : vector<8x32xf32>
    %860 = arith.mulf %855, %859 : vector<8x32xf32>
    %861 = arith.truncf %860 : vector<8x32xf32> to vector<8x32xbf16>
    %cst_383 = arith.constant dense<0.000000e+00> : vector<8x128xf32>
    %862 = tpu.matmul %861, %15, %cst_383 {dimension_numbers = #tpu.dot_dimension_numbers<[1], [0], [0], [1], [0, 0, 1, 1], [], []>} : vector<8x32xbf16>, vector<32x128xbf16>, vector<8x128xf32> -> vector<8x128xf32>
    %863 = vector.broadcast %16 : vector<1x128xf32> to vector<8x128xf32>
    %864 = arith.addf %862, %863 : vector<8x128xf32>
    %c8_384 = arith.constant 8 : index
    %c0_385 = arith.constant 0 : index
    %865 = vector.load %arg9[%c8_384, %c0_385] : memref<56x128xf32, #tpu.memory_space<vmem>>, vector<8x128xf32>
    tpu.vector_store %arg9[%c8_384, %c0_385], %864 {strides = array<i32>} : memref<56x128xf32, #tpu.memory_space<vmem>>, vector<8x128xf32>,
    %866 = arith.truncf %732 : vector<8x32xf32> to vector<8x32xbf16>
    %867 = arith.truncf %700 : vector<8x32xf32> to vector<8x32xbf16>
    %c1_386 = arith.constant 1 : index
    %c0_387 = arith.constant 0 : index
    %c0_388 = arith.constant 0 : index
    %868 = vector.load %arg4[%c1_386, %c0_387, %c0_388] : memref<6x1x128xf32, #tpu.memory_space<vmem>>, vector<1x1x128xf32>
    %869 = vector.shape_cast %868 : vector<1x1x128xf32> to vector<1x128xf32>
    %c0_389 = arith.constant 0 : index
    %c0_390 = arith.constant 0 : index
    %c0_391 = arith.constant 0 : index
    %870 = vector.load %arg2[%c0_389, %c0_390, %c0_391] : memref<5x32x128xbf16, #tpu.memory_space<vmem>>, vector<1x32x128xbf16>
    %871 = vector.shape_cast %870 : vector<1x32x128xbf16> to vector<32x128xbf16>
    %cst_392 = arith.constant dense<0.000000e+00> : vector<8x128xf32>
    %872 = tpu.matmul %867, %871, %cst_392 {dimension_numbers = #tpu.dot_dimension_numbers<[1], [0], [0], [1], [0, 0, 1, 1], [], []>} : vector<8x32xbf16>, vector<32x128xbf16>, vector<8x128xf32> -> vector<8x128xf32>
    %873 = vector.broadcast %869 : vector<1x128xf32> to vector<8x128xf32>
    %874 = arith.addf %873, %872 : vector<8x128xf32>
    %c1_393 = arith.constant 1 : index
    %c0_394 = arith.constant 0 : index
    %c0_395 = arith.constant 0 : index
    %875 = vector.load %arg3[%c1_393, %c0_394, %c0_395] : memref<6x32x128xbf16, #tpu.memory_space<vmem>>, vector<1x32x128xbf16>
    %876 = vector.shape_cast %875 : vector<1x32x128xbf16> to vector<32x128xbf16>
    %cst_396 = arith.constant dense<0.000000e+00> : vector<8x128xf32>
    %877 = tpu.matmul %866, %876, %cst_396 {dimension_numbers = #tpu.dot_dimension_numbers<[1], [0], [0], [1], [0, 0, 1, 1], [], []>} : vector<8x32xbf16>, vector<32x128xbf16>, vector<8x128xf32> -> vector<8x128xf32>
    %878 = arith.addf %874, %877 : vector<8x128xf32>
    %879 = arith.negf %878 : vector<8x128xf32>
    %880 = math.exp %879 : vector<8x128xf32>
    %cst_397 = arith.constant 1.000000e+00 : f32
    %881 = vector.broadcast %cst_397 : f32 to vector<8x128xf32>
    %882 = arith.addf %881, %880 : vector<8x128xf32>
    %883 = arith.divf %881, %882 : vector<8x128xf32>
    %cst_398 = arith.constant 2.000000e+00 : f32
    %884 = vector.broadcast %cst_398 : f32 to vector<8x128xf32>
    %885 = arith.mulf %884, %883 : vector<8x128xf32>
    %cst_399 = arith.constant 1.000000e+00 : f32
    %886 = vector.broadcast %cst_399 : f32 to vector<8x128xf32>
    %887 = arith.subf %885, %886 : vector<8x128xf32>
    %888 = arith.select %5, %887, %883 : vector<8x128xi1>, vector<8x128xf32>
    %889 = vector.extract_strided_slice %888 {offsets = [0, 0], sizes = [8, 32], strides = [1, 1]} : vector<8x128xf32> to vector<8x32xf32>
    %890 = vector.extract_strided_slice %888 {offsets = [0, 32], sizes = [8, 32], strides = [1, 1]} : vector<8x128xf32> to vector<8x32xf32>
    %891 = vector.extract_strided_slice %888 {offsets = [0, 64], sizes = [8, 32], strides = [1, 1]} : vector<8x128xf32> to vector<8x32xf32>
    %892 = vector.extract_strided_slice %888 {offsets = [0, 96], sizes = [8, 32], strides = [1, 1]} : vector<8x128xf32> to vector<8x32xf32>
    %893 = arith.mulf %890, %730 : vector<8x32xf32>
    %894 = arith.mulf %889, %891 : vector<8x32xf32>
    %895 = arith.addf %893, %894 : vector<8x32xf32>
    %896 = math.tanh %895 : vector<8x32xf32>
    %897 = arith.mulf %892, %896 : vector<8x32xf32>
    %898 = arith.truncf %764 : vector<8x32xf32> to vector<8x32xbf16>
    %899 = arith.truncf %732 : vector<8x32xf32> to vector<8x32xbf16>
    %c2_400 = arith.constant 2 : index
    %c0_401 = arith.constant 0 : index
    %c0_402 = arith.constant 0 : index
    %900 = vector.load %arg4[%c2_400, %c0_401, %c0_402] : memref<6x1x128xf32, #tpu.memory_space<vmem>>, vector<1x1x128xf32>
    %901 = vector.shape_cast %900 : vector<1x1x128xf32> to vector<1x128xf32>
    %c1_403 = arith.constant 1 : index
    %c0_404 = arith.constant 0 : index
    %c0_405 = arith.constant 0 : index
    %902 = vector.load %arg2[%c1_403, %c0_404, %c0_405] : memref<5x32x128xbf16, #tpu.memory_space<vmem>>, vector<1x32x128xbf16>
    %903 = vector.shape_cast %902 : vector<1x32x128xbf16> to vector<32x128xbf16>
    %cst_406 = arith.constant dense<0.000000e+00> : vector<8x128xf32>
    %904 = tpu.matmul %899, %903, %cst_406 {dimension_numbers = #tpu.dot_dimension_numbers<[1], [0], [0], [1], [0, 0, 1, 1], [], []>} : vector<8x32xbf16>, vector<32x128xbf16>, vector<8x128xf32> -> vector<8x128xf32>
    %905 = vector.broadcast %901 : vector<1x128xf32> to vector<8x128xf32>
    %906 = arith.addf %905, %904 : vector<8x128xf32>
    %c2_407 = arith.constant 2 : index
    %c0_408 = arith.constant 0 : index
    %c0_409 = arith.constant 0 : index
    %907 = vector.load %arg3[%c2_407, %c0_408, %c0_409] : memref<6x32x128xbf16, #tpu.memory_space<vmem>>, vector<1x32x128xbf16>
    %908 = vector.shape_cast %907 : vector<1x32x128xbf16> to vector<32x128xbf16>
    %cst_410 = arith.constant dense<0.000000e+00> : vector<8x128xf32>
    %909 = tpu.matmul %898, %908, %cst_410 {dimension_numbers = #tpu.dot_dimension_numbers<[1], [0], [0], [1], [0, 0, 1, 1], [], []>} : vector<8x32xbf16>, vector<32x128xbf16>, vector<8x128xf32> -> vector<8x128xf32>
    %910 = arith.addf %906, %909 : vector<8x128xf32>
    %911 = arith.negf %910 : vector<8x128xf32>
    %912 = math.exp %911 : vector<8x128xf32>
    %cst_411 = arith.constant 1.000000e+00 : f32
    %913 = vector.broadcast %cst_411 : f32 to vector<8x128xf32>
    %914 = arith.addf %913, %912 : vector<8x128xf32>
    %915 = arith.divf %913, %914 : vector<8x128xf32>
    %cst_412 = arith.constant 2.000000e+00 : f32
    %916 = vector.broadcast %cst_412 : f32 to vector<8x128xf32>
    %917 = arith.mulf %916, %915 : vector<8x128xf32>
    %cst_413 = arith.constant 1.000000e+00 : f32
    %918 = vector.broadcast %cst_413 : f32 to vector<8x128xf32>
    %919 = arith.subf %917, %918 : vector<8x128xf32>
    %920 = arith.select %5, %919, %915 : vector<8x128xi1>, vector<8x128xf32>
    %921 = vector.extract_strided_slice %920 {offsets = [0, 0], sizes = [8, 32], strides = [1, 1]} : vector<8x128xf32> to vector<8x32xf32>
    %922 = vector.extract_strided_slice %920 {offsets = [0, 32], sizes = [8, 32], strides = [1, 1]} : vector<8x128xf32> to vector<8x32xf32>
    %923 = vector.extract_strided_slice %920 {offsets = [0, 64], sizes = [8, 32], strides = [1, 1]} : vector<8x128xf32> to vector<8x32xf32>
    %924 = vector.extract_strided_slice %920 {offsets = [0, 96], sizes = [8, 32], strides = [1, 1]} : vector<8x128xf32> to vector<8x32xf32>
    %925 = arith.mulf %922, %762 : vector<8x32xf32>
    %926 = arith.mulf %921, %923 : vector<8x32xf32>
    %927 = arith.addf %925, %926 : vector<8x32xf32>
    %928 = math.tanh %927 : vector<8x32xf32>
    %929 = arith.mulf %924, %928 : vector<8x32xf32>
    %930 = arith.truncf %796 : vector<8x32xf32> to vector<8x32xbf16>
    %931 = arith.truncf %764 : vector<8x32xf32> to vector<8x32xbf16>
    %c3_414 = arith.constant 3 : index
    %c0_415 = arith.constant 0 : index
    %c0_416 = arith.constant 0 : index
    %932 = vector.load %arg4[%c3_414, %c0_415, %c0_416] : memref<6x1x128xf32, #tpu.memory_space<vmem>>, vector<1x1x128xf32>
    %933 = vector.shape_cast %932 : vector<1x1x128xf32> to vector<1x128xf32>
    %c2_417 = arith.constant 2 : index
    %c0_418 = arith.constant 0 : index
    %c0_419 = arith.constant 0 : index
    %934 = vector.load %arg2[%c2_417, %c0_418, %c0_419] : memref<5x32x128xbf16, #tpu.memory_space<vmem>>, vector<1x32x128xbf16>
    %935 = vector.shape_cast %934 : vector<1x32x128xbf16> to vector<32x128xbf16>
    %cst_420 = arith.constant dense<0.000000e+00> : vector<8x128xf32>
    %936 = tpu.matmul %931, %935, %cst_420 {dimension_numbers = #tpu.dot_dimension_numbers<[1], [0], [0], [1], [0, 0, 1, 1], [], []>} : vector<8x32xbf16>, vector<32x128xbf16>, vector<8x128xf32> -> vector<8x128xf32>
    %937 = vector.broadcast %933 : vector<1x128xf32> to vector<8x128xf32>
    %938 = arith.addf %937, %936 : vector<8x128xf32>
    %c3_421 = arith.constant 3 : index
    %c0_422 = arith.constant 0 : index
    %c0_423 = arith.constant 0 : index
    %939 = vector.load %arg3[%c3_421, %c0_422, %c0_423] : memref<6x32x128xbf16, #tpu.memory_space<vmem>>, vector<1x32x128xbf16>
    %940 = vector.shape_cast %939 : vector<1x32x128xbf16> to vector<32x128xbf16>
    %cst_424 = arith.constant dense<0.000000e+00> : vector<8x128xf32>
    %941 = tpu.matmul %930, %940, %cst_424 {dimension_numbers = #tpu.dot_dimension_numbers<[1], [0], [0], [1], [0, 0, 1, 1], [], []>} : vector<8x32xbf16>, vector<32x128xbf16>, vector<8x128xf32> -> vector<8x128xf32>
    %942 = arith.addf %938, %941 : vector<8x128xf32>
    %943 = arith.negf %942 : vector<8x128xf32>
    %944 = math.exp %943 : vector<8x128xf32>
    %cst_425 = arith.constant 1.000000e+00 : f32
    %945 = vector.broadcast %cst_425 : f32 to vector<8x128xf32>
    %946 = arith.addf %945, %944 : vector<8x128xf32>
    %947 = arith.divf %945, %946 : vector<8x128xf32>
    %cst_426 = arith.constant 2.000000e+00 : f32
    %948 = vector.broadcast %cst_426 : f32 to vector<8x128xf32>
    %949 = arith.mulf %948, %947 : vector<8x128xf32>
    %cst_427 = arith.constant 1.000000e+00 : f32
    %950 = vector.broadcast %cst_427 : f32 to vector<8x128xf32>
    %951 = arith.subf %949, %950 : vector<8x128xf32>
    %952 = arith.select %5, %951, %947 : vector<8x128xi1>, vector<8x128xf32>
    %953 = vector.extract_strided_slice %952 {offsets = [0, 0], sizes = [8, 32], strides = [1, 1]} : vector<8x128xf32> to vector<8x32xf32>
    %954 = vector.extract_strided_slice %952 {offsets = [0, 32], sizes = [8, 32], strides = [1, 1]} : vector<8x128xf32> to vector<8x32xf32>
    %955 = vector.extract_strided_slice %952 {offsets = [0, 64], sizes = [8, 32], strides = [1, 1]} : vector<8x128xf32> to vector<8x32xf32>
    %956 = vector.extract_strided_slice %952 {offsets = [0, 96], sizes = [8, 32], strides = [1, 1]} : vector<8x128xf32> to vector<8x32xf32>
    %957 = arith.mulf %954, %794 : vector<8x32xf32>
    %958 = arith.mulf %953, %955 : vector<8x32xf32>
    %959 = arith.addf %957, %958 : vector<8x32xf32>
    %960 = math.tanh %959 : vector<8x32xf32>
    %961 = arith.mulf %956, %960 : vector<8x32xf32>
    %962 = arith.truncf %828 : vector<8x32xf32> to vector<8x32xbf16>
    %963 = arith.truncf %796 : vector<8x32xf32> to vector<8x32xbf16>
    %c4_428 = arith.constant 4 : index
    %c0_429 = arith.constant 0 : index
    %c0_430 = arith.constant 0 : index
    %964 = vector.load %arg4[%c4_428, %c0_429, %c0_430] : memref<6x1x128xf32, #tpu.memory_space<vmem>>, vector<1x1x128xf32>
    %965 = vector.shape_cast %964 : vector<1x1x128xf32> to vector<1x128xf32>
    %c3_431 = arith.constant 3 : index
    %c0_432 = arith.constant 0 : index
    %c0_433 = arith.constant 0 : index
    %966 = vector.load %arg2[%c3_431, %c0_432, %c0_433] : memref<5x32x128xbf16, #tpu.memory_space<vmem>>, vector<1x32x128xbf16>
    %967 = vector.shape_cast %966 : vector<1x32x128xbf16> to vector<32x128xbf16>
    %cst_434 = arith.constant dense<0.000000e+00> : vector<8x128xf32>
    %968 = tpu.matmul %963, %967, %cst_434 {dimension_numbers = #tpu.dot_dimension_numbers<[1], [0], [0], [1], [0, 0, 1, 1], [], []>} : vector<8x32xbf16>, vector<32x128xbf16>, vector<8x128xf32> -> vector<8x128xf32>
    %969 = vector.broadcast %965 : vector<1x128xf32> to vector<8x128xf32>
    %970 = arith.addf %969, %968 : vector<8x128xf32>
    %c4_435 = arith.constant 4 : index
    %c0_436 = arith.constant 0 : index
    %c0_437 = arith.constant 0 : index
    %971 = vector.load %arg3[%c4_435, %c0_436, %c0_437] : memref<6x32x128xbf16, #tpu.memory_space<vmem>>, vector<1x32x128xbf16>
    %972 = vector.shape_cast %971 : vector<1x32x128xbf16> to vector<32x128xbf16>
    %cst_438 = arith.constant dense<0.000000e+00> : vector<8x128xf32>
    %973 = tpu.matmul %962, %972, %cst_438 {dimension_numbers = #tpu.dot_dimension_numbers<[1], [0], [0], [1], [0, 0, 1, 1], [], []>} : vector<8x32xbf16>, vector<32x128xbf16>, vector<8x128xf32> -> vector<8x128xf32>
    %974 = arith.addf %970, %973 : vector<8x128xf32>
    %975 = arith.negf %974 : vector<8x128xf32>
    %976 = math.exp %975 : vector<8x128xf32>
    %cst_439 = arith.constant 1.000000e+00 : f32
    %977 = vector.broadcast %cst_439 : f32 to vector<8x128xf32>
    %978 = arith.addf %977, %976 : vector<8x128xf32>
    %979 = arith.divf %977, %978 : vector<8x128xf32>
    %cst_440 = arith.constant 2.000000e+00 : f32
    %980 = vector.broadcast %cst_440 : f32 to vector<8x128xf32>
    %981 = arith.mulf %980, %979 : vector<8x128xf32>
    %cst_441 = arith.constant 1.000000e+00 : f32
    %982 = vector.broadcast %cst_441 : f32 to vector<8x128xf32>
    %983 = arith.subf %981, %982 : vector<8x128xf32>
    %984 = arith.select %5, %983, %979 : vector<8x128xi1>, vector<8x128xf32>
    %985 = vector.extract_strided_slice %984 {offsets = [0, 0], sizes = [8, 32], strides = [1, 1]} : vector<8x128xf32> to vector<8x32xf32>
    %986 = vector.extract_strided_slice %984 {offsets = [0, 32], sizes = [8, 32], strides = [1, 1]} : vector<8x128xf32> to vector<8x32xf32>
    %987 = vector.extract_strided_slice %984 {offsets = [0, 64], sizes = [8, 32], strides = [1, 1]} : vector<8x128xf32> to vector<8x32xf32>
    %988 = vector.extract_strided_slice %984 {offsets = [0, 96], sizes = [8, 32], strides = [1, 1]} : vector<8x128xf32> to vector<8x32xf32>
    %989 = arith.mulf %986, %826 : vector<8x32xf32>
    %990 = arith.mulf %985, %987 : vector<8x32xf32>
    %991 = arith.addf %989, %990 : vector<8x32xf32>
    %992 = math.tanh %991 : vector<8x32xf32>
    %993 = arith.mulf %988, %992 : vector<8x32xf32>
    %994 = arith.truncf %860 : vector<8x32xf32> to vector<8x32xbf16>
    %995 = arith.truncf %828 : vector<8x32xf32> to vector<8x32xbf16>
    %c5_442 = arith.constant 5 : index
    %c0_443 = arith.constant 0 : index
    %c0_444 = arith.constant 0 : index
    %996 = vector.load %arg4[%c5_442, %c0_443, %c0_444] : memref<6x1x128xf32, #tpu.memory_space<vmem>>, vector<1x1x128xf32>
    %997 = vector.shape_cast %996 : vector<1x1x128xf32> to vector<1x128xf32>
    %c4_445 = arith.constant 4 : index
    %c0_446 = arith.constant 0 : index
    %c0_447 = arith.constant 0 : index
    %998 = vector.load %arg2[%c4_445, %c0_446, %c0_447] : memref<5x32x128xbf16, #tpu.memory_space<vmem>>, vector<1x32x128xbf16>
    %999 = vector.shape_cast %998 : vector<1x32x128xbf16> to vector<32x128xbf16>
    %cst_448 = arith.constant dense<0.000000e+00> : vector<8x128xf32>
    %1000 = tpu.matmul %995, %999, %cst_448 {dimension_numbers = #tpu.dot_dimension_numbers<[1], [0], [0], [1], [0, 0, 1, 1], [], []>} : vector<8x32xbf16>, vector<32x128xbf16>, vector<8x128xf32> -> vector<8x128xf32>
    %1001 = vector.broadcast %997 : vector<1x128xf32> to vector<8x128xf32>
    %1002 = arith.addf %1001, %1000 : vector<8x128xf32>
    %c5_449 = arith.constant 5 : index
    %c0_450 = arith.constant 0 : index
    %c0_451 = arith.constant 0 : index
    %1003 = vector.load %arg3[%c5_449, %c0_450, %c0_451] : memref<6x32x128xbf16, #tpu.memory_space<vmem>>, vector<1x32x128xbf16>
    %1004 = vector.shape_cast %1003 : vector<1x32x128xbf16> to vector<32x128xbf16>
    %cst_452 = arith.constant dense<0.000000e+00> : vector<8x128xf32>
    %1005 = tpu.matmul %994, %1004, %cst_452 {dimension_numbers = #tpu.dot_dimension_numbers<[1], [0], [0], [1], [0, 0, 1, 1], [], []>} : vector<8x32xbf16>, vector<32x128xbf16>, vector<8x128xf32> -> vector<8x128xf32>
    %1006 = arith.addf %1002, %1005 : vector<8x128xf32>
    %1007 = arith.negf %1006 : vector<8x128xf32>
    %1008 = math.exp %1007 : vector<8x128xf32>
    %cst_453 = arith.constant 1.000000e+00 : f32
    %1009 = vector.broadcast %cst_453 : f32 to vector<8x128xf32>
    %1010 = arith.addf %1009, %1008 : vector<8x128xf32>
    %1011 = arith.divf %1009, %1010 : vector<8x128xf32>
    %cst_454 = arith.constant 2.000000e+00 : f32
    %1012 = vector.broadcast %cst_454 : f32 to vector<8x128xf32>
    %1013 = arith.mulf %1012, %1011 : vector<8x128xf32>
    %cst_455 = arith.constant 1.000000e+00 : f32
    %1014 = vector.broadcast %cst_455 : f32 to vector<8x128xf32>
    %1015 = arith.subf %1013, %1014 : vector<8x128xf32>
    %1016 = arith.select %5, %1015, %1011 : vector<8x128xi1>, vector<8x128xf32>
    %1017 = vector.extract_strided_slice %1016 {offsets = [0, 0], sizes = [8, 32], strides = [1, 1]} : vector<8x128xf32> to vector<8x32xf32>
    %1018 = vector.extract_strided_slice %1016 {offsets = [0, 32], sizes = [8, 32], strides = [1, 1]} : vector<8x128xf32> to vector<8x32xf32>
    %1019 = vector.extract_strided_slice %1016 {offsets = [0, 64], sizes = [8, 32], strides = [1, 1]} : vector<8x128xf32> to vector<8x32xf32>
    %1020 = vector.extract_strided_slice %1016 {offsets = [0, 96], sizes = [8, 32], strides = [1, 1]} : vector<8x128xf32> to vector<8x32xf32>
    %1021 = arith.mulf %1018, %858 : vector<8x32xf32>
    %1022 = arith.mulf %1017, %1019 : vector<8x32xf32>
    %1023 = arith.addf %1021, %1022 : vector<8x32xf32>
    %1024 = math.tanh %1023 : vector<8x32xf32>
    %1025 = arith.mulf %1020, %1024 : vector<8x32xf32>
    %1026 = arith.truncf %1025 : vector<8x32xf32> to vector<8x32xbf16>
    %cst_456 = arith.constant dense<0.000000e+00> : vector<8x128xf32>
    %1027 = tpu.matmul %1026, %15, %cst_456 {dimension_numbers = #tpu.dot_dimension_numbers<[1], [0], [0], [1], [0, 0, 1, 1], [], []>} : vector<8x32xbf16>, vector<32x128xbf16>, vector<8x128xf32> -> vector<8x128xf32>
    %1028 = vector.broadcast %16 : vector<1x128xf32> to vector<8x128xf32>
    %1029 = arith.addf %1027, %1028 : vector<8x128xf32>
    %c16_457 = arith.constant 16 : index
    %c0_458 = arith.constant 0 : index
    %1030 = vector.load %arg9[%c16_457, %c0_458] : memref<56x128xf32, #tpu.memory_space<vmem>>, vector<8x128xf32>
    tpu.vector_store %arg9[%c16_457, %c0_458], %1029 {strides = array<i32>} : memref<56x128xf32, #tpu.memory_space<vmem>>, vector<8x128xf32>,
    %1031 = arith.truncf %929 : vector<8x32xf32> to vector<8x32xbf16>
    %1032 = arith.truncf %897 : vector<8x32xf32> to vector<8x32xbf16>
    %c2_459 = arith.constant 2 : index
    %c0_460 = arith.constant 0 : index
    %c0_461 = arith.constant 0 : index
    %1033 = vector.load %arg4[%c2_459, %c0_460, %c0_461] : memref<6x1x128xf32, #tpu.memory_space<vmem>>, vector<1x1x128xf32>
    %1034 = vector.shape_cast %1033 : vector<1x1x128xf32> to vector<1x128xf32>
    %c1_462 = arith.constant 1 : index
    %c0_463 = arith.constant 0 : index
    %c0_464 = arith.constant 0 : index
    %1035 = vector.load %arg2[%c1_462, %c0_463, %c0_464] : memref<5x32x128xbf16, #tpu.memory_space<vmem>>, vector<1x32x128xbf16>
    %1036 = vector.shape_cast %1035 : vector<1x32x128xbf16> to vector<32x128xbf16>
    %cst_465 = arith.constant dense<0.000000e+00> : vector<8x128xf32>
    %1037 = tpu.matmul %1032, %1036, %cst_465 {dimension_numbers = #tpu.dot_dimension_numbers<[1], [0], [0], [1], [0, 0, 1, 1], [], []>} : vector<8x32xbf16>, vector<32x128xbf16>, vector<8x128xf32> -> vector<8x128xf32>
    %1038 = vector.broadcast %1034 : vector<1x128xf32> to vector<8x128xf32>
    %1039 = arith.addf %1038, %1037 : vector<8x128xf32>
    %c2_466 = arith.constant 2 : index
    %c0_467 = arith.constant 0 : index
    %c0_468 = arith.constant 0 : index
    %1040 = vector.load %arg3[%c2_466, %c0_467, %c0_468] : memref<6x32x128xbf16, #tpu.memory_space<vmem>>, vector<1x32x128xbf16>
    %1041 = vector.shape_cast %1040 : vector<1x32x128xbf16> to vector<32x128xbf16>
    %cst_469 = arith.constant dense<0.000000e+00> : vector<8x128xf32>
    %1042 = tpu.matmul %1031, %1041, %cst_469 {dimension_numbers = #tpu.dot_dimension_numbers<[1], [0], [0], [1], [0, 0, 1, 1], [], []>} : vector<8x32xbf16>, vector<32x128xbf16>, vector<8x128xf32> -> vector<8x128xf32>
    %1043 = arith.addf %1039, %1042 : vector<8x128xf32>
    %1044 = arith.negf %1043 : vector<8x128xf32>
    %1045 = math.exp %1044 : vector<8x128xf32>
    %cst_470 = arith.constant 1.000000e+00 : f32
    %1046 = vector.broadcast %cst_470 : f32 to vector<8x128xf32>
    %1047 = arith.addf %1046, %1045 : vector<8x128xf32>
    %1048 = arith.divf %1046, %1047 : vector<8x128xf32>
    %cst_471 = arith.constant 2.000000e+00 : f32
    %1049 = vector.broadcast %cst_471 : f32 to vector<8x128xf32>
    %1050 = arith.mulf %1049, %1048 : vector<8x128xf32>
    %cst_472 = arith.constant 1.000000e+00 : f32
    %1051 = vector.broadcast %cst_472 : f32 to vector<8x128xf32>
    %1052 = arith.subf %1050, %1051 : vector<8x128xf32>
    %1053 = arith.select %5, %1052, %1048 : vector<8x128xi1>, vector<8x128xf32>
    %1054 = vector.extract_strided_slice %1053 {offsets = [0, 0], sizes = [8, 32], strides = [1, 1]} : vector<8x128xf32> to vector<8x32xf32>
    %1055 = vector.extract_strided_slice %1053 {offsets = [0, 32], sizes = [8, 32], strides = [1, 1]} : vector<8x128xf32> to vector<8x32xf32>
    %1056 = vector.extract_strided_slice %1053 {offsets = [0, 64], sizes = [8, 32], strides = [1, 1]} : vector<8x128xf32> to vector<8x32xf32>
    %1057 = vector.extract_strided_slice %1053 {offsets = [0, 96], sizes = [8, 32], strides = [1, 1]} : vector<8x128xf32> to vector<8x32xf32>
    %1058 = arith.mulf %1055, %927 : vector<8x32xf32>
    %1059 = arith.mulf %1054, %1056 : vector<8x32xf32>
    %1060 = arith.addf %1058, %1059 : vector<8x32xf32>
    %1061 = math.tanh %1060 : vector<8x32xf32>
    %1062 = arith.mulf %1057, %1061 : vector<8x32xf32>
    %1063 = arith.truncf %961 : vector<8x32xf32> to vector<8x32xbf16>
    %1064 = arith.truncf %929 : vector<8x32xf32> to vector<8x32xbf16>
    %c3_473 = arith.constant 3 : index
    %c0_474 = arith.constant 0 : index
    %c0_475 = arith.constant 0 : index
    %1065 = vector.load %arg4[%c3_473, %c0_474, %c0_475] : memref<6x1x128xf32, #tpu.memory_space<vmem>>, vector<1x1x128xf32>
    %1066 = vector.shape_cast %1065 : vector<1x1x128xf32> to vector<1x128xf32>
    %c2_476 = arith.constant 2 : index
    %c0_477 = arith.constant 0 : index
    %c0_478 = arith.constant 0 : index
    %1067 = vector.load %arg2[%c2_476, %c0_477, %c0_478] : memref<5x32x128xbf16, #tpu.memory_space<vmem>>, vector<1x32x128xbf16>
    %1068 = vector.shape_cast %1067 : vector<1x32x128xbf16> to vector<32x128xbf16>
    %cst_479 = arith.constant dense<0.000000e+00> : vector<8x128xf32>
    %1069 = tpu.matmul %1064, %1068, %cst_479 {dimension_numbers = #tpu.dot_dimension_numbers<[1], [0], [0], [1], [0, 0, 1, 1], [], []>} : vector<8x32xbf16>, vector<32x128xbf16>, vector<8x128xf32> -> vector<8x128xf32>
    %1070 = vector.broadcast %1066 : vector<1x128xf32> to vector<8x128xf32>
    %1071 = arith.addf %1070, %1069 : vector<8x128xf32>
    %c3_480 = arith.constant 3 : index
    %c0_481 = arith.constant 0 : index
    %c0_482 = arith.constant 0 : index
    %1072 = vector.load %arg3[%c3_480, %c0_481, %c0_482] : memref<6x32x128xbf16, #tpu.memory_space<vmem>>, vector<1x32x128xbf16>
    %1073 = vector.shape_cast %1072 : vector<1x32x128xbf16> to vector<32x128xbf16>
    %cst_483 = arith.constant dense<0.000000e+00> : vector<8x128xf32>
    %1074 = tpu.matmul %1063, %1073, %cst_483 {dimension_numbers = #tpu.dot_dimension_numbers<[1], [0], [0], [1], [0, 0, 1, 1], [], []>} : vector<8x32xbf16>, vector<32x128xbf16>, vector<8x128xf32> -> vector<8x128xf32>
    %1075 = arith.addf %1071, %1074 : vector<8x128xf32>
    %1076 = arith.negf %1075 : vector<8x128xf32>
    %1077 = math.exp %1076 : vector<8x128xf32>
    %cst_484 = arith.constant 1.000000e+00 : f32
    %1078 = vector.broadcast %cst_484 : f32 to vector<8x128xf32>
    %1079 = arith.addf %1078, %1077 : vector<8x128xf32>
    %1080 = arith.divf %1078, %1079 : vector<8x128xf32>
    %cst_485 = arith.constant 2.000000e+00 : f32
    %1081 = vector.broadcast %cst_485 : f32 to vector<8x128xf32>
    %1082 = arith.mulf %1081, %1080 : vector<8x128xf32>
    %cst_486 = arith.constant 1.000000e+00 : f32
    %1083 = vector.broadcast %cst_486 : f32 to vector<8x128xf32>
    %1084 = arith.subf %1082, %1083 : vector<8x128xf32>
    %1085 = arith.select %5, %1084, %1080 : vector<8x128xi1>, vector<8x128xf32>
    %1086 = vector.extract_strided_slice %1085 {offsets = [0, 0], sizes = [8, 32], strides = [1, 1]} : vector<8x128xf32> to vector<8x32xf32>
    %1087 = vector.extract_strided_slice %1085 {offsets = [0, 32], sizes = [8, 32], strides = [1, 1]} : vector<8x128xf32> to vector<8x32xf32>
    %1088 = vector.extract_strided_slice %1085 {offsets = [0, 64], sizes = [8, 32], strides = [1, 1]} : vector<8x128xf32> to vector<8x32xf32>
    %1089 = vector.extract_strided_slice %1085 {offsets = [0, 96], sizes = [8, 32], strides = [1, 1]} : vector<8x128xf32> to vector<8x32xf32>
    %1090 = arith.mulf %1087, %959 : vector<8x32xf32>
    %1091 = arith.mulf %1086, %1088 : vector<8x32xf32>
    %1092 = arith.addf %1090, %1091 : vector<8x32xf32>
    %1093 = math.tanh %1092 : vector<8x32xf32>
    %1094 = arith.mulf %1089, %1093 : vector<8x32xf32>
    %1095 = arith.truncf %993 : vector<8x32xf32> to vector<8x32xbf16>
    %1096 = arith.truncf %961 : vector<8x32xf32> to vector<8x32xbf16>
    %c4_487 = arith.constant 4 : index
    %c0_488 = arith.constant 0 : index
    %c0_489 = arith.constant 0 : index
    %1097 = vector.load %arg4[%c4_487, %c0_488, %c0_489] : memref<6x1x128xf32, #tpu.memory_space<vmem>>, vector<1x1x128xf32>
    %1098 = vector.shape_cast %1097 : vector<1x1x128xf32> to vector<1x128xf32>
    %c3_490 = arith.constant 3 : index
    %c0_491 = arith.constant 0 : index
    %c0_492 = arith.constant 0 : index
    %1099 = vector.load %arg2[%c3_490, %c0_491, %c0_492] : memref<5x32x128xbf16, #tpu.memory_space<vmem>>, vector<1x32x128xbf16>
    %1100 = vector.shape_cast %1099 : vector<1x32x128xbf16> to vector<32x128xbf16>
    %cst_493 = arith.constant dense<0.000000e+00> : vector<8x128xf32>
    %1101 = tpu.matmul %1096, %1100, %cst_493 {dimension_numbers = #tpu.dot_dimension_numbers<[1], [0], [0], [1], [0, 0, 1, 1], [], []>} : vector<8x32xbf16>, vector<32x128xbf16>, vector<8x128xf32> -> vector<8x128xf32>
    %1102 = vector.broadcast %1098 : vector<1x128xf32> to vector<8x128xf32>
    %1103 = arith.addf %1102, %1101 : vector<8x128xf32>
    %c4_494 = arith.constant 4 : index
    %c0_495 = arith.constant 0 : index
    %c0_496 = arith.constant 0 : index
    %1104 = vector.load %arg3[%c4_494, %c0_495, %c0_496] : memref<6x32x128xbf16, #tpu.memory_space<vmem>>, vector<1x32x128xbf16>
    %1105 = vector.shape_cast %1104 : vector<1x32x128xbf16> to vector<32x128xbf16>
    %cst_497 = arith.constant dense<0.000000e+00> : vector<8x128xf32>
    %1106 = tpu.matmul %1095, %1105, %cst_497 {dimension_numbers = #tpu.dot_dimension_numbers<[1], [0], [0], [1], [0, 0, 1, 1], [], []>} : vector<8x32xbf16>, vector<32x128xbf16>, vector<8x128xf32> -> vector<8x128xf32>
    %1107 = arith.addf %1103, %1106 : vector<8x128xf32>
    %1108 = arith.negf %1107 : vector<8x128xf32>
    %1109 = math.exp %1108 : vector<8x128xf32>
    %cst_498 = arith.constant 1.000000e+00 : f32
    %1110 = vector.broadcast %cst_498 : f32 to vector<8x128xf32>
    %1111 = arith.addf %1110, %1109 : vector<8x128xf32>
    %1112 = arith.divf %1110, %1111 : vector<8x128xf32>
    %cst_499 = arith.constant 2.000000e+00 : f32
    %1113 = vector.broadcast %cst_499 : f32 to vector<8x128xf32>
    %1114 = arith.mulf %1113, %1112 : vector<8x128xf32>
    %cst_500 = arith.constant 1.000000e+00 : f32
    %1115 = vector.broadcast %cst_500 : f32 to vector<8x128xf32>
    %1116 = arith.subf %1114, %1115 : vector<8x128xf32>
    %1117 = arith.select %5, %1116, %1112 : vector<8x128xi1>, vector<8x128xf32>
    %1118 = vector.extract_strided_slice %1117 {offsets = [0, 0], sizes = [8, 32], strides = [1, 1]} : vector<8x128xf32> to vector<8x32xf32>
    %1119 = vector.extract_strided_slice %1117 {offsets = [0, 32], sizes = [8, 32], strides = [1, 1]} : vector<8x128xf32> to vector<8x32xf32>
    %1120 = vector.extract_strided_slice %1117 {offsets = [0, 64], sizes = [8, 32], strides = [1, 1]} : vector<8x128xf32> to vector<8x32xf32>
    %1121 = vector.extract_strided_slice %1117 {offsets = [0, 96], sizes = [8, 32], strides = [1, 1]} : vector<8x128xf32> to vector<8x32xf32>
    %1122 = arith.mulf %1119, %991 : vector<8x32xf32>
    %1123 = arith.mulf %1118, %1120 : vector<8x32xf32>
    %1124 = arith.addf %1122, %1123 : vector<8x32xf32>
    %1125 = math.tanh %1124 : vector<8x32xf32>
    %1126 = arith.mulf %1121, %1125 : vector<8x32xf32>
    %1127 = arith.truncf %1025 : vector<8x32xf32> to vector<8x32xbf16>
    %1128 = arith.truncf %993 : vector<8x32xf32> to vector<8x32xbf16>
    %c5_501 = arith.constant 5 : index
    %c0_502 = arith.constant 0 : index
    %c0_503 = arith.constant 0 : index
    %1129 = vector.load %arg4[%c5_501, %c0_502, %c0_503] : memref<6x1x128xf32, #tpu.memory_space<vmem>>, vector<1x1x128xf32>
    %1130 = vector.shape_cast %1129 : vector<1x1x128xf32> to vector<1x128xf32>
    %c4_504 = arith.constant 4 : index
    %c0_505 = arith.constant 0 : index
    %c0_506 = arith.constant 0 : index
    %1131 = vector.load %arg2[%c4_504, %c0_505, %c0_506] : memref<5x32x128xbf16, #tpu.memory_space<vmem>>, vector<1x32x128xbf16>
    %1132 = vector.shape_cast %1131 : vector<1x32x128xbf16> to vector<32x128xbf16>
    %cst_507 = arith.constant dense<0.000000e+00> : vector<8x128xf32>
    %1133 = tpu.matmul %1128, %1132, %cst_507 {dimension_numbers = #tpu.dot_dimension_numbers<[1], [0], [0], [1], [0, 0, 1, 1], [], []>} : vector<8x32xbf16>, vector<32x128xbf16>, vector<8x128xf32> -> vector<8x128xf32>
    %1134 = vector.broadcast %1130 : vector<1x128xf32> to vector<8x128xf32>
    %1135 = arith.addf %1134, %1133 : vector<8x128xf32>
    %c5_508 = arith.constant 5 : index
    %c0_509 = arith.constant 0 : index
    %c0_510 = arith.constant 0 : index
    %1136 = vector.load %arg3[%c5_508, %c0_509, %c0_510] : memref<6x32x128xbf16, #tpu.memory_space<vmem>>, vector<1x32x128xbf16>
    %1137 = vector.shape_cast %1136 : vector<1x32x128xbf16> to vector<32x128xbf16>
    %cst_511 = arith.constant dense<0.000000e+00> : vector<8x128xf32>
    %1138 = tpu.matmul %1127, %1137, %cst_511 {dimension_numbers = #tpu.dot_dimension_numbers<[1], [0], [0], [1], [0, 0, 1, 1], [], []>} : vector<8x32xbf16>, vector<32x128xbf16>, vector<8x128xf32> -> vector<8x128xf32>
    %1139 = arith.addf %1135, %1138 : vector<8x128xf32>
    %1140 = arith.negf %1139 : vector<8x128xf32>
    %1141 = math.exp %1140 : vector<8x128xf32>
    %cst_512 = arith.constant 1.000000e+00 : f32
    %1142 = vector.broadcast %cst_512 : f32 to vector<8x128xf32>
    %1143 = arith.addf %1142, %1141 : vector<8x128xf32>
    %1144 = arith.divf %1142, %1143 : vector<8x128xf32>
    %cst_513 = arith.constant 2.000000e+00 : f32
    %1145 = vector.broadcast %cst_513 : f32 to vector<8x128xf32>
    %1146 = arith.mulf %1145, %1144 : vector<8x128xf32>
    %cst_514 = arith.constant 1.000000e+00 : f32
    %1147 = vector.broadcast %cst_514 : f32 to vector<8x128xf32>
    %1148 = arith.subf %1146, %1147 : vector<8x128xf32>
    %1149 = arith.select %5, %1148, %1144 : vector<8x128xi1>, vector<8x128xf32>
    %1150 = vector.extract_strided_slice %1149 {offsets = [0, 0], sizes = [8, 32], strides = [1, 1]} : vector<8x128xf32> to vector<8x32xf32>
    %1151 = vector.extract_strided_slice %1149 {offsets = [0, 32], sizes = [8, 32], strides = [1, 1]} : vector<8x128xf32> to vector<8x32xf32>
    %1152 = vector.extract_strided_slice %1149 {offsets = [0, 64], sizes = [8, 32], strides = [1, 1]} : vector<8x128xf32> to vector<8x32xf32>
    %1153 = vector.extract_strided_slice %1149 {offsets = [0, 96], sizes = [8, 32], strides = [1, 1]} : vector<8x128xf32> to vector<8x32xf32>
    %1154 = arith.mulf %1151, %1023 : vector<8x32xf32>
    %1155 = arith.mulf %1150, %1152 : vector<8x32xf32>
    %1156 = arith.addf %1154, %1155 : vector<8x32xf32>
    %1157 = math.tanh %1156 : vector<8x32xf32>
    %1158 = arith.mulf %1153, %1157 : vector<8x32xf32>
    %1159 = arith.truncf %1158 : vector<8x32xf32> to vector<8x32xbf16>
    %cst_515 = arith.constant dense<0.000000e+00> : vector<8x128xf32>
    %1160 = tpu.matmul %1159, %15, %cst_515 {dimension_numbers = #tpu.dot_dimension_numbers<[1], [0], [0], [1], [0, 0, 1, 1], [], []>} : vector<8x32xbf16>, vector<32x128xbf16>, vector<8x128xf32> -> vector<8x128xf32>
    %1161 = vector.broadcast %16 : vector<1x128xf32> to vector<8x128xf32>
    %1162 = arith.addf %1160, %1161 : vector<8x128xf32>
    %c24_516 = arith.constant 24 : index
    %c0_517 = arith.constant 0 : index
    %1163 = vector.load %arg9[%c24_516, %c0_517] : memref<56x128xf32, #tpu.memory_space<vmem>>, vector<8x128xf32>
    tpu.vector_store %arg9[%c24_516, %c0_517], %1162 {strides = array<i32>} : memref<56x128xf32, #tpu.memory_space<vmem>>, vector<8x128xf32>,
    %1164 = arith.truncf %1094 : vector<8x32xf32> to vector<8x32xbf16>
    %1165 = arith.truncf %1062 : vector<8x32xf32> to vector<8x32xbf16>
    %c3_518 = arith.constant 3 : index
    %c0_519 = arith.constant 0 : index
    %c0_520 = arith.constant 0 : index
    %1166 = vector.load %arg4[%c3_518, %c0_519, %c0_520] : memref<6x1x128xf32, #tpu.memory_space<vmem>>, vector<1x1x128xf32>
    %1167 = vector.shape_cast %1166 : vector<1x1x128xf32> to vector<1x128xf32>
    %c2_521 = arith.constant 2 : index
    %c0_522 = arith.constant 0 : index
    %c0_523 = arith.constant 0 : index
    %1168 = vector.load %arg2[%c2_521, %c0_522, %c0_523] : memref<5x32x128xbf16, #tpu.memory_space<vmem>>, vector<1x32x128xbf16>
    %1169 = vector.shape_cast %1168 : vector<1x32x128xbf16> to vector<32x128xbf16>
    %cst_524 = arith.constant dense<0.000000e+00> : vector<8x128xf32>
    %1170 = tpu.matmul %1165, %1169, %cst_524 {dimension_numbers = #tpu.dot_dimension_numbers<[1], [0], [0], [1], [0, 0, 1, 1], [], []>} : vector<8x32xbf16>, vector<32x128xbf16>, vector<8x128xf32> -> vector<8x128xf32>
    %1171 = vector.broadcast %1167 : vector<1x128xf32> to vector<8x128xf32>
    %1172 = arith.addf %1171, %1170 : vector<8x128xf32>
    %c3_525 = arith.constant 3 : index
    %c0_526 = arith.constant 0 : index
    %c0_527 = arith.constant 0 : index
    %1173 = vector.load %arg3[%c3_525, %c0_526, %c0_527] : memref<6x32x128xbf16, #tpu.memory_space<vmem>>, vector<1x32x128xbf16>
    %1174 = vector.shape_cast %1173 : vector<1x32x128xbf16> to vector<32x128xbf16>
    %cst_528 = arith.constant dense<0.000000e+00> : vector<8x128xf32>
    %1175 = tpu.matmul %1164, %1174, %cst_528 {dimension_numbers = #tpu.dot_dimension_numbers<[1], [0], [0], [1], [0, 0, 1, 1], [], []>} : vector<8x32xbf16>, vector<32x128xbf16>, vector<8x128xf32> -> vector<8x128xf32>
    %1176 = arith.addf %1172, %1175 : vector<8x128xf32>
    %1177 = arith.negf %1176 : vector<8x128xf32>
    %1178 = math.exp %1177 : vector<8x128xf32>
    %cst_529 = arith.constant 1.000000e+00 : f32
    %1179 = vector.broadcast %cst_529 : f32 to vector<8x128xf32>
    %1180 = arith.addf %1179, %1178 : vector<8x128xf32>
    %1181 = arith.divf %1179, %1180 : vector<8x128xf32>
    %cst_530 = arith.constant 2.000000e+00 : f32
    %1182 = vector.broadcast %cst_530 : f32 to vector<8x128xf32>
    %1183 = arith.mulf %1182, %1181 : vector<8x128xf32>
    %cst_531 = arith.constant 1.000000e+00 : f32
    %1184 = vector.broadcast %cst_531 : f32 to vector<8x128xf32>
    %1185 = arith.subf %1183, %1184 : vector<8x128xf32>
    %1186 = arith.select %5, %1185, %1181 : vector<8x128xi1>, vector<8x128xf32>
    %1187 = vector.extract_strided_slice %1186 {offsets = [0, 0], sizes = [8, 32], strides = [1, 1]} : vector<8x128xf32> to vector<8x32xf32>
    %1188 = vector.extract_strided_slice %1186 {offsets = [0, 32], sizes = [8, 32], strides = [1, 1]} : vector<8x128xf32> to vector<8x32xf32>
    %1189 = vector.extract_strided_slice %1186 {offsets = [0, 64], sizes = [8, 32], strides = [1, 1]} : vector<8x128xf32> to vector<8x32xf32>
    %1190 = vector.extract_strided_slice %1186 {offsets = [0, 96], sizes = [8, 32], strides = [1, 1]} : vector<8x128xf32> to vector<8x32xf32>
    %1191 = arith.mulf %1188, %1092 : vector<8x32xf32>
    %1192 = arith.mulf %1187, %1189 : vector<8x32xf32>
    %1193 = arith.addf %1191, %1192 : vector<8x32xf32>
    %1194 = math.tanh %1193 : vector<8x32xf32>
    %1195 = arith.mulf %1190, %1194 : vector<8x32xf32>
    %1196 = arith.truncf %1126 : vector<8x32xf32> to vector<8x32xbf16>
    %1197 = arith.truncf %1094 : vector<8x32xf32> to vector<8x32xbf16>
    %c4_532 = arith.constant 4 : index
    %c0_533 = arith.constant 0 : index
    %c0_534 = arith.constant 0 : index
    %1198 = vector.load %arg4[%c4_532, %c0_533, %c0_534] : memref<6x1x128xf32, #tpu.memory_space<vmem>>, vector<1x1x128xf32>
    %1199 = vector.shape_cast %1198 : vector<1x1x128xf32> to vector<1x128xf32>
    %c3_535 = arith.constant 3 : index
    %c0_536 = arith.constant 0 : index
    %c0_537 = arith.constant 0 : index
    %1200 = vector.load %arg2[%c3_535, %c0_536, %c0_537] : memref<5x32x128xbf16, #tpu.memory_space<vmem>>, vector<1x32x128xbf16>
    %1201 = vector.shape_cast %1200 : vector<1x32x128xbf16> to vector<32x128xbf16>
    %cst_538 = arith.constant dense<0.000000e+00> : vector<8x128xf32>
    %1202 = tpu.matmul %1197, %1201, %cst_538 {dimension_numbers = #tpu.dot_dimension_numbers<[1], [0], [0], [1], [0, 0, 1, 1], [], []>} : vector<8x32xbf16>, vector<32x128xbf16>, vector<8x128xf32> -> vector<8x128xf32>
    %1203 = vector.broadcast %1199 : vector<1x128xf32> to vector<8x128xf32>
    %1204 = arith.addf %1203, %1202 : vector<8x128xf32>
    %c4_539 = arith.constant 4 : index
    %c0_540 = arith.constant 0 : index
    %c0_541 = arith.constant 0 : index
    %1205 = vector.load %arg3[%c4_539, %c0_540, %c0_541] : memref<6x32x128xbf16, #tpu.memory_space<vmem>>, vector<1x32x128xbf16>
    %1206 = vector.shape_cast %1205 : vector<1x32x128xbf16> to vector<32x128xbf16>
    %cst_542 = arith.constant dense<0.000000e+00> : vector<8x128xf32>
    %1207 = tpu.matmul %1196, %1206, %cst_542 {dimension_numbers = #tpu.dot_dimension_numbers<[1], [0], [0], [1], [0, 0, 1, 1], [], []>} : vector<8x32xbf16>, vector<32x128xbf16>, vector<8x128xf32> -> vector<8x128xf32>
    %1208 = arith.addf %1204, %1207 : vector<8x128xf32>
    %1209 = arith.negf %1208 : vector<8x128xf32>
    %1210 = math.exp %1209 : vector<8x128xf32>
    %cst_543 = arith.constant 1.000000e+00 : f32
    %1211 = vector.broadcast %cst_543 : f32 to vector<8x128xf32>
    %1212 = arith.addf %1211, %1210 : vector<8x128xf32>
    %1213 = arith.divf %1211, %1212 : vector<8x128xf32>
    %cst_544 = arith.constant 2.000000e+00 : f32
    %1214 = vector.broadcast %cst_544 : f32 to vector<8x128xf32>
    %1215 = arith.mulf %1214, %1213 : vector<8x128xf32>
    %cst_545 = arith.constant 1.000000e+00 : f32
    %1216 = vector.broadcast %cst_545 : f32 to vector<8x128xf32>
    %1217 = arith.subf %1215, %1216 : vector<8x128xf32>
    %1218 = arith.select %5, %1217, %1213 : vector<8x128xi1>, vector<8x128xf32>
    %1219 = vector.extract_strided_slice %1218 {offsets = [0, 0], sizes = [8, 32], strides = [1, 1]} : vector<8x128xf32> to vector<8x32xf32>
    %1220 = vector.extract_strided_slice %1218 {offsets = [0, 32], sizes = [8, 32], strides = [1, 1]} : vector<8x128xf32> to vector<8x32xf32>
    %1221 = vector.extract_strided_slice %1218 {offsets = [0, 64], sizes = [8, 32], strides = [1, 1]} : vector<8x128xf32> to vector<8x32xf32>
    %1222 = vector.extract_strided_slice %1218 {offsets = [0, 96], sizes = [8, 32], strides = [1, 1]} : vector<8x128xf32> to vector<8x32xf32>
    %1223 = arith.mulf %1220, %1124 : vector<8x32xf32>
    %1224 = arith.mulf %1219, %1221 : vector<8x32xf32>
    %1225 = arith.addf %1223, %1224 : vector<8x32xf32>
    %1226 = math.tanh %1225 : vector<8x32xf32>
    %1227 = arith.mulf %1222, %1226 : vector<8x32xf32>
    %1228 = arith.truncf %1158 : vector<8x32xf32> to vector<8x32xbf16>
    %1229 = arith.truncf %1126 : vector<8x32xf32> to vector<8x32xbf16>
    %c5_546 = arith.constant 5 : index
    %c0_547 = arith.constant 0 : index
    %c0_548 = arith.constant 0 : index
    %1230 = vector.load %arg4[%c5_546, %c0_547, %c0_548] : memref<6x1x128xf32, #tpu.memory_space<vmem>>, vector<1x1x128xf32>
    %1231 = vector.shape_cast %1230 : vector<1x1x128xf32> to vector<1x128xf32>
    %c4_549 = arith.constant 4 : index
    %c0_550 = arith.constant 0 : index
    %c0_551 = arith.constant 0 : index
    %1232 = vector.load %arg2[%c4_549, %c0_550, %c0_551] : memref<5x32x128xbf16, #tpu.memory_space<vmem>>, vector<1x32x128xbf16>
    %1233 = vector.shape_cast %1232 : vector<1x32x128xbf16> to vector<32x128xbf16>
    %cst_552 = arith.constant dense<0.000000e+00> : vector<8x128xf32>
    %1234 = tpu.matmul %1229, %1233, %cst_552 {dimension_numbers = #tpu.dot_dimension_numbers<[1], [0], [0], [1], [0, 0, 1, 1], [], []>} : vector<8x32xbf16>, vector<32x128xbf16>, vector<8x128xf32> -> vector<8x128xf32>
    %1235 = vector.broadcast %1231 : vector<1x128xf32> to vector<8x128xf32>
    %1236 = arith.addf %1235, %1234 : vector<8x128xf32>
    %c5_553 = arith.constant 5 : index
    %c0_554 = arith.constant 0 : index
    %c0_555 = arith.constant 0 : index
    %1237 = vector.load %arg3[%c5_553, %c0_554, %c0_555] : memref<6x32x128xbf16, #tpu.memory_space<vmem>>, vector<1x32x128xbf16>
    %1238 = vector.shape_cast %1237 : vector<1x32x128xbf16> to vector<32x128xbf16>
    %cst_556 = arith.constant dense<0.000000e+00> : vector<8x128xf32>
    %1239 = tpu.matmul %1228, %1238, %cst_556 {dimension_numbers = #tpu.dot_dimension_numbers<[1], [0], [0], [1], [0, 0, 1, 1], [], []>} : vector<8x32xbf16>, vector<32x128xbf16>, vector<8x128xf32> -> vector<8x128xf32>
    %1240 = arith.addf %1236, %1239 : vector<8x128xf32>
    %1241 = arith.negf %1240 : vector<8x128xf32>
    %1242 = math.exp %1241 : vector<8x128xf32>
    %cst_557 = arith.constant 1.000000e+00 : f32
    %1243 = vector.broadcast %cst_557 : f32 to vector<8x128xf32>
    %1244 = arith.addf %1243, %1242 : vector<8x128xf32>
    %1245 = arith.divf %1243, %1244 : vector<8x128xf32>
    %cst_558 = arith.constant 2.000000e+00 : f32
    %1246 = vector.broadcast %cst_558 : f32 to vector<8x128xf32>
    %1247 = arith.mulf %1246, %1245 : vector<8x128xf32>
    %cst_559 = arith.constant 1.000000e+00 : f32
    %1248 = vector.broadcast %cst_559 : f32 to vector<8x128xf32>
    %1249 = arith.subf %1247, %1248 : vector<8x128xf32>
    %1250 = arith.select %5, %1249, %1245 : vector<8x128xi1>, vector<8x128xf32>
    %1251 = vector.extract_strided_slice %1250 {offsets = [0, 0], sizes = [8, 32], strides = [1, 1]} : vector<8x128xf32> to vector<8x32xf32>
    %1252 = vector.extract_strided_slice %1250 {offsets = [0, 32], sizes = [8, 32], strides = [1, 1]} : vector<8x128xf32> to vector<8x32xf32>
    %1253 = vector.extract_strided_slice %1250 {offsets = [0, 64], sizes = [8, 32], strides = [1, 1]} : vector<8x128xf32> to vector<8x32xf32>
    %1254 = vector.extract_strided_slice %1250 {offsets = [0, 96], sizes = [8, 32], strides = [1, 1]} : vector<8x128xf32> to vector<8x32xf32>
    %1255 = arith.mulf %1252, %1156 : vector<8x32xf32>
    %1256 = arith.mulf %1251, %1253 : vector<8x32xf32>
    %1257 = arith.addf %1255, %1256 : vector<8x32xf32>
    %1258 = math.tanh %1257 : vector<8x32xf32>
    %1259 = arith.mulf %1254, %1258 : vector<8x32xf32>
    %1260 = arith.truncf %1259 : vector<8x32xf32> to vector<8x32xbf16>
    %cst_560 = arith.constant dense<0.000000e+00> : vector<8x128xf32>
    %1261 = tpu.matmul %1260, %15, %cst_560 {dimension_numbers = #tpu.dot_dimension_numbers<[1], [0], [0], [1], [0, 0, 1, 1], [], []>} : vector<8x32xbf16>, vector<32x128xbf16>, vector<8x128xf32> -> vector<8x128xf32>
    %1262 = vector.broadcast %16 : vector<1x128xf32> to vector<8x128xf32>
    %1263 = arith.addf %1261, %1262 : vector<8x128xf32>
    %c32_561 = arith.constant 32 : index
    %c0_562 = arith.constant 0 : index
    %1264 = vector.load %arg9[%c32_561, %c0_562] : memref<56x128xf32, #tpu.memory_space<vmem>>, vector<8x128xf32>
    tpu.vector_store %arg9[%c32_561, %c0_562], %1263 {strides = array<i32>} : memref<56x128xf32, #tpu.memory_space<vmem>>, vector<8x128xf32>,
    %1265 = arith.truncf %1227 : vector<8x32xf32> to vector<8x32xbf16>
    %1266 = arith.truncf %1195 : vector<8x32xf32> to vector<8x32xbf16>
    %c4_563 = arith.constant 4 : index
    %c0_564 = arith.constant 0 : index
    %c0_565 = arith.constant 0 : index
    %1267 = vector.load %arg4[%c4_563, %c0_564, %c0_565] : memref<6x1x128xf32, #tpu.memory_space<vmem>>, vector<1x1x128xf32>
    %1268 = vector.shape_cast %1267 : vector<1x1x128xf32> to vector<1x128xf32>
    %c3_566 = arith.constant 3 : index
    %c0_567 = arith.constant 0 : index
    %c0_568 = arith.constant 0 : index
    %1269 = vector.load %arg2[%c3_566, %c0_567, %c0_568] : memref<5x32x128xbf16, #tpu.memory_space<vmem>>, vector<1x32x128xbf16>
    %1270 = vector.shape_cast %1269 : vector<1x32x128xbf16> to vector<32x128xbf16>
    %cst_569 = arith.constant dense<0.000000e+00> : vector<8x128xf32>
    %1271 = tpu.matmul %1266, %1270, %cst_569 {dimension_numbers = #tpu.dot_dimension_numbers<[1], [0], [0], [1], [0, 0, 1, 1], [], []>} : vector<8x32xbf16>, vector<32x128xbf16>, vector<8x128xf32> -> vector<8x128xf32>
    %1272 = vector.broadcast %1268 : vector<1x128xf32> to vector<8x128xf32>
    %1273 = arith.addf %1272, %1271 : vector<8x128xf32>
    %c4_570 = arith.constant 4 : index
    %c0_571 = arith.constant 0 : index
    %c0_572 = arith.constant 0 : index
    %1274 = vector.load %arg3[%c4_570, %c0_571, %c0_572] : memref<6x32x128xbf16, #tpu.memory_space<vmem>>, vector<1x32x128xbf16>
    %1275 = vector.shape_cast %1274 : vector<1x32x128xbf16> to vector<32x128xbf16>
    %cst_573 = arith.constant dense<0.000000e+00> : vector<8x128xf32>
    %1276 = tpu.matmul %1265, %1275, %cst_573 {dimension_numbers = #tpu.dot_dimension_numbers<[1], [0], [0], [1], [0, 0, 1, 1], [], []>} : vector<8x32xbf16>, vector<32x128xbf16>, vector<8x128xf32> -> vector<8x128xf32>
    %1277 = arith.addf %1273, %1276 : vector<8x128xf32>
    %1278 = arith.negf %1277 : vector<8x128xf32>
    %1279 = math.exp %1278 : vector<8x128xf32>
    %cst_574 = arith.constant 1.000000e+00 : f32
    %1280 = vector.broadcast %cst_574 : f32 to vector<8x128xf32>
    %1281 = arith.addf %1280, %1279 : vector<8x128xf32>
    %1282 = arith.divf %1280, %1281 : vector<8x128xf32>
    %cst_575 = arith.constant 2.000000e+00 : f32
    %1283 = vector.broadcast %cst_575 : f32 to vector<8x128xf32>
    %1284 = arith.mulf %1283, %1282 : vector<8x128xf32>
    %cst_576 = arith.constant 1.000000e+00 : f32
    %1285 = vector.broadcast %cst_576 : f32 to vector<8x128xf32>
    %1286 = arith.subf %1284, %1285 : vector<8x128xf32>
    %1287 = arith.select %5, %1286, %1282 : vector<8x128xi1>, vector<8x128xf32>
    %1288 = vector.extract_strided_slice %1287 {offsets = [0, 0], sizes = [8, 32], strides = [1, 1]} : vector<8x128xf32> to vector<8x32xf32>
    %1289 = vector.extract_strided_slice %1287 {offsets = [0, 32], sizes = [8, 32], strides = [1, 1]} : vector<8x128xf32> to vector<8x32xf32>
    %1290 = vector.extract_strided_slice %1287 {offsets = [0, 64], sizes = [8, 32], strides = [1, 1]} : vector<8x128xf32> to vector<8x32xf32>
    %1291 = vector.extract_strided_slice %1287 {offsets = [0, 96], sizes = [8, 32], strides = [1, 1]} : vector<8x128xf32> to vector<8x32xf32>
    %1292 = arith.mulf %1289, %1225 : vector<8x32xf32>
    %1293 = arith.mulf %1288, %1290 : vector<8x32xf32>
    %1294 = arith.addf %1292, %1293 : vector<8x32xf32>
    %1295 = math.tanh %1294 : vector<8x32xf32>
    %1296 = arith.mulf %1291, %1295 : vector<8x32xf32>
    %1297 = arith.truncf %1259 : vector<8x32xf32> to vector<8x32xbf16>
    %1298 = arith.truncf %1227 : vector<8x32xf32> to vector<8x32xbf16>
    %c5_577 = arith.constant 5 : index
    %c0_578 = arith.constant 0 : index
    %c0_579 = arith.constant 0 : index
    %1299 = vector.load %arg4[%c5_577, %c0_578, %c0_579] : memref<6x1x128xf32, #tpu.memory_space<vmem>>, vector<1x1x128xf32>
    %1300 = vector.shape_cast %1299 : vector<1x1x128xf32> to vector<1x128xf32>
    %c4_580 = arith.constant 4 : index
    %c0_581 = arith.constant 0 : index
    %c0_582 = arith.constant 0 : index
    %1301 = vector.load %arg2[%c4_580, %c0_581, %c0_582] : memref<5x32x128xbf16, #tpu.memory_space<vmem>>, vector<1x32x128xbf16>
    %1302 = vector.shape_cast %1301 : vector<1x32x128xbf16> to vector<32x128xbf16>
    %cst_583 = arith.constant dense<0.000000e+00> : vector<8x128xf32>
    %1303 = tpu.matmul %1298, %1302, %cst_583 {dimension_numbers = #tpu.dot_dimension_numbers<[1], [0], [0], [1], [0, 0, 1, 1], [], []>} : vector<8x32xbf16>, vector<32x128xbf16>, vector<8x128xf32> -> vector<8x128xf32>
    %1304 = vector.broadcast %1300 : vector<1x128xf32> to vector<8x128xf32>
    %1305 = arith.addf %1304, %1303 : vector<8x128xf32>
    %c5_584 = arith.constant 5 : index
    %c0_585 = arith.constant 0 : index
    %c0_586 = arith.constant 0 : index
    %1306 = vector.load %arg3[%c5_584, %c0_585, %c0_586] : memref<6x32x128xbf16, #tpu.memory_space<vmem>>, vector<1x32x128xbf16>
    %1307 = vector.shape_cast %1306 : vector<1x32x128xbf16> to vector<32x128xbf16>
    %cst_587 = arith.constant dense<0.000000e+00> : vector<8x128xf32>
    %1308 = tpu.matmul %1297, %1307, %cst_587 {dimension_numbers = #tpu.dot_dimension_numbers<[1], [0], [0], [1], [0, 0, 1, 1], [], []>} : vector<8x32xbf16>, vector<32x128xbf16>, vector<8x128xf32> -> vector<8x128xf32>
    %1309 = arith.addf %1305, %1308 : vector<8x128xf32>
    %1310 = arith.negf %1309 : vector<8x128xf32>
    %1311 = math.exp %1310 : vector<8x128xf32>
    %cst_588 = arith.constant 1.000000e+00 : f32
    %1312 = vector.broadcast %cst_588 : f32 to vector<8x128xf32>
    %1313 = arith.addf %1312, %1311 : vector<8x128xf32>
    %1314 = arith.divf %1312, %1313 : vector<8x128xf32>
    %cst_589 = arith.constant 2.000000e+00 : f32
    %1315 = vector.broadcast %cst_589 : f32 to vector<8x128xf32>
    %1316 = arith.mulf %1315, %1314 : vector<8x128xf32>
    %cst_590 = arith.constant 1.000000e+00 : f32
    %1317 = vector.broadcast %cst_590 : f32 to vector<8x128xf32>
    %1318 = arith.subf %1316, %1317 : vector<8x128xf32>
    %1319 = arith.select %5, %1318, %1314 : vector<8x128xi1>, vector<8x128xf32>
    %1320 = vector.extract_strided_slice %1319 {offsets = [0, 0], sizes = [8, 32], strides = [1, 1]} : vector<8x128xf32> to vector<8x32xf32>
    %1321 = vector.extract_strided_slice %1319 {offsets = [0, 32], sizes = [8, 32], strides = [1, 1]} : vector<8x128xf32> to vector<8x32xf32>
    %1322 = vector.extract_strided_slice %1319 {offsets = [0, 64], sizes = [8, 32], strides = [1, 1]} : vector<8x128xf32> to vector<8x32xf32>
    %1323 = vector.extract_strided_slice %1319 {offsets = [0, 96], sizes = [8, 32], strides = [1, 1]} : vector<8x128xf32> to vector<8x32xf32>
    %1324 = arith.mulf %1321, %1257 : vector<8x32xf32>
    %1325 = arith.mulf %1320, %1322 : vector<8x32xf32>
    %1326 = arith.addf %1324, %1325 : vector<8x32xf32>
    %1327 = math.tanh %1326 : vector<8x32xf32>
    %1328 = arith.mulf %1323, %1327 : vector<8x32xf32>
    %1329 = arith.truncf %1328 : vector<8x32xf32> to vector<8x32xbf16>
    %cst_591 = arith.constant dense<0.000000e+00> : vector<8x128xf32>
    %1330 = tpu.matmul %1329, %15, %cst_591 {dimension_numbers = #tpu.dot_dimension_numbers<[1], [0], [0], [1], [0, 0, 1, 1], [], []>} : vector<8x32xbf16>, vector<32x128xbf16>, vector<8x128xf32> -> vector<8x128xf32>
    %1331 = vector.broadcast %16 : vector<1x128xf32> to vector<8x128xf32>
    %1332 = arith.addf %1330, %1331 : vector<8x128xf32>
    %c40_592 = arith.constant 40 : index
    %c0_593 = arith.constant 0 : index
    %1333 = vector.load %arg9[%c40_592, %c0_593] : memref<56x128xf32, #tpu.memory_space<vmem>>, vector<8x128xf32>
    tpu.vector_store %arg9[%c40_592, %c0_593], %1332 {strides = array<i32>} : memref<56x128xf32, #tpu.memory_space<vmem>>, vector<8x128xf32>,
    %1334 = arith.truncf %1328 : vector<8x32xf32> to vector<8x32xbf16>
    %1335 = arith.truncf %1296 : vector<8x32xf32> to vector<8x32xbf16>
    %c5_594 = arith.constant 5 : index
    %c0_595 = arith.constant 0 : index
    %c0_596 = arith.constant 0 : index
    %1336 = vector.load %arg4[%c5_594, %c0_595, %c0_596] : memref<6x1x128xf32, #tpu.memory_space<vmem>>, vector<1x1x128xf32>
    %1337 = vector.shape_cast %1336 : vector<1x1x128xf32> to vector<1x128xf32>
    %c4_597 = arith.constant 4 : index
    %c0_598 = arith.constant 0 : index
    %c0_599 = arith.constant 0 : index
    %1338 = vector.load %arg2[%c4_597, %c0_598, %c0_599] : memref<5x32x128xbf16, #tpu.memory_space<vmem>>, vector<1x32x128xbf16>
    %1339 = vector.shape_cast %1338 : vector<1x32x128xbf16> to vector<32x128xbf16>
    %cst_600 = arith.constant dense<0.000000e+00> : vector<8x128xf32>
    %1340 = tpu.matmul %1335, %1339, %cst_600 {dimension_numbers = #tpu.dot_dimension_numbers<[1], [0], [0], [1], [0, 0, 1, 1], [], []>} : vector<8x32xbf16>, vector<32x128xbf16>, vector<8x128xf32> -> vector<8x128xf32>
    %1341 = vector.broadcast %1337 : vector<1x128xf32> to vector<8x128xf32>
    %1342 = arith.addf %1341, %1340 : vector<8x128xf32>
    %c5_601 = arith.constant 5 : index
    %c0_602 = arith.constant 0 : index
    %c0_603 = arith.constant 0 : index
    %1343 = vector.load %arg3[%c5_601, %c0_602, %c0_603] : memref<6x32x128xbf16, #tpu.memory_space<vmem>>, vector<1x32x128xbf16>
    %1344 = vector.shape_cast %1343 : vector<1x32x128xbf16> to vector<32x128xbf16>
    %cst_604 = arith.constant dense<0.000000e+00> : vector<8x128xf32>
    %1345 = tpu.matmul %1334, %1344, %cst_604 {dimension_numbers = #tpu.dot_dimension_numbers<[1], [0], [0], [1], [0, 0, 1, 1], [], []>} : vector<8x32xbf16>, vector<32x128xbf16>, vector<8x128xf32> -> vector<8x128xf32>
    %1346 = arith.addf %1342, %1345 : vector<8x128xf32>
    %1347 = arith.negf %1346 : vector<8x128xf32>
    %1348 = math.exp %1347 : vector<8x128xf32>
    %cst_605 = arith.constant 1.000000e+00 : f32
    %1349 = vector.broadcast %cst_605 : f32 to vector<8x128xf32>
    %1350 = arith.addf %1349, %1348 : vector<8x128xf32>
    %1351 = arith.divf %1349, %1350 : vector<8x128xf32>
    %cst_606 = arith.constant 2.000000e+00 : f32
    %1352 = vector.broadcast %cst_606 : f32 to vector<8x128xf32>
    %1353 = arith.mulf %1352, %1351 : vector<8x128xf32>
    %cst_607 = arith.constant 1.000000e+00 : f32
    %1354 = vector.broadcast %cst_607 : f32 to vector<8x128xf32>
    %1355 = arith.subf %1353, %1354 : vector<8x128xf32>
    %1356 = arith.select %5, %1355, %1351 : vector<8x128xi1>, vector<8x128xf32>
    %1357 = vector.extract_strided_slice %1356 {offsets = [0, 0], sizes = [8, 32], strides = [1, 1]} : vector<8x128xf32> to vector<8x32xf32>
    %1358 = vector.extract_strided_slice %1356 {offsets = [0, 32], sizes = [8, 32], strides = [1, 1]} : vector<8x128xf32> to vector<8x32xf32>
    %1359 = vector.extract_strided_slice %1356 {offsets = [0, 64], sizes = [8, 32], strides = [1, 1]} : vector<8x128xf32> to vector<8x32xf32>
    %1360 = vector.extract_strided_slice %1356 {offsets = [0, 96], sizes = [8, 32], strides = [1, 1]} : vector<8x128xf32> to vector<8x32xf32>
    %1361 = arith.mulf %1358, %1326 : vector<8x32xf32>
    %1362 = arith.mulf %1357, %1359 : vector<8x32xf32>
    %1363 = arith.addf %1361, %1362 : vector<8x32xf32>
    %1364 = math.tanh %1363 : vector<8x32xf32>
    %1365 = arith.mulf %1360, %1364 : vector<8x32xf32>
    %1366 = arith.truncf %1365 : vector<8x32xf32> to vector<8x32xbf16>
    %cst_608 = arith.constant dense<0.000000e+00> : vector<8x128xf32>
    %1367 = tpu.matmul %1366, %15, %cst_608 {dimension_numbers = #tpu.dot_dimension_numbers<[1], [0], [0], [1], [0, 0, 1, 1], [], []>} : vector<8x32xbf16>, vector<32x128xbf16>, vector<8x128xf32> -> vector<8x128xf32>
    %1368 = vector.broadcast %16 : vector<1x128xf32> to vector<8x128xf32>
    %1369 = arith.addf %1367, %1368 : vector<8x128xf32>
    %c48_609 = arith.constant 48 : index
    %c0_610 = arith.constant 0 : index
    %1370 = vector.load %arg9[%c48_609, %c0_610] : memref<56x128xf32, #tpu.memory_space<vmem>>, vector<8x128xf32>
    tpu.vector_store %arg9[%c48_609, %c0_610], %1369 {strides = array<i32>} : memref<56x128xf32, #tpu.memory_space<vmem>>, vector<8x128xf32>,
    return
  }
}

</mosaic_0001>

<llo_original>
// kernel: lstm_base_forward.1
$region0: #{lstm_base_forward.1}
  #allocation0 [shape = 'u32[]', space=smem, size = 0x4, offset = 0x4, fixed_abs, tag = 'smem constant byte address 0x4 - core index']
  #allocation1 [shape = 'u32[144,128]{1,0:T(1,128)}', space=vmem, size = 0x12000, scoped, tag = 'internal scratch']
  #allocation2 [shape = 'f32[56,128]{1,0:T(8,128)}', space=vmem, size = 0x7000, scoped, tag = 'scratch operand']
  %s0 = inlined_call_operand.vmem [shape: f32[56,128], index: 0, kind: input, shape index: {}]
  %s1 = inlined_call_operand.vmem [shape: bf16[128,128], index: 1, kind: input, shape index: {}]
  %s2 = inlined_call_operand.vmem [shape: bf16[5,32,128], index: 2, kind: input, shape index: {}]
  %s3 = inlined_call_operand.vmem [shape: bf16[6,32,128], index: 3, kind: input, shape index: {}]
  %s4 = inlined_call_operand.hbm [shape: f32[6,1,128], index: 4, kind: input, shape index: {}]
  %s5 = inlined_call_operand.hbm [shape: f32[6,8,32], index: 5, kind: input, shape index: {}]
  %s6 = inlined_call_operand.hbm [shape: f32[6,8,32], index: 6, kind: input, shape index: {}]
  %s7 = inlined_call_operand.vmem [shape: bf16[32,128], index: 7, kind: input, shape index: {}]
  %s8 = inlined_call_operand.vmem [shape: f32[1,128], index: 8, kind: input, shape index: {}]
  %s9 = inlined_call_operand.vmem [shape: f32[56,128], index: 9, kind: output, shape index: {}]
  %s10 = sld [smem:[#allocation0]]
  $region58: #{lstm_base_forward.1} parent=0
    _
  %s12 = ssub.s32 1, %s10
  %s13 = scalar_select 0, %s12, %s10
  $region1: #{lstm_base_forward.1} parent=0
    #allocation3 [shape = 'u8[3072]{0}', space=vmem, size = 0xc00, scoped, tag = 'input window, operand 4, single buffered']
    #allocation4 [shape = 's32[1]{0}', space=sflag, size = 0x4, scoped, tag = 'scoped memory for lstm_base_forward.1']
    #allocation5 [shape = 'u8[24576]{0}', space=vmem, size = 0x6000, scoped, tag = 'input window, operand 5, single buffered']
    #allocation6 [shape = 's32[1]{0}', space=sflag, size = 0x4, scoped, tag = 'scoped memory for lstm_base_forward.1']
    #allocation7 [shape = 'u8[24576]{0}', space=vmem, size = 0x6000, scoped, tag = 'input window, operand 6, single buffered']
    %14 = vsyncpa [#allocation4], 0
    %15 = vsyncpa [#allocation6], 0
    // Predicated region
    $region2: #{lstm_base_forward.1} parent=1 // pred_check
      _
    $region3: #{lstm_base_forward.1} parent=1 // pred_check_branch
      %17 = sbr.rel (0) target = $region5
    $region4: #{lstm_base_forward.1} parent=1 // pred_region
      _
    $region5: #{lstm_base_forward.1} parent=1 // pred_fallthru
      _
    // Predicated region
    $region6: #{lstm_base_forward.1} parent=1 // pred_check
      _
    $region7: #{lstm_base_forward.1} parent=1 // pred_check_branch
      %19 = sbr.rel (0) target = $region9
    $region8: #{lstm_base_forward.1} parent=1 // pred_region
      _
    $region9: #{lstm_base_forward.1} parent=1 // pred_fallthru
      _
    // Predicated region
    $region10: #{lstm_base_forward.1} parent=1 // pred_check
      _
    $region11: #{lstm_base_forward.1} parent=1 // pred_check_branch
      %21 = sbr.rel (0) target = $region13
    $region12: #{lstm_base_forward.1} parent=1 // pred_region
      _
    $region13: #{lstm_base_forward.1} parent=1 // pred_fallthru
      _
    // Predicated region
    $region14: #{lstm_base_forward.1} parent=1 // pred_check
      _
    $region15: #{lstm_base_forward.1} parent=1 // pred_check_branch
      %23 = sbr.rel (0) target = $region17
    $region16: #{lstm_base_forward.1} parent=1 // pred_region
      _
    $region17: #{lstm_base_forward.1} parent=1 // pred_fallthru
      _
    // Predicated region
    $region18: #{lstm_base_forward.1} parent=1 // pred_check
      _
    $region19: #{lstm_base_forward.1} parent=1 // pred_check_branch
      %25 = sbr.rel (0) target = $region21
    $region20: #{lstm_base_forward.1} parent=1 // pred_region
      %s27 = ssub.s32 96, 96
      %28 = vsyncadd [#allocation4], %s27
      %s29 = sshll.u32 [#allocation3], 4
      %s30 = int_to_ptr.vmem [resolvable:$true] %s29
      %35 = dma.hbm_to_vmem [thread:$0]  %s4, 96, %s30, [#allocation4], 16, 16, 1
    $region21: #{lstm_base_forward.1} parent=1 // pred_fallthru
      _
    // Predicated region
    $region22: #{lstm_base_forward.1} parent=1 // pred_check
      _
    $region23: #{lstm_base_forward.1} parent=1 // pred_check_branch
      %37 = sbr.rel (0) target = $region25
    $region24: #{lstm_base_forward.1} parent=1 // pred_region
      %s39 = ssub.s32 768, 768
      %40 = vsyncadd [#allocation6], %s39
      %s41 = sshll.u32 [#allocation5], 4
      %s42 = int_to_ptr.vmem [resolvable:$true] %s41
      %47 = dma.hbm_to_vmem [thread:$0]  %s5, 768, %s42, [#allocation6], 128, 128, 8
    $region25: #{lstm_base_forward.1} parent=1 // pred_fallthru
      _
    // Predicated region
    $region26: #{lstm_base_forward.1} parent=1 // pred_check
      _
    $region27: #{lstm_base_forward.1} parent=1 // pred_check_branch
      %49 = sbr.rel (0) target = $region29
    $region28: #{lstm_base_forward.1} parent=1 // pred_region
      %s51 = ssub.s32 768, 768
      %52 = vsyncadd [#allocation6], %s51
      %s53 = sshll.u32 [#allocation7], 4
      %s54 = int_to_ptr.vmem [resolvable:$true] %s53
      %59 = dma.hbm_to_vmem [thread:$0]  %s6, 768, %s54, [#allocation6], 128, 128, 8
    $region29: #{lstm_base_forward.1} parent=1 // pred_fallthru
      _
    // Predicated region
    $region30: #{lstm_base_forward.1} parent=1 // pred_check
      _
    $region31: #{lstm_base_forward.1} parent=1 // pred_check_branch
      %61 = sbr.rel (0) target = $region33
    $region32: #{lstm_base_forward.1} parent=1 // pred_region
      _
    $region33: #{lstm_base_forward.1} parent=1 // pred_fallthru
      _
    // Predicated region
    $region34: #{lstm_base_forward.1} parent=1 // pred_check
      _
    $region35: #{lstm_base_forward.1} parent=1 // pred_check_branch
      %63 = sbr.rel (0) target = $region37
    $region36: #{lstm_base_forward.1} parent=1 // pred_region
      _
    $region37: #{lstm_base_forward.1} parent=1 // pred_fallthru
      _
    // Predicated region
    $region38: #{lstm_base_forward.1} parent=1 // pred_check
      _
    $region39: #{lstm_base_forward.1} parent=1 // pred_check_branch
      %65 = sbr.rel (0) target = $region41
    $region40: #{lstm_base_forward.1} parent=1 // pred_region
      %66 = dma.done [#allocation4], 96
    $region41: #{lstm_base_forward.1} parent=1 // pred_fallthru
      _
    // Predicated region
    $region42: #{lstm_base_forward.1} parent=1 // pred_check
      _
    $region43: #{lstm_base_forward.1} parent=1 // pred_check_branch
      %68 = sbr.rel (0) target = $region45
    $region44: #{lstm_base_forward.1} parent=1 // pred_region
      %69 = dma.done [#allocation6], 768
    $region45: #{lstm_base_forward.1} parent=1 // pred_fallthru
      _
    // Predicated region
    $region46: #{lstm_base_forward.1} parent=1 // pred_check
      _
    $region47: #{lstm_base_forward.1} parent=1 // pred_check_branch
      %71 = sbr.rel (0) target = $region49
    $region48: #{lstm_base_forward.1} parent=1 // pred_region
      %72 = dma.done [#allocation6], 768
    $region49: #{lstm_base_forward.1} parent=1 // pred_fallthru
      _
    %v74 = vlaneseq
    %v75 = vand.u32 %v74, 127
    %vm76 = vcmp.ge.s32.totalorder %v75, 64
    %vm77 = vcmp.lt.s32.totalorder %v75, 96
    %vm78 = vmand %vm76, %vm77
    %v79 = vld [vmem:[%s0] sm:$0xff]
    %v80 = vld [vmem:[%s0 + $0x8] sm:$0xff]
    %v81 = vld [vmem:[%s0 + $0x10] sm:$0xff]
    %v82 = vld [vmem:[%s0 + $0x18] sm:$0xff]
    %v83 = vld [vmem:[%s0 + $0x20] sm:$0xff]
    %v84 = vld [vmem:[%s0 + $0x28] sm:$0xff]
    %v85 = vld [vmem:[%s0 + $0x30] sm:$0xff]
    %v86 = vpack.c.bf16 %v80, %v79
    %v87 = vpack.c.bf16 %v82, %v81
    %v88 = vpack.c.bf16 %v84, %v83
    %v89 = vpack.c.bf16 %v85, %v85
    %v90 = vld [vmem:[%s1] sm:$0xf]
    %v91 = vld [vmem:[%s1 + $0x4] sm:$0xf]
    %v92 = vld [vmem:[%s1 + $0x8] sm:$0xf]
    %v93 = vld [vmem:[%s1 + $0xc] sm:$0xf]
    %v94 = vld [vmem:[%s1 + $0x10] sm:$0xf]
    %v95 = vld [vmem:[%s1 + $0x14] sm:$0xf]
    %v96 = vld [vmem:[%s1 + $0x18] sm:$0xf]
    %v97 = vld [vmem:[%s1 + $0x1c] sm:$0xf]
    %v98 = vld [vmem:[%s1 + $0x20] sm:$0xf]
    %v99 = vld [vmem:[%s1 + $0x24] sm:$0xf]
    %v100 = vld [vmem:[%s1 + $0x28] sm:$0xf]
    %v101 = vld [vmem:[%s1 + $0x2c] sm:$0xf]
    %v102 = vld [vmem:[%s1 + $0x30] sm:$0xf]
    %v103 = vld [vmem:[%s1 + $0x34] sm:$0xf]
    %v104 = vld [vmem:[%s1 + $0x38] sm:$0xf]
    %v105 = vld [vmem:[%s1 + $0x3c] sm:$0xf]
    %v106 = vld [vmem:[#allocation3] sm:$0x1]
    %v108 = vlaneseq
    %v109 = vshrl.u32 %v108, 7
    %v110 = vsub.s32 0, %v109
    %v111 = vrot.slane %v106, %v110
    %v129 = vunpack.c.l.b16 %v90
    %v130 = vunpack.c.l.b16 %v91
    %v131 = vunpack.c.l.b16 %v92
    %v132 = vunpack.c.l.b16 %v93
    %v133 = vunpack.c.l.b16 %v94
    %v134 = vunpack.c.l.b16 %v95
    %v135 = vunpack.c.l.b16 %v96
    %v136 = vunpack.c.l.b16 %v97
    %v137 = vunpack.c.l.b16 %v98
    %v138 = vunpack.c.l.b16 %v99
    %v139 = vunpack.c.l.b16 %v100
    %v140 = vunpack.c.l.b16 %v101
    %v141 = vunpack.c.l.b16 %v102
    %v142 = vunpack.c.l.b16 %v103
    %v143 = vunpack.c.l.b16 %v104
    %v144 = vunpack.c.l.b16 %v105
    %v145 = vpack.c.b16 %v130, %v129
    %v146 = vpack.c.b16 %v132, %v131
    %v147 = vpack.c.b16 %v134, %v133
    %v148 = vpack.c.b16 %v136, %v135
    %v149 = vpack.c.b16 %v138, %v137
    %v150 = vpack.c.b16 %v140, %v139
    %v151 = vpack.c.b16 %v142, %v141
    %v152 = vpack.c.b16 %v144, %v143
    %161 = vmatprep.subr.bf16.mxu0 0
    %162 = vmatpush1.bf16.msra.mxu0 %v145
    %163 = vmatprep.subr.bf16.mxu0 0
    %164 = vmatpush1.bf16.msra.mxu0 %v146
    %165 = vmatprep.subr.bf16.mxu0 0
    %166 = vmatpush1.bf16.msra.mxu0 %v147
    %167 = vmatprep.subr.bf16.mxu0 0
    %168 = vmatpush1.bf16.msra.mxu0 %v148
    %169 = vmatprep.subr.bf16.mxu0 0
    %170 = vmatpush1.bf16.msra.mxu0 %v149
    %171 = vmatprep.subr.bf16.mxu0 0
    %172 = vmatpush1.bf16.msra.mxu0 %v150
    %173 = vmatprep.subr.bf16.mxu0 0
    %174 = vmatpush1.bf16.msra.mxu0 %v151
    %175 = vmatprep.subr.bf16.mxu0 0
    %176 = vmatpush1.bf16.msra.mxu0 %v152
    %177 = vmatprep.subr.bf16.mxu0 0
    %178 = vmatpush1.bf16.msra.mxu0 0
    %179 = vmatprep.subr.bf16.mxu0 0
    %180 = vmatpush1.bf16.msra.mxu0 0
    %181 = vmatprep.subr.bf16.mxu0 0
    %182 = vmatpush1.bf16.msra.mxu0 0
    %183 = vmatprep.subr.bf16.mxu0 0
    %184 = vmatpush1.bf16.msra.mxu0 0
    %185 = vmatprep.subr.bf16.mxu0 0
    %186 = vmatpush1.bf16.msra.mxu0 0
    %187 = vmatprep.subr.bf16.mxu0 0
    %188 = vmatpush1.bf16.msra.mxu0 0
    %189 = vmatprep.subr.bf16.mxu0 0
    %190 = vmatpush1.bf16.msra.mxu0 0
    %191 = vmatprep.subr.bf16.mxu0 0
    %192 = vmatpush1.bf16.msra.mxu0 0
    %193 = vmatprep.mubr.bf16.mxu0 0
    %194 = vmatmul.mubr.bf16.gmra.mrb[0].mxu0 %v86
    %v195 = vpop.f32.mrb[0].mxu0
    %v196 = vadd.f32 %v111, %v195
    %v197 = vpop.f32.mrb[0].mxu0
    %v198 = vpop.f32.mrb[0].mxu0
    %v199 = vadd.f32 %v111, %v198
    %v200 = vpop.f32.mrb[0].mxu0
    %201 = vmatprep.mubr.bf16.mxu0 0
    %202 = vmatmul.mubr.bf16.gmra.mrb[0].mxu0 %v87
    %v203 = vpop.f32.mrb[0].mxu0
    %v204 = vadd.f32 %v111, %v203
    %v205 = vpop.f32.mrb[0].mxu0
    %v206 = vpop.f32.mrb[0].mxu0
    %v207 = vadd.f32 %v111, %v206
    %v208 = vpop.f32.mrb[0].mxu0
    %209 = vmatprep.mubr.bf16.mxu0 0
    %210 = vmatmul.mubr.bf16.gmra.mrb[0].mxu0 %v88
    %v211 = vpop.f32.mrb[0].mxu0
    %v212 = vadd.f32 %v111, %v211
    %v213 = vpop.f32.mrb[0].mxu0
    %v214 = vpop.f32.mrb[0].mxu0
    %v215 = vadd.f32 %v111, %v214
    %v216 = vpop.f32.mrb[0].mxu0
    %217 = vmatprep.mubr.bf16.mxu0 0
    %218 = vmatmul.mubr.bf16.gmra.mrb[0].mxu0 %v89
    %v219 = vpop.f32.mrb[0].mxu0
    %v220 = vadd.f32 %v111, %v219
    %v221 = vpop.f32.mrb[0].mxu0
    %v222 = vpop.f32.mrb[0].mxu0
    %v223 = vpop.f32.mrb[0].mxu0
    %224 = vdwg.mxu0
    %225 = vst [vmem:[#allocation2] sm:$0xff] %v196
    %226 = vst [vmem:[#allocation2 + $0x8] sm:$0xff] %v199
    %227 = vst [vmem:[#allocation2 + $0x10] sm:$0xff] %v204
    %228 = vst [vmem:[#allocation2 + $0x18] sm:$0xff] %v207
    %229 = vst [vmem:[#allocation2 + $0x20] sm:$0xff] %v212
    %230 = vst [vmem:[#allocation2 + $0x28] sm:$0xff] %v215
    %231 = vst [vmem:[#allocation2 + $0x30] sm:$0xff] %v220
    %v232 = vld [vmem:[%s7] sm:$0xf]
    %v233 = vld [vmem:[%s7 + $0x4] sm:$0xf]
    %v234 = vld [vmem:[%s7 + $0x8] sm:$0xf]
    %v235 = vld [vmem:[%s7 + $0xc] sm:$0xf]
    %v236 = vld [vmem:[%s8] sm:$0x1]
    %v237 = vld [vmem:[#allocation5] sm:$0xff]
    %s238 = scalar_lea.vmem [#allocation5], 8
    %v239 = vld [vmem:[%s238] sm:$0xff]
    %s240 = scalar_lea.vmem [#allocation5], 16
    %v241 = vld [vmem:[%s240] sm:$0xff]
    %s242 = scalar_lea.vmem [#allocation5], 24
    %v243 = vld [vmem:[%s242] sm:$0xff]
    %s244 = scalar_lea.vmem [#allocation5], 32
    %v245 = vld [vmem:[%s244] sm:$0xff]
    %s246 = scalar_lea.vmem [#allocation5], 40
    %v247 = vld [vmem:[%s246] sm:$0xff]
    %v248 = vld [vmem:[#allocation7] sm:$0xff]
    %s249 = scalar_lea.vmem [#allocation7], 8
    %v250 = vld [vmem:[%s249] sm:$0xff]
    %s251 = scalar_lea.vmem [#allocation7], 16
    %v252 = vld [vmem:[%s251] sm:$0xff]
    %s253 = scalar_lea.vmem [#allocation7], 24
    %v254 = vld [vmem:[%s253] sm:$0xff]
    %s255 = scalar_lea.vmem [#allocation7], 32
    %v256 = vld [vmem:[%s255] sm:$0xff]
    %s257 = scalar_lea.vmem [#allocation7], 40
    %v258 = vld [vmem:[%s257] sm:$0xff]
    %v259 = vpack.c.bf16 %v237, %v237
    %v260 = vld [vmem:[#allocation2] sm:$0xff]
    %v261 = vld [vmem:[%s3] sm:$0xf]
    %v262 = vld [vmem:[%s3 + $0x4] sm:$0xf]
    %v263 = vld [vmem:[%s3 + $0x8] sm:$0xf]
    %v264 = vld [vmem:[%s3 + $0xc] sm:$0xf]
    %v269 = vunpack.c.l.b16 %v261
    %v270 = vunpack.c.l.b16 %v262
    %v271 = vunpack.c.l.b16 %v263
    %v272 = vunpack.c.l.b16 %v264
    %v273 = vpack.c.b16 %v270, %v269
    %v274 = vpack.c.b16 %v272, %v271
    %vm277 = vcmask 261120
    %v279 = vsel %vm277, %v259, 0
    %281 = vmatprep.subr.bf16.mxu0 0
    %282 = vmatpush1.bf16.msra.mxu0 %v273
    %283 = vmatprep.subr.bf16.mxu0 0
    %284 = vmatpush1.bf16.msra.mxu0 %v274
    %285 = vmatprep.subr.bf16.mxu0 0
    %286 = vmatpush1.bf16.msra.mxu0 0
    %287 = vmatprep.subr.bf16.mxu0 0
    %288 = vmatpush1.bf16.msra.mxu0 0
    %289 = vmatprep.subr.bf16.mxu0 0
    %290 = vmatpush1.bf16.msra.mxu0 0
    %291 = vmatprep.subr.bf16.mxu0 0
    %292 = vmatpush1.bf16.msra.mxu0 0
    %293 = vmatprep.subr.bf16.mxu0 0
    %294 = vmatpush1.bf16.msra.mxu0 0
    %295 = vmatprep.subr.bf16.mxu0 0
    %296 = vmatpush1.bf16.msra.mxu0 0
    %297 = vmatprep.subr.bf16.mxu0 0
    %298 = vmatpush1.bf16.msra.mxu0 0
    %299 = vmatprep.subr.bf16.mxu0 0
    %300 = vmatpush1.bf16.msra.mxu0 0
    %301 = vmatprep.subr.bf16.mxu0 0
    %302 = vmatpush1.bf16.msra.mxu0 0
    %303 = vmatprep.subr.bf16.mxu0 0
    %304 = vmatpush1.bf16.msra.mxu0 0
    %305 = vmatprep.subr.bf16.mxu0 0
    %306 = vmatpush1.bf16.msra.mxu0 0
    %307 = vmatprep.subr.bf16.mxu0 0
    %308 = vmatpush1.bf16.msra.mxu0 0
    %309 = vmatprep.subr.bf16.mxu0 0
    %310 = vmatpush1.bf16.msra.mxu0 0
    %311 = vmatprep.subr.bf16.mxu0 0
    %312 = vmatpush1.bf16.msra.mxu0 0
    %313 = vmatprep.mubr.bf16.mxu0 0
    %314 = vmatmul.mubr.bf16.gmra.mrb[0].mxu0 %v279
    %v315 = vpop.f32.mrb[0].mxu0
    %v316 = vadd.f32 0.0, %v315
    %v317 = vpop.f32.mrb[0].mxu0
    %v318 = vpop.f32.mrb[0].mxu0
    %v319 = vpop.f32.mrb[0].mxu0
    %320 = vdwg.mxu0
    %v321 = vadd.f32 %v260, %v316
    %v322 = vxor.u32 %v321, 2147483648
    %v323 = vmul.f32 %v322, 1.442695
    %v324 = vpow.pop %v323
    %v325 = vadd.f32 %v324, 1.0
    %v326 = vrcp.pop %v325
    %v327 = vmul.f32 1.0, %v326
    %v328 = vmul.f32 %v327, 2.0
    %v329 = vsub.f32 %v328, 1.0
    %v330 = vsel %vm78, %v329, %v327
    %332 = vrot.lane.b32.xlu0 %v248, 32
    %v333 = vpop.permute.xlu0 %332
    %v335 = vmul.f32 %v330, %v333
    %337 = vrot.lane.b32.xlu0 %v330, 64
    %v338 = vpop.permute.xlu0 %337
    %v340 = vmul.f32 %v330, %v338
    %342 = vrot.lane.b32.xlu0 %v340, 32
    %v343 = vpop.permute.xlu0 %342
    %v345 = vadd.f32 %v335, %v343
    %v346 = vtanh.pop %v345
    %348 = vrot.lane.b32.xlu0 %v346, 64
    %v349 = vpop.permute.xlu0 %348
    %v351 = vmul.f32 %v330, %v349
    %v352 = vpack.c.bf16 %v351, %v351
    %v353 = vld [vmem:[#allocation2 + $0x8] sm:$0xff]
    %355 = vrot.lane.b32.xlu0 %v352, 32
    %v356 = vpop.permute.xlu0 %355
    %v358 = vsel %vm277, %v356, 0
    %360 = vmatprep.subr.bf16.mxu0 0
    %361 = vmatpush1.bf16.msra.mxu0 %v273
    %362 = vmatprep.subr.bf16.mxu0 0
    %363 = vmatpush1.bf16.msra.mxu0 %v274
    %364 = vmatprep.subr.bf16.mxu0 0
    %365 = vmatpush1.bf16.msra.mxu0 0
    %366 = vmatprep.subr.bf16.mxu0 0
    %367 = vmatpush1.bf16.msra.mxu0 0
    %368 = vmatprep.subr.bf16.mxu0 0
    %369 = vmatpush1.bf16.msra.mxu0 0
    %370 = vmatprep.subr.bf16.mxu0 0
    %371 = vmatpush1.bf16.msra.mxu0 0
    %372 = vmatprep.subr.bf16.mxu0 0
    %373 = vmatpush1.bf16.msra.mxu0 0
    %374 = vmatprep.subr.bf16.mxu0 0
    %375 = vmatpush1.bf16.msra.mxu0 0
    %376 = vmatprep.subr.bf16.mxu0 0
    %377 = vmatpush1.bf16.msra.mxu0 0
    %378 = vmatprep.subr.bf16.mxu0 0
    %379 = vmatpush1.bf16.msra.mxu0 0
    %380 = vmatprep.subr.bf16.mxu0 0
    %381 = vmatpush1.bf16.msra.mxu0 0
    %382 = vmatprep.subr.bf16.mxu0 0
    %383 = vmatpush1.bf16.msra.mxu0 0
    %384 = vmatprep.subr.bf16.mxu0 0
    %385 = vmatpush1.bf16.msra.mxu0 0
    %386 = vmatprep.subr.bf16.mxu0 0
    %387 = vmatpush1.bf16.msra.mxu0 0
    %388 = vmatprep.subr.bf16.mxu0 0
    %389 = vmatpush1.bf16.msra.mxu0 0
    %390 = vmatprep.subr.bf16.mxu0 0
    %391 = vmatpush1.bf16.msra.mxu0 0
    %392 = vmatprep.mubr.bf16.mxu0 0
    %393 = vmatmul.mubr.bf16.gmra.mrb[0].mxu0 %v358
    %v394 = vpop.f32.mrb[0].mxu0
    %v395 = vadd.f32 0.0, %v394
    %v396 = vpop.f32.mrb[0].mxu0
    %v397 = vpop.f32.mrb[0].mxu0
    %v398 = vpop.f32.mrb[0].mxu0
    %399 = vdwg.mxu0
    %v400 = vadd.f32 %v353, %v395
    %v401 = vxor.u32 %v400, 2147483648
    %v402 = vmul.f32 %v401, 1.442695
    %v403 = vpow.pop %v402
    %v404 = vadd.f32 %v403, 1.0
    %v405 = vrcp.pop %v404
    %v406 = vmul.f32 1.0, %v405
    %v407 = vmul.f32 %v406, 2.0
    %v408 = vsub.f32 %v407, 1.0
    %v409 = vsel %vm78, %v408, %v406
    %v410 = vmul.f32 %v409, %v345
    %412 = vrot.lane.b32.xlu0 %v409, 64
    %v413 = vpop.permute.xlu0 %412
    %v415 = vmul.f32 %v409, %v413
    %417 = vrot.lane.b32.xlu0 %v415, 32
    %v418 = vpop.permute.xlu0 %417
    %v420 = vadd.f32 %v410, %v418
    %v421 = vtanh.pop %v420
    %423 = vrot.lane.b32.xlu0 %v421, 64
    %v424 = vpop.permute.xlu0 %423
    %v426 = vmul.f32 %v409, %v424
    %v427 = vpack.c.bf16 %v239, %v239
    %s428 = scalar_lea.vmem [#allocation3], 1
    %v429 = vld [vmem:[%s428] sm:$0x1]
    %v430 = vld [vmem:[%s2] sm:$0xf]
    %v431 = vld [vmem:[%s2 + $0x4] sm:$0xf]
    %v432 = vld [vmem:[%s2 + $0x8] sm:$0xf]
    %v433 = vld [vmem:[%s2 + $0xc] sm:$0xf]
    %v438 = vunpack.c.l.b16 %v430
    %v439 = vunpack.c.l.b16 %v431
    %v440 = vunpack.c.l.b16 %v432
    %v441 = vunpack.c.l.b16 %v433
    %v442 = vpack.c.b16 %v439, %v438
    %v443 = vpack.c.b16 %v441, %v440
    %446 = vmatprep.subr.bf16.mxu0 0
    %447 = vmatpush1.bf16.msra.mxu0 %v442
    %448 = vmatprep.subr.bf16.mxu0 0
    %449 = vmatpush1.bf16.msra.mxu0 %v443
    %450 = vmatprep.subr.bf16.mxu0 0
    %451 = vmatpush1.bf16.msra.mxu0 0
    %452 = vmatprep.subr.bf16.mxu0 0
    %453 = vmatpush1.bf16.msra.mxu0 0
    %454 = vmatprep.subr.bf16.mxu0 0
    %455 = vmatpush1.bf16.msra.mxu0 0
    %456 = vmatprep.subr.bf16.mxu0 0
    %457 = vmatpush1.bf16.msra.mxu0 0
    %458 = vmatprep.subr.bf16.mxu0 0
    %459 = vmatpush1.bf16.msra.mxu0 0
    %460 = vmatprep.subr.bf16.mxu0 0
    %461 = vmatpush1.bf16.msra.mxu0 0
    %462 = vmatprep.subr.bf16.mxu0 0
    %463 = vmatpush1.bf16.msra.mxu0 0
    %464 = vmatprep.subr.bf16.mxu0 0
    %465 = vmatpush1.bf16.msra.mxu0 0
    %466 = vmatprep.subr.bf16.mxu0 0
    %467 = vmatpush1.bf16.msra.mxu0 0
    %468 = vmatprep.subr.bf16.mxu0 0
    %469 = vmatpush1.bf16.msra.mxu0 0
    %470 = vmatprep.subr.bf16.mxu0 0
    %471 = vmatpush1.bf16.msra.mxu0 0
    %472 = vmatprep.subr.bf16.mxu0 0
    %473 = vmatpush1.bf16.msra.mxu0 0
    %474 = vmatprep.subr.bf16.mxu0 0
    %475 = vmatpush1.bf16.msra.mxu0 0
    %476 = vmatprep.subr.bf16.mxu0 0
    %477 = vmatpush1.bf16.msra.mxu0 0
    %478 = vmatprep.mubr.bf16.mxu0 0
    %479 = vmatmul.mubr.bf16.gmra.mrb[0].mxu0 %v358
    %v480 = vpop.f32.mrb[0].mxu0
    %v481 = vadd.f32 0.0, %v480
    %v482 = vpop.f32.mrb[0].mxu0
    %v483 = vpop.f32.mrb[0].mxu0
    %v484 = vpop.f32.mrb[0].mxu0
    %485 = vdwg.mxu0
    %v487 = vlaneseq
    %v488 = vshrl.u32 %v487, 7
    %v489 = vsub.s32 0, %v488
    %v490 = vrot.slane %v429, %v489
    %v492 = vadd.f32 %v490, %v481
    %s493 = scalar_lea.vmem %s3, 16
    %v494 = vld [vmem:[%s493] sm:$0xf]
    %v495 = vld [vmem:[%s493 + $0x4] sm:$0xf]
    %v496 = vld [vmem:[%s493 + $0x8] sm:$0xf]
    %v497 = vld [vmem:[%s493 + $0xc] sm:$0xf]
    %v502 = vunpack.c.l.b16 %v494
    %v503 = vunpack.c.l.b16 %v495
    %v504 = vunpack.c.l.b16 %v496
    %v505 = vunpack.c.l.b16 %v497
    %v506 = vpack.c.b16 %v503, %v502
    %v507 = vpack.c.b16 %v505, %v504
    %v511 = vsel %vm277, %v427, 0
    %513 = vmatprep.subr.bf16.mxu0 0
    %514 = vmatpush1.bf16.msra.mxu0 %v506
    %515 = vmatprep.subr.bf16.mxu0 0
    %516 = vmatpush1.bf16.msra.mxu0 %v507
    %517 = vmatprep.subr.bf16.mxu0 0
    %518 = vmatpush1.bf16.msra.mxu0 0
    %519 = vmatprep.subr.bf16.mxu0 0
    %520 = vmatpush1.bf16.msra.mxu0 0
    %521 = vmatprep.subr.bf16.mxu0 0
    %522 = vmatpush1.bf16.msra.mxu0 0
    %523 = vmatprep.subr.bf16.mxu0 0
    %524 = vmatpush1.bf16.msra.mxu0 0
    %525 = vmatprep.subr.bf16.mxu0 0
    %526 = vmatpush1.bf16.msra.mxu0 0
    %527 = vmatprep.subr.bf16.mxu0 0
    %528 = vmatpush1.bf16.msra.mxu0 0
    %529 = vmatprep.subr.bf16.mxu0 0
    %530 = vmatpush1.bf16.msra.mxu0 0
    %531 = vmatprep.subr.bf16.mxu0 0
    %532 = vmatpush1.bf16.msra.mxu0 0
    %533 = vmatprep.subr.bf16.mxu0 0
    %534 = vmatpush1.bf16.msra.mxu0 0
    %535 = vmatprep.subr.bf16.mxu0 0
    %536 = vmatpush1.bf16.msra.mxu0 0
    %537 = vmatprep.subr.bf16.mxu0 0
    %538 = vmatpush1.bf16.msra.mxu0 0
    %539 = vmatprep.subr.bf16.mxu0 0
    %540 = vmatpush1.bf16.msra.mxu0 0
    %541 = vmatprep.subr.bf16.mxu0 0
    %542 = vmatpush1.bf16.msra.mxu0 0
    %543 = vmatprep.subr.bf16.mxu0 0
    %544 = vmatpush1.bf16.msra.mxu0 0
    %545 = vmatprep.mubr.bf16.mxu0 0
    %546 = vmatmul.mubr.bf16.gmra.mrb[0].mxu0 %v511
    %v547 = vpop.f32.mrb[0].mxu0
    %v548 = vadd.f32 0.0, %v547
    %v549 = vpop.f32.mrb[0].mxu0
    %v550 = vpop.f32.mrb[0].mxu0
    %v551 = vpop.f32.mrb[0].mxu0
    %552 = vdwg.mxu0
    %v553 = vadd.f32 %v492, %v548
    %v554 = vxor.u32 %v553, 2147483648
    %v555 = vmul.f32 %v554, 1.442695
    %v556 = vpow.pop %v555
    %v557 = vadd.f32 %v556, 1.0
    %v558 = vrcp.pop %v557
    %v559 = vmul.f32 1.0, %v558
    %v560 = vmul.f32 %v559, 2.0
    %v561 = vsub.f32 %v560, 1.0
    %v562 = vsel %vm78, %v561, %v559
    %564 = vrot.lane.b32.xlu0 %v250, 32
    %v565 = vpop.permute.xlu0 %564
    %v567 = vmul.f32 %v562, %v565
    %569 = vrot.lane.b32.xlu0 %v562, 64
    %v570 = vpop.permute.xlu0 %569
    %v572 = vmul.f32 %v562, %v570
    %574 = vrot.lane.b32.xlu0 %v572, 32
    %v575 = vpop.permute.xlu0 %574
    %v577 = vadd.f32 %v567, %v575
    %v578 = vtanh.pop %v577
    %580 = vrot.lane.b32.xlu0 %v578, 64
    %v581 = vpop.permute.xlu0 %580
    %v583 = vmul.f32 %v562, %v581
    %v584 = vpack.c.bf16 %v426, %v426
    %v585 = vld [vmem:[#allocation2 + $0x10] sm:$0xff]
    %587 = vrot.lane.b32.xlu0 %v584, 32
    %v588 = vpop.permute.xlu0 %587
    %v590 = vsel %vm277, %v588, 0
    %592 = vmatprep.subr.bf16.mxu0 0
    %593 = vmatpush1.bf16.msra.mxu0 %v273
    %594 = vmatprep.subr.bf16.mxu0 0
    %595 = vmatpush1.bf16.msra.mxu0 %v274
    %596 = vmatprep.subr.bf16.mxu0 0
    %597 = vmatpush1.bf16.msra.mxu0 0
    %598 = vmatprep.subr.bf16.mxu0 0
    %599 = vmatpush1.bf16.msra.mxu0 0
    %600 = vmatprep.subr.bf16.mxu0 0
    %601 = vmatpush1.bf16.msra.mxu0 0
    %602 = vmatprep.subr.bf16.mxu0 0
    %603 = vmatpush1.bf16.msra.mxu0 0
    %604 = vmatprep.subr.bf16.mxu0 0
    %605 = vmatpush1.bf16.msra.mxu0 0
    %606 = vmatprep.subr.bf16.mxu0 0
    %607 = vmatpush1.bf16.msra.mxu0 0
    %608 = vmatprep.subr.bf16.mxu0 0
    %609 = vmatpush1.bf16.msra.mxu0 0
    %610 = vmatprep.subr.bf16.mxu0 0
    %611 = vmatpush1.bf16.msra.mxu0 0
    %612 = vmatprep.subr.bf16.mxu0 0
    %613 = vmatpush1.bf16.msra.mxu0 0
    %614 = vmatprep.subr.bf16.mxu0 0
    %615 = vmatpush1.bf16.msra.mxu0 0
    %616 = vmatprep.subr.bf16.mxu0 0
    %617 = vmatpush1.bf16.msra.mxu0 0
    %618 = vmatprep.subr.bf16.mxu0 0
    %619 = vmatpush1.bf16.msra.mxu0 0
    %620 = vmatprep.subr.bf16.mxu0 0
    %621 = vmatpush1.bf16.msra.mxu0 0
    %622 = vmatprep.subr.bf16.mxu0 0
    %623 = vmatpush1.bf16.msra.mxu0 0
    %624 = vmatprep.mubr.bf16.mxu0 0
    %625 = vmatmul.mubr.bf16.gmra.mrb[0].mxu0 %v590
    %v626 = vpop.f32.mrb[0].mxu0
    %v627 = vadd.f32 0.0, %v626
    %v628 = vpop.f32.mrb[0].mxu0
    %v629 = vpop.f32.mrb[0].mxu0
    %v630 = vpop.f32.mrb[0].mxu0
    %631 = vdwg.mxu0
    %v632 = vadd.f32 %v585, %v627
    %v633 = vxor.u32 %v632, 2147483648
    %v634 = vmul.f32 %v633, 1.442695
    %v635 = vpow.pop %v634
    %v636 = vadd.f32 %v635, 1.0
    %v637 = vrcp.pop %v636
    %v638 = vmul.f32 1.0, %v637
    %v639 = vmul.f32 %v638, 2.0
    %v640 = vsub.f32 %v639, 1.0
    %v641 = vsel %vm78, %v640, %v638
    %v642 = vmul.f32 %v641, %v420
    %644 = vrot.lane.b32.xlu0 %v641, 64
    %v645 = vpop.permute.xlu0 %644
    %v647 = vmul.f32 %v641, %v645
    %649 = vrot.lane.b32.xlu0 %v647, 32
    %v650 = vpop.permute.xlu0 %649
    %v652 = vadd.f32 %v642, %v650
    %v653 = vtanh.pop %v652
    %655 = vrot.lane.b32.xlu0 %v653, 64
    %v656 = vpop.permute.xlu0 %655
    %v658 = vmul.f32 %v641, %v656
    %v659 = vpack.c.bf16 %v583, %v583
    %660 = vmatprep.subr.bf16.mxu0 0
    %661 = vmatpush1.bf16.msra.mxu0 %v442
    %662 = vmatprep.subr.bf16.mxu0 0
    %663 = vmatpush1.bf16.msra.mxu0 %v443
    %664 = vmatprep.subr.bf16.mxu0 0
    %665 = vmatpush1.bf16.msra.mxu0 0
    %666 = vmatprep.subr.bf16.mxu0 0
    %667 = vmatpush1.bf16.msra.mxu0 0
    %668 = vmatprep.subr.bf16.mxu0 0
    %669 = vmatpush1.bf16.msra.mxu0 0
    %670 = vmatprep.subr.bf16.mxu0 0
    %671 = vmatpush1.bf16.msra.mxu0 0
    %672 = vmatprep.subr.bf16.mxu0 0
    %673 = vmatpush1.bf16.msra.mxu0 0
    %674 = vmatprep.subr.bf16.mxu0 0
    %675 = vmatpush1.bf16.msra.mxu0 0
    %676 = vmatprep.subr.bf16.mxu0 0
    %677 = vmatpush1.bf16.msra.mxu0 0
    %678 = vmatprep.subr.bf16.mxu0 0
    %679 = vmatpush1.bf16.msra.mxu0 0
    %680 = vmatprep.subr.bf16.mxu0 0
    %681 = vmatpush1.bf16.msra.mxu0 0
    %682 = vmatprep.subr.bf16.mxu0 0
    %683 = vmatpush1.bf16.msra.mxu0 0
    %684 = vmatprep.subr.bf16.mxu0 0
    %685 = vmatpush1.bf16.msra.mxu0 0
    %686 = vmatprep.subr.bf16.mxu0 0
    %687 = vmatpush1.bf16.msra.mxu0 0
    %688 = vmatprep.subr.bf16.mxu0 0
    %689 = vmatpush1.bf16.msra.mxu0 0
    %690 = vmatprep.subr.bf16.mxu0 0
    %691 = vmatpush1.bf16.msra.mxu0 0
    %692 = vmatprep.mubr.bf16.mxu0 0
    %693 = vmatmul.mubr.bf16.gmra.mrb[0].mxu0 %v590
    %v694 = vpop.f32.mrb[0].mxu0
    %v695 = vadd.f32 0.0, %v694
    %v696 = vpop.f32.mrb[0].mxu0
    %v697 = vpop.f32.mrb[0].mxu0
    %v698 = vpop.f32.mrb[0].mxu0
    %699 = vdwg.mxu0
    %v700 = vadd.f32 %v490, %v695
    %702 = vrot.lane.b32.xlu0 %v659, 32
    %v703 = vpop.permute.xlu0 %702
    %v705 = vsel %vm277, %v703, 0
    %707 = vmatprep.subr.bf16.mxu0 0
    %708 = vmatpush1.bf16.msra.mxu0 %v506
    %709 = vmatprep.subr.bf16.mxu0 0
    %710 = vmatpush1.bf16.msra.mxu0 %v507
    %711 = vmatprep.subr.bf16.mxu0 0
    %712 = vmatpush1.bf16.msra.mxu0 0
    %713 = vmatprep.subr.bf16.mxu0 0
    %714 = vmatpush1.bf16.msra.mxu0 0
    %715 = vmatprep.subr.bf16.mxu0 0
    %716 = vmatpush1.bf16.msra.mxu0 0
    %717 = vmatprep.subr.bf16.mxu0 0
    %718 = vmatpush1.bf16.msra.mxu0 0
    %719 = vmatprep.subr.bf16.mxu0 0
    %720 = vmatpush1.bf16.msra.mxu0 0
    %721 = vmatprep.subr.bf16.mxu0 0
    %722 = vmatpush1.bf16.msra.mxu0 0
    %723 = vmatprep.subr.bf16.mxu0 0
    %724 = vmatpush1.bf16.msra.mxu0 0
    %725 = vmatprep.subr.bf16.mxu0 0
    %726 = vmatpush1.bf16.msra.mxu0 0
    %727 = vmatprep.subr.bf16.mxu0 0
    %728 = vmatpush1.bf16.msra.mxu0 0
    %729 = vmatprep.subr.bf16.mxu0 0
    %730 = vmatpush1.bf16.msra.mxu0 0
    %731 = vmatprep.subr.bf16.mxu0 0
    %732 = vmatpush1.bf16.msra.mxu0 0
    %733 = vmatprep.subr.bf16.mxu0 0
    %734 = vmatpush1.bf16.msra.mxu0 0
    %735 = vmatprep.subr.bf16.mxu0 0
    %736 = vmatpush1.bf16.msra.mxu0 0
    %737 = vmatprep.subr.bf16.mxu0 0
    %738 = vmatpush1.bf16.msra.mxu0 0
    %739 = vmatprep.mubr.bf16.mxu0 0
    %740 = vmatmul.mubr.bf16.gmra.mrb[0].mxu0 %v705
    %v741 = vpop.f32.mrb[0].mxu0
    %v742 = vadd.f32 0.0, %v741
    %v743 = vpop.f32.mrb[0].mxu0
    %v744 = vpop.f32.mrb[0].mxu0
    %v745 = vpop.f32.mrb[0].mxu0
    %746 = vdwg.mxu0
    %v747 = vadd.f32 %v700, %v742
    %v748 = vxor.u32 %v747, 2147483648
    %v749 = vmul.f32 %v748, 1.442695
    %v750 = vpow.pop %v749
    %v751 = vadd.f32 %v750, 1.0
    %v752 = vrcp.pop %v751
    %v753 = vmul.f32 1.0, %v752
    %v754 = vmul.f32 %v753, 2.0
    %v755 = vsub.f32 %v754, 1.0
    %v756 = vsel %vm78, %v755, %v753
    %v757 = vmul.f32 %v756, %v577
    %759 = vrot.lane.b32.xlu0 %v756, 64
    %v760 = vpop.permute.xlu0 %759
    %v762 = vmul.f32 %v756, %v760
    %764 = vrot.lane.b32.xlu0 %v762, 32
    %v765 = vpop.permute.xlu0 %764
    %v767 = vadd.f32 %v757, %v765
    %v768 = vtanh.pop %v767
    %770 = vrot.lane.b32.xlu0 %v768, 64
    %v771 = vpop.permute.xlu0 %770
    %v773 = vmul.f32 %v756, %v771
    %v774 = vpack.c.bf16 %v241, %v241
    %s775 = scalar_lea.vmem [#allocation3], 2
    %v776 = vld [vmem:[%s775] sm:$0x1]
    %s777 = scalar_lea.vmem %s2, 16
    %v778 = vld [vmem:[%s777] sm:$0xf]
    %v779 = vld [vmem:[%s777 + $0x4] sm:$0xf]
    %v780 = vld [vmem:[%s777 + $0x8] sm:$0xf]
    %v781 = vld [vmem:[%s777 + $0xc] sm:$0xf]
    %v786 = vunpack.c.l.b16 %v778
    %v787 = vunpack.c.l.b16 %v779
    %v788 = vunpack.c.l.b16 %v780
    %v789 = vunpack.c.l.b16 %v781
    %v790 = vpack.c.b16 %v787, %v786
    %v791 = vpack.c.b16 %v789, %v788
    %794 = vmatprep.subr.bf16.mxu0 0
    %795 = vmatpush1.bf16.msra.mxu0 %v790
    %796 = vmatprep.subr.bf16.mxu0 0
    %797 = vmatpush1.bf16.msra.mxu0 %v791
    %798 = vmatprep.subr.bf16.mxu0 0
    %799 = vmatpush1.bf16.msra.mxu0 0
    %800 = vmatprep.subr.bf16.mxu0 0
    %801 = vmatpush1.bf16.msra.mxu0 0
    %802 = vmatprep.subr.bf16.mxu0 0
    %803 = vmatpush1.bf16.msra.mxu0 0
    %804 = vmatprep.subr.bf16.mxu0 0
    %805 = vmatpush1.bf16.msra.mxu0 0
    %806 = vmatprep.subr.bf16.mxu0 0
    %807 = vmatpush1.bf16.msra.mxu0 0
    %808 = vmatprep.subr.bf16.mxu0 0
    %809 = vmatpush1.bf16.msra.mxu0 0
    %810 = vmatprep.subr.bf16.mxu0 0
    %811 = vmatpush1.bf16.msra.mxu0 0
    %812 = vmatprep.subr.bf16.mxu0 0
    %813 = vmatpush1.bf16.msra.mxu0 0
    %814 = vmatprep.subr.bf16.mxu0 0
    %815 = vmatpush1.bf16.msra.mxu0 0
    %816 = vmatprep.subr.bf16.mxu0 0
    %817 = vmatpush1.bf16.msra.mxu0 0
    %818 = vmatprep.subr.bf16.mxu0 0
    %819 = vmatpush1.bf16.msra.mxu0 0
    %820 = vmatprep.subr.bf16.mxu0 0
    %821 = vmatpush1.bf16.msra.mxu0 0
    %822 = vmatprep.subr.bf16.mxu0 0
    %823 = vmatpush1.bf16.msra.mxu0 0
    %824 = vmatprep.subr.bf16.mxu0 0
    %825 = vmatpush1.bf16.msra.mxu0 0
    %826 = vmatprep.mubr.bf16.mxu0 0
    %827 = vmatmul.mubr.bf16.gmra.mrb[0].mxu0 %v705
    %v828 = vpop.f32.mrb[0].mxu0
    %v829 = vadd.f32 0.0, %v828
    %v830 = vpop.f32.mrb[0].mxu0
    %v831 = vpop.f32.mrb[0].mxu0
    %v832 = vpop.f32.mrb[0].mxu0
    %833 = vdwg.mxu0
    %v835 = vlaneseq
    %v836 = vshrl.u32 %v835, 7
    %v837 = vsub.s32 0, %v836
    %v838 = vrot.slane %v776, %v837
    %v840 = vadd.f32 %v838, %v829
    %s841 = scalar_lea.vmem %s3, 32
    %v842 = vld [vmem:[%s841] sm:$0xf]
    %v843 = vld [vmem:[%s841 + $0x4] sm:$0xf]
    %v844 = vld [vmem:[%s841 + $0x8] sm:$0xf]
    %v845 = vld [vmem:[%s841 + $0xc] sm:$0xf]
    %v850 = vunpack.c.l.b16 %v842
    %v851 = vunpack.c.l.b16 %v843
    %v852 = vunpack.c.l.b16 %v844
    %v853 = vunpack.c.l.b16 %v845
    %v854 = vpack.c.b16 %v851, %v850
    %v855 = vpack.c.b16 %v853, %v852
    %v859 = vsel %vm277, %v774, 0
    %861 = vmatprep.subr.bf16.mxu0 0
    %862 = vmatpush1.bf16.msra.mxu0 %v854
    %863 = vmatprep.subr.bf16.mxu0 0
    %864 = vmatpush1.bf16.msra.mxu0 %v855
    %865 = vmatprep.subr.bf16.mxu0 0
    %866 = vmatpush1.bf16.msra.mxu0 0
    %867 = vmatprep.subr.bf16.mxu0 0
    %868 = vmatpush1.bf16.msra.mxu0 0
    %869 = vmatprep.subr.bf16.mxu0 0
    %870 = vmatpush1.bf16.msra.mxu0 0
    %871 = vmatprep.subr.bf16.mxu0 0
    %872 = vmatpush1.bf16.msra.mxu0 0
    %873 = vmatprep.subr.bf16.mxu0 0
    %874 = vmatpush1.bf16.msra.mxu0 0
    %875 = vmatprep.subr.bf16.mxu0 0
    %876 = vmatpush1.bf16.msra.mxu0 0
    %877 = vmatprep.subr.bf16.mxu0 0
    %878 = vmatpush1.bf16.msra.mxu0 0
    %879 = vmatprep.subr.bf16.mxu0 0
    %880 = vmatpush1.bf16.msra.mxu0 0
    %881 = vmatprep.subr.bf16.mxu0 0
    %882 = vmatpush1.bf16.msra.mxu0 0
    %883 = vmatprep.subr.bf16.mxu0 0
    %884 = vmatpush1.bf16.msra.mxu0 0
    %885 = vmatprep.subr.bf16.mxu0 0
    %886 = vmatpush1.bf16.msra.mxu0 0
    %887 = vmatprep.subr.bf16.mxu0 0
    %888 = vmatpush1.bf16.msra.mxu0 0
    %889 = vmatprep.subr.bf16.mxu0 0
    %890 = vmatpush1.bf16.msra.mxu0 0
    %891 = vmatprep.subr.bf16.mxu0 0
    %892 = vmatpush1.bf16.msra.mxu0 0
    %893 = vmatprep.mubr.bf16.mxu0 0
    %894 = vmatmul.mubr.bf16.gmra.mrb[0].mxu0 %v859
    %v895 = vpop.f32.mrb[0].mxu0
    %v896 = vadd.f32 0.0, %v895
    %v897 = vpop.f32.mrb[0].mxu0
    %v898 = vpop.f32.mrb[0].mxu0
    %v899 = vpop.f32.mrb[0].mxu0
    %900 = vdwg.mxu0
    %v901 = vadd.f32 %v840, %v896
    %v902 = vxor.u32 %v901, 2147483648
    %v903 = vmul.f32 %v902, 1.442695
    %v904 = vpow.pop %v903
    %v905 = vadd.f32 %v904, 1.0
    %v906 = vrcp.pop %v905
    %v907 = vmul.f32 1.0, %v906
    %v908 = vmul.f32 %v907, 2.0
    %v909 = vsub.f32 %v908, 1.0
    %v910 = vsel %vm78, %v909, %v907
    %912 = vrot.lane.b32.xlu0 %v252, 32
    %v913 = vpop.permute.xlu0 %912
    %v915 = vmul.f32 %v910, %v913
    %917 = vrot.lane.b32.xlu0 %v910, 64
    %v918 = vpop.permute.xlu0 %917
    %v920 = vmul.f32 %v910, %v918
    %922 = vrot.lane.b32.xlu0 %v920, 32
    %v923 = vpop.permute.xlu0 %922
    %v925 = vadd.f32 %v915, %v923
    %v926 = vtanh.pop %v925
    %928 = vrot.lane.b32.xlu0 %v926, 64
    %v929 = vpop.permute.xlu0 %928
    %v931 = vmul.f32 %v910, %v929
    %v932 = vpack.c.bf16 %v658, %v658
    %v933 = vld [vmem:[#allocation2 + $0x18] sm:$0xff]
    %935 = vrot.lane.b32.xlu0 %v932, 32
    %v936 = vpop.permute.xlu0 %935
    %v938 = vsel %vm277, %v936, 0
    %940 = vmatprep.subr.bf16.mxu0 0
    %941 = vmatpush1.bf16.msra.mxu0 %v273
    %942 = vmatprep.subr.bf16.mxu0 0
    %943 = vmatpush1.bf16.msra.mxu0 %v274
    %944 = vmatprep.subr.bf16.mxu0 0
    %945 = vmatpush1.bf16.msra.mxu0 0
    %946 = vmatprep.subr.bf16.mxu0 0
    %947 = vmatpush1.bf16.msra.mxu0 0
    %948 = vmatprep.subr.bf16.mxu0 0
    %949 = vmatpush1.bf16.msra.mxu0 0
    %950 = vmatprep.subr.bf16.mxu0 0
    %951 = vmatpush1.bf16.msra.mxu0 0
    %952 = vmatprep.subr.bf16.mxu0 0
    %953 = vmatpush1.bf16.msra.mxu0 0
    %954 = vmatprep.subr.bf16.mxu0 0
    %955 = vmatpush1.bf16.msra.mxu0 0
    %956 = vmatprep.subr.bf16.mxu0 0
    %957 = vmatpush1.bf16.msra.mxu0 0
    %958 = vmatprep.subr.bf16.mxu0 0
    %959 = vmatpush1.bf16.msra.mxu0 0
    %960 = vmatprep.subr.bf16.mxu0 0
    %961 = vmatpush1.bf16.msra.mxu0 0
    %962 = vmatprep.subr.bf16.mxu0 0
    %963 = vmatpush1.bf16.msra.mxu0 0
    %964 = vmatprep.subr.bf16.mxu0 0
    %965 = vmatpush1.bf16.msra.mxu0 0
    %966 = vmatprep.subr.bf16.mxu0 0
    %967 = vmatpush1.bf16.msra.mxu0 0
    %968 = vmatprep.subr.bf16.mxu0 0
    %969 = vmatpush1.bf16.msra.mxu0 0
    %970 = vmatprep.subr.bf16.mxu0 0
    %971 = vmatpush1.bf16.msra.mxu0 0
    %972 = vmatprep.mubr.bf16.mxu0 0
    %973 = vmatmul.mubr.bf16.gmra.mrb[0].mxu0 %v938
    %v974 = vpop.f32.mrb[0].mxu0
    %v975 = vadd.f32 0.0, %v974
    %v976 = vpop.f32.mrb[0].mxu0
    %v977 = vpop.f32.mrb[0].mxu0
    %v978 = vpop.f32.mrb[0].mxu0
    %979 = vdwg.mxu0
    %v980 = vadd.f32 %v933, %v975
    %v981 = vxor.u32 %v980, 2147483648
    %v982 = vmul.f32 %v981, 1.442695
    %v983 = vpow.pop %v982
    %v984 = vadd.f32 %v983, 1.0
    %v985 = vrcp.pop %v984
    %v986 = vmul.f32 1.0, %v985
    %v987 = vmul.f32 %v986, 2.0
    %v988 = vsub.f32 %v987, 1.0
    %v989 = vsel %vm78, %v988, %v986
    %v990 = vmul.f32 %v989, %v652
    %992 = vrot.lane.b32.xlu0 %v989, 64
    %v993 = vpop.permute.xlu0 %992
    %v995 = vmul.f32 %v989, %v993
    %997 = vrot.lane.b32.xlu0 %v995, 32
    %v998 = vpop.permute.xlu0 %997
    %v1000 = vadd.f32 %v990, %v998
    %v1001 = vtanh.pop %v1000
    %1003 = vrot.lane.b32.xlu0 %v1001, 64
    %v1004 = vpop.permute.xlu0 %1003
    %v1006 = vmul.f32 %v989, %v1004
    %v1007 = vpack.c.bf16 %v773, %v773
    %1008 = vmatprep.subr.bf16.mxu0 0
    %1009 = vmatpush1.bf16.msra.mxu0 %v442
    %1010 = vmatprep.subr.bf16.mxu0 0
    %1011 = vmatpush1.bf16.msra.mxu0 %v443
    %1012 = vmatprep.subr.bf16.mxu0 0
    %1013 = vmatpush1.bf16.msra.mxu0 0
    %1014 = vmatprep.subr.bf16.mxu0 0
    %1015 = vmatpush1.bf16.msra.mxu0 0
    %1016 = vmatprep.subr.bf16.mxu0 0
    %1017 = vmatpush1.bf16.msra.mxu0 0
    %1018 = vmatprep.subr.bf16.mxu0 0
    %1019 = vmatpush1.bf16.msra.mxu0 0
    %1020 = vmatprep.subr.bf16.mxu0 0
    %1021 = vmatpush1.bf16.msra.mxu0 0
    %1022 = vmatprep.subr.bf16.mxu0 0
    %1023 = vmatpush1.bf16.msra.mxu0 0
    %1024 = vmatprep.subr.bf16.mxu0 0
    %1025 = vmatpush1.bf16.msra.mxu0 0
    %1026 = vmatprep.subr.bf16.mxu0 0
    %1027 = vmatpush1.bf16.msra.mxu0 0
    %1028 = vmatprep.subr.bf16.mxu0 0
    %1029 = vmatpush1.bf16.msra.mxu0 0
    %1030 = vmatprep.subr.bf16.mxu0 0
    %1031 = vmatpush1.bf16.msra.mxu0 0
    %1032 = vmatprep.subr.bf16.mxu0 0
    %1033 = vmatpush1.bf16.msra.mxu0 0
    %1034 = vmatprep.subr.bf16.mxu0 0
    %1035 = vmatpush1.bf16.msra.mxu0 0
    %1036 = vmatprep.subr.bf16.mxu0 0
    %1037 = vmatpush1.bf16.msra.mxu0 0
    %1038 = vmatprep.subr.bf16.mxu0 0
    %1039 = vmatpush1.bf16.msra.mxu0 0
    %1040 = vmatprep.mubr.bf16.mxu0 0
    %1041 = vmatmul.mubr.bf16.gmra.mrb[0].mxu0 %v938
    %v1042 = vpop.f32.mrb[0].mxu0
    %v1043 = vadd.f32 0.0, %v1042
    %v1044 = vpop.f32.mrb[0].mxu0
    %v1045 = vpop.f32.mrb[0].mxu0
    %v1046 = vpop.f32.mrb[0].mxu0
    %1047 = vdwg.mxu0
    %v1048 = vadd.f32 %v490, %v1043
    %1050 = vrot.lane.b32.xlu0 %v1007, 32
    %v1051 = vpop.permute.xlu0 %1050
    %v1053 = vsel %vm277, %v1051, 0
    %1055 = vmatprep.subr.bf16.mxu0 0
    %1056 = vmatpush1.bf16.msra.mxu0 %v506
    %1057 = vmatprep.subr.bf16.mxu0 0
    %1058 = vmatpush1.bf16.msra.mxu0 %v507
    %1059 = vmatprep.subr.bf16.mxu0 0
    %1060 = vmatpush1.bf16.msra.mxu0 0
    %1061 = vmatprep.subr.bf16.mxu0 0
    %1062 = vmatpush1.bf16.msra.mxu0 0
    %1063 = vmatprep.subr.bf16.mxu0 0
    %1064 = vmatpush1.bf16.msra.mxu0 0
    %1065 = vmatprep.subr.bf16.mxu0 0
    %1066 = vmatpush1.bf16.msra.mxu0 0
    %1067 = vmatprep.subr.bf16.mxu0 0
    %1068 = vmatpush1.bf16.msra.mxu0 0
    %1069 = vmatprep.subr.bf16.mxu0 0
    %1070 = vmatpush1.bf16.msra.mxu0 0
    %1071 = vmatprep.subr.bf16.mxu0 0
    %1072 = vmatpush1.bf16.msra.mxu0 0
    %1073 = vmatprep.subr.bf16.mxu0 0
    %1074 = vmatpush1.bf16.msra.mxu0 0
    %1075 = vmatprep.subr.bf16.mxu0 0
    %1076 = vmatpush1.bf16.msra.mxu0 0
    %1077 = vmatprep.subr.bf16.mxu0 0
    %1078 = vmatpush1.bf16.msra.mxu0 0
    %1079 = vmatprep.subr.bf16.mxu0 0
    %1080 = vmatpush1.bf16.msra.mxu0 0
    %1081 = vmatprep.subr.bf16.mxu0 0
    %1082 = vmatpush1.bf16.msra.mxu0 0
    %1083 = vmatprep.subr.bf16.mxu0 0
    %1084 = vmatpush1.bf16.msra.mxu0 0
    %1085 = vmatprep.subr.bf16.mxu0 0
    %1086 = vmatpush1.bf16.msra.mxu0 0
    %1087 = vmatprep.mubr.bf16.mxu0 0
    %1088 = vmatmul.mubr.bf16.gmra.mrb[0].mxu0 %v1053
    %v1089 = vpop.f32.mrb[0].mxu0
    %v1090 = vadd.f32 0.0, %v1089
    %v1091 = vpop.f32.mrb[0].mxu0
    %v1092 = vpop.f32.mrb[0].mxu0
    %v1093 = vpop.f32.mrb[0].mxu0
    %1094 = vdwg.mxu0
    %v1095 = vadd.f32 %v1048, %v1090
    %v1096 = vxor.u32 %v1095, 2147483648
    %v1097 = vmul.f32 %v1096, 1.442695
    %v1098 = vpow.pop %v1097
    %v1099 = vadd.f32 %v1098, 1.0
    %v1100 = vrcp.pop %v1099
    %v1101 = vmul.f32 1.0, %v1100
    %v1102 = vmul.f32 %v1101, 2.0
    %v1103 = vsub.f32 %v1102, 1.0
    %v1104 = vsel %vm78, %v1103, %v1101
    %v1105 = vmul.f32 %v1104, %v767
    %1107 = vrot.lane.b32.xlu0 %v1104, 64
    %v1108 = vpop.permute.xlu0 %1107
    %v1110 = vmul.f32 %v1104, %v1108
    %1112 = vrot.lane.b32.xlu0 %v1110, 32
    %v1113 = vpop.permute.xlu0 %1112
    %v1115 = vadd.f32 %v1105, %v1113
    %v1116 = vtanh.pop %v1115
    %1118 = vrot.lane.b32.xlu0 %v1116, 64
    %v1119 = vpop.permute.xlu0 %1118
    %v1121 = vmul.f32 %v1104, %v1119
    %v1122 = vpack.c.bf16 %v931, %v931
    %1123 = vmatprep.subr.bf16.mxu0 0
    %1124 = vmatpush1.bf16.msra.mxu0 %v790
    %1125 = vmatprep.subr.bf16.mxu0 0
    %1126 = vmatpush1.bf16.msra.mxu0 %v791
    %1127 = vmatprep.subr.bf16.mxu0 0
    %1128 = vmatpush1.bf16.msra.mxu0 0
    %1129 = vmatprep.subr.bf16.mxu0 0
    %1130 = vmatpush1.bf16.msra.mxu0 0
    %1131 = vmatprep.subr.bf16.mxu0 0
    %1132 = vmatpush1.bf16.msra.mxu0 0
    %1133 = vmatprep.subr.bf16.mxu0 0
    %1134 = vmatpush1.bf16.msra.mxu0 0
    %1135 = vmatprep.subr.bf16.mxu0 0
    %1136 = vmatpush1.bf16.msra.mxu0 0
    %1137 = vmatprep.subr.bf16.mxu0 0
    %1138 = vmatpush1.bf16.msra.mxu0 0
    %1139 = vmatprep.subr.bf16.mxu0 0
    %1140 = vmatpush1.bf16.msra.mxu0 0
    %1141 = vmatprep.subr.bf16.mxu0 0
    %1142 = vmatpush1.bf16.msra.mxu0 0
    %1143 = vmatprep.subr.bf16.mxu0 0
    %1144 = vmatpush1.bf16.msra.mxu0 0
    %1145 = vmatprep.subr.bf16.mxu0 0
    %1146 = vmatpush1.bf16.msra.mxu0 0
    %1147 = vmatprep.subr.bf16.mxu0 0
    %1148 = vmatpush1.bf16.msra.mxu0 0
    %1149 = vmatprep.subr.bf16.mxu0 0
    %1150 = vmatpush1.bf16.msra.mxu0 0
    %1151 = vmatprep.subr.bf16.mxu0 0
    %1152 = vmatpush1.bf16.msra.mxu0 0
    %1153 = vmatprep.subr.bf16.mxu0 0
    %1154 = vmatpush1.bf16.msra.mxu0 0
    %1155 = vmatprep.mubr.bf16.mxu0 0
    %1156 = vmatmul.mubr.bf16.gmra.mrb[0].mxu0 %v1053
    %v1157 = vpop.f32.mrb[0].mxu0
    %v1158 = vadd.f32 0.0, %v1157
    %v1159 = vpop.f32.mrb[0].mxu0
    %v1160 = vpop.f32.mrb[0].mxu0
    %v1161 = vpop.f32.mrb[0].mxu0
    %1162 = vdwg.mxu0
    %v1163 = vadd.f32 %v838, %v1158
    %1165 = vrot.lane.b32.xlu0 %v1122, 32
    %v1166 = vpop.permute.xlu0 %1165
    %v1168 = vsel %vm277, %v1166, 0
    %1170 = vmatprep.subr.bf16.mxu0 0
    %1171 = vmatpush1.bf16.msra.mxu0 %v854
    %1172 = vmatprep.subr.bf16.mxu0 0
    %1173 = vmatpush1.bf16.msra.mxu0 %v855
    %1174 = vmatprep.subr.bf16.mxu0 0
    %1175 = vmatpush1.bf16.msra.mxu0 0
    %1176 = vmatprep.subr.bf16.mxu0 0
    %1177 = vmatpush1.bf16.msra.mxu0 0
    %1178 = vmatprep.subr.bf16.mxu0 0
    %1179 = vmatpush1.bf16.msra.mxu0 0
    %1180 = vmatprep.subr.bf16.mxu0 0
    %1181 = vmatpush1.bf16.msra.mxu0 0
    %1182 = vmatprep.subr.bf16.mxu0 0
    %1183 = vmatpush1.bf16.msra.mxu0 0
    %1184 = vmatprep.subr.bf16.mxu0 0
    %1185 = vmatpush1.bf16.msra.mxu0 0
    %1186 = vmatprep.subr.bf16.mxu0 0
    %1187 = vmatpush1.bf16.msra.mxu0 0
    %1188 = vmatprep.subr.bf16.mxu0 0
    %1189 = vmatpush1.bf16.msra.mxu0 0
    %1190 = vmatprep.subr.bf16.mxu0 0
    %1191 = vmatpush1.bf16.msra.mxu0 0
    %1192 = vmatprep.subr.bf16.mxu0 0
    %1193 = vmatpush1.bf16.msra.mxu0 0
    %1194 = vmatprep.subr.bf16.mxu0 0
    %1195 = vmatpush1.bf16.msra.mxu0 0
    %1196 = vmatprep.subr.bf16.mxu0 0
    %1197 = vmatpush1.bf16.msra.mxu0 0
    %1198 = vmatprep.subr.bf16.mxu0 0
    %1199 = vmatpush1.bf16.msra.mxu0 0
    %1200 = vmatprep.subr.bf16.mxu0 0
    %1201 = vmatpush1.bf16.msra.mxu0 0
    %1202 = vmatprep.mubr.bf16.mxu0 0
    %1203 = vmatmul.mubr.bf16.gmra.mrb[0].mxu0 %v1168
    %v1204 = vpop.f32.mrb[0].mxu0
    %v1205 = vadd.f32 0.0, %v1204
    %v1206 = vpop.f32.mrb[0].mxu0
    %v1207 = vpop.f32.mrb[0].mxu0
    %v1208 = vpop.f32.mrb[0].mxu0
    %1209 = vdwg.mxu0
    %v1210 = vadd.f32 %v1163, %v1205
    %v1211 = vxor.u32 %v1210, 2147483648
    %v1212 = vmul.f32 %v1211, 1.442695
    %v1213 = vpow.pop %v1212
    %v1214 = vadd.f32 %v1213, 1.0
    %v1215 = vrcp.pop %v1214
    %v1216 = vmul.f32 1.0, %v1215
    %v1217 = vmul.f32 %v1216, 2.0
    %v1218 = vsub.f32 %v1217, 1.0
    %v1219 = vsel %vm78, %v1218, %v1216
    %v1220 = vmul.f32 %v1219, %v925
    %1222 = vrot.lane.b32.xlu0 %v1219, 64
    %v1223 = vpop.permute.xlu0 %1222
    %v1225 = vmul.f32 %v1219, %v1223
    %1227 = vrot.lane.b32.xlu0 %v1225, 32
    %v1228 = vpop.permute.xlu0 %1227
    %v1230 = vadd.f32 %v1220, %v1228
    %v1231 = vtanh.pop %v1230
    %1233 = vrot.lane.b32.xlu0 %v1231, 64
    %v1234 = vpop.permute.xlu0 %1233
    %v1236 = vmul.f32 %v1219, %v1234
    %v1237 = vpack.c.bf16 %v243, %v243
    %s1238 = scalar_lea.vmem [#allocation3], 3
    %v1239 = vld [vmem:[%s1238] sm:$0x1]
    %s1240 = scalar_lea.vmem %s2, 32
    %v1241 = vld [vmem:[%s1240] sm:$0xf]
    %v1242 = vld [vmem:[%s1240 + $0x4] sm:$0xf]
    %v1243 = vld [vmem:[%s1240 + $0x8] sm:$0xf]
    %v1244 = vld [vmem:[%s1240 + $0xc] sm:$0xf]
    %v1249 = vunpack.c.l.b16 %v1241
    %v1250 = vunpack.c.l.b16 %v1242
    %v1251 = vunpack.c.l.b16 %v1243
    %v1252 = vunpack.c.l.b16 %v1244
    %v1253 = vpack.c.b16 %v1250, %v1249
    %v1254 = vpack.c.b16 %v1252, %v1251
    %1257 = vmatprep.subr.bf16.mxu0 0
    %1258 = vmatpush1.bf16.msra.mxu0 %v1253
    %1259 = vmatprep.subr.bf16.mxu0 0
    %1260 = vmatpush1.bf16.msra.mxu0 %v1254
    %1261 = vmatprep.subr.bf16.mxu0 0
    %1262 = vmatpush1.bf16.msra.mxu0 0
    %1263 = vmatprep.subr.bf16.mxu0 0
    %1264 = vmatpush1.bf16.msra.mxu0 0
    %1265 = vmatprep.subr.bf16.mxu0 0
    %1266 = vmatpush1.bf16.msra.mxu0 0
    %1267 = vmatprep.subr.bf16.mxu0 0
    %1268 = vmatpush1.bf16.msra.mxu0 0
    %1269 = vmatprep.subr.bf16.mxu0 0
    %1270 = vmatpush1.bf16.msra.mxu0 0
    %1271 = vmatprep.subr.bf16.mxu0 0
    %1272 = vmatpush1.bf16.msra.mxu0 0
    %1273 = vmatprep.subr.bf16.mxu0 0
    %1274 = vmatpush1.bf16.msra.mxu0 0
    %1275 = vmatprep.subr.bf16.mxu0 0
    %1276 = vmatpush1.bf16.msra.mxu0 0
    %1277 = vmatprep.subr.bf16.mxu0 0
    %1278 = vmatpush1.bf16.msra.mxu0 0
    %1279 = vmatprep.subr.bf16.mxu0 0
    %1280 = vmatpush1.bf16.msra.mxu0 0
    %1281 = vmatprep.subr.bf16.mxu0 0
    %1282 = vmatpush1.bf16.msra.mxu0 0
    %1283 = vmatprep.subr.bf16.mxu0 0
    %1284 = vmatpush1.bf16.msra.mxu0 0
    %1285 = vmatprep.subr.bf16.mxu0 0
    %1286 = vmatpush1.bf16.msra.mxu0 0
    %1287 = vmatprep.subr.bf16.mxu0 0
    %1288 = vmatpush1.bf16.msra.mxu0 0
    %1289 = vmatprep.mubr.bf16.mxu0 0
    %1290 = vmatmul.mubr.bf16.gmra.mrb[0].mxu0 %v1168
    %v1291 = vpop.f32.mrb[0].mxu0
    %v1292 = vadd.f32 0.0, %v1291
    %v1293 = vpop.f32.mrb[0].mxu0
    %v1294 = vpop.f32.mrb[0].mxu0
    %v1295 = vpop.f32.mrb[0].mxu0
    %1296 = vdwg.mxu0
    %v1298 = vlaneseq
    %v1299 = vshrl.u32 %v1298, 7
    %v1300 = vsub.s32 0, %v1299
    %v1301 = vrot.slane %v1239, %v1300
    %v1303 = vadd.f32 %v1301, %v1292
    %s1304 = scalar_lea.vmem %s3, 48
    %v1305 = vld [vmem:[%s1304] sm:$0xf]
    %v1306 = vld [vmem:[%s1304 + $0x4] sm:$0xf]
    %v1307 = vld [vmem:[%s1304 + $0x8] sm:$0xf]
    %v1308 = vld [vmem:[%s1304 + $0xc] sm:$0xf]
    %v1313 = vunpack.c.l.b16 %v1305
    %v1314 = vunpack.c.l.b16 %v1306
    %v1315 = vunpack.c.l.b16 %v1307
    %v1316 = vunpack.c.l.b16 %v1308
    %v1317 = vpack.c.b16 %v1314, %v1313
    %v1318 = vpack.c.b16 %v1316, %v1315
    %v1322 = vsel %vm277, %v1237, 0
    %1324 = vmatprep.subr.bf16.mxu0 0
    %1325 = vmatpush1.bf16.msra.mxu0 %v1317
    %1326 = vmatprep.subr.bf16.mxu0 0
    %1327 = vmatpush1.bf16.msra.mxu0 %v1318
    %1328 = vmatprep.subr.bf16.mxu0 0
    %1329 = vmatpush1.bf16.msra.mxu0 0
    %1330 = vmatprep.subr.bf16.mxu0 0
    %1331 = vmatpush1.bf16.msra.mxu0 0
    %1332 = vmatprep.subr.bf16.mxu0 0
    %1333 = vmatpush1.bf16.msra.mxu0 0
    %1334 = vmatprep.subr.bf16.mxu0 0
    %1335 = vmatpush1.bf16.msra.mxu0 0
    %1336 = vmatprep.subr.bf16.mxu0 0
    %1337 = vmatpush1.bf16.msra.mxu0 0
    %1338 = vmatprep.subr.bf16.mxu0 0
    %1339 = vmatpush1.bf16.msra.mxu0 0
    %1340 = vmatprep.subr.bf16.mxu0 0
    %1341 = vmatpush1.bf16.msra.mxu0 0
    %1342 = vmatprep.subr.bf16.mxu0 0
    %1343 = vmatpush1.bf16.msra.mxu0 0
    %1344 = vmatprep.subr.bf16.mxu0 0
    %1345 = vmatpush1.bf16.msra.mxu0 0
    %1346 = vmatprep.subr.bf16.mxu0 0
    %1347 = vmatpush1.bf16.msra.mxu0 0
    %1348 = vmatprep.subr.bf16.mxu0 0
    %1349 = vmatpush1.bf16.msra.mxu0 0
    %1350 = vmatprep.subr.bf16.mxu0 0
    %1351 = vmatpush1.bf16.msra.mxu0 0
    %1352 = vmatprep.subr.bf16.mxu0 0
    %1353 = vmatpush1.bf16.msra.mxu0 0
    %1354 = vmatprep.subr.bf16.mxu0 0
    %1355 = vmatpush1.bf16.msra.mxu0 0
    %1356 = vmatprep.mubr.bf16.mxu0 0
    %1357 = vmatmul.mubr.bf16.gmra.mrb[0].mxu0 %v1322
    %v1358 = vpop.f32.mrb[0].mxu0
    %v1359 = vadd.f32 0.0, %v1358
    %v1360 = vpop.f32.mrb[0].mxu0
    %v1361 = vpop.f32.mrb[0].mxu0
    %v1362 = vpop.f32.mrb[0].mxu0
    %1363 = vdwg.mxu0
    %v1364 = vadd.f32 %v1303, %v1359
    %v1365 = vxor.u32 %v1364, 2147483648
    %v1366 = vmul.f32 %v1365, 1.442695
    %v1367 = vpow.pop %v1366
    %v1368 = vadd.f32 %v1367, 1.0
    %v1369 = vrcp.pop %v1368
    %v1370 = vmul.f32 1.0, %v1369
    %v1371 = vmul.f32 %v1370, 2.0
    %v1372 = vsub.f32 %v1371, 1.0
    %v1373 = vsel %vm78, %v1372, %v1370
    %1375 = vrot.lane.b32.xlu0 %v254, 32
    %v1376 = vpop.permute.xlu0 %1375
    %v1378 = vmul.f32 %v1373, %v1376
    %1380 = vrot.lane.b32.xlu0 %v1373, 64
    %v1381 = vpop.permute.xlu0 %1380
    %v1383 = vmul.f32 %v1373, %v1381
    %1385 = vrot.lane.b32.xlu0 %v1383, 32
    %v1386 = vpop.permute.xlu0 %1385
    %v1388 = vadd.f32 %v1378, %v1386
    %v1389 = vtanh.pop %v1388
    %1391 = vrot.lane.b32.xlu0 %v1389, 64
    %v1392 = vpop.permute.xlu0 %1391
    %v1394 = vmul.f32 %v1373, %v1392
    %v1395 = vpack.c.bf16 %v1006, %v1006
    %v1396 = vld [vmem:[#allocation2 + $0x20] sm:$0xff]
    %1398 = vrot.lane.b32.xlu0 %v1395, 32
    %v1399 = vpop.permute.xlu0 %1398
    %v1401 = vsel %vm277, %v1399, 0
    %1403 = vmatprep.subr.bf16.mxu0 0
    %1404 = vmatpush1.bf16.msra.mxu0 %v273
    %1405 = vmatprep.subr.bf16.mxu0 0
    %1406 = vmatpush1.bf16.msra.mxu0 %v274
    %1407 = vmatprep.subr.bf16.mxu0 0
    %1408 = vmatpush1.bf16.msra.mxu0 0
    %1409 = vmatprep.subr.bf16.mxu0 0
    %1410 = vmatpush1.bf16.msra.mxu0 0
    %1411 = vmatprep.subr.bf16.mxu0 0
    %1412 = vmatpush1.bf16.msra.mxu0 0
    %1413 = vmatprep.subr.bf16.mxu0 0
    %1414 = vmatpush1.bf16.msra.mxu0 0
    %1415 = vmatprep.subr.bf16.mxu0 0
    %1416 = vmatpush1.bf16.msra.mxu0 0
    %1417 = vmatprep.subr.bf16.mxu0 0
    %1418 = vmatpush1.bf16.msra.mxu0 0
    %1419 = vmatprep.subr.bf16.mxu0 0
    %1420 = vmatpush1.bf16.msra.mxu0 0
    %1421 = vmatprep.subr.bf16.mxu0 0
    %1422 = vmatpush1.bf16.msra.mxu0 0
    %1423 = vmatprep.subr.bf16.mxu0 0
    %1424 = vmatpush1.bf16.msra.mxu0 0
    %1425 = vmatprep.subr.bf16.mxu0 0
    %1426 = vmatpush1.bf16.msra.mxu0 0
    %1427 = vmatprep.subr.bf16.mxu0 0
    %1428 = vmatpush1.bf16.msra.mxu0 0
    %1429 = vmatprep.subr.bf16.mxu0 0
    %1430 = vmatpush1.bf16.msra.mxu0 0
    %1431 = vmatprep.subr.bf16.mxu0 0
    %1432 = vmatpush1.bf16.msra.mxu0 0
    %1433 = vmatprep.subr.bf16.mxu0 0
    %1434 = vmatpush1.bf16.msra.mxu0 0
    %1435 = vmatprep.mubr.bf16.mxu0 0
    %1436 = vmatmul.mubr.bf16.gmra.mrb[0].mxu0 %v1401
    %v1437 = vpop.f32.mrb[0].mxu0
    %v1438 = vadd.f32 0.0, %v1437
    %v1439 = vpop.f32.mrb[0].mxu0
    %v1440 = vpop.f32.mrb[0].mxu0
    %v1441 = vpop.f32.mrb[0].mxu0
    %1442 = vdwg.mxu0
    %v1443 = vadd.f32 %v1396, %v1438
    %v1444 = vxor.u32 %v1443, 2147483648
    %v1445 = vmul.f32 %v1444, 1.442695
    %v1446 = vpow.pop %v1445
    %v1447 = vadd.f32 %v1446, 1.0
    %v1448 = vrcp.pop %v1447
    %v1449 = vmul.f32 1.0, %v1448
    %v1450 = vmul.f32 %v1449, 2.0
    %v1451 = vsub.f32 %v1450, 1.0
    %v1452 = vsel %vm78, %v1451, %v1449
    %v1453 = vmul.f32 %v1452, %v1000
    %1455 = vrot.lane.b32.xlu0 %v1452, 64
    %v1456 = vpop.permute.xlu0 %1455
    %v1458 = vmul.f32 %v1452, %v1456
    %1460 = vrot.lane.b32.xlu0 %v1458, 32
    %v1461 = vpop.permute.xlu0 %1460
    %v1463 = vadd.f32 %v1453, %v1461
    %v1464 = vtanh.pop %v1463
    %1466 = vrot.lane.b32.xlu0 %v1464, 64
    %v1467 = vpop.permute.xlu0 %1466
    %v1469 = vmul.f32 %v1452, %v1467
    %v1470 = vpack.c.bf16 %v1121, %v1121
    %1471 = vmatprep.subr.bf16.mxu0 0
    %1472 = vmatpush1.bf16.msra.mxu0 %v442
    %1473 = vmatprep.subr.bf16.mxu0 0
    %1474 = vmatpush1.bf16.msra.mxu0 %v443
    %1475 = vmatprep.subr.bf16.mxu0 0
    %1476 = vmatpush1.bf16.msra.mxu0 0
    %1477 = vmatprep.subr.bf16.mxu0 0
    %1478 = vmatpush1.bf16.msra.mxu0 0
    %1479 = vmatprep.subr.bf16.mxu0 0
    %1480 = vmatpush1.bf16.msra.mxu0 0
    %1481 = vmatprep.subr.bf16.mxu0 0
    %1482 = vmatpush1.bf16.msra.mxu0 0
    %1483 = vmatprep.subr.bf16.mxu0 0
    %1484 = vmatpush1.bf16.msra.mxu0 0
    %1485 = vmatprep.subr.bf16.mxu0 0
    %1486 = vmatpush1.bf16.msra.mxu0 0
    %1487 = vmatprep.subr.bf16.mxu0 0
    %1488 = vmatpush1.bf16.msra.mxu0 0
    %1489 = vmatprep.subr.bf16.mxu0 0
    %1490 = vmatpush1.bf16.msra.mxu0 0
    %1491 = vmatprep.subr.bf16.mxu0 0
    %1492 = vmatpush1.bf16.msra.mxu0 0
    %1493 = vmatprep.subr.bf16.mxu0 0
    %1494 = vmatpush1.bf16.msra.mxu0 0
    %1495 = vmatprep.subr.bf16.mxu0 0
    %1496 = vmatpush1.bf16.msra.mxu0 0
    %1497 = vmatprep.subr.bf16.mxu0 0
    %1498 = vmatpush1.bf16.msra.mxu0 0
    %1499 = vmatprep.subr.bf16.mxu0 0
    %1500 = vmatpush1.bf16.msra.mxu0 0
    %1501 = vmatprep.subr.bf16.mxu0 0
    %1502 = vmatpush1.bf16.msra.mxu0 0
    %1503 = vmatprep.mubr.bf16.mxu0 0
    %1504 = vmatmul.mubr.bf16.gmra.mrb[0].mxu0 %v1401
    %v1505 = vpop.f32.mrb[0].mxu0
    %v1506 = vadd.f32 0.0, %v1505
    %v1507 = vpop.f32.mrb[0].mxu0
    %v1508 = vpop.f32.mrb[0].mxu0
    %v1509 = vpop.f32.mrb[0].mxu0
    %1510 = vdwg.mxu0
    %v1511 = vadd.f32 %v490, %v1506
    %1513 = vrot.lane.b32.xlu0 %v1470, 32
    %v1514 = vpop.permute.xlu0 %1513
    %v1516 = vsel %vm277, %v1514, 0
    %1518 = vmatprep.subr.bf16.mxu0 0
    %1519 = vmatpush1.bf16.msra.mxu0 %v506
    %1520 = vmatprep.subr.bf16.mxu0 0
    %1521 = vmatpush1.bf16.msra.mxu0 %v507
    %1522 = vmatprep.subr.bf16.mxu0 0
    %1523 = vmatpush1.bf16.msra.mxu0 0
    %1524 = vmatprep.subr.bf16.mxu0 0
    %1525 = vmatpush1.bf16.msra.mxu0 0
    %1526 = vmatprep.subr.bf16.mxu0 0
    %1527 = vmatpush1.bf16.msra.mxu0 0
    %1528 = vmatprep.subr.bf16.mxu0 0
    %1529 = vmatpush1.bf16.msra.mxu0 0
    %1530 = vmatprep.subr.bf16.mxu0 0
    %1531 = vmatpush1.bf16.msra.mxu0 0
    %1532 = vmatprep.subr.bf16.mxu0 0
    %1533 = vmatpush1.bf16.msra.mxu0 0
    %1534 = vmatprep.subr.bf16.mxu0 0
    %1535 = vmatpush1.bf16.msra.mxu0 0
    %1536 = vmatprep.subr.bf16.mxu0 0
    %1537 = vmatpush1.bf16.msra.mxu0 0
    %1538 = vmatprep.subr.bf16.mxu0 0
    %1539 = vmatpush1.bf16.msra.mxu0 0
    %1540 = vmatprep.subr.bf16.mxu0 0
    %1541 = vmatpush1.bf16.msra.mxu0 0
    %1542 = vmatprep.subr.bf16.mxu0 0
    %1543 = vmatpush1.bf16.msra.mxu0 0
    %1544 = vmatprep.subr.bf16.mxu0 0
    %1545 = vmatpush1.bf16.msra.mxu0 0
    %1546 = vmatprep.subr.bf16.mxu0 0
    %1547 = vmatpush1.bf16.msra.mxu0 0
    %1548 = vmatprep.subr.bf16.mxu0 0
    %1549 = vmatpush1.bf16.msra.mxu0 0
    %1550 = vmatprep.mubr.bf16.mxu0 0
    %1551 = vmatmul.mubr.bf16.gmra.mrb[0].mxu0 %v1516
    %v1552 = vpop.f32.mrb[0].mxu0
    %v1553 = vadd.f32 0.0, %v1552
    %v1554 = vpop.f32.mrb[0].mxu0
    %v1555 = vpop.f32.mrb[0].mxu0
    %v1556 = vpop.f32.mrb[0].mxu0
    %1557 = vdwg.mxu0
    %v1558 = vadd.f32 %v1511, %v1553
    %v1559 = vxor.u32 %v1558, 2147483648
    %v1560 = vmul.f32 %v1559, 1.442695
    %v1561 = vpow.pop %v1560
    %v1562 = vadd.f32 %v1561, 1.0
    %v1563 = vrcp.pop %v1562
    %v1564 = vmul.f32 1.0, %v1563
    %v1565 = vmul.f32 %v1564, 2.0
    %v1566 = vsub.f32 %v1565, 1.0
    %v1567 = vsel %vm78, %v1566, %v1564
    %v1568 = vmul.f32 %v1567, %v1115
    %1570 = vrot.lane.b32.xlu0 %v1567, 64
    %v1571 = vpop.permute.xlu0 %1570
    %v1573 = vmul.f32 %v1567, %v1571
    %1575 = vrot.lane.b32.xlu0 %v1573, 32
    %v1576 = vpop.permute.xlu0 %1575
    %v1578 = vadd.f32 %v1568, %v1576
    %v1579 = vtanh.pop %v1578
    %1581 = vrot.lane.b32.xlu0 %v1579, 64
    %v1582 = vpop.permute.xlu0 %1581
    %v1584 = vmul.f32 %v1567, %v1582
    %v1585 = vpack.c.bf16 %v1236, %v1236
    %1586 = vmatprep.subr.bf16.mxu0 0
    %1587 = vmatpush1.bf16.msra.mxu0 %v790
    %1588 = vmatprep.subr.bf16.mxu0 0
    %1589 = vmatpush1.bf16.msra.mxu0 %v791
    %1590 = vmatprep.subr.bf16.mxu0 0
    %1591 = vmatpush1.bf16.msra.mxu0 0
    %1592 = vmatprep.subr.bf16.mxu0 0
    %1593 = vmatpush1.bf16.msra.mxu0 0
    %1594 = vmatprep.subr.bf16.mxu0 0
    %1595 = vmatpush1.bf16.msra.mxu0 0
    %1596 = vmatprep.subr.bf16.mxu0 0
    %1597 = vmatpush1.bf16.msra.mxu0 0
    %1598 = vmatprep.subr.bf16.mxu0 0
    %1599 = vmatpush1.bf16.msra.mxu0 0
    %1600 = vmatprep.subr.bf16.mxu0 0
    %1601 = vmatpush1.bf16.msra.mxu0 0
    %1602 = vmatprep.subr.bf16.mxu0 0
    %1603 = vmatpush1.bf16.msra.mxu0 0
    %1604 = vmatprep.subr.bf16.mxu0 0
    %1605 = vmatpush1.bf16.msra.mxu0 0
    %1606 = vmatprep.subr.bf16.mxu0 0
    %1607 = vmatpush1.bf16.msra.mxu0 0
    %1608 = vmatprep.subr.bf16.mxu0 0
    %1609 = vmatpush1.bf16.msra.mxu0 0
    %1610 = vmatprep.subr.bf16.mxu0 0
    %1611 = vmatpush1.bf16.msra.mxu0 0
    %1612 = vmatprep.subr.bf16.mxu0 0
    %1613 = vmatpush1.bf16.msra.mxu0 0
    %1614 = vmatprep.subr.bf16.mxu0 0
    %1615 = vmatpush1.bf16.msra.mxu0 0
    %1616 = vmatprep.subr.bf16.mxu0 0
    %1617 = vmatpush1.bf16.msra.mxu0 0
    %1618 = vmatprep.mubr.bf16.mxu0 0
    %1619 = vmatmul.mubr.bf16.gmra.mrb[0].mxu0 %v1516
    %v1620 = vpop.f32.mrb[0].mxu0
    %v1621 = vadd.f32 0.0, %v1620
    %v1622 = vpop.f32.mrb[0].mxu0
    %v1623 = vpop.f32.mrb[0].mxu0
    %v1624 = vpop.f32.mrb[0].mxu0
    %1625 = vdwg.mxu0
    %v1626 = vadd.f32 %v838, %v1621
    %1628 = vrot.lane.b32.xlu0 %v1585, 32
    %v1629 = vpop.permute.xlu0 %1628
    %v1631 = vsel %vm277, %v1629, 0
    %1633 = vmatprep.subr.bf16.mxu0 0
    %1634 = vmatpush1.bf16.msra.mxu0 %v854
    %1635 = vmatprep.subr.bf16.mxu0 0
    %1636 = vmatpush1.bf16.msra.mxu0 %v855
    %1637 = vmatprep.subr.bf16.mxu0 0
    %1638 = vmatpush1.bf16.msra.mxu0 0
    %1639 = vmatprep.subr.bf16.mxu0 0
    %1640 = vmatpush1.bf16.msra.mxu0 0
    %1641 = vmatprep.subr.bf16.mxu0 0
    %1642 = vmatpush1.bf16.msra.mxu0 0
    %1643 = vmatprep.subr.bf16.mxu0 0
    %1644 = vmatpush1.bf16.msra.mxu0 0
    %1645 = vmatprep.subr.bf16.mxu0 0
    %1646 = vmatpush1.bf16.msra.mxu0 0
    %1647 = vmatprep.subr.bf16.mxu0 0
    %1648 = vmatpush1.bf16.msra.mxu0 0
    %1649 = vmatprep.subr.bf16.mxu0 0
    %1650 = vmatpush1.bf16.msra.mxu0 0
    %1651 = vmatprep.subr.bf16.mxu0 0
    %1652 = vmatpush1.bf16.msra.mxu0 0
    %1653 = vmatprep.subr.bf16.mxu0 0
    %1654 = vmatpush1.bf16.msra.mxu0 0
    %1655 = vmatprep.subr.bf16.mxu0 0
    %1656 = vmatpush1.bf16.msra.mxu0 0
    %1657 = vmatprep.subr.bf16.mxu0 0
    %1658 = vmatpush1.bf16.msra.mxu0 0
    %1659 = vmatprep.subr.bf16.mxu0 0
    %1660 = vmatpush1.bf16.msra.mxu0 0
    %1661 = vmatprep.subr.bf16.mxu0 0
    %1662 = vmatpush1.bf16.msra.mxu0 0
    %1663 = vmatprep.subr.bf16.mxu0 0
    %1664 = vmatpush1.bf16.msra.mxu0 0
    %1665 = vmatprep.mubr.bf16.mxu0 0
    %1666 = vmatmul.mubr.bf16.gmra.mrb[0].mxu0 %v1631
    %v1667 = vpop.f32.mrb[0].mxu0
    %v1668 = vadd.f32 0.0, %v1667
    %v1669 = vpop.f32.mrb[0].mxu0
    %v1670 = vpop.f32.mrb[0].mxu0
    %v1671 = vpop.f32.mrb[0].mxu0
    %1672 = vdwg.mxu0
    %v1673 = vadd.f32 %v1626, %v1668
    %v1674 = vxor.u32 %v1673, 2147483648
    %v1675 = vmul.f32 %v1674, 1.442695
    %v1676 = vpow.pop %v1675
    %v1677 = vadd.f32 %v1676, 1.0
    %v1678 = vrcp.pop %v1677
    %v1679 = vmul.f32 1.0, %v1678
    %v1680 = vmul.f32 %v1679, 2.0
    %v1681 = vsub.f32 %v1680, 1.0
    %v1682 = vsel %vm78, %v1681, %v1679
    %v1683 = vmul.f32 %v1682, %v1230
    %1685 = vrot.lane.b32.xlu0 %v1682, 64
    %v1686 = vpop.permute.xlu0 %1685
    %v1688 = vmul.f32 %v1682, %v1686
    %1690 = vrot.lane.b32.xlu0 %v1688, 32
    %v1691 = vpop.permute.xlu0 %1690
    %v1693 = vadd.f32 %v1683, %v1691
    %v1694 = vtanh.pop %v1693
    %1696 = vrot.lane.b32.xlu0 %v1694, 64
    %v1697 = vpop.permute.xlu0 %1696
    %v1699 = vmul.f32 %v1682, %v1697
    %v1700 = vpack.c.bf16 %v1394, %v1394
    %1701 = vmatprep.subr.bf16.mxu0 0
    %1702 = vmatpush1.bf16.msra.mxu0 %v1253
    %1703 = vmatprep.subr.bf16.mxu0 0
    %1704 = vmatpush1.bf16.msra.mxu0 %v1254
    %1705 = vmatprep.subr.bf16.mxu0 0
    %1706 = vmatpush1.bf16.msra.mxu0 0
    %1707 = vmatprep.subr.bf16.mxu0 0
    %1708 = vmatpush1.bf16.msra.mxu0 0
    %1709 = vmatprep.subr.bf16.mxu0 0
    %1710 = vmatpush1.bf16.msra.mxu0 0
    %1711 = vmatprep.subr.bf16.mxu0 0
    %1712 = vmatpush1.bf16.msra.mxu0 0
    %1713 = vmatprep.subr.bf16.mxu0 0
    %1714 = vmatpush1.bf16.msra.mxu0 0
    %1715 = vmatprep.subr.bf16.mxu0 0
    %1716 = vmatpush1.bf16.msra.mxu0 0
    %1717 = vmatprep.subr.bf16.mxu0 0
    %1718 = vmatpush1.bf16.msra.mxu0 0
    %1719 = vmatprep.subr.bf16.mxu0 0
    %1720 = vmatpush1.bf16.msra.mxu0 0
    %1721 = vmatprep.subr.bf16.mxu0 0
    %1722 = vmatpush1.bf16.msra.mxu0 0
    %1723 = vmatprep.subr.bf16.mxu0 0
    %1724 = vmatpush1.bf16.msra.mxu0 0
    %1725 = vmatprep.subr.bf16.mxu0 0
    %1726 = vmatpush1.bf16.msra.mxu0 0
    %1727 = vmatprep.subr.bf16.mxu0 0
    %1728 = vmatpush1.bf16.msra.mxu0 0
    %1729 = vmatprep.subr.bf16.mxu0 0
    %1730 = vmatpush1.bf16.msra.mxu0 0
    %1731 = vmatprep.subr.bf16.mxu0 0
    %1732 = vmatpush1.bf16.msra.mxu0 0
    %1733 = vmatprep.mubr.bf16.mxu0 0
    %1734 = vmatmul.mubr.bf16.gmra.mrb[0].mxu0 %v1631
    %v1735 = vpop.f32.mrb[0].mxu0
    %v1736 = vadd.f32 0.0, %v1735
    %v1737 = vpop.f32.mrb[0].mxu0
    %v1738 = vpop.f32.mrb[0].mxu0
    %v1739 = vpop.f32.mrb[0].mxu0
    %1740 = vdwg.mxu0
    %v1741 = vadd.f32 %v1301, %v1736
    %1743 = vrot.lane.b32.xlu0 %v1700, 32
    %v1744 = vpop.permute.xlu0 %1743
    %v1746 = vsel %vm277, %v1744, 0
    %1748 = vmatprep.subr.bf16.mxu0 0
    %1749 = vmatpush1.bf16.msra.mxu0 %v1317
    %1750 = vmatprep.subr.bf16.mxu0 0
    %1751 = vmatpush1.bf16.msra.mxu0 %v1318
    %1752 = vmatprep.subr.bf16.mxu0 0
    %1753 = vmatpush1.bf16.msra.mxu0 0
    %1754 = vmatprep.subr.bf16.mxu0 0
    %1755 = vmatpush1.bf16.msra.mxu0 0
    %1756 = vmatprep.subr.bf16.mxu0 0
    %1757 = vmatpush1.bf16.msra.mxu0 0
    %1758 = vmatprep.subr.bf16.mxu0 0
    %1759 = vmatpush1.bf16.msra.mxu0 0
    %1760 = vmatprep.subr.bf16.mxu0 0
    %1761 = vmatpush1.bf16.msra.mxu0 0
    %1762 = vmatprep.subr.bf16.mxu0 0
    %1763 = vmatpush1.bf16.msra.mxu0 0
    %1764 = vmatprep.subr.bf16.mxu0 0
    %1765 = vmatpush1.bf16.msra.mxu0 0
    %1766 = vmatprep.subr.bf16.mxu0 0
    %1767 = vmatpush1.bf16.msra.mxu0 0
    %1768 = vmatprep.subr.bf16.mxu0 0
    %1769 = vmatpush1.bf16.msra.mxu0 0
    %1770 = vmatprep.subr.bf16.mxu0 0
    %1771 = vmatpush1.bf16.msra.mxu0 0
    %1772 = vmatprep.subr.bf16.mxu0 0
    %1773 = vmatpush1.bf16.msra.mxu0 0
    %1774 = vmatprep.subr.bf16.mxu0 0
    %1775 = vmatpush1.bf16.msra.mxu0 0
    %1776 = vmatprep.subr.bf16.mxu0 0
    %1777 = vmatpush1.bf16.msra.mxu0 0
    %1778 = vmatprep.subr.bf16.mxu0 0
    %1779 = vmatpush1.bf16.msra.mxu0 0
    %1780 = vmatprep.mubr.bf16.mxu0 0
    %1781 = vmatmul.mubr.bf16.gmra.mrb[0].mxu0 %v1746
    %v1782 = vpop.f32.mrb[0].mxu0
    %v1783 = vadd.f32 0.0, %v1782
    %v1784 = vpop.f32.mrb[0].mxu0
    %v1785 = vpop.f32.mrb[0].mxu0
    %v1786 = vpop.f32.mrb[0].mxu0
    %1787 = vdwg.mxu0
    %v1788 = vadd.f32 %v1741, %v1783
    %v1789 = vxor.u32 %v1788, 2147483648
    %v1790 = vmul.f32 %v1789, 1.442695
    %v1791 = vpow.pop %v1790
    %v1792 = vadd.f32 %v1791, 1.0
    %v1793 = vrcp.pop %v1792
    %v1794 = vmul.f32 1.0, %v1793
    %v1795 = vmul.f32 %v1794, 2.0
    %v1796 = vsub.f32 %v1795, 1.0
    %v1797 = vsel %vm78, %v1796, %v1794
    %v1798 = vmul.f32 %v1797, %v1388
    %1800 = vrot.lane.b32.xlu0 %v1797, 64
    %v1801 = vpop.permute.xlu0 %1800
    %v1803 = vmul.f32 %v1797, %v1801
    %1805 = vrot.lane.b32.xlu0 %v1803, 32
    %v1806 = vpop.permute.xlu0 %1805
    %v1808 = vadd.f32 %v1798, %v1806
    %v1809 = vtanh.pop %v1808
    %1811 = vrot.lane.b32.xlu0 %v1809, 64
    %v1812 = vpop.permute.xlu0 %1811
    %v1814 = vmul.f32 %v1797, %v1812
    %v1815 = vpack.c.bf16 %v245, %v245
    %s1816 = scalar_lea.vmem [#allocation3], 4
    %v1817 = vld [vmem:[%s1816] sm:$0x1]
    %s1818 = scalar_lea.vmem %s2, 48
    %v1819 = vld [vmem:[%s1818] sm:$0xf]
    %v1820 = vld [vmem:[%s1818 + $0x4] sm:$0xf]
    %v1821 = vld [vmem:[%s1818 + $0x8] sm:$0xf]
    %v1822 = vld [vmem:[%s1818 + $0xc] sm:$0xf]
    %v1827 = vunpack.c.l.b16 %v1819
    %v1828 = vunpack.c.l.b16 %v1820
    %v1829 = vunpack.c.l.b16 %v1821
    %v1830 = vunpack.c.l.b16 %v1822
    %v1831 = vpack.c.b16 %v1828, %v1827
    %v1832 = vpack.c.b16 %v1830, %v1829
    %1835 = vmatprep.subr.bf16.mxu0 0
    %1836 = vmatpush1.bf16.msra.mxu0 %v1831
    %1837 = vmatprep.subr.bf16.mxu0 0
    %1838 = vmatpush1.bf16.msra.mxu0 %v1832
    %1839 = vmatprep.subr.bf16.mxu0 0
    %1840 = vmatpush1.bf16.msra.mxu0 0
    %1841 = vmatprep.subr.bf16.mxu0 0
    %1842 = vmatpush1.bf16.msra.mxu0 0
    %1843 = vmatprep.subr.bf16.mxu0 0
    %1844 = vmatpush1.bf16.msra.mxu0 0
    %1845 = vmatprep.subr.bf16.mxu0 0
    %1846 = vmatpush1.bf16.msra.mxu0 0
    %1847 = vmatprep.subr.bf16.mxu0 0
    %1848 = vmatpush1.bf16.msra.mxu0 0
    %1849 = vmatprep.subr.bf16.mxu0 0
    %1850 = vmatpush1.bf16.msra.mxu0 0
    %1851 = vmatprep.subr.bf16.mxu0 0
    %1852 = vmatpush1.bf16.msra.mxu0 0
    %1853 = vmatprep.subr.bf16.mxu0 0
    %1854 = vmatpush1.bf16.msra.mxu0 0
    %1855 = vmatprep.subr.bf16.mxu0 0
    %1856 = vmatpush1.bf16.msra.mxu0 0
    %1857 = vmatprep.subr.bf16.mxu0 0
    %1858 = vmatpush1.bf16.msra.mxu0 0
    %1859 = vmatprep.subr.bf16.mxu0 0
    %1860 = vmatpush1.bf16.msra.mxu0 0
    %1861 = vmatprep.subr.bf16.mxu0 0
    %1862 = vmatpush1.bf16.msra.mxu0 0
    %1863 = vmatprep.subr.bf16.mxu0 0
    %1864 = vmatpush1.bf16.msra.mxu0 0
    %1865 = vmatprep.subr.bf16.mxu0 0
    %1866 = vmatpush1.bf16.msra.mxu0 0
    %1867 = vmatprep.mubr.bf16.mxu0 0
    %1868 = vmatmul.mubr.bf16.gmra.mrb[0].mxu0 %v1746
    %v1869 = vpop.f32.mrb[0].mxu0
    %v1870 = vadd.f32 0.0, %v1869
    %v1871 = vpop.f32.mrb[0].mxu0
    %v1872 = vpop.f32.mrb[0].mxu0
    %v1873 = vpop.f32.mrb[0].mxu0
    %1874 = vdwg.mxu0
    %v1876 = vlaneseq
    %v1877 = vshrl.u32 %v1876, 7
    %v1878 = vsub.s32 0, %v1877
    %v1879 = vrot.slane %v1817, %v1878
    %v1881 = vadd.f32 %v1879, %v1870
    %s1882 = scalar_lea.vmem %s3, 64
    %v1883 = vld [vmem:[%s1882] sm:$0xf]
    %v1884 = vld [vmem:[%s1882 + $0x4] sm:$0xf]
    %v1885 = vld [vmem:[%s1882 + $0x8] sm:$0xf]
    %v1886 = vld [vmem:[%s1882 + $0xc] sm:$0xf]
    %v1891 = vunpack.c.l.b16 %v1883
    %v1892 = vunpack.c.l.b16 %v1884
    %v1893 = vunpack.c.l.b16 %v1885
    %v1894 = vunpack.c.l.b16 %v1886
    %v1895 = vpack.c.b16 %v1892, %v1891
    %v1896 = vpack.c.b16 %v1894, %v1893
    %v1900 = vsel %vm277, %v1815, 0
    %1902 = vmatprep.subr.bf16.mxu0 0
    %1903 = vmatpush1.bf16.msra.mxu0 %v1895
    %1904 = vmatprep.subr.bf16.mxu0 0
    %1905 = vmatpush1.bf16.msra.mxu0 %v1896
    %1906 = vmatprep.subr.bf16.mxu0 0
    %1907 = vmatpush1.bf16.msra.mxu0 0
    %1908 = vmatprep.subr.bf16.mxu0 0
    %1909 = vmatpush1.bf16.msra.mxu0 0
    %1910 = vmatprep.subr.bf16.mxu0 0
    %1911 = vmatpush1.bf16.msra.mxu0 0
    %1912 = vmatprep.subr.bf16.mxu0 0
    %1913 = vmatpush1.bf16.msra.mxu0 0
    %1914 = vmatprep.subr.bf16.mxu0 0
    %1915 = vmatpush1.bf16.msra.mxu0 0
    %1916 = vmatprep.subr.bf16.mxu0 0
    %1917 = vmatpush1.bf16.msra.mxu0 0
    %1918 = vmatprep.subr.bf16.mxu0 0
    %1919 = vmatpush1.bf16.msra.mxu0 0
    %1920 = vmatprep.subr.bf16.mxu0 0
    %1921 = vmatpush1.bf16.msra.mxu0 0
    %1922 = vmatprep.subr.bf16.mxu0 0
    %1923 = vmatpush1.bf16.msra.mxu0 0
    %1924 = vmatprep.subr.bf16.mxu0 0
    %1925 = vmatpush1.bf16.msra.mxu0 0
    %1926 = vmatprep.subr.bf16.mxu0 0
    %1927 = vmatpush1.bf16.msra.mxu0 0
    %1928 = vmatprep.subr.bf16.mxu0 0
    %1929 = vmatpush1.bf16.msra.mxu0 0
    %1930 = vmatprep.subr.bf16.mxu0 0
    %1931 = vmatpush1.bf16.msra.mxu0 0
    %1932 = vmatprep.subr.bf16.mxu0 0
    %1933 = vmatpush1.bf16.msra.mxu0 0
    %1934 = vmatprep.mubr.bf16.mxu0 0
    %1935 = vmatmul.mubr.bf16.gmra.mrb[0].mxu0 %v1900
    %v1936 = vpop.f32.mrb[0].mxu0
    %v1937 = vadd.f32 0.0, %v1936
    %v1938 = vpop.f32.mrb[0].mxu0
    %v1939 = vpop.f32.mrb[0].mxu0
    %v1940 = vpop.f32.mrb[0].mxu0
    %1941 = vdwg.mxu0
    %v1942 = vadd.f32 %v1881, %v1937
    %v1943 = vxor.u32 %v1942, 2147483648
    %v1944 = vmul.f32 %v1943, 1.442695
    %v1945 = vpow.pop %v1944
    %v1946 = vadd.f32 %v1945, 1.0
    %v1947 = vrcp.pop %v1946
    %v1948 = vmul.f32 1.0, %v1947
    %v1949 = vmul.f32 %v1948, 2.0
    %v1950 = vsub.f32 %v1949, 1.0
    %v1951 = vsel %vm78, %v1950, %v1948
    %1953 = vrot.lane.b32.xlu0 %v256, 32
    %v1954 = vpop.permute.xlu0 %1953
    %v1956 = vmul.f32 %v1951, %v1954
    %1958 = vrot.lane.b32.xlu0 %v1951, 64
    %v1959 = vpop.permute.xlu0 %1958
    %v1961 = vmul.f32 %v1951, %v1959
    %1963 = vrot.lane.b32.xlu0 %v1961, 32
    %v1964 = vpop.permute.xlu0 %1963
    %v1966 = vadd.f32 %v1956, %v1964
    %v1967 = vtanh.pop %v1966
    %1969 = vrot.lane.b32.xlu0 %v1967, 64
    %v1970 = vpop.permute.xlu0 %1969
    %v1972 = vmul.f32 %v1951, %v1970
    %v1973 = vpack.c.bf16 %v1469, %v1469
    %v1974 = vld [vmem:[#allocation2 + $0x28] sm:$0xff]
    %1976 = vrot.lane.b32.xlu0 %v1973, 32
    %v1977 = vpop.permute.xlu0 %1976
    %v1979 = vsel %vm277, %v1977, 0
    %1981 = vmatprep.subr.bf16.mxu0 0
    %1982 = vmatpush1.bf16.msra.mxu0 %v273
    %1983 = vmatprep.subr.bf16.mxu0 0
    %1984 = vmatpush1.bf16.msra.mxu0 %v274
    %1985 = vmatprep.subr.bf16.mxu0 0
    %1986 = vmatpush1.bf16.msra.mxu0 0
    %1987 = vmatprep.subr.bf16.mxu0 0
    %1988 = vmatpush1.bf16.msra.mxu0 0
    %1989 = vmatprep.subr.bf16.mxu0 0
    %1990 = vmatpush1.bf16.msra.mxu0 0
    %1991 = vmatprep.subr.bf16.mxu0 0
    %1992 = vmatpush1.bf16.msra.mxu0 0
    %1993 = vmatprep.subr.bf16.mxu0 0
    %1994 = vmatpush1.bf16.msra.mxu0 0
    %1995 = vmatprep.subr.bf16.mxu0 0
    %1996 = vmatpush1.bf16.msra.mxu0 0
    %1997 = vmatprep.subr.bf16.mxu0 0
    %1998 = vmatpush1.bf16.msra.mxu0 0
    %1999 = vmatprep.subr.bf16.mxu0 0
    %2000 = vmatpush1.bf16.msra.mxu0 0
    %2001 = vmatprep.subr.bf16.mxu0 0
    %2002 = vmatpush1.bf16.msra.mxu0 0
    %2003 = vmatprep.subr.bf16.mxu0 0
    %2004 = vmatpush1.bf16.msra.mxu0 0
    %2005 = vmatprep.subr.bf16.mxu0 0
    %2006 = vmatpush1.bf16.msra.mxu0 0
    %2007 = vmatprep.subr.bf16.mxu0 0
    %2008 = vmatpush1.bf16.msra.mxu0 0
    %2009 = vmatprep.subr.bf16.mxu0 0
    %2010 = vmatpush1.bf16.msra.mxu0 0
    %2011 = vmatprep.subr.bf16.mxu0 0
    %2012 = vmatpush1.bf16.msra.mxu0 0
    %2013 = vmatprep.mubr.bf16.mxu0 0
    %2014 = vmatmul.mubr.bf16.gmra.mrb[0].mxu0 %v1979
    %v2015 = vpop.f32.mrb[0].mxu0
    %v2016 = vadd.f32 0.0, %v2015
    %v2017 = vpop.f32.mrb[0].mxu0
    %v2018 = vpop.f32.mrb[0].mxu0
    %v2019 = vpop.f32.mrb[0].mxu0
    %2020 = vdwg.mxu0
    %v2021 = vadd.f32 %v1974, %v2016
    %v2022 = vxor.u32 %v2021, 2147483648
    %v2023 = vmul.f32 %v2022, 1.442695
    %v2024 = vpow.pop %v2023
    %v2025 = vadd.f32 %v2024, 1.0
    %v2026 = vrcp.pop %v2025
    %v2027 = vmul.f32 1.0, %v2026
    %v2028 = vmul.f32 %v2027, 2.0
    %v2029 = vsub.f32 %v2028, 1.0
    %v2030 = vsel %vm78, %v2029, %v2027
    %v2031 = vmul.f32 %v2030, %v1463
    %2033 = vrot.lane.b32.xlu0 %v2030, 64
    %v2034 = vpop.permute.xlu0 %2033
    %v2036 = vmul.f32 %v2030, %v2034
    %2038 = vrot.lane.b32.xlu0 %v2036, 32
    %v2039 = vpop.permute.xlu0 %2038
    %v2041 = vadd.f32 %v2031, %v2039
    %v2042 = vtanh.pop %v2041
    %2044 = vrot.lane.b32.xlu0 %v2042, 64
    %v2045 = vpop.permute.xlu0 %2044
    %v2047 = vmul.f32 %v2030, %v2045
    %v2048 = vpack.c.bf16 %v1584, %v1584
    %2049 = vmatprep.subr.bf16.mxu0 0
    %2050 = vmatpush1.bf16.msra.mxu0 %v442
    %2051 = vmatprep.subr.bf16.mxu0 0
    %2052 = vmatpush1.bf16.msra.mxu0 %v443
    %2053 = vmatprep.subr.bf16.mxu0 0
    %2054 = vmatpush1.bf16.msra.mxu0 0
    %2055 = vmatprep.subr.bf16.mxu0 0
    %2056 = vmatpush1.bf16.msra.mxu0 0
    %2057 = vmatprep.subr.bf16.mxu0 0
    %2058 = vmatpush1.bf16.msra.mxu0 0
    %2059 = vmatprep.subr.bf16.mxu0 0
    %2060 = vmatpush1.bf16.msra.mxu0 0
    %2061 = vmatprep.subr.bf16.mxu0 0
    %2062 = vmatpush1.bf16.msra.mxu0 0
    %2063 = vmatprep.subr.bf16.mxu0 0
    %2064 = vmatpush1.bf16.msra.mxu0 0
    %2065 = vmatprep.subr.bf16.mxu0 0
    %2066 = vmatpush1.bf16.msra.mxu0 0
    %2067 = vmatprep.subr.bf16.mxu0 0
    %2068 = vmatpush1.bf16.msra.mxu0 0
    %2069 = vmatprep.subr.bf16.mxu0 0
    %2070 = vmatpush1.bf16.msra.mxu0 0
    %2071 = vmatprep.subr.bf16.mxu0 0
    %2072 = vmatpush1.bf16.msra.mxu0 0
    %2073 = vmatprep.subr.bf16.mxu0 0
    %2074 = vmatpush1.bf16.msra.mxu0 0
    %2075 = vmatprep.subr.bf16.mxu0 0
    %2076 = vmatpush1.bf16.msra.mxu0 0
    %2077 = vmatprep.subr.bf16.mxu0 0
    %2078 = vmatpush1.bf16.msra.mxu0 0
    %2079 = vmatprep.subr.bf16.mxu0 0
    %2080 = vmatpush1.bf16.msra.mxu0 0
    %2081 = vmatprep.mubr.bf16.mxu0 0
    %2082 = vmatmul.mubr.bf16.gmra.mrb[0].mxu0 %v1979
    %v2083 = vpop.f32.mrb[0].mxu0
    %v2084 = vadd.f32 0.0, %v2083
    %v2085 = vpop.f32.mrb[0].mxu0
    %v2086 = vpop.f32.mrb[0].mxu0
    %v2087 = vpop.f32.mrb[0].mxu0
    %2088 = vdwg.mxu0
    %v2089 = vadd.f32 %v490, %v2084
    %2091 = vrot.lane.b32.xlu0 %v2048, 32
    %v2092 = vpop.permute.xlu0 %2091
    %v2094 = vsel %vm277, %v2092, 0
    %2096 = vmatprep.subr.bf16.mxu0 0
    %2097 = vmatpush1.bf16.msra.mxu0 %v506
    %2098 = vmatprep.subr.bf16.mxu0 0
    %2099 = vmatpush1.bf16.msra.mxu0 %v507
    %2100 = vmatprep.subr.bf16.mxu0 0
    %2101 = vmatpush1.bf16.msra.mxu0 0
    %2102 = vmatprep.subr.bf16.mxu0 0
    %2103 = vmatpush1.bf16.msra.mxu0 0
    %2104 = vmatprep.subr.bf16.mxu0 0
    %2105 = vmatpush1.bf16.msra.mxu0 0
    %2106 = vmatprep.subr.bf16.mxu0 0
    %2107 = vmatpush1.bf16.msra.mxu0 0
    %2108 = vmatprep.subr.bf16.mxu0 0
    %2109 = vmatpush1.bf16.msra.mxu0 0
    %2110 = vmatprep.subr.bf16.mxu0 0
    %2111 = vmatpush1.bf16.msra.mxu0 0
    %2112 = vmatprep.subr.bf16.mxu0 0
    %2113 = vmatpush1.bf16.msra.mxu0 0
    %2114 = vmatprep.subr.bf16.mxu0 0
    %2115 = vmatpush1.bf16.msra.mxu0 0
    %2116 = vmatprep.subr.bf16.mxu0 0
    %2117 = vmatpush1.bf16.msra.mxu0 0
    %2118 = vmatprep.subr.bf16.mxu0 0
    %2119 = vmatpush1.bf16.msra.mxu0 0
    %2120 = vmatprep.subr.bf16.mxu0 0
    %2121 = vmatpush1.bf16.msra.mxu0 0
    %2122 = vmatprep.subr.bf16.mxu0 0
    %2123 = vmatpush1.bf16.msra.mxu0 0
    %2124 = vmatprep.subr.bf16.mxu0 0
    %2125 = vmatpush1.bf16.msra.mxu0 0
    %2126 = vmatprep.subr.bf16.mxu0 0
    %2127 = vmatpush1.bf16.msra.mxu0 0
    %2128 = vmatprep.mubr.bf16.mxu0 0
    %2129 = vmatmul.mubr.bf16.gmra.mrb[0].mxu0 %v2094
    %v2130 = vpop.f32.mrb[0].mxu0
    %v2131 = vadd.f32 0.0, %v2130
    %v2132 = vpop.f32.mrb[0].mxu0
    %v2133 = vpop.f32.mrb[0].mxu0
    %v2134 = vpop.f32.mrb[0].mxu0
    %2135 = vdwg.mxu0
    %v2136 = vadd.f32 %v2089, %v2131
    %v2137 = vxor.u32 %v2136, 2147483648
    %v2138 = vmul.f32 %v2137, 1.442695
    %v2139 = vpow.pop %v2138
    %v2140 = vadd.f32 %v2139, 1.0
    %v2141 = vrcp.pop %v2140
    %v2142 = vmul.f32 1.0, %v2141
    %v2143 = vmul.f32 %v2142, 2.0
    %v2144 = vsub.f32 %v2143, 1.0
    %v2145 = vsel %vm78, %v2144, %v2142
    %v2146 = vmul.f32 %v2145, %v1578
    %2148 = vrot.lane.b32.xlu0 %v2145, 64
    %v2149 = vpop.permute.xlu0 %2148
    %v2151 = vmul.f32 %v2145, %v2149
    %2153 = vrot.lane.b32.xlu0 %v2151, 32
    %v2154 = vpop.permute.xlu0 %2153
    %v2156 = vadd.f32 %v2146, %v2154
    %v2157 = vtanh.pop %v2156
    %2159 = vrot.lane.b32.xlu0 %v2157, 64
    %v2160 = vpop.permute.xlu0 %2159
    %v2162 = vmul.f32 %v2145, %v2160
    %v2163 = vpack.c.bf16 %v1699, %v1699
    %2164 = vmatprep.subr.bf16.mxu0 0
    %2165 = vmatpush1.bf16.msra.mxu0 %v790
    %2166 = vmatprep.subr.bf16.mxu0 0
    %2167 = vmatpush1.bf16.msra.mxu0 %v791
    %2168 = vmatprep.subr.bf16.mxu0 0
    %2169 = vmatpush1.bf16.msra.mxu0 0
    %2170 = vmatprep.subr.bf16.mxu0 0
    %2171 = vmatpush1.bf16.msra.mxu0 0
    %2172 = vmatprep.subr.bf16.mxu0 0
    %2173 = vmatpush1.bf16.msra.mxu0 0
    %2174 = vmatprep.subr.bf16.mxu0 0
    %2175 = vmatpush1.bf16.msra.mxu0 0
    %2176 = vmatprep.subr.bf16.mxu0 0
    %2177 = vmatpush1.bf16.msra.mxu0 0
    %2178 = vmatprep.subr.bf16.mxu0 0
    %2179 = vmatpush1.bf16.msra.mxu0 0
    %2180 = vmatprep.subr.bf16.mxu0 0
    %2181 = vmatpush1.bf16.msra.mxu0 0
    %2182 = vmatprep.subr.bf16.mxu0 0
    %2183 = vmatpush1.bf16.msra.mxu0 0
    %2184 = vmatprep.subr.bf16.mxu0 0
    %2185 = vmatpush1.bf16.msra.mxu0 0
    %2186 = vmatprep.subr.bf16.mxu0 0
    %2187 = vmatpush1.bf16.msra.mxu0 0
    %2188 = vmatprep.subr.bf16.mxu0 0
    %2189 = vmatpush1.bf16.msra.mxu0 0
    %2190 = vmatprep.subr.bf16.mxu0 0
    %2191 = vmatpush1.bf16.msra.mxu0 0
    %2192 = vmatprep.subr.bf16.mxu0 0
    %2193 = vmatpush1.bf16.msra.mxu0 0
    %2194 = vmatprep.subr.bf16.mxu0 0
    %2195 = vmatpush1.bf16.msra.mxu0 0
    %2196 = vmatprep.mubr.bf16.mxu0 0
    %2197 = vmatmul.mubr.bf16.gmra.mrb[0].mxu0 %v2094
    %v2198 = vpop.f32.mrb[0].mxu0
    %v2199 = vadd.f32 0.0, %v2198
    %v2200 = vpop.f32.mrb[0].mxu0
    %v2201 = vpop.f32.mrb[0].mxu0
    %v2202 = vpop.f32.mrb[0].mxu0
    %2203 = vdwg.mxu0
    %v2204 = vadd.f32 %v838, %v2199
    %2206 = vrot.lane.b32.xlu0 %v2163, 32
    %v2207 = vpop.permute.xlu0 %2206
    %v2209 = vsel %vm277, %v2207, 0
    %2211 = vmatprep.subr.bf16.mxu0 0
    %2212 = vmatpush1.bf16.msra.mxu0 %v854
    %2213 = vmatprep.subr.bf16.mxu0 0
    %2214 = vmatpush1.bf16.msra.mxu0 %v855
    %2215 = vmatprep.subr.bf16.mxu0 0
    %2216 = vmatpush1.bf16.msra.mxu0 0
    %2217 = vmatprep.subr.bf16.mxu0 0
    %2218 = vmatpush1.bf16.msra.mxu0 0
    %2219 = vmatprep.subr.bf16.mxu0 0
    %2220 = vmatpush1.bf16.msra.mxu0 0
    %2221 = vmatprep.subr.bf16.mxu0 0
    %2222 = vmatpush1.bf16.msra.mxu0 0
    %2223 = vmatprep.subr.bf16.mxu0 0
    %2224 = vmatpush1.bf16.msra.mxu0 0
    %2225 = vmatprep.subr.bf16.mxu0 0
    %2226 = vmatpush1.bf16.msra.mxu0 0
    %2227 = vmatprep.subr.bf16.mxu0 0
    %2228 = vmatpush1.bf16.msra.mxu0 0
    %2229 = vmatprep.subr.bf16.mxu0 0
    %2230 = vmatpush1.bf16.msra.mxu0 0
    %2231 = vmatprep.subr.bf16.mxu0 0
    %2232 = vmatpush1.bf16.msra.mxu0 0
    %2233 = vmatprep.subr.bf16.mxu0 0
    %2234 = vmatpush1.bf16.msra.mxu0 0
    %2235 = vmatprep.subr.bf16.mxu0 0
    %2236 = vmatpush1.bf16.msra.mxu0 0
    %2237 = vmatprep.subr.bf16.mxu0 0
    %2238 = vmatpush1.bf16.msra.mxu0 0
    %2239 = vmatprep.subr.bf16.mxu0 0
    %2240 = vmatpush1.bf16.msra.mxu0 0
    %2241 = vmatprep.subr.bf16.mxu0 0
    %2242 = vmatpush1.bf16.msra.mxu0 0
    %2243 = vmatprep.mubr.bf16.mxu0 0
    %2244 = vmatmul.mubr.bf16.gmra.mrb[0].mxu0 %v2209
    %v2245 = vpop.f32.mrb[0].mxu0
    %v2246 = vadd.f32 0.0, %v2245
    %v2247 = vpop.f32.mrb[0].mxu0
    %v2248 = vpop.f32.mrb[0].mxu0
    %v2249 = vpop.f32.mrb[0].mxu0
    %2250 = vdwg.mxu0
    %v2251 = vadd.f32 %v2204, %v2246
    %v2252 = vxor.u32 %v2251, 2147483648
    %v2253 = vmul.f32 %v2252, 1.442695
    %v2254 = vpow.pop %v2253
    %v2255 = vadd.f32 %v2254, 1.0
    %v2256 = vrcp.pop %v2255
    %v2257 = vmul.f32 1.0, %v2256
    %v2258 = vmul.f32 %v2257, 2.0
    %v2259 = vsub.f32 %v2258, 1.0
    %v2260 = vsel %vm78, %v2259, %v2257
    %v2261 = vmul.f32 %v2260, %v1693
    %2263 = vrot.lane.b32.xlu0 %v2260, 64
    %v2264 = vpop.permute.xlu0 %2263
    %v2266 = vmul.f32 %v2260, %v2264
    %2268 = vrot.lane.b32.xlu0 %v2266, 32
    %v2269 = vpop.permute.xlu0 %2268
    %v2271 = vadd.f32 %v2261, %v2269
    %v2272 = vtanh.pop %v2271
    %2274 = vrot.lane.b32.xlu0 %v2272, 64
    %v2275 = vpop.permute.xlu0 %2274
    %v2277 = vmul.f32 %v2260, %v2275
    %v2278 = vpack.c.bf16 %v1814, %v1814
    %2279 = vmatprep.subr.bf16.mxu0 0
    %2280 = vmatpush1.bf16.msra.mxu0 %v1253
    %2281 = vmatprep.subr.bf16.mxu0 0
    %2282 = vmatpush1.bf16.msra.mxu0 %v1254
    %2283 = vmatprep.subr.bf16.mxu0 0
    %2284 = vmatpush1.bf16.msra.mxu0 0
    %2285 = vmatprep.subr.bf16.mxu0 0
    %2286 = vmatpush1.bf16.msra.mxu0 0
    %2287 = vmatprep.subr.bf16.mxu0 0
    %2288 = vmatpush1.bf16.msra.mxu0 0
    %2289 = vmatprep.subr.bf16.mxu0 0
    %2290 = vmatpush1.bf16.msra.mxu0 0
    %2291 = vmatprep.subr.bf16.mxu0 0
    %2292 = vmatpush1.bf16.msra.mxu0 0
    %2293 = vmatprep.subr.bf16.mxu0 0
    %2294 = vmatpush1.bf16.msra.mxu0 0
    %2295 = vmatprep.subr.bf16.mxu0 0
    %2296 = vmatpush1.bf16.msra.mxu0 0
    %2297 = vmatprep.subr.bf16.mxu0 0
    %2298 = vmatpush1.bf16.msra.mxu0 0
    %2299 = vmatprep.subr.bf16.mxu0 0
    %2300 = vmatpush1.bf16.msra.mxu0 0
    %2301 = vmatprep.subr.bf16.mxu0 0
    %2302 = vmatpush1.bf16.msra.mxu0 0
    %2303 = vmatprep.subr.bf16.mxu0 0
    %2304 = vmatpush1.bf16.msra.mxu0 0
    %2305 = vmatprep.subr.bf16.mxu0 0
    %2306 = vmatpush1.bf16.msra.mxu0 0
    %2307 = vmatprep.subr.bf16.mxu0 0
    %2308 = vmatpush1.bf16.msra.mxu0 0
    %2309 = vmatprep.subr.bf16.mxu0 0
    %2310 = vmatpush1.bf16.msra.mxu0 0
    %2311 = vmatprep.mubr.bf16.mxu0 0
    %2312 = vmatmul.mubr.bf16.gmra.mrb[0].mxu0 %v2209
    %v2313 = vpop.f32.mrb[0].mxu0
    %v2314 = vadd.f32 0.0, %v2313
    %v2315 = vpop.f32.mrb[0].mxu0
    %v2316 = vpop.f32.mrb[0].mxu0
    %v2317 = vpop.f32.mrb[0].mxu0
    %2318 = vdwg.mxu0
    %v2319 = vadd.f32 %v1301, %v2314
    %2321 = vrot.lane.b32.xlu0 %v2278, 32
    %v2322 = vpop.permute.xlu0 %2321
    %v2324 = vsel %vm277, %v2322, 0
    %2326 = vmatprep.subr.bf16.mxu0 0
    %2327 = vmatpush1.bf16.msra.mxu0 %v1317
    %2328 = vmatprep.subr.bf16.mxu0 0
    %2329 = vmatpush1.bf16.msra.mxu0 %v1318
    %2330 = vmatprep.subr.bf16.mxu0 0
    %2331 = vmatpush1.bf16.msra.mxu0 0
    %2332 = vmatprep.subr.bf16.mxu0 0
    %2333 = vmatpush1.bf16.msra.mxu0 0
    %2334 = vmatprep.subr.bf16.mxu0 0
    %2335 = vmatpush1.bf16.msra.mxu0 0
    %2336 = vmatprep.subr.bf16.mxu0 0
    %2337 = vmatpush1.bf16.msra.mxu0 0
    %2338 = vmatprep.subr.bf16.mxu0 0
    %2339 = vmatpush1.bf16.msra.mxu0 0
    %2340 = vmatprep.subr.bf16.mxu0 0
    %2341 = vmatpush1.bf16.msra.mxu0 0
    %2342 = vmatprep.subr.bf16.mxu0 0
    %2343 = vmatpush1.bf16.msra.mxu0 0
    %2344 = vmatprep.subr.bf16.mxu0 0
    %2345 = vmatpush1.bf16.msra.mxu0 0
    %2346 = vmatprep.subr.bf16.mxu0 0
    %2347 = vmatpush1.bf16.msra.mxu0 0
    %2348 = vmatprep.subr.bf16.mxu0 0
    %2349 = vmatpush1.bf16.msra.mxu0 0
    %2350 = vmatprep.subr.bf16.mxu0 0
    %2351 = vmatpush1.bf16.msra.mxu0 0
    %2352 = vmatprep.subr.bf16.mxu0 0
    %2353 = vmatpush1.bf16.msra.mxu0 0
    %2354 = vmatprep.subr.bf16.mxu0 0
    %2355 = vmatpush1.bf16.msra.mxu0 0
    %2356 = vmatprep.subr.bf16.mxu0 0
    %2357 = vmatpush1.bf16.msra.mxu0 0
    %2358 = vmatprep.mubr.bf16.mxu0 0
    %2359 = vmatmul.mubr.bf16.gmra.mrb[0].mxu0 %v2324
    %v2360 = vpop.f32.mrb[0].mxu0
    %v2361 = vadd.f32 0.0, %v2360
    %v2362 = vpop.f32.mrb[0].mxu0
    %v2363 = vpop.f32.mrb[0].mxu0
    %v2364 = vpop.f32.mrb[0].mxu0
    %2365 = vdwg.mxu0
    %v2366 = vadd.f32 %v2319, %v2361
    %v2367 = vxor.u32 %v2366, 2147483648
    %v2368 = vmul.f32 %v2367, 1.442695
    %v2369 = vpow.pop %v2368
    %v2370 = vadd.f32 %v2369, 1.0
    %v2371 = vrcp.pop %v2370
    %v2372 = vmul.f32 1.0, %v2371
    %v2373 = vmul.f32 %v2372, 2.0
    %v2374 = vsub.f32 %v2373, 1.0
    %v2375 = vsel %vm78, %v2374, %v2372
    %v2376 = vmul.f32 %v2375, %v1808
    %2378 = vrot.lane.b32.xlu0 %v2375, 64
    %v2379 = vpop.permute.xlu0 %2378
    %v2381 = vmul.f32 %v2375, %v2379
    %2383 = vrot.lane.b32.xlu0 %v2381, 32
    %v2384 = vpop.permute.xlu0 %2383
    %v2386 = vadd.f32 %v2376, %v2384
    %v2387 = vtanh.pop %v2386
    %2389 = vrot.lane.b32.xlu0 %v2387, 64
    %v2390 = vpop.permute.xlu0 %2389
    %v2392 = vmul.f32 %v2375, %v2390
    %v2393 = vpack.c.bf16 %v1972, %v1972
    %2394 = vmatprep.subr.bf16.mxu0 0
    %2395 = vmatpush1.bf16.msra.mxu0 %v1831
    %2396 = vmatprep.subr.bf16.mxu0 0
    %2397 = vmatpush1.bf16.msra.mxu0 %v1832
    %2398 = vmatprep.subr.bf16.mxu0 0
    %2399 = vmatpush1.bf16.msra.mxu0 0
    %2400 = vmatprep.subr.bf16.mxu0 0
    %2401 = vmatpush1.bf16.msra.mxu0 0
    %2402 = vmatprep.subr.bf16.mxu0 0
    %2403 = vmatpush1.bf16.msra.mxu0 0
    %2404 = vmatprep.subr.bf16.mxu0 0
    %2405 = vmatpush1.bf16.msra.mxu0 0
    %2406 = vmatprep.subr.bf16.mxu0 0
    %2407 = vmatpush1.bf16.msra.mxu0 0
    %2408 = vmatprep.subr.bf16.mxu0 0
    %2409 = vmatpush1.bf16.msra.mxu0 0
    %2410 = vmatprep.subr.bf16.mxu0 0
    %2411 = vmatpush1.bf16.msra.mxu0 0
    %2412 = vmatprep.subr.bf16.mxu0 0
    %2413 = vmatpush1.bf16.msra.mxu0 0
    %2414 = vmatprep.subr.bf16.mxu0 0
    %2415 = vmatpush1.bf16.msra.mxu0 0
    %2416 = vmatprep.subr.bf16.mxu0 0
    %2417 = vmatpush1.bf16.msra.mxu0 0
    %2418 = vmatprep.subr.bf16.mxu0 0
    %2419 = vmatpush1.bf16.msra.mxu0 0
    %2420 = vmatprep.subr.bf16.mxu0 0
    %2421 = vmatpush1.bf16.msra.mxu0 0
    %2422 = vmatprep.subr.bf16.mxu0 0
    %2423 = vmatpush1.bf16.msra.mxu0 0
    %2424 = vmatprep.subr.bf16.mxu0 0
    %2425 = vmatpush1.bf16.msra.mxu0 0
    %2426 = vmatprep.mubr.bf16.mxu0 0
    %2427 = vmatmul.mubr.bf16.gmra.mrb[0].mxu0 %v2324
    %v2428 = vpop.f32.mrb[0].mxu0
    %v2429 = vadd.f32 0.0, %v2428
    %v2430 = vpop.f32.mrb[0].mxu0
    %v2431 = vpop.f32.mrb[0].mxu0
    %v2432 = vpop.f32.mrb[0].mxu0
    %2433 = vdwg.mxu0
    %v2434 = vadd.f32 %v1879, %v2429
    %2436 = vrot.lane.b32.xlu0 %v2393, 32
    %v2437 = vpop.permute.xlu0 %2436
    %v2439 = vsel %vm277, %v2437, 0
    %2441 = vmatprep.subr.bf16.mxu0 0
    %2442 = vmatpush1.bf16.msra.mxu0 %v1895
    %2443 = vmatprep.subr.bf16.mxu0 0
    %2444 = vmatpush1.bf16.msra.mxu0 %v1896
    %2445 = vmatprep.subr.bf16.mxu0 0
    %2446 = vmatpush1.bf16.msra.mxu0 0
    %2447 = vmatprep.subr.bf16.mxu0 0
    %2448 = vmatpush1.bf16.msra.mxu0 0
    %2449 = vmatprep.subr.bf16.mxu0 0
    %2450 = vmatpush1.bf16.msra.mxu0 0
    %2451 = vmatprep.subr.bf16.mxu0 0
    %2452 = vmatpush1.bf16.msra.mxu0 0
    %2453 = vmatprep.subr.bf16.mxu0 0
    %2454 = vmatpush1.bf16.msra.mxu0 0
    %2455 = vmatprep.subr.bf16.mxu0 0
    %2456 = vmatpush1.bf16.msra.mxu0 0
    %2457 = vmatprep.subr.bf16.mxu0 0
    %2458 = vmatpush1.bf16.msra.mxu0 0
    %2459 = vmatprep.subr.bf16.mxu0 0
    %2460 = vmatpush1.bf16.msra.mxu0 0
    %2461 = vmatprep.subr.bf16.mxu0 0
    %2462 = vmatpush1.bf16.msra.mxu0 0
    %2463 = vmatprep.subr.bf16.mxu0 0
    %2464 = vmatpush1.bf16.msra.mxu0 0
    %2465 = vmatprep.subr.bf16.mxu0 0
    %2466 = vmatpush1.bf16.msra.mxu0 0
    %2467 = vmatprep.subr.bf16.mxu0 0
    %2468 = vmatpush1.bf16.msra.mxu0 0
    %2469 = vmatprep.subr.bf16.mxu0 0
    %2470 = vmatpush1.bf16.msra.mxu0 0
    %2471 = vmatprep.subr.bf16.mxu0 0
    %2472 = vmatpush1.bf16.msra.mxu0 0
    %2473 = vmatprep.mubr.bf16.mxu0 0
    %2474 = vmatmul.mubr.bf16.gmra.mrb[0].mxu0 %v2439
    %v2475 = vpop.f32.mrb[0].mxu0
    %v2476 = vadd.f32 0.0, %v2475
    %v2477 = vpop.f32.mrb[0].mxu0
    %v2478 = vpop.f32.mrb[0].mxu0
    %v2479 = vpop.f32.mrb[0].mxu0
    %2480 = vdwg.mxu0
    %v2481 = vadd.f32 %v2434, %v2476
    %v2482 = vxor.u32 %v2481, 2147483648
    %v2483 = vmul.f32 %v2482, 1.442695
    %v2484 = vpow.pop %v2483
    %v2485 = vadd.f32 %v2484, 1.0
    %v2486 = vrcp.pop %v2485
    %v2487 = vmul.f32 1.0, %v2486
    %v2488 = vmul.f32 %v2487, 2.0
    %v2489 = vsub.f32 %v2488, 1.0
    %v2490 = vsel %vm78, %v2489, %v2487
    %v2491 = vmul.f32 %v2490, %v1966
    %2493 = vrot.lane.b32.xlu0 %v2490, 64
    %v2494 = vpop.permute.xlu0 %2493
    %v2496 = vmul.f32 %v2490, %v2494
    %2498 = vrot.lane.b32.xlu0 %v2496, 32
    %v2499 = vpop.permute.xlu0 %2498
    %v2501 = vadd.f32 %v2491, %v2499
    %v2502 = vtanh.pop %v2501
    %2504 = vrot.lane.b32.xlu0 %v2502, 64
    %v2505 = vpop.permute.xlu0 %2504
    %v2507 = vmul.f32 %v2490, %v2505
    %v2508 = vpack.c.bf16 %v247, %v247
    %s2509 = scalar_lea.vmem [#allocation3], 5
    %v2510 = vld [vmem:[%s2509] sm:$0x1]
    %s2511 = scalar_lea.vmem %s2, 64
    %v2512 = vld [vmem:[%s2511] sm:$0xf]
    %v2513 = vld [vmem:[%s2511 + $0x4] sm:$0xf]
    %v2514 = vld [vmem:[%s2511 + $0x8] sm:$0xf]
    %v2515 = vld [vmem:[%s2511 + $0xc] sm:$0xf]
    %v2520 = vunpack.c.l.b16 %v2512
    %v2521 = vunpack.c.l.b16 %v2513
    %v2522 = vunpack.c.l.b16 %v2514
    %v2523 = vunpack.c.l.b16 %v2515
    %v2524 = vpack.c.b16 %v2521, %v2520
    %v2525 = vpack.c.b16 %v2523, %v2522
    %2528 = vmatprep.subr.bf16.mxu0 0
    %2529 = vmatpush1.bf16.msra.mxu0 %v2524
    %2530 = vmatprep.subr.bf16.mxu0 0
    %2531 = vmatpush1.bf16.msra.mxu0 %v2525
    %2532 = vmatprep.subr.bf16.mxu0 0
    %2533 = vmatpush1.bf16.msra.mxu0 0
    %2534 = vmatprep.subr.bf16.mxu0 0
    %2535 = vmatpush1.bf16.msra.mxu0 0
    %2536 = vmatprep.subr.bf16.mxu0 0
    %2537 = vmatpush1.bf16.msra.mxu0 0
    %2538 = vmatprep.subr.bf16.mxu0 0
    %2539 = vmatpush1.bf16.msra.mxu0 0
    %2540 = vmatprep.subr.bf16.mxu0 0
    %2541 = vmatpush1.bf16.msra.mxu0 0
    %2542 = vmatprep.subr.bf16.mxu0 0
    %2543 = vmatpush1.bf16.msra.mxu0 0
    %2544 = vmatprep.subr.bf16.mxu0 0
    %2545 = vmatpush1.bf16.msra.mxu0 0
    %2546 = vmatprep.subr.bf16.mxu0 0
    %2547 = vmatpush1.bf16.msra.mxu0 0
    %2548 = vmatprep.subr.bf16.mxu0 0
    %2549 = vmatpush1.bf16.msra.mxu0 0
    %2550 = vmatprep.subr.bf16.mxu0 0
    %2551 = vmatpush1.bf16.msra.mxu0 0
    %2552 = vmatprep.subr.bf16.mxu0 0
    %2553 = vmatpush1.bf16.msra.mxu0 0
    %2554 = vmatprep.subr.bf16.mxu0 0
    %2555 = vmatpush1.bf16.msra.mxu0 0
    %2556 = vmatprep.subr.bf16.mxu0 0
    %2557 = vmatpush1.bf16.msra.mxu0 0
    %2558 = vmatprep.subr.bf16.mxu0 0
    %2559 = vmatpush1.bf16.msra.mxu0 0
    %2560 = vmatprep.mubr.bf16.mxu0 0
    %2561 = vmatmul.mubr.bf16.gmra.mrb[0].mxu0 %v2439
    %v2562 = vpop.f32.mrb[0].mxu0
    %v2563 = vadd.f32 0.0, %v2562
    %v2564 = vpop.f32.mrb[0].mxu0
    %v2565 = vpop.f32.mrb[0].mxu0
    %v2566 = vpop.f32.mrb[0].mxu0
    %2567 = vdwg.mxu0
    %v2569 = vlaneseq
    %v2570 = vshrl.u32 %v2569, 7
    %v2571 = vsub.s32 0, %v2570
    %v2572 = vrot.slane %v2510, %v2571
    %v2574 = vadd.f32 %v2572, %v2563
    %s2575 = scalar_lea.vmem %s3, 80
    %v2576 = vld [vmem:[%s2575] sm:$0xf]
    %v2577 = vld [vmem:[%s2575 + $0x4] sm:$0xf]
    %v2578 = vld [vmem:[%s2575 + $0x8] sm:$0xf]
    %v2579 = vld [vmem:[%s2575 + $0xc] sm:$0xf]
    %v2584 = vunpack.c.l.b16 %v2576
    %v2585 = vunpack.c.l.b16 %v2577
    %v2586 = vunpack.c.l.b16 %v2578
    %v2587 = vunpack.c.l.b16 %v2579
    %v2588 = vpack.c.b16 %v2585, %v2584
    %v2589 = vpack.c.b16 %v2587, %v2586
    %v2593 = vsel %vm277, %v2508, 0
    %2595 = vmatprep.subr.bf16.mxu0 0
    %2596 = vmatpush1.bf16.msra.mxu0 %v2588
    %2597 = vmatprep.subr.bf16.mxu0 0
    %2598 = vmatpush1.bf16.msra.mxu0 %v2589
    %2599 = vmatprep.subr.bf16.mxu0 0
    %2600 = vmatpush1.bf16.msra.mxu0 0
    %2601 = vmatprep.subr.bf16.mxu0 0
    %2602 = vmatpush1.bf16.msra.mxu0 0
    %2603 = vmatprep.subr.bf16.mxu0 0
    %2604 = vmatpush1.bf16.msra.mxu0 0
    %2605 = vmatprep.subr.bf16.mxu0 0
    %2606 = vmatpush1.bf16.msra.mxu0 0
    %2607 = vmatprep.subr.bf16.mxu0 0
    %2608 = vmatpush1.bf16.msra.mxu0 0
    %2609 = vmatprep.subr.bf16.mxu0 0
    %2610 = vmatpush1.bf16.msra.mxu0 0
    %2611 = vmatprep.subr.bf16.mxu0 0
    %2612 = vmatpush1.bf16.msra.mxu0 0
    %2613 = vmatprep.subr.bf16.mxu0 0
    %2614 = vmatpush1.bf16.msra.mxu0 0
    %2615 = vmatprep.subr.bf16.mxu0 0
    %2616 = vmatpush1.bf16.msra.mxu0 0
    %2617 = vmatprep.subr.bf16.mxu0 0
    %2618 = vmatpush1.bf16.msra.mxu0 0
    %2619 = vmatprep.subr.bf16.mxu0 0
    %2620 = vmatpush1.bf16.msra.mxu0 0
    %2621 = vmatprep.subr.bf16.mxu0 0
    %2622 = vmatpush1.bf16.msra.mxu0 0
    %2623 = vmatprep.subr.bf16.mxu0 0
    %2624 = vmatpush1.bf16.msra.mxu0 0
    %2625 = vmatprep.subr.bf16.mxu0 0
    %2626 = vmatpush1.bf16.msra.mxu0 0
    %2627 = vmatprep.mubr.bf16.mxu0 0
    %2628 = vmatmul.mubr.bf16.gmra.mrb[0].mxu0 %v2593
    %v2629 = vpop.f32.mrb[0].mxu0
    %v2630 = vadd.f32 0.0, %v2629
    %v2631 = vpop.f32.mrb[0].mxu0
    %v2632 = vpop.f32.mrb[0].mxu0
    %v2633 = vpop.f32.mrb[0].mxu0
    %2634 = vdwg.mxu0
    %v2635 = vadd.f32 %v2574, %v2630
    %v2636 = vxor.u32 %v2635, 2147483648
    %v2637 = vmul.f32 %v2636, 1.442695
    %v2638 = vpow.pop %v2637
    %v2639 = vadd.f32 %v2638, 1.0
    %v2640 = vrcp.pop %v2639
    %v2641 = vmul.f32 1.0, %v2640
    %v2642 = vmul.f32 %v2641, 2.0
    %v2643 = vsub.f32 %v2642, 1.0
    %v2644 = vsel %vm78, %v2643, %v2641
    %2646 = vrot.lane.b32.xlu0 %v258, 32
    %v2647 = vpop.permute.xlu0 %2646
    %v2649 = vmul.f32 %v2644, %v2647
    %2651 = vrot.lane.b32.xlu0 %v2644, 64
    %v2652 = vpop.permute.xlu0 %2651
    %v2654 = vmul.f32 %v2644, %v2652
    %2656 = vrot.lane.b32.xlu0 %v2654, 32
    %v2657 = vpop.permute.xlu0 %2656
    %v2659 = vadd.f32 %v2649, %v2657
    %v2660 = vtanh.pop %v2659
    %2662 = vrot.lane.b32.xlu0 %v2660, 64
    %v2663 = vpop.permute.xlu0 %2662
    %v2665 = vmul.f32 %v2644, %v2663
    %v2666 = vpack.c.bf16 %v2665, %v2665
    %v2668 = vlaneseq
    %v2669 = vshrl.u32 %v2668, 7
    %v2670 = vsub.s32 0, %v2669
    %v2671 = vrot.slane %v236, %v2670
    %2674 = vrot.lane.b32.xlu0 %v2666, 32
    %v2675 = vpop.permute.xlu0 %2674
    %v2680 = vunpack.c.l.b16 %v232
    %v2681 = vunpack.c.l.b16 %v233
    %v2682 = vunpack.c.l.b16 %v234
    %v2683 = vunpack.c.l.b16 %v235
    %v2684 = vpack.c.b16 %v2681, %v2680
    %v2685 = vpack.c.b16 %v2683, %v2682
    %v2689 = vsel %vm277, %v2675, 0
    %2691 = vmatprep.subr.bf16.mxu0 0
    %2692 = vmatpush1.bf16.msra.mxu0 %v2684
    %2693 = vmatprep.subr.bf16.mxu0 0
    %2694 = vmatpush1.bf16.msra.mxu0 %v2685
    %2695 = vmatprep.subr.bf16.mxu0 0
    %2696 = vmatpush1.bf16.msra.mxu0 0
    %2697 = vmatprep.subr.bf16.mxu0 0
    %2698 = vmatpush1.bf16.msra.mxu0 0
    %2699 = vmatprep.subr.bf16.mxu0 0
    %2700 = vmatpush1.bf16.msra.mxu0 0
    %2701 = vmatprep.subr.bf16.mxu0 0
    %2702 = vmatpush1.bf16.msra.mxu0 0
    %2703 = vmatprep.subr.bf16.mxu0 0
    %2704 = vmatpush1.bf16.msra.mxu0 0
    %2705 = vmatprep.subr.bf16.mxu0 0
    %2706 = vmatpush1.bf16.msra.mxu0 0
    %2707 = vmatprep.subr.bf16.mxu0 0
    %2708 = vmatpush1.bf16.msra.mxu0 0
    %2709 = vmatprep.subr.bf16.mxu0 0
    %2710 = vmatpush1.bf16.msra.mxu0 0
    %2711 = vmatprep.subr.bf16.mxu0 0
    %2712 = vmatpush1.bf16.msra.mxu0 0
    %2713 = vmatprep.subr.bf16.mxu0 0
    %2714 = vmatpush1.bf16.msra.mxu0 0
    %2715 = vmatprep.subr.bf16.mxu0 0
    %2716 = vmatpush1.bf16.msra.mxu0 0
    %2717 = vmatprep.subr.bf16.mxu0 0
    %2718 = vmatpush1.bf16.msra.mxu0 0
    %2719 = vmatprep.subr.bf16.mxu0 0
    %2720 = vmatpush1.bf16.msra.mxu0 0
    %2721 = vmatprep.subr.bf16.mxu0 0
    %2722 = vmatpush1.bf16.msra.mxu0 0
    %2723 = vmatprep.mubr.bf16.mxu0 0
    %2724 = vmatmul.mubr.bf16.gmra.mrb[0].mxu0 %v2689
    %v2725 = vpop.f32.mrb[0].mxu0
    %v2726 = vadd.f32 %v2671, %v2725
    %v2727 = vpop.f32.mrb[0].mxu0
    %v2728 = vpop.f32.mrb[0].mxu0
    %v2729 = vpop.f32.mrb[0].mxu0
    %2730 = vdwg.mxu0
    %2731 = vst [vmem:[%s9] sm:$0xff] %v2726
    %v2732 = vpack.c.bf16 %v2047, %v2047
    %v2733 = vld [vmem:[#allocation2 + $0x30] sm:$0xff]
    %v2734 = vld [vmem:[%s3] sm:$0xf]
    %v2735 = vld [vmem:[%s3 + $0x4] sm:$0xf]
    %v2736 = vld [vmem:[%s3 + $0x8] sm:$0xf]
    %v2737 = vld [vmem:[%s3 + $0xc] sm:$0xf]
    %2739 = vrot.lane.b32.xlu0 %v2732, 32
    %v2740 = vpop.permute.xlu0 %2739
    %v2745 = vunpack.c.l.b16 %v2734
    %v2746 = vunpack.c.l.b16 %v2735
    %v2747 = vunpack.c.l.b16 %v2736
    %v2748 = vunpack.c.l.b16 %v2737
    %v2749 = vpack.c.b16 %v2746, %v2745
    %v2750 = vpack.c.b16 %v2748, %v2747
    %v2754 = vsel %vm277, %v2740, 0
    %2756 = vmatprep.subr.bf16.mxu0 0
    %2757 = vmatpush1.bf16.msra.mxu0 %v2749
    %2758 = vmatprep.subr.bf16.mxu0 0
    %2759 = vmatpush1.bf16.msra.mxu0 %v2750
    %2760 = vmatprep.subr.bf16.mxu0 0
    %2761 = vmatpush1.bf16.msra.mxu0 0
    %2762 = vmatprep.subr.bf16.mxu0 0
    %2763 = vmatpush1.bf16.msra.mxu0 0
    %2764 = vmatprep.subr.bf16.mxu0 0
    %2765 = vmatpush1.bf16.msra.mxu0 0
    %2766 = vmatprep.subr.bf16.mxu0 0
    %2767 = vmatpush1.bf16.msra.mxu0 0
    %2768 = vmatprep.subr.bf16.mxu0 0
    %2769 = vmatpush1.bf16.msra.mxu0 0
    %2770 = vmatprep.subr.bf16.mxu0 0
    %2771 = vmatpush1.bf16.msra.mxu0 0
    %2772 = vmatprep.subr.bf16.mxu0 0
    %2773 = vmatpush1.bf16.msra.mxu0 0
    %2774 = vmatprep.subr.bf16.mxu0 0
    %2775 = vmatpush1.bf16.msra.mxu0 0
    %2776 = vmatprep.subr.bf16.mxu0 0
    %2777 = vmatpush1.bf16.msra.mxu0 0
    %2778 = vmatprep.subr.bf16.mxu0 0
    %2779 = vmatpush1.bf16.msra.mxu0 0
    %2780 = vmatprep.subr.bf16.mxu0 0
    %2781 = vmatpush1.bf16.msra.mxu0 0
    %2782 = vmatprep.subr.bf16.mxu0 0
    %2783 = vmatpush1.bf16.msra.mxu0 0
    %2784 = vmatprep.subr.bf16.mxu0 0
    %2785 = vmatpush1.bf16.msra.mxu0 0
    %2786 = vmatprep.subr.bf16.mxu0 0
    %2787 = vmatpush1.bf16.msra.mxu0 0
    %2788 = vmatprep.mubr.bf16.mxu0 0
    %2789 = vmatmul.mubr.bf16.gmra.mrb[0].mxu0 %v2754
    %v2790 = vpop.f32.mrb[0].mxu0
    %v2791 = vadd.f32 0.0, %v2790
    %v2792 = vpop.f32.mrb[0].mxu0
    %v2793 = vpop.f32.mrb[0].mxu0
    %v2794 = vpop.f32.mrb[0].mxu0
    %2795 = vdwg.mxu0
    %v2796 = vadd.f32 %v2733, %v2791
    %v2797 = vxor.u32 %v2796, 2147483648
    %v2798 = vmul.f32 %v2797, 1.442695
    %v2799 = vpow.pop %v2798
    %v2800 = vadd.f32 %v2799, 1.0
    %v2801 = vrcp.pop %v2800
    %v2802 = vmul.f32 1.0, %v2801
    %v2803 = vmul.f32 %v2802, 2.0
    %v2804 = vsub.f32 %v2803, 1.0
    %v2805 = vsel %vm78, %v2804, %v2802
    %v2806 = vmul.f32 %v2805, %v2041
    %2808 = vrot.lane.b32.xlu0 %v2805, 64
    %v2809 = vpop.permute.xlu0 %2808
    %v2811 = vmul.f32 %v2805, %v2809
    %2813 = vrot.lane.b32.xlu0 %v2811, 32
    %v2814 = vpop.permute.xlu0 %2813
    %v2816 = vadd.f32 %v2806, %v2814
    %v2817 = vtanh.pop %v2816
    %2819 = vrot.lane.b32.xlu0 %v2817, 64
    %v2820 = vpop.permute.xlu0 %2819
    %v2822 = vmul.f32 %v2805, %v2820
    %v2823 = vpack.c.bf16 %v2162, %v2162
    %v2824 = vld [vmem:[%s428] sm:$0x1]
    %v2825 = vld [vmem:[%s2] sm:$0xf]
    %v2826 = vld [vmem:[%s2 + $0x4] sm:$0xf]
    %v2827 = vld [vmem:[%s2 + $0x8] sm:$0xf]
    %v2828 = vld [vmem:[%s2 + $0xc] sm:$0xf]
    %v2833 = vunpack.c.l.b16 %v2825
    %v2834 = vunpack.c.l.b16 %v2826
    %v2835 = vunpack.c.l.b16 %v2827
    %v2836 = vunpack.c.l.b16 %v2828
    %v2837 = vpack.c.b16 %v2834, %v2833
    %v2838 = vpack.c.b16 %v2836, %v2835
    %2841 = vmatprep.subr.bf16.mxu0 0
    %2842 = vmatpush1.bf16.msra.mxu0 %v2837
    %2843 = vmatprep.subr.bf16.mxu0 0
    %2844 = vmatpush1.bf16.msra.mxu0 %v2838
    %2845 = vmatprep.subr.bf16.mxu0 0
    %2846 = vmatpush1.bf16.msra.mxu0 0
    %2847 = vmatprep.subr.bf16.mxu0 0
    %2848 = vmatpush1.bf16.msra.mxu0 0
    %2849 = vmatprep.subr.bf16.mxu0 0
    %2850 = vmatpush1.bf16.msra.mxu0 0
    %2851 = vmatprep.subr.bf16.mxu0 0
    %2852 = vmatpush1.bf16.msra.mxu0 0
    %2853 = vmatprep.subr.bf16.mxu0 0
    %2854 = vmatpush1.bf16.msra.mxu0 0
    %2855 = vmatprep.subr.bf16.mxu0 0
    %2856 = vmatpush1.bf16.msra.mxu0 0
    %2857 = vmatprep.subr.bf16.mxu0 0
    %2858 = vmatpush1.bf16.msra.mxu0 0
    %2859 = vmatprep.subr.bf16.mxu0 0
    %2860 = vmatpush1.bf16.msra.mxu0 0
    %2861 = vmatprep.subr.bf16.mxu0 0
    %2862 = vmatpush1.bf16.msra.mxu0 0
    %2863 = vmatprep.subr.bf16.mxu0 0
    %2864 = vmatpush1.bf16.msra.mxu0 0
    %2865 = vmatprep.subr.bf16.mxu0 0
    %2866 = vmatpush1.bf16.msra.mxu0 0
    %2867 = vmatprep.subr.bf16.mxu0 0
    %2868 = vmatpush1.bf16.msra.mxu0 0
    %2869 = vmatprep.subr.bf16.mxu0 0
    %2870 = vmatpush1.bf16.msra.mxu0 0
    %2871 = vmatprep.subr.bf16.mxu0 0
    %2872 = vmatpush1.bf16.msra.mxu0 0
    %2873 = vmatprep.mubr.bf16.mxu0 0
    %2874 = vmatmul.mubr.bf16.gmra.mrb[0].mxu0 %v2754
    %v2875 = vpop.f32.mrb[0].mxu0
    %v2876 = vadd.f32 0.0, %v2875
    %v2877 = vpop.f32.mrb[0].mxu0
    %v2878 = vpop.f32.mrb[0].mxu0
    %v2879 = vpop.f32.mrb[0].mxu0
    %2880 = vdwg.mxu0
    %v2882 = vlaneseq
    %v2883 = vshrl.u32 %v2882, 7
    %v2884 = vsub.s32 0, %v2883
    %v2885 = vrot.slane %v2824, %v2884
    %v2887 = vadd.f32 %v2885, %v2876
    %v2888 = vld [vmem:[%s493] sm:$0xf]
    %v2889 = vld [vmem:[%s493 + $0x4] sm:$0xf]
    %v2890 = vld [vmem:[%s493 + $0x8] sm:$0xf]
    %v2891 = vld [vmem:[%s493 + $0xc] sm:$0xf]
    %2893 = vrot.lane.b32.xlu0 %v2823, 32
    %v2894 = vpop.permute.xlu0 %2893
    %v2899 = vunpack.c.l.b16 %v2888
    %v2900 = vunpack.c.l.b16 %v2889
    %v2901 = vunpack.c.l.b16 %v2890
    %v2902 = vunpack.c.l.b16 %v2891
    %v2903 = vpack.c.b16 %v2900, %v2899
    %v2904 = vpack.c.b16 %v2902, %v2901
    %v2908 = vsel %vm277, %v2894, 0
    %2910 = vmatprep.subr.bf16.mxu0 0
    %2911 = vmatpush1.bf16.msra.mxu0 %v2903
    %2912 = vmatprep.subr.bf16.mxu0 0
    %2913 = vmatpush1.bf16.msra.mxu0 %v2904
    %2914 = vmatprep.subr.bf16.mxu0 0
    %2915 = vmatpush1.bf16.msra.mxu0 0
    %2916 = vmatprep.subr.bf16.mxu0 0
    %2917 = vmatpush1.bf16.msra.mxu0 0
    %2918 = vmatprep.subr.bf16.mxu0 0
    %2919 = vmatpush1.bf16.msra.mxu0 0
    %2920 = vmatprep.subr.bf16.mxu0 0
    %2921 = vmatpush1.bf16.msra.mxu0 0
    %2922 = vmatprep.subr.bf16.mxu0 0
    %2923 = vmatpush1.bf16.msra.mxu0 0
    %2924 = vmatprep.subr.bf16.mxu0 0
    %2925 = vmatpush1.bf16.msra.mxu0 0
    %2926 = vmatprep.subr.bf16.mxu0 0
    %2927 = vmatpush1.bf16.msra.mxu0 0
    %2928 = vmatprep.subr.bf16.mxu0 0
    %2929 = vmatpush1.bf16.msra.mxu0 0
    %2930 = vmatprep.subr.bf16.mxu0 0
    %2931 = vmatpush1.bf16.msra.mxu0 0
    %2932 = vmatprep.subr.bf16.mxu0 0
    %2933 = vmatpush1.bf16.msra.mxu0 0
    %2934 = vmatprep.subr.bf16.mxu0 0
    %2935 = vmatpush1.bf16.msra.mxu0 0
    %2936 = vmatprep.subr.bf16.mxu0 0
    %2937 = vmatpush1.bf16.msra.mxu0 0
    %2938 = vmatprep.subr.bf16.mxu0 0
    %2939 = vmatpush1.bf16.msra.mxu0 0
    %2940 = vmatprep.subr.bf16.mxu0 0
    %2941 = vmatpush1.bf16.msra.mxu0 0
    %2942 = vmatprep.mubr.bf16.mxu0 0
    %2943 = vmatmul.mubr.bf16.gmra.mrb[0].mxu0 %v2908
    %v2944 = vpop.f32.mrb[0].mxu0
    %v2945 = vadd.f32 0.0, %v2944
    %v2946 = vpop.f32.mrb[0].mxu0
    %v2947 = vpop.f32.mrb[0].mxu0
    %v2948 = vpop.f32.mrb[0].mxu0
    %2949 = vdwg.mxu0
    %v2950 = vadd.f32 %v2887, %v2945
    %v2951 = vxor.u32 %v2950, 2147483648
    %v2952 = vmul.f32 %v2951, 1.442695
    %v2953 = vpow.pop %v2952
    %v2954 = vadd.f32 %v2953, 1.0
    %v2955 = vrcp.pop %v2954
    %v2956 = vmul.f32 1.0, %v2955
    %v2957 = vmul.f32 %v2956, 2.0
    %v2958 = vsub.f32 %v2957, 1.0
    %v2959 = vsel %vm78, %v2958, %v2956
    %v2960 = vmul.f32 %v2959, %v2156
    %2962 = vrot.lane.b32.xlu0 %v2959, 64
    %v2963 = vpop.permute.xlu0 %2962
    %v2965 = vmul.f32 %v2959, %v2963
    %2967 = vrot.lane.b32.xlu0 %v2965, 32
    %v2968 = vpop.permute.xlu0 %2967
    %v2970 = vadd.f32 %v2960, %v2968
    %v2971 = vtanh.pop %v2970
    %2973 = vrot.lane.b32.xlu0 %v2971, 64
    %v2974 = vpop.permute.xlu0 %2973
    %v2976 = vmul.f32 %v2959, %v2974
    %v2977 = vpack.c.bf16 %v2277, %v2277
    %v2978 = vld [vmem:[%s775] sm:$0x1]
    %v2979 = vld [vmem:[%s777] sm:$0xf]
    %v2980 = vld [vmem:[%s777 + $0x4] sm:$0xf]
    %v2981 = vld [vmem:[%s777 + $0x8] sm:$0xf]
    %v2982 = vld [vmem:[%s777 + $0xc] sm:$0xf]
    %v2987 = vunpack.c.l.b16 %v2979
    %v2988 = vunpack.c.l.b16 %v2980
    %v2989 = vunpack.c.l.b16 %v2981
    %v2990 = vunpack.c.l.b16 %v2982
    %v2991 = vpack.c.b16 %v2988, %v2987
    %v2992 = vpack.c.b16 %v2990, %v2989
    %2995 = vmatprep.subr.bf16.mxu0 0
    %2996 = vmatpush1.bf16.msra.mxu0 %v2991
    %2997 = vmatprep.subr.bf16.mxu0 0
    %2998 = vmatpush1.bf16.msra.mxu0 %v2992
    %2999 = vmatprep.subr.bf16.mxu0 0
    %3000 = vmatpush1.bf16.msra.mxu0 0
    %3001 = vmatprep.subr.bf16.mxu0 0
    %3002 = vmatpush1.bf16.msra.mxu0 0
    %3003 = vmatprep.subr.bf16.mxu0 0
    %3004 = vmatpush1.bf16.msra.mxu0 0
    %3005 = vmatprep.subr.bf16.mxu0 0
    %3006 = vmatpush1.bf16.msra.mxu0 0
    %3007 = vmatprep.subr.bf16.mxu0 0
    %3008 = vmatpush1.bf16.msra.mxu0 0
    %3009 = vmatprep.subr.bf16.mxu0 0
    %3010 = vmatpush1.bf16.msra.mxu0 0
    %3011 = vmatprep.subr.bf16.mxu0 0
    %3012 = vmatpush1.bf16.msra.mxu0 0
    %3013 = vmatprep.subr.bf16.mxu0 0
    %3014 = vmatpush1.bf16.msra.mxu0 0
    %3015 = vmatprep.subr.bf16.mxu0 0
    %3016 = vmatpush1.bf16.msra.mxu0 0
    %3017 = vmatprep.subr.bf16.mxu0 0
    %3018 = vmatpush1.bf16.msra.mxu0 0
    %3019 = vmatprep.subr.bf16.mxu0 0
    %3020 = vmatpush1.bf16.msra.mxu0 0
    %3021 = vmatprep.subr.bf16.mxu0 0
    %3022 = vmatpush1.bf16.msra.mxu0 0
    %3023 = vmatprep.subr.bf16.mxu0 0
    %3024 = vmatpush1.bf16.msra.mxu0 0
    %3025 = vmatprep.subr.bf16.mxu0 0
    %3026 = vmatpush1.bf16.msra.mxu0 0
    %3027 = vmatprep.mubr.bf16.mxu0 0
    %3028 = vmatmul.mubr.bf16.gmra.mrb[0].mxu0 %v2908
    %v3029 = vpop.f32.mrb[0].mxu0
    %v3030 = vadd.f32 0.0, %v3029
    %v3031 = vpop.f32.mrb[0].mxu0
    %v3032 = vpop.f32.mrb[0].mxu0
    %v3033 = vpop.f32.mrb[0].mxu0
    %3034 = vdwg.mxu0
    %v3036 = vlaneseq
    %v3037 = vshrl.u32 %v3036, 7
    %v3038 = vsub.s32 0, %v3037
    %v3039 = vrot.slane %v2978, %v3038
    %v3041 = vadd.f32 %v3039, %v3030
    %v3042 = vld [vmem:[%s841] sm:$0xf]
    %v3043 = vld [vmem:[%s841 + $0x4] sm:$0xf]
    %v3044 = vld [vmem:[%s841 + $0x8] sm:$0xf]
    %v3045 = vld [vmem:[%s841 + $0xc] sm:$0xf]
    %3047 = vrot.lane.b32.xlu0 %v2977, 32
    %v3048 = vpop.permute.xlu0 %3047
    %v3053 = vunpack.c.l.b16 %v3042
    %v3054 = vunpack.c.l.b16 %v3043
    %v3055 = vunpack.c.l.b16 %v3044
    %v3056 = vunpack.c.l.b16 %v3045
    %v3057 = vpack.c.b16 %v3054, %v3053
    %v3058 = vpack.c.b16 %v3056, %v3055
    %v3062 = vsel %vm277, %v3048, 0
    %3064 = vmatprep.subr.bf16.mxu0 0
    %3065 = vmatpush1.bf16.msra.mxu0 %v3057
    %3066 = vmatprep.subr.bf16.mxu0 0
    %3067 = vmatpush1.bf16.msra.mxu0 %v3058
    %3068 = vmatprep.subr.bf16.mxu0 0
    %3069 = vmatpush1.bf16.msra.mxu0 0
    %3070 = vmatprep.subr.bf16.mxu0 0
    %3071 = vmatpush1.bf16.msra.mxu0 0
    %3072 = vmatprep.subr.bf16.mxu0 0
    %3073 = vmatpush1.bf16.msra.mxu0 0
    %3074 = vmatprep.subr.bf16.mxu0 0
    %3075 = vmatpush1.bf16.msra.mxu0 0
    %3076 = vmatprep.subr.bf16.mxu0 0
    %3077 = vmatpush1.bf16.msra.mxu0 0
    %3078 = vmatprep.subr.bf16.mxu0 0
    %3079 = vmatpush1.bf16.msra.mxu0 0
    %3080 = vmatprep.subr.bf16.mxu0 0
    %3081 = vmatpush1.bf16.msra.mxu0 0
    %3082 = vmatprep.subr.bf16.mxu0 0
    %3083 = vmatpush1.bf16.msra.mxu0 0
    %3084 = vmatprep.subr.bf16.mxu0 0
    %3085 = vmatpush1.bf16.msra.mxu0 0
    %3086 = vmatprep.subr.bf16.mxu0 0
    %3087 = vmatpush1.bf16.msra.mxu0 0
    %3088 = vmatprep.subr.bf16.mxu0 0
    %3089 = vmatpush1.bf16.msra.mxu0 0
    %3090 = vmatprep.subr.bf16.mxu0 0
    %3091 = vmatpush1.bf16.msra.mxu0 0
    %3092 = vmatprep.subr.bf16.mxu0 0
    %3093 = vmatpush1.bf16.msra.mxu0 0
    %3094 = vmatprep.subr.bf16.mxu0 0
    %3095 = vmatpush1.bf16.msra.mxu0 0
    %3096 = vmatprep.mubr.bf16.mxu0 0
    %3097 = vmatmul.mubr.bf16.gmra.mrb[0].mxu0 %v3062
    %v3098 = vpop.f32.mrb[0].mxu0
    %v3099 = vadd.f32 0.0, %v3098
    %v3100 = vpop.f32.mrb[0].mxu0
    %v3101 = vpop.f32.mrb[0].mxu0
    %v3102 = vpop.f32.mrb[0].mxu0
    %3103 = vdwg.mxu0
    %v3104 = vadd.f32 %v3041, %v3099
    %v3105 = vxor.u32 %v3104, 2147483648
    %v3106 = vmul.f32 %v3105, 1.442695
    %v3107 = vpow.pop %v3106
    %v3108 = vadd.f32 %v3107, 1.0
    %v3109 = vrcp.pop %v3108
    %v3110 = vmul.f32 1.0, %v3109
    %v3111 = vmul.f32 %v3110, 2.0
    %v3112 = vsub.f32 %v3111, 1.0
    %v3113 = vsel %vm78, %v3112, %v3110
    %v3114 = vmul.f32 %v3113, %v2271
    %3116 = vrot.lane.b32.xlu0 %v3113, 64
    %v3117 = vpop.permute.xlu0 %3116
    %v3119 = vmul.f32 %v3113, %v3117
    %3121 = vrot.lane.b32.xlu0 %v3119, 32
    %v3122 = vpop.permute.xlu0 %3121
    %v3124 = vadd.f32 %v3114, %v3122
    %v3125 = vtanh.pop %v3124
    %3127 = vrot.lane.b32.xlu0 %v3125, 64
    %v3128 = vpop.permute.xlu0 %3127
    %v3130 = vmul.f32 %v3113, %v3128
    %v3131 = vpack.c.bf16 %v2392, %v2392
    %v3132 = vld [vmem:[%s1238] sm:$0x1]
    %v3133 = vld [vmem:[%s1240] sm:$0xf]
    %v3134 = vld [vmem:[%s1240 + $0x4] sm:$0xf]
    %v3135 = vld [vmem:[%s1240 + $0x8] sm:$0xf]
    %v3136 = vld [vmem:[%s1240 + $0xc] sm:$0xf]
    %v3141 = vunpack.c.l.b16 %v3133
    %v3142 = vunpack.c.l.b16 %v3134
    %v3143 = vunpack.c.l.b16 %v3135
    %v3144 = vunpack.c.l.b16 %v3136
    %v3145 = vpack.c.b16 %v3142, %v3141
    %v3146 = vpack.c.b16 %v3144, %v3143
    %3149 = vmatprep.subr.bf16.mxu0 0
    %3150 = vmatpush1.bf16.msra.mxu0 %v3145
    %3151 = vmatprep.subr.bf16.mxu0 0
    %3152 = vmatpush1.bf16.msra.mxu0 %v3146
    %3153 = vmatprep.subr.bf16.mxu0 0
    %3154 = vmatpush1.bf16.msra.mxu0 0
    %3155 = vmatprep.subr.bf16.mxu0 0
    %3156 = vmatpush1.bf16.msra.mxu0 0
    %3157 = vmatprep.subr.bf16.mxu0 0
    %3158 = vmatpush1.bf16.msra.mxu0 0
    %3159 = vmatprep.subr.bf16.mxu0 0
    %3160 = vmatpush1.bf16.msra.mxu0 0
    %3161 = vmatprep.subr.bf16.mxu0 0
    %3162 = vmatpush1.bf16.msra.mxu0 0
    %3163 = vmatprep.subr.bf16.mxu0 0
    %3164 = vmatpush1.bf16.msra.mxu0 0
    %3165 = vmatprep.subr.bf16.mxu0 0
    %3166 = vmatpush1.bf16.msra.mxu0 0
    %3167 = vmatprep.subr.bf16.mxu0 0
    %3168 = vmatpush1.bf16.msra.mxu0 0
    %3169 = vmatprep.subr.bf16.mxu0 0
    %3170 = vmatpush1.bf16.msra.mxu0 0
    %3171 = vmatprep.subr.bf16.mxu0 0
    %3172 = vmatpush1.bf16.msra.mxu0 0
    %3173 = vmatprep.subr.bf16.mxu0 0
    %3174 = vmatpush1.bf16.msra.mxu0 0
    %3175 = vmatprep.subr.bf16.mxu0 0
    %3176 = vmatpush1.bf16.msra.mxu0 0
    %3177 = vmatprep.subr.bf16.mxu0 0
    %3178 = vmatpush1.bf16.msra.mxu0 0
    %3179 = vmatprep.subr.bf16.mxu0 0
    %3180 = vmatpush1.bf16.msra.mxu0 0
    %3181 = vmatprep.mubr.bf16.mxu0 0
    %3182 = vmatmul.mubr.bf16.gmra.mrb[0].mxu0 %v3062
    %v3183 = vpop.f32.mrb[0].mxu0
    %v3184 = vadd.f32 0.0, %v3183
    %v3185 = vpop.f32.mrb[0].mxu0
    %v3186 = vpop.f32.mrb[0].mxu0
    %v3187 = vpop.f32.mrb[0].mxu0
    %3188 = vdwg.mxu0
    %v3190 = vlaneseq
    %v3191 = vshrl.u32 %v3190, 7
    %v3192 = vsub.s32 0, %v3191
    %v3193 = vrot.slane %v3132, %v3192
    %v3195 = vadd.f32 %v3193, %v3184
    %v3196 = vld [vmem:[%s1304] sm:$0xf]
    %v3197 = vld [vmem:[%s1304 + $0x4] sm:$0xf]
    %v3198 = vld [vmem:[%s1304 + $0x8] sm:$0xf]
    %v3199 = vld [vmem:[%s1304 + $0xc] sm:$0xf]
    %3201 = vrot.lane.b32.xlu0 %v3131, 32
    %v3202 = vpop.permute.xlu0 %3201
    %v3207 = vunpack.c.l.b16 %v3196
    %v3208 = vunpack.c.l.b16 %v3197
    %v3209 = vunpack.c.l.b16 %v3198
    %v3210 = vunpack.c.l.b16 %v3199
    %v3211 = vpack.c.b16 %v3208, %v3207
    %v3212 = vpack.c.b16 %v3210, %v3209
    %v3216 = vsel %vm277, %v3202, 0
    %3218 = vmatprep.subr.bf16.mxu0 0
    %3219 = vmatpush1.bf16.msra.mxu0 %v3211
    %3220 = vmatprep.subr.bf16.mxu0 0
    %3221 = vmatpush1.bf16.msra.mxu0 %v3212
    %3222 = vmatprep.subr.bf16.mxu0 0
    %3223 = vmatpush1.bf16.msra.mxu0 0
    %3224 = vmatprep.subr.bf16.mxu0 0
    %3225 = vmatpush1.bf16.msra.mxu0 0
    %3226 = vmatprep.subr.bf16.mxu0 0
    %3227 = vmatpush1.bf16.msra.mxu0 0
    %3228 = vmatprep.subr.bf16.mxu0 0
    %3229 = vmatpush1.bf16.msra.mxu0 0
    %3230 = vmatprep.subr.bf16.mxu0 0
    %3231 = vmatpush1.bf16.msra.mxu0 0
    %3232 = vmatprep.subr.bf16.mxu0 0
    %3233 = vmatpush1.bf16.msra.mxu0 0
    %3234 = vmatprep.subr.bf16.mxu0 0
    %3235 = vmatpush1.bf16.msra.mxu0 0
    %3236 = vmatprep.subr.bf16.mxu0 0
    %3237 = vmatpush1.bf16.msra.mxu0 0
    %3238 = vmatprep.subr.bf16.mxu0 0
    %3239 = vmatpush1.bf16.msra.mxu0 0
    %3240 = vmatprep.subr.bf16.mxu0 0
    %3241 = vmatpush1.bf16.msra.mxu0 0
    %3242 = vmatprep.subr.bf16.mxu0 0
    %3243 = vmatpush1.bf16.msra.mxu0 0
    %3244 = vmatprep.subr.bf16.mxu0 0
    %3245 = vmatpush1.bf16.msra.mxu0 0
    %3246 = vmatprep.subr.bf16.mxu0 0
    %3247 = vmatpush1.bf16.msra.mxu0 0
    %3248 = vmatprep.subr.bf16.mxu0 0
    %3249 = vmatpush1.bf16.msra.mxu0 0
    %3250 = vmatprep.mubr.bf16.mxu0 0
    %3251 = vmatmul.mubr.bf16.gmra.mrb[0].mxu0 %v3216
    %v3252 = vpop.f32.mrb[0].mxu0
    %v3253 = vadd.f32 0.0, %v3252
    %v3254 = vpop.f32.mrb[0].mxu0
    %v3255 = vpop.f32.mrb[0].mxu0
    %v3256 = vpop.f32.mrb[0].mxu0
    %3257 = vdwg.mxu0
    %v3258 = vadd.f32 %v3195, %v3253
    %v3259 = vxor.u32 %v3258, 2147483648
    %v3260 = vmul.f32 %v3259, 1.442695
    %v3261 = vpow.pop %v3260
    %v3262 = vadd.f32 %v3261, 1.0
    %v3263 = vrcp.pop %v3262
    %v3264 = vmul.f32 1.0, %v3263
    %v3265 = vmul.f32 %v3264, 2.0
    %v3266 = vsub.f32 %v3265, 1.0
    %v3267 = vsel %vm78, %v3266, %v3264
    %v3268 = vmul.f32 %v3267, %v2386
    %3270 = vrot.lane.b32.xlu0 %v3267, 64
    %v3271 = vpop.permute.xlu0 %3270
    %v3273 = vmul.f32 %v3267, %v3271
    %3275 = vrot.lane.b32.xlu0 %v3273, 32
    %v3276 = vpop.permute.xlu0 %3275
    %v3278 = vadd.f32 %v3268, %v3276
    %v3279 = vtanh.pop %v3278
    %3281 = vrot.lane.b32.xlu0 %v3279, 64
    %v3282 = vpop.permute.xlu0 %3281
    %v3284 = vmul.f32 %v3267, %v3282
    %v3285 = vpack.c.bf16 %v2507, %v2507
    %v3286 = vld [vmem:[%s1816] sm:$0x1]
    %v3287 = vld [vmem:[%s1818] sm:$0xf]
    %v3288 = vld [vmem:[%s1818 + $0x4] sm:$0xf]
    %v3289 = vld [vmem:[%s1818 + $0x8] sm:$0xf]
    %v3290 = vld [vmem:[%s1818 + $0xc] sm:$0xf]
    %v3295 = vunpack.c.l.b16 %v3287
    %v3296 = vunpack.c.l.b16 %v3288
    %v3297 = vunpack.c.l.b16 %v3289
    %v3298 = vunpack.c.l.b16 %v3290
    %v3299 = vpack.c.b16 %v3296, %v3295
    %v3300 = vpack.c.b16 %v3298, %v3297
    %3303 = vmatprep.subr.bf16.mxu0 0
    %3304 = vmatpush1.bf16.msra.mxu0 %v3299
    %3305 = vmatprep.subr.bf16.mxu0 0
    %3306 = vmatpush1.bf16.msra.mxu0 %v3300
    %3307 = vmatprep.subr.bf16.mxu0 0
    %3308 = vmatpush1.bf16.msra.mxu0 0
    %3309 = vmatprep.subr.bf16.mxu0 0
    %3310 = vmatpush1.bf16.msra.mxu0 0
    %3311 = vmatprep.subr.bf16.mxu0 0
    %3312 = vmatpush1.bf16.msra.mxu0 0
    %3313 = vmatprep.subr.bf16.mxu0 0
    %3314 = vmatpush1.bf16.msra.mxu0 0
    %3315 = vmatprep.subr.bf16.mxu0 0
    %3316 = vmatpush1.bf16.msra.mxu0 0
    %3317 = vmatprep.subr.bf16.mxu0 0
    %3318 = vmatpush1.bf16.msra.mxu0 0
    %3319 = vmatprep.subr.bf16.mxu0 0
    %3320 = vmatpush1.bf16.msra.mxu0 0
    %3321 = vmatprep.subr.bf16.mxu0 0
    %3322 = vmatpush1.bf16.msra.mxu0 0
    %3323 = vmatprep.subr.bf16.mxu0 0
    %3324 = vmatpush1.bf16.msra.mxu0 0
    %3325 = vmatprep.subr.bf16.mxu0 0
    %3326 = vmatpush1.bf16.msra.mxu0 0
    %3327 = vmatprep.subr.bf16.mxu0 0
    %3328 = vmatpush1.bf16.msra.mxu0 0
    %3329 = vmatprep.subr.bf16.mxu0 0
    %3330 = vmatpush1.bf16.msra.mxu0 0
    %3331 = vmatprep.subr.bf16.mxu0 0
    %3332 = vmatpush1.bf16.msra.mxu0 0
    %3333 = vmatprep.subr.bf16.mxu0 0
    %3334 = vmatpush1.bf16.msra.mxu0 0
    %3335 = vmatprep.mubr.bf16.mxu0 0
    %3336 = vmatmul.mubr.bf16.gmra.mrb[0].mxu0 %v3216
    %v3337 = vpop.f32.mrb[0].mxu0
    %v3338 = vadd.f32 0.0, %v3337
    %v3339 = vpop.f32.mrb[0].mxu0
    %v3340 = vpop.f32.mrb[0].mxu0
    %v3341 = vpop.f32.mrb[0].mxu0
    %3342 = vdwg.mxu0
    %v3344 = vlaneseq
    %v3345 = vshrl.u32 %v3344, 7
    %v3346 = vsub.s32 0, %v3345
    %v3347 = vrot.slane %v3286, %v3346
    %v3349 = vadd.f32 %v3347, %v3338
    %v3350 = vld [vmem:[%s1882] sm:$0xf]
    %v3351 = vld [vmem:[%s1882 + $0x4] sm:$0xf]
    %v3352 = vld [vmem:[%s1882 + $0x8] sm:$0xf]
    %v3353 = vld [vmem:[%s1882 + $0xc] sm:$0xf]
    %3355 = vrot.lane.b32.xlu0 %v3285, 32
    %v3356 = vpop.permute.xlu0 %3355
    %v3361 = vunpack.c.l.b16 %v3350
    %v3362 = vunpack.c.l.b16 %v3351
    %v3363 = vunpack.c.l.b16 %v3352
    %v3364 = vunpack.c.l.b16 %v3353
    %v3365 = vpack.c.b16 %v3362, %v3361
    %v3366 = vpack.c.b16 %v3364, %v3363
    %v3370 = vsel %vm277, %v3356, 0
    %3372 = vmatprep.subr.bf16.mxu0 0
    %3373 = vmatpush1.bf16.msra.mxu0 %v3365
    %3374 = vmatprep.subr.bf16.mxu0 0
    %3375 = vmatpush1.bf16.msra.mxu0 %v3366
    %3376 = vmatprep.subr.bf16.mxu0 0
    %3377 = vmatpush1.bf16.msra.mxu0 0
    %3378 = vmatprep.subr.bf16.mxu0 0
    %3379 = vmatpush1.bf16.msra.mxu0 0
    %3380 = vmatprep.subr.bf16.mxu0 0
    %3381 = vmatpush1.bf16.msra.mxu0 0
    %3382 = vmatprep.subr.bf16.mxu0 0
    %3383 = vmatpush1.bf16.msra.mxu0 0
    %3384 = vmatprep.subr.bf16.mxu0 0
    %3385 = vmatpush1.bf16.msra.mxu0 0
    %3386 = vmatprep.subr.bf16.mxu0 0
    %3387 = vmatpush1.bf16.msra.mxu0 0
    %3388 = vmatprep.subr.bf16.mxu0 0
    %3389 = vmatpush1.bf16.msra.mxu0 0
    %3390 = vmatprep.subr.bf16.mxu0 0
    %3391 = vmatpush1.bf16.msra.mxu0 0
    %3392 = vmatprep.subr.bf16.mxu0 0
    %3393 = vmatpush1.bf16.msra.mxu0 0
    %3394 = vmatprep.subr.bf16.mxu0 0
    %3395 = vmatpush1.bf16.msra.mxu0 0
    %3396 = vmatprep.subr.bf16.mxu0 0
    %3397 = vmatpush1.bf16.msra.mxu0 0
    %3398 = vmatprep.subr.bf16.mxu0 0
    %3399 = vmatpush1.bf16.msra.mxu0 0
    %3400 = vmatprep.subr.bf16.mxu0 0
    %3401 = vmatpush1.bf16.msra.mxu0 0
    %3402 = vmatprep.subr.bf16.mxu0 0
    %3403 = vmatpush1.bf16.msra.mxu0 0
    %3404 = vmatprep.mubr.bf16.mxu0 0
    %3405 = vmatmul.mubr.bf16.gmra.mrb[0].mxu0 %v3370
    %v3406 = vpop.f32.mrb[0].mxu0
    %v3407 = vadd.f32 0.0, %v3406
    %v3408 = vpop.f32.mrb[0].mxu0
    %v3409 = vpop.f32.mrb[0].mxu0
    %v3410 = vpop.f32.mrb[0].mxu0
    %3411 = vdwg.mxu0
    %v3412 = vadd.f32 %v3349, %v3407
    %v3413 = vxor.u32 %v3412, 2147483648
    %v3414 = vmul.f32 %v3413, 1.442695
    %v3415 = vpow.pop %v3414
    %v3416 = vadd.f32 %v3415, 1.0
    %v3417 = vrcp.pop %v3416
    %v3418 = vmul.f32 1.0, %v3417
    %v3419 = vmul.f32 %v3418, 2.0
    %v3420 = vsub.f32 %v3419, 1.0
    %v3421 = vsel %vm78, %v3420, %v3418
    %v3422 = vmul.f32 %v3421, %v2501
    %3424 = vrot.lane.b32.xlu0 %v3421, 64
    %v3425 = vpop.permute.xlu0 %3424
    %v3427 = vmul.f32 %v3421, %v3425
    %3429 = vrot.lane.b32.xlu0 %v3427, 32
    %v3430 = vpop.permute.xlu0 %3429
    %v3432 = vadd.f32 %v3422, %v3430
    %v3433 = vtanh.pop %v3432
    %3435 = vrot.lane.b32.xlu0 %v3433, 64
    %v3436 = vpop.permute.xlu0 %3435
    %v3438 = vmul.f32 %v3421, %v3436
    %v3439 = vld [vmem:[%s2509] sm:$0x1]
    %v3440 = vld [vmem:[%s2511] sm:$0xf]
    %v3441 = vld [vmem:[%s2511 + $0x4] sm:$0xf]
    %v3442 = vld [vmem:[%s2511 + $0x8] sm:$0xf]
    %v3443 = vld [vmem:[%s2511 + $0xc] sm:$0xf]
    %v3448 = vunpack.c.l.b16 %v3440
    %v3449 = vunpack.c.l.b16 %v3441
    %v3450 = vunpack.c.l.b16 %v3442
    %v3451 = vunpack.c.l.b16 %v3443
    %v3452 = vpack.c.b16 %v3449, %v3448
    %v3453 = vpack.c.b16 %v3451, %v3450
    %3456 = vmatprep.subr.bf16.mxu0 0
    %3457 = vmatpush1.bf16.msra.mxu0 %v3452
    %3458 = vmatprep.subr.bf16.mxu0 0
    %3459 = vmatpush1.bf16.msra.mxu0 %v3453
    %3460 = vmatprep.subr.bf16.mxu0 0
    %3461 = vmatpush1.bf16.msra.mxu0 0
    %3462 = vmatprep.subr.bf16.mxu0 0
    %3463 = vmatpush1.bf16.msra.mxu0 0
    %3464 = vmatprep.subr.bf16.mxu0 0
    %3465 = vmatpush1.bf16.msra.mxu0 0
    %3466 = vmatprep.subr.bf16.mxu0 0
    %3467 = vmatpush1.bf16.msra.mxu0 0
    %3468 = vmatprep.subr.bf16.mxu0 0
    %3469 = vmatpush1.bf16.msra.mxu0 0
    %3470 = vmatprep.subr.bf16.mxu0 0
    %3471 = vmatpush1.bf16.msra.mxu0 0
    %3472 = vmatprep.subr.bf16.mxu0 0
    %3473 = vmatpush1.bf16.msra.mxu0 0
    %3474 = vmatprep.subr.bf16.mxu0 0
    %3475 = vmatpush1.bf16.msra.mxu0 0
    %3476 = vmatprep.subr.bf16.mxu0 0
    %3477 = vmatpush1.bf16.msra.mxu0 0
    %3478 = vmatprep.subr.bf16.mxu0 0
    %3479 = vmatpush1.bf16.msra.mxu0 0
    %3480 = vmatprep.subr.bf16.mxu0 0
    %3481 = vmatpush1.bf16.msra.mxu0 0
    %3482 = vmatprep.subr.bf16.mxu0 0
    %3483 = vmatpush1.bf16.msra.mxu0 0
    %3484 = vmatprep.subr.bf16.mxu0 0
    %3485 = vmatpush1.bf16.msra.mxu0 0
    %3486 = vmatprep.subr.bf16.mxu0 0
    %3487 = vmatpush1.bf16.msra.mxu0 0
    %3488 = vmatprep.mubr.bf16.mxu0 0
    %3489 = vmatmul.mubr.bf16.gmra.mrb[0].mxu0 %v3370
    %v3490 = vpop.f32.mrb[0].mxu0
    %v3491 = vadd.f32 0.0, %v3490
    %v3492 = vpop.f32.mrb[0].mxu0
    %v3493 = vpop.f32.mrb[0].mxu0
    %v3494 = vpop.f32.mrb[0].mxu0
    %3495 = vdwg.mxu0
    %v3497 = vlaneseq
    %v3498 = vshrl.u32 %v3497, 7
    %v3499 = vsub.s32 0, %v3498
    %v3500 = vrot.slane %v3439, %v3499
    %v3502 = vadd.f32 %v3500, %v3491
    %v3503 = vld [vmem:[%s2575] sm:$0xf]
    %v3504 = vld [vmem:[%s2575 + $0x4] sm:$0xf]
    %v3505 = vld [vmem:[%s2575 + $0x8] sm:$0xf]
    %v3506 = vld [vmem:[%s2575 + $0xc] sm:$0xf]
    %v3511 = vunpack.c.l.b16 %v3503
    %v3512 = vunpack.c.l.b16 %v3504
    %v3513 = vunpack.c.l.b16 %v3505
    %v3514 = vunpack.c.l.b16 %v3506
    %v3515 = vpack.c.b16 %v3512, %v3511
    %v3516 = vpack.c.b16 %v3514, %v3513
    %3519 = vmatprep.subr.bf16.mxu0 0
    %3520 = vmatpush1.bf16.msra.mxu0 %v3515
    %3521 = vmatprep.subr.bf16.mxu0 0
    %3522 = vmatpush1.bf16.msra.mxu0 %v3516
    %3523 = vmatprep.subr.bf16.mxu0 0
    %3524 = vmatpush1.bf16.msra.mxu0 0
    %3525 = vmatprep.subr.bf16.mxu0 0
    %3526 = vmatpush1.bf16.msra.mxu0 0
    %3527 = vmatprep.subr.bf16.mxu0 0
    %3528 = vmatpush1.bf16.msra.mxu0 0
    %3529 = vmatprep.subr.bf16.mxu0 0
    %3530 = vmatpush1.bf16.msra.mxu0 0
    %3531 = vmatprep.subr.bf16.mxu0 0
    %3532 = vmatpush1.bf16.msra.mxu0 0
    %3533 = vmatprep.subr.bf16.mxu0 0
    %3534 = vmatpush1.bf16.msra.mxu0 0
    %3535 = vmatprep.subr.bf16.mxu0 0
    %3536 = vmatpush1.bf16.msra.mxu0 0
    %3537 = vmatprep.subr.bf16.mxu0 0
    %3538 = vmatpush1.bf16.msra.mxu0 0
    %3539 = vmatprep.subr.bf16.mxu0 0
    %3540 = vmatpush1.bf16.msra.mxu0 0
    %3541 = vmatprep.subr.bf16.mxu0 0
    %3542 = vmatpush1.bf16.msra.mxu0 0
    %3543 = vmatprep.subr.bf16.mxu0 0
    %3544 = vmatpush1.bf16.msra.mxu0 0
    %3545 = vmatprep.subr.bf16.mxu0 0
    %3546 = vmatpush1.bf16.msra.mxu0 0
    %3547 = vmatprep.subr.bf16.mxu0 0
    %3548 = vmatpush1.bf16.msra.mxu0 0
    %3549 = vmatprep.subr.bf16.mxu0 0
    %3550 = vmatpush1.bf16.msra.mxu0 0
    %3551 = vmatprep.mubr.bf16.mxu0 0
    %3552 = vmatmul.mubr.bf16.gmra.mrb[0].mxu0 %v2689
    %v3553 = vpop.f32.mrb[0].mxu0
    %v3554 = vadd.f32 0.0, %v3553
    %v3555 = vpop.f32.mrb[0].mxu0
    %v3556 = vpop.f32.mrb[0].mxu0
    %v3557 = vpop.f32.mrb[0].mxu0
    %3558 = vdwg.mxu0
    %v3559 = vadd.f32 %v3502, %v3554
    %v3560 = vxor.u32 %v3559, 2147483648
    %v3561 = vmul.f32 %v3560, 1.442695
    %v3562 = vpow.pop %v3561
    %v3563 = vadd.f32 %v3562, 1.0
    %v3564 = vrcp.pop %v3563
    %v3565 = vmul.f32 1.0, %v3564
    %v3566 = vmul.f32 %v3565, 2.0
    %v3567 = vsub.f32 %v3566, 1.0
    %v3568 = vsel %vm78, %v3567, %v3565
    %v3569 = vmul.f32 %v3568, %v2659
    %3571 = vrot.lane.b32.xlu0 %v3568, 64
    %v3572 = vpop.permute.xlu0 %3571
    %v3574 = vmul.f32 %v3568, %v3572
    %3576 = vrot.lane.b32.xlu0 %v3574, 32
    %v3577 = vpop.permute.xlu0 %3576
    %v3579 = vadd.f32 %v3569, %v3577
    %v3580 = vtanh.pop %v3579
    %3582 = vrot.lane.b32.xlu0 %v3580, 64
    %v3583 = vpop.permute.xlu0 %3582
    %v3585 = vmul.f32 %v3568, %v3583
    %v3586 = vpack.c.bf16 %v3585, %v3585
    %3588 = vrot.lane.b32.xlu0 %v3586, 32
    %v3589 = vpop.permute.xlu0 %3588
    %v3591 = vsel %vm277, %v3589, 0
    %3593 = vmatprep.subr.bf16.mxu0 0
    %3594 = vmatpush1.bf16.msra.mxu0 %v2684
    %3595 = vmatprep.subr.bf16.mxu0 0
    %3596 = vmatpush1.bf16.msra.mxu0 %v2685
    %3597 = vmatprep.subr.bf16.mxu0 0
    %3598 = vmatpush1.bf16.msra.mxu0 0
    %3599 = vmatprep.subr.bf16.mxu0 0
    %3600 = vmatpush1.bf16.msra.mxu0 0
    %3601 = vmatprep.subr.bf16.mxu0 0
    %3602 = vmatpush1.bf16.msra.mxu0 0
    %3603 = vmatprep.subr.bf16.mxu0 0
    %3604 = vmatpush1.bf16.msra.mxu0 0
    %3605 = vmatprep.subr.bf16.mxu0 0
    %3606 = vmatpush1.bf16.msra.mxu0 0
    %3607 = vmatprep.subr.bf16.mxu0 0
    %3608 = vmatpush1.bf16.msra.mxu0 0
    %3609 = vmatprep.subr.bf16.mxu0 0
    %3610 = vmatpush1.bf16.msra.mxu0 0
    %3611 = vmatprep.subr.bf16.mxu0 0
    %3612 = vmatpush1.bf16.msra.mxu0 0
    %3613 = vmatprep.subr.bf16.mxu0 0
    %3614 = vmatpush1.bf16.msra.mxu0 0
    %3615 = vmatprep.subr.bf16.mxu0 0
    %3616 = vmatpush1.bf16.msra.mxu0 0
    %3617 = vmatprep.subr.bf16.mxu0 0
    %3618 = vmatpush1.bf16.msra.mxu0 0
    %3619 = vmatprep.subr.bf16.mxu0 0
    %3620 = vmatpush1.bf16.msra.mxu0 0
    %3621 = vmatprep.subr.bf16.mxu0 0
    %3622 = vmatpush1.bf16.msra.mxu0 0
    %3623 = vmatprep.subr.bf16.mxu0 0
    %3624 = vmatpush1.bf16.msra.mxu0 0
    %3625 = vmatprep.mubr.bf16.mxu0 0
    %3626 = vmatmul.mubr.bf16.gmra.mrb[0].mxu0 %v3591
    %v3627 = vpop.f32.mrb[0].mxu0
    %v3628 = vadd.f32 %v2671, %v3627
    %v3629 = vpop.f32.mrb[0].mxu0
    %v3630 = vpop.f32.mrb[0].mxu0
    %v3631 = vpop.f32.mrb[0].mxu0
    %3632 = vdwg.mxu0
    %3633 = vst [vmem:[%s9 + $0x8] sm:$0xff] %v3628
    %v3634 = vpack.c.bf16 %v2976, %v2976
    %v3635 = vpack.c.bf16 %v2822, %v2822
    %v3636 = vld [vmem:[%s428] sm:$0x1]
    %v3637 = vld [vmem:[%s2] sm:$0xf]
    %v3638 = vld [vmem:[%s2 + $0x4] sm:$0xf]
    %v3639 = vld [vmem:[%s2 + $0x8] sm:$0xf]
    %v3640 = vld [vmem:[%s2 + $0xc] sm:$0xf]
    %3642 = vrot.lane.b32.xlu0 %v3635, 32
    %v3643 = vpop.permute.xlu0 %3642
    %v3648 = vunpack.c.l.b16 %v3637
    %v3649 = vunpack.c.l.b16 %v3638
    %v3650 = vunpack.c.l.b16 %v3639
    %v3651 = vunpack.c.l.b16 %v3640
    %v3652 = vpack.c.b16 %v3649, %v3648
    %v3653 = vpack.c.b16 %v3651, %v3650
    %v3657 = vsel %vm277, %v3643, 0
    %3659 = vmatprep.subr.bf16.mxu0 0
    %3660 = vmatpush1.bf16.msra.mxu0 %v3652
    %3661 = vmatprep.subr.bf16.mxu0 0
    %3662 = vmatpush1.bf16.msra.mxu0 %v3653
    %3663 = vmatprep.subr.bf16.mxu0 0
    %3664 = vmatpush1.bf16.msra.mxu0 0
    %3665 = vmatprep.subr.bf16.mxu0 0
    %3666 = vmatpush1.bf16.msra.mxu0 0
    %3667 = vmatprep.subr.bf16.mxu0 0
    %3668 = vmatpush1.bf16.msra.mxu0 0
    %3669 = vmatprep.subr.bf16.mxu0 0
    %3670 = vmatpush1.bf16.msra.mxu0 0
    %3671 = vmatprep.subr.bf16.mxu0 0
    %3672 = vmatpush1.bf16.msra.mxu0 0
    %3673 = vmatprep.subr.bf16.mxu0 0
    %3674 = vmatpush1.bf16.msra.mxu0 0
    %3675 = vmatprep.subr.bf16.mxu0 0
    %3676 = vmatpush1.bf16.msra.mxu0 0
    %3677 = vmatprep.subr.bf16.mxu0 0
    %3678 = vmatpush1.bf16.msra.mxu0 0
    %3679 = vmatprep.subr.bf16.mxu0 0
    %3680 = vmatpush1.bf16.msra.mxu0 0
    %3681 = vmatprep.subr.bf16.mxu0 0
    %3682 = vmatpush1.bf16.msra.mxu0 0
    %3683 = vmatprep.subr.bf16.mxu0 0
    %3684 = vmatpush1.bf16.msra.mxu0 0
    %3685 = vmatprep.subr.bf16.mxu0 0
    %3686 = vmatpush1.bf16.msra.mxu0 0
    %3687 = vmatprep.subr.bf16.mxu0 0
    %3688 = vmatpush1.bf16.msra.mxu0 0
    %3689 = vmatprep.subr.bf16.mxu0 0
    %3690 = vmatpush1.bf16.msra.mxu0 0
    %3691 = vmatprep.mubr.bf16.mxu0 0
    %3692 = vmatmul.mubr.bf16.gmra.mrb[0].mxu0 %v3657
    %v3693 = vpop.f32.mrb[0].mxu0
    %v3694 = vadd.f32 0.0, %v3693
    %v3695 = vpop.f32.mrb[0].mxu0
    %v3696 = vpop.f32.mrb[0].mxu0
    %v3697 = vpop.f32.mrb[0].mxu0
    %3698 = vdwg.mxu0
    %v3700 = vlaneseq
    %v3701 = vshrl.u32 %v3700, 7
    %v3702 = vsub.s32 0, %v3701
    %v3703 = vrot.slane %v3636, %v3702
    %v3705 = vadd.f32 %v3703, %v3694
    %v3706 = vld [vmem:[%s493] sm:$0xf]
    %v3707 = vld [vmem:[%s493 + $0x4] sm:$0xf]
    %v3708 = vld [vmem:[%s493 + $0x8] sm:$0xf]
    %v3709 = vld [vmem:[%s493 + $0xc] sm:$0xf]
    %3711 = vrot.lane.b32.xlu0 %v3634, 32
    %v3712 = vpop.permute.xlu0 %3711
    %v3717 = vunpack.c.l.b16 %v3706
    %v3718 = vunpack.c.l.b16 %v3707
    %v3719 = vunpack.c.l.b16 %v3708
    %v3720 = vunpack.c.l.b16 %v3709
    %v3721 = vpack.c.b16 %v3718, %v3717
    %v3722 = vpack.c.b16 %v3720, %v3719
    %v3726 = vsel %vm277, %v3712, 0
    %3728 = vmatprep.subr.bf16.mxu0 0
    %3729 = vmatpush1.bf16.msra.mxu0 %v3721
    %3730 = vmatprep.subr.bf16.mxu0 0
    %3731 = vmatpush1.bf16.msra.mxu0 %v3722
    %3732 = vmatprep.subr.bf16.mxu0 0
    %3733 = vmatpush1.bf16.msra.mxu0 0
    %3734 = vmatprep.subr.bf16.mxu0 0
    %3735 = vmatpush1.bf16.msra.mxu0 0
    %3736 = vmatprep.subr.bf16.mxu0 0
    %3737 = vmatpush1.bf16.msra.mxu0 0
    %3738 = vmatprep.subr.bf16.mxu0 0
    %3739 = vmatpush1.bf16.msra.mxu0 0
    %3740 = vmatprep.subr.bf16.mxu0 0
    %3741 = vmatpush1.bf16.msra.mxu0 0
    %3742 = vmatprep.subr.bf16.mxu0 0
    %3743 = vmatpush1.bf16.msra.mxu0 0
    %3744 = vmatprep.subr.bf16.mxu0 0
    %3745 = vmatpush1.bf16.msra.mxu0 0
    %3746 = vmatprep.subr.bf16.mxu0 0
    %3747 = vmatpush1.bf16.msra.mxu0 0
    %3748 = vmatprep.subr.bf16.mxu0 0
    %3749 = vmatpush1.bf16.msra.mxu0 0
    %3750 = vmatprep.subr.bf16.mxu0 0
    %3751 = vmatpush1.bf16.msra.mxu0 0
    %3752 = vmatprep.subr.bf16.mxu0 0
    %3753 = vmatpush1.bf16.msra.mxu0 0
    %3754 = vmatprep.subr.bf16.mxu0 0
    %3755 = vmatpush1.bf16.msra.mxu0 0
    %3756 = vmatprep.subr.bf16.mxu0 0
    %3757 = vmatpush1.bf16.msra.mxu0 0
    %3758 = vmatprep.subr.bf16.mxu0 0
    %3759 = vmatpush1.bf16.msra.mxu0 0
    %3760 = vmatprep.mubr.bf16.mxu0 0
    %3761 = vmatmul.mubr.bf16.gmra.mrb[0].mxu0 %v3726
    %v3762 = vpop.f32.mrb[0].mxu0
    %v3763 = vadd.f32 0.0, %v3762
    %v3764 = vpop.f32.mrb[0].mxu0
    %v3765 = vpop.f32.mrb[0].mxu0
    %v3766 = vpop.f32.mrb[0].mxu0
    %3767 = vdwg.mxu0
    %v3768 = vadd.f32 %v3705, %v3763
    %v3769 = vxor.u32 %v3768, 2147483648
    %v3770 = vmul.f32 %v3769, 1.442695
    %v3771 = vpow.pop %v3770
    %v3772 = vadd.f32 %v3771, 1.0
    %v3773 = vrcp.pop %v3772
    %v3774 = vmul.f32 1.0, %v3773
    %v3775 = vmul.f32 %v3774, 2.0
    %v3776 = vsub.f32 %v3775, 1.0
    %v3777 = vsel %vm78, %v3776, %v3774
    %v3778 = vmul.f32 %v3777, %v2970
    %3780 = vrot.lane.b32.xlu0 %v3777, 64
    %v3781 = vpop.permute.xlu0 %3780
    %v3783 = vmul.f32 %v3777, %v3781
    %3785 = vrot.lane.b32.xlu0 %v3783, 32
    %v3786 = vpop.permute.xlu0 %3785
    %v3788 = vadd.f32 %v3778, %v3786
    %v3789 = vtanh.pop %v3788
    %3791 = vrot.lane.b32.xlu0 %v3789, 64
    %v3792 = vpop.permute.xlu0 %3791
    %v3794 = vmul.f32 %v3777, %v3792
    %v3795 = vpack.c.bf16 %v3130, %v3130
    %v3796 = vld [vmem:[%s775] sm:$0x1]
    %v3797 = vld [vmem:[%s777] sm:$0xf]
    %v3798 = vld [vmem:[%s777 + $0x4] sm:$0xf]
    %v3799 = vld [vmem:[%s777 + $0x8] sm:$0xf]
    %v3800 = vld [vmem:[%s777 + $0xc] sm:$0xf]
    %v3805 = vunpack.c.l.b16 %v3797
    %v3806 = vunpack.c.l.b16 %v3798
    %v3807 = vunpack.c.l.b16 %v3799
    %v3808 = vunpack.c.l.b16 %v3800
    %v3809 = vpack.c.b16 %v3806, %v3805
    %v3810 = vpack.c.b16 %v3808, %v3807
    %3813 = vmatprep.subr.bf16.mxu0 0
    %3814 = vmatpush1.bf16.msra.mxu0 %v3809
    %3815 = vmatprep.subr.bf16.mxu0 0
    %3816 = vmatpush1.bf16.msra.mxu0 %v3810
    %3817 = vmatprep.subr.bf16.mxu0 0
    %3818 = vmatpush1.bf16.msra.mxu0 0
    %3819 = vmatprep.subr.bf16.mxu0 0
    %3820 = vmatpush1.bf16.msra.mxu0 0
    %3821 = vmatprep.subr.bf16.mxu0 0
    %3822 = vmatpush1.bf16.msra.mxu0 0
    %3823 = vmatprep.subr.bf16.mxu0 0
    %3824 = vmatpush1.bf16.msra.mxu0 0
    %3825 = vmatprep.subr.bf16.mxu0 0
    %3826 = vmatpush1.bf16.msra.mxu0 0
    %3827 = vmatprep.subr.bf16.mxu0 0
    %3828 = vmatpush1.bf16.msra.mxu0 0
    %3829 = vmatprep.subr.bf16.mxu0 0
    %3830 = vmatpush1.bf16.msra.mxu0 0
    %3831 = vmatprep.subr.bf16.mxu0 0
    %3832 = vmatpush1.bf16.msra.mxu0 0
    %3833 = vmatprep.subr.bf16.mxu0 0
    %3834 = vmatpush1.bf16.msra.mxu0 0
    %3835 = vmatprep.subr.bf16.mxu0 0
    %3836 = vmatpush1.bf16.msra.mxu0 0
    %3837 = vmatprep.subr.bf16.mxu0 0
    %3838 = vmatpush1.bf16.msra.mxu0 0
    %3839 = vmatprep.subr.bf16.mxu0 0
    %3840 = vmatpush1.bf16.msra.mxu0 0
    %3841 = vmatprep.subr.bf16.mxu0 0
    %3842 = vmatpush1.bf16.msra.mxu0 0
    %3843 = vmatprep.subr.bf16.mxu0 0
    %3844 = vmatpush1.bf16.msra.mxu0 0
    %3845 = vmatprep.mubr.bf16.mxu0 0
    %3846 = vmatmul.mubr.bf16.gmra.mrb[0].mxu0 %v3726
    %v3847 = vpop.f32.mrb[0].mxu0
    %v3848 = vadd.f32 0.0, %v3847
    %v3849 = vpop.f32.mrb[0].mxu0
    %v3850 = vpop.f32.mrb[0].mxu0
    %v3851 = vpop.f32.mrb[0].mxu0
    %3852 = vdwg.mxu0
    %v3854 = vlaneseq
    %v3855 = vshrl.u32 %v3854, 7
    %v3856 = vsub.s32 0, %v3855
    %v3857 = vrot.slane %v3796, %v3856
    %v3859 = vadd.f32 %v3857, %v3848
    %v3860 = vld [vmem:[%s841] sm:$0xf]
    %v3861 = vld [vmem:[%s841 + $0x4] sm:$0xf]
    %v3862 = vld [vmem:[%s841 + $0x8] sm:$0xf]
    %v3863 = vld [vmem:[%s841 + $0xc] sm:$0xf]
    %3865 = vrot.lane.b32.xlu0 %v3795, 32
    %v3866 = vpop.permute.xlu0 %3865
    %v3871 = vunpack.c.l.b16 %v3860
    %v3872 = vunpack.c.l.b16 %v3861
    %v3873 = vunpack.c.l.b16 %v3862
    %v3874 = vunpack.c.l.b16 %v3863
    %v3875 = vpack.c.b16 %v3872, %v3871
    %v3876 = vpack.c.b16 %v3874, %v3873
    %v3880 = vsel %vm277, %v3866, 0
    %3882 = vmatprep.subr.bf16.mxu0 0
    %3883 = vmatpush1.bf16.msra.mxu0 %v3875
    %3884 = vmatprep.subr.bf16.mxu0 0
    %3885 = vmatpush1.bf16.msra.mxu0 %v3876
    %3886 = vmatprep.subr.bf16.mxu0 0
    %3887 = vmatpush1.bf16.msra.mxu0 0
    %3888 = vmatprep.subr.bf16.mxu0 0
    %3889 = vmatpush1.bf16.msra.mxu0 0
    %3890 = vmatprep.subr.bf16.mxu0 0
    %3891 = vmatpush1.bf16.msra.mxu0 0
    %3892 = vmatprep.subr.bf16.mxu0 0
    %3893 = vmatpush1.bf16.msra.mxu0 0
    %3894 = vmatprep.subr.bf16.mxu0 0
    %3895 = vmatpush1.bf16.msra.mxu0 0
    %3896 = vmatprep.subr.bf16.mxu0 0
    %3897 = vmatpush1.bf16.msra.mxu0 0
    %3898 = vmatprep.subr.bf16.mxu0 0
    %3899 = vmatpush1.bf16.msra.mxu0 0
    %3900 = vmatprep.subr.bf16.mxu0 0
    %3901 = vmatpush1.bf16.msra.mxu0 0
    %3902 = vmatprep.subr.bf16.mxu0 0
    %3903 = vmatpush1.bf16.msra.mxu0 0
    %3904 = vmatprep.subr.bf16.mxu0 0
    %3905 = vmatpush1.bf16.msra.mxu0 0
    %3906 = vmatprep.subr.bf16.mxu0 0
    %3907 = vmatpush1.bf16.msra.mxu0 0
    %3908 = vmatprep.subr.bf16.mxu0 0
    %3909 = vmatpush1.bf16.msra.mxu0 0
    %3910 = vmatprep.subr.bf16.mxu0 0
    %3911 = vmatpush1.bf16.msra.mxu0 0
    %3912 = vmatprep.subr.bf16.mxu0 0
    %3913 = vmatpush1.bf16.msra.mxu0 0
    %3914 = vmatprep.mubr.bf16.mxu0 0
    %3915 = vmatmul.mubr.bf16.gmra.mrb[0].mxu0 %v3880
    %v3916 = vpop.f32.mrb[0].mxu0
    %v3917 = vadd.f32 0.0, %v3916
    %v3918 = vpop.f32.mrb[0].mxu0
    %v3919 = vpop.f32.mrb[0].mxu0
    %v3920 = vpop.f32.mrb[0].mxu0
    %3921 = vdwg.mxu0
    %v3922 = vadd.f32 %v3859, %v3917
    %v3923 = vxor.u32 %v3922, 2147483648
    %v3924 = vmul.f32 %v3923, 1.442695
    %v3925 = vpow.pop %v3924
    %v3926 = vadd.f32 %v3925, 1.0
    %v3927 = vrcp.pop %v3926
    %v3928 = vmul.f32 1.0, %v3927
    %v3929 = vmul.f32 %v3928, 2.0
    %v3930 = vsub.f32 %v3929, 1.0
    %v3931 = vsel %vm78, %v3930, %v3928
    %v3932 = vmul.f32 %v3931, %v3124
    %3934 = vrot.lane.b32.xlu0 %v3931, 64
    %v3935 = vpop.permute.xlu0 %3934
    %v3937 = vmul.f32 %v3931, %v3935
    %3939 = vrot.lane.b32.xlu0 %v3937, 32
    %v3940 = vpop.permute.xlu0 %3939
    %v3942 = vadd.f32 %v3932, %v3940
    %v3943 = vtanh.pop %v3942
    %3945 = vrot.lane.b32.xlu0 %v3943, 64
    %v3946 = vpop.permute.xlu0 %3945
    %v3948 = vmul.f32 %v3931, %v3946
    %v3949 = vpack.c.bf16 %v3284, %v3284
    %v3950 = vld [vmem:[%s1238] sm:$0x1]
    %v3951 = vld [vmem:[%s1240] sm:$0xf]
    %v3952 = vld [vmem:[%s1240 + $0x4] sm:$0xf]
    %v3953 = vld [vmem:[%s1240 + $0x8] sm:$0xf]
    %v3954 = vld [vmem:[%s1240 + $0xc] sm:$0xf]
    %v3959 = vunpack.c.l.b16 %v3951
    %v3960 = vunpack.c.l.b16 %v3952
    %v3961 = vunpack.c.l.b16 %v3953
    %v3962 = vunpack.c.l.b16 %v3954
    %v3963 = vpack.c.b16 %v3960, %v3959
    %v3964 = vpack.c.b16 %v3962, %v3961
    %3967 = vmatprep.subr.bf16.mxu0 0
    %3968 = vmatpush1.bf16.msra.mxu0 %v3963
    %3969 = vmatprep.subr.bf16.mxu0 0
    %3970 = vmatpush1.bf16.msra.mxu0 %v3964
    %3971 = vmatprep.subr.bf16.mxu0 0
    %3972 = vmatpush1.bf16.msra.mxu0 0
    %3973 = vmatprep.subr.bf16.mxu0 0
    %3974 = vmatpush1.bf16.msra.mxu0 0
    %3975 = vmatprep.subr.bf16.mxu0 0
    %3976 = vmatpush1.bf16.msra.mxu0 0
    %3977 = vmatprep.subr.bf16.mxu0 0
    %3978 = vmatpush1.bf16.msra.mxu0 0
    %3979 = vmatprep.subr.bf16.mxu0 0
    %3980 = vmatpush1.bf16.msra.mxu0 0
    %3981 = vmatprep.subr.bf16.mxu0 0
    %3982 = vmatpush1.bf16.msra.mxu0 0
    %3983 = vmatprep.subr.bf16.mxu0 0
    %3984 = vmatpush1.bf16.msra.mxu0 0
    %3985 = vmatprep.subr.bf16.mxu0 0
    %3986 = vmatpush1.bf16.msra.mxu0 0
    %3987 = vmatprep.subr.bf16.mxu0 0
    %3988 = vmatpush1.bf16.msra.mxu0 0
    %3989 = vmatprep.subr.bf16.mxu0 0
    %3990 = vmatpush1.bf16.msra.mxu0 0
    %3991 = vmatprep.subr.bf16.mxu0 0
    %3992 = vmatpush1.bf16.msra.mxu0 0
    %3993 = vmatprep.subr.bf16.mxu0 0
    %3994 = vmatpush1.bf16.msra.mxu0 0
    %3995 = vmatprep.subr.bf16.mxu0 0
    %3996 = vmatpush1.bf16.msra.mxu0 0
    %3997 = vmatprep.subr.bf16.mxu0 0
    %3998 = vmatpush1.bf16.msra.mxu0 0
    %3999 = vmatprep.mubr.bf16.mxu0 0
    %4000 = vmatmul.mubr.bf16.gmra.mrb[0].mxu0 %v3880
    %v4001 = vpop.f32.mrb[0].mxu0
    %v4002 = vadd.f32 0.0, %v4001
    %v4003 = vpop.f32.mrb[0].mxu0
    %v4004 = vpop.f32.mrb[0].mxu0
    %v4005 = vpop.f32.mrb[0].mxu0
    %4006 = vdwg.mxu0
    %v4008 = vlaneseq
    %v4009 = vshrl.u32 %v4008, 7
    %v4010 = vsub.s32 0, %v4009
    %v4011 = vrot.slane %v3950, %v4010
    %v4013 = vadd.f32 %v4011, %v4002
    %v4014 = vld [vmem:[%s1304] sm:$0xf]
    %v4015 = vld [vmem:[%s1304 + $0x4] sm:$0xf]
    %v4016 = vld [vmem:[%s1304 + $0x8] sm:$0xf]
    %v4017 = vld [vmem:[%s1304 + $0xc] sm:$0xf]
    %4019 = vrot.lane.b32.xlu0 %v3949, 32
    %v4020 = vpop.permute.xlu0 %4019
    %v4025 = vunpack.c.l.b16 %v4014
    %v4026 = vunpack.c.l.b16 %v4015
    %v4027 = vunpack.c.l.b16 %v4016
    %v4028 = vunpack.c.l.b16 %v4017
    %v4029 = vpack.c.b16 %v4026, %v4025
    %v4030 = vpack.c.b16 %v4028, %v4027
    %v4034 = vsel %vm277, %v4020, 0
    %4036 = vmatprep.subr.bf16.mxu0 0
    %4037 = vmatpush1.bf16.msra.mxu0 %v4029
    %4038 = vmatprep.subr.bf16.mxu0 0
    %4039 = vmatpush1.bf16.msra.mxu0 %v4030
    %4040 = vmatprep.subr.bf16.mxu0 0
    %4041 = vmatpush1.bf16.msra.mxu0 0
    %4042 = vmatprep.subr.bf16.mxu0 0
    %4043 = vmatpush1.bf16.msra.mxu0 0
    %4044 = vmatprep.subr.bf16.mxu0 0
    %4045 = vmatpush1.bf16.msra.mxu0 0
    %4046 = vmatprep.subr.bf16.mxu0 0
    %4047 = vmatpush1.bf16.msra.mxu0 0
    %4048 = vmatprep.subr.bf16.mxu0 0
    %4049 = vmatpush1.bf16.msra.mxu0 0
    %4050 = vmatprep.subr.bf16.mxu0 0
    %4051 = vmatpush1.bf16.msra.mxu0 0
    %4052 = vmatprep.subr.bf16.mxu0 0
    %4053 = vmatpush1.bf16.msra.mxu0 0
    %4054 = vmatprep.subr.bf16.mxu0 0
    %4055 = vmatpush1.bf16.msra.mxu0 0
    %4056 = vmatprep.subr.bf16.mxu0 0
    %4057 = vmatpush1.bf16.msra.mxu0 0
    %4058 = vmatprep.subr.bf16.mxu0 0
    %4059 = vmatpush1.bf16.msra.mxu0 0
    %4060 = vmatprep.subr.bf16.mxu0 0
    %4061 = vmatpush1.bf16.msra.mxu0 0
    %4062 = vmatprep.subr.bf16.mxu0 0
    %4063 = vmatpush1.bf16.msra.mxu0 0
    %4064 = vmatprep.subr.bf16.mxu0 0
    %4065 = vmatpush1.bf16.msra.mxu0 0
    %4066 = vmatprep.subr.bf16.mxu0 0
    %4067 = vmatpush1.bf16.msra.mxu0 0
    %4068 = vmatprep.mubr.bf16.mxu0 0
    %4069 = vmatmul.mubr.bf16.gmra.mrb[0].mxu0 %v4034
    %v4070 = vpop.f32.mrb[0].mxu0
    %v4071 = vadd.f32 0.0, %v4070
    %v4072 = vpop.f32.mrb[0].mxu0
    %v4073 = vpop.f32.mrb[0].mxu0
    %v4074 = vpop.f32.mrb[0].mxu0
    %4075 = vdwg.mxu0
    %v4076 = vadd.f32 %v4013, %v4071
    %v4077 = vxor.u32 %v4076, 2147483648
    %v4078 = vmul.f32 %v4077, 1.442695
    %v4079 = vpow.pop %v4078
    %v4080 = vadd.f32 %v4079, 1.0
    %v4081 = vrcp.pop %v4080
    %v4082 = vmul.f32 1.0, %v4081
    %v4083 = vmul.f32 %v4082, 2.0
    %v4084 = vsub.f32 %v4083, 1.0
    %v4085 = vsel %vm78, %v4084, %v4082
    %v4086 = vmul.f32 %v4085, %v3278
    %4088 = vrot.lane.b32.xlu0 %v4085, 64
    %v4089 = vpop.permute.xlu0 %4088
    %v4091 = vmul.f32 %v4085, %v4089
    %4093 = vrot.lane.b32.xlu0 %v4091, 32
    %v4094 = vpop.permute.xlu0 %4093
    %v4096 = vadd.f32 %v4086, %v4094
    %v4097 = vtanh.pop %v4096
    %4099 = vrot.lane.b32.xlu0 %v4097, 64
    %v4100 = vpop.permute.xlu0 %4099
    %v4102 = vmul.f32 %v4085, %v4100
    %v4103 = vpack.c.bf16 %v3438, %v3438
    %v4104 = vld [vmem:[%s1816] sm:$0x1]
    %v4105 = vld [vmem:[%s1818] sm:$0xf]
    %v4106 = vld [vmem:[%s1818 + $0x4] sm:$0xf]
    %v4107 = vld [vmem:[%s1818 + $0x8] sm:$0xf]
    %v4108 = vld [vmem:[%s1818 + $0xc] sm:$0xf]
    %v4113 = vunpack.c.l.b16 %v4105
    %v4114 = vunpack.c.l.b16 %v4106
    %v4115 = vunpack.c.l.b16 %v4107
    %v4116 = vunpack.c.l.b16 %v4108
    %v4117 = vpack.c.b16 %v4114, %v4113
    %v4118 = vpack.c.b16 %v4116, %v4115
    %4121 = vmatprep.subr.bf16.mxu0 0
    %4122 = vmatpush1.bf16.msra.mxu0 %v4117
    %4123 = vmatprep.subr.bf16.mxu0 0
    %4124 = vmatpush1.bf16.msra.mxu0 %v4118
    %4125 = vmatprep.subr.bf16.mxu0 0
    %4126 = vmatpush1.bf16.msra.mxu0 0
    %4127 = vmatprep.subr.bf16.mxu0 0
    %4128 = vmatpush1.bf16.msra.mxu0 0
    %4129 = vmatprep.subr.bf16.mxu0 0
    %4130 = vmatpush1.bf16.msra.mxu0 0
    %4131 = vmatprep.subr.bf16.mxu0 0
    %4132 = vmatpush1.bf16.msra.mxu0 0
    %4133 = vmatprep.subr.bf16.mxu0 0
    %4134 = vmatpush1.bf16.msra.mxu0 0
    %4135 = vmatprep.subr.bf16.mxu0 0
    %4136 = vmatpush1.bf16.msra.mxu0 0
    %4137 = vmatprep.subr.bf16.mxu0 0
    %4138 = vmatpush1.bf16.msra.mxu0 0
    %4139 = vmatprep.subr.bf16.mxu0 0
    %4140 = vmatpush1.bf16.msra.mxu0 0
    %4141 = vmatprep.subr.bf16.mxu0 0
    %4142 = vmatpush1.bf16.msra.mxu0 0
    %4143 = vmatprep.subr.bf16.mxu0 0
    %4144 = vmatpush1.bf16.msra.mxu0 0
    %4145 = vmatprep.subr.bf16.mxu0 0
    %4146 = vmatpush1.bf16.msra.mxu0 0
    %4147 = vmatprep.subr.bf16.mxu0 0
    %4148 = vmatpush1.bf16.msra.mxu0 0
    %4149 = vmatprep.subr.bf16.mxu0 0
    %4150 = vmatpush1.bf16.msra.mxu0 0
    %4151 = vmatprep.subr.bf16.mxu0 0
    %4152 = vmatpush1.bf16.msra.mxu0 0
    %4153 = vmatprep.mubr.bf16.mxu0 0
    %4154 = vmatmul.mubr.bf16.gmra.mrb[0].mxu0 %v4034
    %v4155 = vpop.f32.mrb[0].mxu0
    %v4156 = vadd.f32 0.0, %v4155
    %v4157 = vpop.f32.mrb[0].mxu0
    %v4158 = vpop.f32.mrb[0].mxu0
    %v4159 = vpop.f32.mrb[0].mxu0
    %4160 = vdwg.mxu0
    %v4162 = vlaneseq
    %v4163 = vshrl.u32 %v4162, 7
    %v4164 = vsub.s32 0, %v4163
    %v4165 = vrot.slane %v4104, %v4164
    %v4167 = vadd.f32 %v4165, %v4156
    %v4168 = vld [vmem:[%s1882] sm:$0xf]
    %v4169 = vld [vmem:[%s1882 + $0x4] sm:$0xf]
    %v4170 = vld [vmem:[%s1882 + $0x8] sm:$0xf]
    %v4171 = vld [vmem:[%s1882 + $0xc] sm:$0xf]
    %4173 = vrot.lane.b32.xlu0 %v4103, 32
    %v4174 = vpop.permute.xlu0 %4173
    %v4179 = vunpack.c.l.b16 %v4168
    %v4180 = vunpack.c.l.b16 %v4169
    %v4181 = vunpack.c.l.b16 %v4170
    %v4182 = vunpack.c.l.b16 %v4171
    %v4183 = vpack.c.b16 %v4180, %v4179
    %v4184 = vpack.c.b16 %v4182, %v4181
    %v4188 = vsel %vm277, %v4174, 0
    %4190 = vmatprep.subr.bf16.mxu0 0
    %4191 = vmatpush1.bf16.msra.mxu0 %v4183
    %4192 = vmatprep.subr.bf16.mxu0 0
    %4193 = vmatpush1.bf16.msra.mxu0 %v4184
    %4194 = vmatprep.subr.bf16.mxu0 0
    %4195 = vmatpush1.bf16.msra.mxu0 0
    %4196 = vmatprep.subr.bf16.mxu0 0
    %4197 = vmatpush1.bf16.msra.mxu0 0
    %4198 = vmatprep.subr.bf16.mxu0 0
    %4199 = vmatpush1.bf16.msra.mxu0 0
    %4200 = vmatprep.subr.bf16.mxu0 0
    %4201 = vmatpush1.bf16.msra.mxu0 0
    %4202 = vmatprep.subr.bf16.mxu0 0
    %4203 = vmatpush1.bf16.msra.mxu0 0
    %4204 = vmatprep.subr.bf16.mxu0 0
    %4205 = vmatpush1.bf16.msra.mxu0 0
    %4206 = vmatprep.subr.bf16.mxu0 0
    %4207 = vmatpush1.bf16.msra.mxu0 0
    %4208 = vmatprep.subr.bf16.mxu0 0
    %4209 = vmatpush1.bf16.msra.mxu0 0
    %4210 = vmatprep.subr.bf16.mxu0 0
    %4211 = vmatpush1.bf16.msra.mxu0 0
    %4212 = vmatprep.subr.bf16.mxu0 0
    %4213 = vmatpush1.bf16.msra.mxu0 0
    %4214 = vmatprep.subr.bf16.mxu0 0
    %4215 = vmatpush1.bf16.msra.mxu0 0
    %4216 = vmatprep.subr.bf16.mxu0 0
    %4217 = vmatpush1.bf16.msra.mxu0 0
    %4218 = vmatprep.subr.bf16.mxu0 0
    %4219 = vmatpush1.bf16.msra.mxu0 0
    %4220 = vmatprep.subr.bf16.mxu0 0
    %4221 = vmatpush1.bf16.msra.mxu0 0
    %4222 = vmatprep.mubr.bf16.mxu0 0
    %4223 = vmatmul.mubr.bf16.gmra.mrb[0].mxu0 %v4188
    %v4224 = vpop.f32.mrb[0].mxu0
    %v4225 = vadd.f32 0.0, %v4224
    %v4226 = vpop.f32.mrb[0].mxu0
    %v4227 = vpop.f32.mrb[0].mxu0
    %v4228 = vpop.f32.mrb[0].mxu0
    %4229 = vdwg.mxu0
    %v4230 = vadd.f32 %v4167, %v4225
    %v4231 = vxor.u32 %v4230, 2147483648
    %v4232 = vmul.f32 %v4231, 1.442695
    %v4233 = vpow.pop %v4232
    %v4234 = vadd.f32 %v4233, 1.0
    %v4235 = vrcp.pop %v4234
    %v4236 = vmul.f32 1.0, %v4235
    %v4237 = vmul.f32 %v4236, 2.0
    %v4238 = vsub.f32 %v4237, 1.0
    %v4239 = vsel %vm78, %v4238, %v4236
    %v4240 = vmul.f32 %v4239, %v3432
    %4242 = vrot.lane.b32.xlu0 %v4239, 64
    %v4243 = vpop.permute.xlu0 %4242
    %v4245 = vmul.f32 %v4239, %v4243
    %4247 = vrot.lane.b32.xlu0 %v4245, 32
    %v4248 = vpop.permute.xlu0 %4247
    %v4250 = vadd.f32 %v4240, %v4248
    %v4251 = vtanh.pop %v4250
    %4253 = vrot.lane.b32.xlu0 %v4251, 64
    %v4254 = vpop.permute.xlu0 %4253
    %v4256 = vmul.f32 %v4239, %v4254
    %v4257 = vld [vmem:[%s2509] sm:$0x1]
    %v4258 = vld [vmem:[%s2511] sm:$0xf]
    %v4259 = vld [vmem:[%s2511 + $0x4] sm:$0xf]
    %v4260 = vld [vmem:[%s2511 + $0x8] sm:$0xf]
    %v4261 = vld [vmem:[%s2511 + $0xc] sm:$0xf]
    %v4266 = vunpack.c.l.b16 %v4258
    %v4267 = vunpack.c.l.b16 %v4259
    %v4268 = vunpack.c.l.b16 %v4260
    %v4269 = vunpack.c.l.b16 %v4261
    %v4270 = vpack.c.b16 %v4267, %v4266
    %v4271 = vpack.c.b16 %v4269, %v4268
    %4274 = vmatprep.subr.bf16.mxu0 0
    %4275 = vmatpush1.bf16.msra.mxu0 %v4270
    %4276 = vmatprep.subr.bf16.mxu0 0
    %4277 = vmatpush1.bf16.msra.mxu0 %v4271
    %4278 = vmatprep.subr.bf16.mxu0 0
    %4279 = vmatpush1.bf16.msra.mxu0 0
    %4280 = vmatprep.subr.bf16.mxu0 0
    %4281 = vmatpush1.bf16.msra.mxu0 0
    %4282 = vmatprep.subr.bf16.mxu0 0
    %4283 = vmatpush1.bf16.msra.mxu0 0
    %4284 = vmatprep.subr.bf16.mxu0 0
    %4285 = vmatpush1.bf16.msra.mxu0 0
    %4286 = vmatprep.subr.bf16.mxu0 0
    %4287 = vmatpush1.bf16.msra.mxu0 0
    %4288 = vmatprep.subr.bf16.mxu0 0
    %4289 = vmatpush1.bf16.msra.mxu0 0
    %4290 = vmatprep.subr.bf16.mxu0 0
    %4291 = vmatpush1.bf16.msra.mxu0 0
    %4292 = vmatprep.subr.bf16.mxu0 0
    %4293 = vmatpush1.bf16.msra.mxu0 0
    %4294 = vmatprep.subr.bf16.mxu0 0
    %4295 = vmatpush1.bf16.msra.mxu0 0
    %4296 = vmatprep.subr.bf16.mxu0 0
    %4297 = vmatpush1.bf16.msra.mxu0 0
    %4298 = vmatprep.subr.bf16.mxu0 0
    %4299 = vmatpush1.bf16.msra.mxu0 0
    %4300 = vmatprep.subr.bf16.mxu0 0
    %4301 = vmatpush1.bf16.msra.mxu0 0
    %4302 = vmatprep.subr.bf16.mxu0 0
    %4303 = vmatpush1.bf16.msra.mxu0 0
    %4304 = vmatprep.subr.bf16.mxu0 0
    %4305 = vmatpush1.bf16.msra.mxu0 0
    %4306 = vmatprep.mubr.bf16.mxu0 0
    %4307 = vmatmul.mubr.bf16.gmra.mrb[0].mxu0 %v4188
    %v4308 = vpop.f32.mrb[0].mxu0
    %v4309 = vadd.f32 0.0, %v4308
    %v4310 = vpop.f32.mrb[0].mxu0
    %v4311 = vpop.f32.mrb[0].mxu0
    %v4312 = vpop.f32.mrb[0].mxu0
    %4313 = vdwg.mxu0
    %v4315 = vlaneseq
    %v4316 = vshrl.u32 %v4315, 7
    %v4317 = vsub.s32 0, %v4316
    %v4318 = vrot.slane %v4257, %v4317
    %v4320 = vadd.f32 %v4318, %v4309
    %v4321 = vld [vmem:[%s2575] sm:$0xf]
    %v4322 = vld [vmem:[%s2575 + $0x4] sm:$0xf]
    %v4323 = vld [vmem:[%s2575 + $0x8] sm:$0xf]
    %v4324 = vld [vmem:[%s2575 + $0xc] sm:$0xf]
    %v4329 = vunpack.c.l.b16 %v4321
    %v4330 = vunpack.c.l.b16 %v4322
    %v4331 = vunpack.c.l.b16 %v4323
    %v4332 = vunpack.c.l.b16 %v4324
    %v4333 = vpack.c.b16 %v4330, %v4329
    %v4334 = vpack.c.b16 %v4332, %v4331
    %4337 = vmatprep.subr.bf16.mxu0 0
    %4338 = vmatpush1.bf16.msra.mxu0 %v4333
    %4339 = vmatprep.subr.bf16.mxu0 0
    %4340 = vmatpush1.bf16.msra.mxu0 %v4334
    %4341 = vmatprep.subr.bf16.mxu0 0
    %4342 = vmatpush1.bf16.msra.mxu0 0
    %4343 = vmatprep.subr.bf16.mxu0 0
    %4344 = vmatpush1.bf16.msra.mxu0 0
    %4345 = vmatprep.subr.bf16.mxu0 0
    %4346 = vmatpush1.bf16.msra.mxu0 0
    %4347 = vmatprep.subr.bf16.mxu0 0
    %4348 = vmatpush1.bf16.msra.mxu0 0
    %4349 = vmatprep.subr.bf16.mxu0 0
    %4350 = vmatpush1.bf16.msra.mxu0 0
    %4351 = vmatprep.subr.bf16.mxu0 0
    %4352 = vmatpush1.bf16.msra.mxu0 0
    %4353 = vmatprep.subr.bf16.mxu0 0
    %4354 = vmatpush1.bf16.msra.mxu0 0
    %4355 = vmatprep.subr.bf16.mxu0 0
    %4356 = vmatpush1.bf16.msra.mxu0 0
    %4357 = vmatprep.subr.bf16.mxu0 0
    %4358 = vmatpush1.bf16.msra.mxu0 0
    %4359 = vmatprep.subr.bf16.mxu0 0
    %4360 = vmatpush1.bf16.msra.mxu0 0
    %4361 = vmatprep.subr.bf16.mxu0 0
    %4362 = vmatpush1.bf16.msra.mxu0 0
    %4363 = vmatprep.subr.bf16.mxu0 0
    %4364 = vmatpush1.bf16.msra.mxu0 0
    %4365 = vmatprep.subr.bf16.mxu0 0
    %4366 = vmatpush1.bf16.msra.mxu0 0
    %4367 = vmatprep.subr.bf16.mxu0 0
    %4368 = vmatpush1.bf16.msra.mxu0 0
    %4369 = vmatprep.mubr.bf16.mxu0 0
    %4370 = vmatmul.mubr.bf16.gmra.mrb[0].mxu0 %v3591
    %v4371 = vpop.f32.mrb[0].mxu0
    %v4372 = vadd.f32 0.0, %v4371
    %v4373 = vpop.f32.mrb[0].mxu0
    %v4374 = vpop.f32.mrb[0].mxu0
    %v4375 = vpop.f32.mrb[0].mxu0
    %4376 = vdwg.mxu0
    %v4377 = vadd.f32 %v4320, %v4372
    %v4378 = vxor.u32 %v4377, 2147483648
    %v4379 = vmul.f32 %v4378, 1.442695
    %v4380 = vpow.pop %v4379
    %v4381 = vadd.f32 %v4380, 1.0
    %v4382 = vrcp.pop %v4381
    %v4383 = vmul.f32 1.0, %v4382
    %v4384 = vmul.f32 %v4383, 2.0
    %v4385 = vsub.f32 %v4384, 1.0
    %v4386 = vsel %vm78, %v4385, %v4383
    %v4387 = vmul.f32 %v4386, %v3579
    %4389 = vrot.lane.b32.xlu0 %v4386, 64
    %v4390 = vpop.permute.xlu0 %4389
    %v4392 = vmul.f32 %v4386, %v4390
    %4394 = vrot.lane.b32.xlu0 %v4392, 32
    %v4395 = vpop.permute.xlu0 %4394
    %v4397 = vadd.f32 %v4387, %v4395
    %v4398 = vtanh.pop %v4397
    %4400 = vrot.lane.b32.xlu0 %v4398, 64
    %v4401 = vpop.permute.xlu0 %4400
    %v4403 = vmul.f32 %v4386, %v4401
    %v4404 = vpack.c.bf16 %v4403, %v4403
    %4406 = vrot.lane.b32.xlu0 %v4404, 32
    %v4407 = vpop.permute.xlu0 %4406
    %v4409 = vsel %vm277, %v4407, 0
    %4411 = vmatprep.subr.bf16.mxu0 0
    %4412 = vmatpush1.bf16.msra.mxu0 %v2684
    %4413 = vmatprep.subr.bf16.mxu0 0
    %4414 = vmatpush1.bf16.msra.mxu0 %v2685
    %4415 = vmatprep.subr.bf16.mxu0 0
    %4416 = vmatpush1.bf16.msra.mxu0 0
    %4417 = vmatprep.subr.bf16.mxu0 0
    %4418 = vmatpush1.bf16.msra.mxu0 0
    %4419 = vmatprep.subr.bf16.mxu0 0
    %4420 = vmatpush1.bf16.msra.mxu0 0
    %4421 = vmatprep.subr.bf16.mxu0 0
    %4422 = vmatpush1.bf16.msra.mxu0 0
    %4423 = vmatprep.subr.bf16.mxu0 0
    %4424 = vmatpush1.bf16.msra.mxu0 0
    %4425 = vmatprep.subr.bf16.mxu0 0
    %4426 = vmatpush1.bf16.msra.mxu0 0
    %4427 = vmatprep.subr.bf16.mxu0 0
    %4428 = vmatpush1.bf16.msra.mxu0 0
    %4429 = vmatprep.subr.bf16.mxu0 0
    %4430 = vmatpush1.bf16.msra.mxu0 0
    %4431 = vmatprep.subr.bf16.mxu0 0
    %4432 = vmatpush1.bf16.msra.mxu0 0
    %4433 = vmatprep.subr.bf16.mxu0 0
    %4434 = vmatpush1.bf16.msra.mxu0 0
    %4435 = vmatprep.subr.bf16.mxu0 0
    %4436 = vmatpush1.bf16.msra.mxu0 0
    %4437 = vmatprep.subr.bf16.mxu0 0
    %4438 = vmatpush1.bf16.msra.mxu0 0
    %4439 = vmatprep.subr.bf16.mxu0 0
    %4440 = vmatpush1.bf16.msra.mxu0 0
    %4441 = vmatprep.subr.bf16.mxu0 0
    %4442 = vmatpush1.bf16.msra.mxu0 0
    %4443 = vmatprep.mubr.bf16.mxu0 0
    %4444 = vmatmul.mubr.bf16.gmra.mrb[0].mxu0 %v4409
    %v4445 = vpop.f32.mrb[0].mxu0
    %v4446 = vadd.f32 %v2671, %v4445
    %v4447 = vpop.f32.mrb[0].mxu0
    %v4448 = vpop.f32.mrb[0].mxu0
    %v4449 = vpop.f32.mrb[0].mxu0
    %4450 = vdwg.mxu0
    %4451 = vst [vmem:[%s9 + $0x10] sm:$0xff] %v4446
    %v4452 = vpack.c.bf16 %v3948, %v3948
    %v4453 = vpack.c.bf16 %v3794, %v3794
    %v4454 = vld [vmem:[%s775] sm:$0x1]
    %v4455 = vld [vmem:[%s777] sm:$0xf]
    %v4456 = vld [vmem:[%s777 + $0x4] sm:$0xf]
    %v4457 = vld [vmem:[%s777 + $0x8] sm:$0xf]
    %v4458 = vld [vmem:[%s777 + $0xc] sm:$0xf]
    %4460 = vrot.lane.b32.xlu0 %v4453, 32
    %v4461 = vpop.permute.xlu0 %4460
    %v4466 = vunpack.c.l.b16 %v4455
    %v4467 = vunpack.c.l.b16 %v4456
    %v4468 = vunpack.c.l.b16 %v4457
    %v4469 = vunpack.c.l.b16 %v4458
    %v4470 = vpack.c.b16 %v4467, %v4466
    %v4471 = vpack.c.b16 %v4469, %v4468
    %v4475 = vsel %vm277, %v4461, 0
    %4477 = vmatprep.subr.bf16.mxu0 0
    %4478 = vmatpush1.bf16.msra.mxu0 %v4470
    %4479 = vmatprep.subr.bf16.mxu0 0
    %4480 = vmatpush1.bf16.msra.mxu0 %v4471
    %4481 = vmatprep.subr.bf16.mxu0 0
    %4482 = vmatpush1.bf16.msra.mxu0 0
    %4483 = vmatprep.subr.bf16.mxu0 0
    %4484 = vmatpush1.bf16.msra.mxu0 0
    %4485 = vmatprep.subr.bf16.mxu0 0
    %4486 = vmatpush1.bf16.msra.mxu0 0
    %4487 = vmatprep.subr.bf16.mxu0 0
    %4488 = vmatpush1.bf16.msra.mxu0 0
    %4489 = vmatprep.subr.bf16.mxu0 0
    %4490 = vmatpush1.bf16.msra.mxu0 0
    %4491 = vmatprep.subr.bf16.mxu0 0
    %4492 = vmatpush1.bf16.msra.mxu0 0
    %4493 = vmatprep.subr.bf16.mxu0 0
    %4494 = vmatpush1.bf16.msra.mxu0 0
    %4495 = vmatprep.subr.bf16.mxu0 0
    %4496 = vmatpush1.bf16.msra.mxu0 0
    %4497 = vmatprep.subr.bf16.mxu0 0
    %4498 = vmatpush1.bf16.msra.mxu0 0
    %4499 = vmatprep.subr.bf16.mxu0 0
    %4500 = vmatpush1.bf16.msra.mxu0 0
    %4501 = vmatprep.subr.bf16.mxu0 0
    %4502 = vmatpush1.bf16.msra.mxu0 0
    %4503 = vmatprep.subr.bf16.mxu0 0
    %4504 = vmatpush1.bf16.msra.mxu0 0
    %4505 = vmatprep.subr.bf16.mxu0 0
    %4506 = vmatpush1.bf16.msra.mxu0 0
    %4507 = vmatprep.subr.bf16.mxu0 0
    %4508 = vmatpush1.bf16.msra.mxu0 0
    %4509 = vmatprep.mubr.bf16.mxu0 0
    %4510 = vmatmul.mubr.bf16.gmra.mrb[0].mxu0 %v4475
    %v4511 = vpop.f32.mrb[0].mxu0
    %v4512 = vadd.f32 0.0, %v4511
    %v4513 = vpop.f32.mrb[0].mxu0
    %v4514 = vpop.f32.mrb[0].mxu0
    %v4515 = vpop.f32.mrb[0].mxu0
    %4516 = vdwg.mxu0
    %v4518 = vlaneseq
    %v4519 = vshrl.u32 %v4518, 7
    %v4520 = vsub.s32 0, %v4519
    %v4521 = vrot.slane %v4454, %v4520
    %v4523 = vadd.f32 %v4521, %v4512
    %v4524 = vld [vmem:[%s841] sm:$0xf]
    %v4525 = vld [vmem:[%s841 + $0x4] sm:$0xf]
    %v4526 = vld [vmem:[%s841 + $0x8] sm:$0xf]
    %v4527 = vld [vmem:[%s841 + $0xc] sm:$0xf]
    %4529 = vrot.lane.b32.xlu0 %v4452, 32
    %v4530 = vpop.permute.xlu0 %4529
    %v4535 = vunpack.c.l.b16 %v4524
    %v4536 = vunpack.c.l.b16 %v4525
    %v4537 = vunpack.c.l.b16 %v4526
    %v4538 = vunpack.c.l.b16 %v4527
    %v4539 = vpack.c.b16 %v4536, %v4535
    %v4540 = vpack.c.b16 %v4538, %v4537
    %v4544 = vsel %vm277, %v4530, 0
    %4546 = vmatprep.subr.bf16.mxu0 0
    %4547 = vmatpush1.bf16.msra.mxu0 %v4539
    %4548 = vmatprep.subr.bf16.mxu0 0
    %4549 = vmatpush1.bf16.msra.mxu0 %v4540
    %4550 = vmatprep.subr.bf16.mxu0 0
    %4551 = vmatpush1.bf16.msra.mxu0 0
    %4552 = vmatprep.subr.bf16.mxu0 0
    %4553 = vmatpush1.bf16.msra.mxu0 0
    %4554 = vmatprep.subr.bf16.mxu0 0
    %4555 = vmatpush1.bf16.msra.mxu0 0
    %4556 = vmatprep.subr.bf16.mxu0 0
    %4557 = vmatpush1.bf16.msra.mxu0 0
    %4558 = vmatprep.subr.bf16.mxu0 0
    %4559 = vmatpush1.bf16.msra.mxu0 0
    %4560 = vmatprep.subr.bf16.mxu0 0
    %4561 = vmatpush1.bf16.msra.mxu0 0
    %4562 = vmatprep.subr.bf16.mxu0 0
    %4563 = vmatpush1.bf16.msra.mxu0 0
    %4564 = vmatprep.subr.bf16.mxu0 0
    %4565 = vmatpush1.bf16.msra.mxu0 0
    %4566 = vmatprep.subr.bf16.mxu0 0
    %4567 = vmatpush1.bf16.msra.mxu0 0
    %4568 = vmatprep.subr.bf16.mxu0 0
    %4569 = vmatpush1.bf16.msra.mxu0 0
    %4570 = vmatprep.subr.bf16.mxu0 0
    %4571 = vmatpush1.bf16.msra.mxu0 0
    %4572 = vmatprep.subr.bf16.mxu0 0
    %4573 = vmatpush1.bf16.msra.mxu0 0
    %4574 = vmatprep.subr.bf16.mxu0 0
    %4575 = vmatpush1.bf16.msra.mxu0 0
    %4576 = vmatprep.subr.bf16.mxu0 0
    %4577 = vmatpush1.bf16.msra.mxu0 0
    %4578 = vmatprep.mubr.bf16.mxu0 0
    %4579 = vmatmul.mubr.bf16.gmra.mrb[0].mxu0 %v4544
    %v4580 = vpop.f32.mrb[0].mxu0
    %v4581 = vadd.f32 0.0, %v4580
    %v4582 = vpop.f32.mrb[0].mxu0
    %v4583 = vpop.f32.mrb[0].mxu0
    %v4584 = vpop.f32.mrb[0].mxu0
    %4585 = vdwg.mxu0
    %v4586 = vadd.f32 %v4523, %v4581
    %v4587 = vxor.u32 %v4586, 2147483648
    %v4588 = vmul.f32 %v4587, 1.442695
    %v4589 = vpow.pop %v4588
    %v4590 = vadd.f32 %v4589, 1.0
    %v4591 = vrcp.pop %v4590
    %v4592 = vmul.f32 1.0, %v4591
    %v4593 = vmul.f32 %v4592, 2.0
    %v4594 = vsub.f32 %v4593, 1.0
    %v4595 = vsel %vm78, %v4594, %v4592
    %v4596 = vmul.f32 %v4595, %v3942
    %4598 = vrot.lane.b32.xlu0 %v4595, 64
    %v4599 = vpop.permute.xlu0 %4598
    %v4601 = vmul.f32 %v4595, %v4599
    %4603 = vrot.lane.b32.xlu0 %v4601, 32
    %v4604 = vpop.permute.xlu0 %4603
    %v4606 = vadd.f32 %v4596, %v4604
    %v4607 = vtanh.pop %v4606
    %4609 = vrot.lane.b32.xlu0 %v4607, 64
    %v4610 = vpop.permute.xlu0 %4609
    %v4612 = vmul.f32 %v4595, %v4610
    %v4613 = vpack.c.bf16 %v4102, %v4102
    %v4614 = vld [vmem:[%s1238] sm:$0x1]
    %v4615 = vld [vmem:[%s1240] sm:$0xf]
    %v4616 = vld [vmem:[%s1240 + $0x4] sm:$0xf]
    %v4617 = vld [vmem:[%s1240 + $0x8] sm:$0xf]
    %v4618 = vld [vmem:[%s1240 + $0xc] sm:$0xf]
    %v4623 = vunpack.c.l.b16 %v4615
    %v4624 = vunpack.c.l.b16 %v4616
    %v4625 = vunpack.c.l.b16 %v4617
    %v4626 = vunpack.c.l.b16 %v4618
    %v4627 = vpack.c.b16 %v4624, %v4623
    %v4628 = vpack.c.b16 %v4626, %v4625
    %4631 = vmatprep.subr.bf16.mxu0 0
    %4632 = vmatpush1.bf16.msra.mxu0 %v4627
    %4633 = vmatprep.subr.bf16.mxu0 0
    %4634 = vmatpush1.bf16.msra.mxu0 %v4628
    %4635 = vmatprep.subr.bf16.mxu0 0
    %4636 = vmatpush1.bf16.msra.mxu0 0
    %4637 = vmatprep.subr.bf16.mxu0 0
    %4638 = vmatpush1.bf16.msra.mxu0 0
    %4639 = vmatprep.subr.bf16.mxu0 0
    %4640 = vmatpush1.bf16.msra.mxu0 0
    %4641 = vmatprep.subr.bf16.mxu0 0
    %4642 = vmatpush1.bf16.msra.mxu0 0
    %4643 = vmatprep.subr.bf16.mxu0 0
    %4644 = vmatpush1.bf16.msra.mxu0 0
    %4645 = vmatprep.subr.bf16.mxu0 0
    %4646 = vmatpush1.bf16.msra.mxu0 0
    %4647 = vmatprep.subr.bf16.mxu0 0
    %4648 = vmatpush1.bf16.msra.mxu0 0
    %4649 = vmatprep.subr.bf16.mxu0 0
    %4650 = vmatpush1.bf16.msra.mxu0 0
    %4651 = vmatprep.subr.bf16.mxu0 0
    %4652 = vmatpush1.bf16.msra.mxu0 0
    %4653 = vmatprep.subr.bf16.mxu0 0
    %4654 = vmatpush1.bf16.msra.mxu0 0
    %4655 = vmatprep.subr.bf16.mxu0 0
    %4656 = vmatpush1.bf16.msra.mxu0 0
    %4657 = vmatprep.subr.bf16.mxu0 0
    %4658 = vmatpush1.bf16.msra.mxu0 0
    %4659 = vmatprep.subr.bf16.mxu0 0
    %4660 = vmatpush1.bf16.msra.mxu0 0
    %4661 = vmatprep.subr.bf16.mxu0 0
    %4662 = vmatpush1.bf16.msra.mxu0 0
    %4663 = vmatprep.mubr.bf16.mxu0 0
    %4664 = vmatmul.mubr.bf16.gmra.mrb[0].mxu0 %v4544
    %v4665 = vpop.f32.mrb[0].mxu0
    %v4666 = vadd.f32 0.0, %v4665
    %v4667 = vpop.f32.mrb[0].mxu0
    %v4668 = vpop.f32.mrb[0].mxu0
    %v4669 = vpop.f32.mrb[0].mxu0
    %4670 = vdwg.mxu0
    %v4672 = vlaneseq
    %v4673 = vshrl.u32 %v4672, 7
    %v4674 = vsub.s32 0, %v4673
    %v4675 = vrot.slane %v4614, %v4674
    %v4677 = vadd.f32 %v4675, %v4666
    %v4678 = vld [vmem:[%s1304] sm:$0xf]
    %v4679 = vld [vmem:[%s1304 + $0x4] sm:$0xf]
    %v4680 = vld [vmem:[%s1304 + $0x8] sm:$0xf]
    %v4681 = vld [vmem:[%s1304 + $0xc] sm:$0xf]
    %4683 = vrot.lane.b32.xlu0 %v4613, 32
    %v4684 = vpop.permute.xlu0 %4683
    %v4689 = vunpack.c.l.b16 %v4678
    %v4690 = vunpack.c.l.b16 %v4679
    %v4691 = vunpack.c.l.b16 %v4680
    %v4692 = vunpack.c.l.b16 %v4681
    %v4693 = vpack.c.b16 %v4690, %v4689
    %v4694 = vpack.c.b16 %v4692, %v4691
    %v4698 = vsel %vm277, %v4684, 0
    %4700 = vmatprep.subr.bf16.mxu0 0
    %4701 = vmatpush1.bf16.msra.mxu0 %v4693
    %4702 = vmatprep.subr.bf16.mxu0 0
    %4703 = vmatpush1.bf16.msra.mxu0 %v4694
    %4704 = vmatprep.subr.bf16.mxu0 0
    %4705 = vmatpush1.bf16.msra.mxu0 0
    %4706 = vmatprep.subr.bf16.mxu0 0
    %4707 = vmatpush1.bf16.msra.mxu0 0
    %4708 = vmatprep.subr.bf16.mxu0 0
    %4709 = vmatpush1.bf16.msra.mxu0 0
    %4710 = vmatprep.subr.bf16.mxu0 0
    %4711 = vmatpush1.bf16.msra.mxu0 0
    %4712 = vmatprep.subr.bf16.mxu0 0
    %4713 = vmatpush1.bf16.msra.mxu0 0
    %4714 = vmatprep.subr.bf16.mxu0 0
    %4715 = vmatpush1.bf16.msra.mxu0 0
    %4716 = vmatprep.subr.bf16.mxu0 0
    %4717 = vmatpush1.bf16.msra.mxu0 0
    %4718 = vmatprep.subr.bf16.mxu0 0
    %4719 = vmatpush1.bf16.msra.mxu0 0
    %4720 = vmatprep.subr.bf16.mxu0 0
    %4721 = vmatpush1.bf16.msra.mxu0 0
    %4722 = vmatprep.subr.bf16.mxu0 0
    %4723 = vmatpush1.bf16.msra.mxu0 0
    %4724 = vmatprep.subr.bf16.mxu0 0
    %4725 = vmatpush1.bf16.msra.mxu0 0
    %4726 = vmatprep.subr.bf16.mxu0 0
    %4727 = vmatpush1.bf16.msra.mxu0 0
    %4728 = vmatprep.subr.bf16.mxu0 0
    %4729 = vmatpush1.bf16.msra.mxu0 0
    %4730 = vmatprep.subr.bf16.mxu0 0
    %4731 = vmatpush1.bf16.msra.mxu0 0
    %4732 = vmatprep.mubr.bf16.mxu0 0
    %4733 = vmatmul.mubr.bf16.gmra.mrb[0].mxu0 %v4698
    %v4734 = vpop.f32.mrb[0].mxu0
    %v4735 = vadd.f32 0.0, %v4734
    %v4736 = vpop.f32.mrb[0].mxu0
    %v4737 = vpop.f32.mrb[0].mxu0
    %v4738 = vpop.f32.mrb[0].mxu0
    %4739 = vdwg.mxu0
    %v4740 = vadd.f32 %v4677, %v4735
    %v4741 = vxor.u32 %v4740, 2147483648
    %v4742 = vmul.f32 %v4741, 1.442695
    %v4743 = vpow.pop %v4742
    %v4744 = vadd.f32 %v4743, 1.0
    %v4745 = vrcp.pop %v4744
    %v4746 = vmul.f32 1.0, %v4745
    %v4747 = vmul.f32 %v4746, 2.0
    %v4748 = vsub.f32 %v4747, 1.0
    %v4749 = vsel %vm78, %v4748, %v4746
    %v4750 = vmul.f32 %v4749, %v4096
    %4752 = vrot.lane.b32.xlu0 %v4749, 64
    %v4753 = vpop.permute.xlu0 %4752
    %v4755 = vmul.f32 %v4749, %v4753
    %4757 = vrot.lane.b32.xlu0 %v4755, 32
    %v4758 = vpop.permute.xlu0 %4757
    %v4760 = vadd.f32 %v4750, %v4758
    %v4761 = vtanh.pop %v4760
    %4763 = vrot.lane.b32.xlu0 %v4761, 64
    %v4764 = vpop.permute.xlu0 %4763
    %v4766 = vmul.f32 %v4749, %v4764
    %v4767 = vpack.c.bf16 %v4256, %v4256
    %v4768 = vld [vmem:[%s1816] sm:$0x1]
    %v4769 = vld [vmem:[%s1818] sm:$0xf]
    %v4770 = vld [vmem:[%s1818 + $0x4] sm:$0xf]
    %v4771 = vld [vmem:[%s1818 + $0x8] sm:$0xf]
    %v4772 = vld [vmem:[%s1818 + $0xc] sm:$0xf]
    %v4777 = vunpack.c.l.b16 %v4769
    %v4778 = vunpack.c.l.b16 %v4770
    %v4779 = vunpack.c.l.b16 %v4771
    %v4780 = vunpack.c.l.b16 %v4772
    %v4781 = vpack.c.b16 %v4778, %v4777
    %v4782 = vpack.c.b16 %v4780, %v4779
    %4785 = vmatprep.subr.bf16.mxu0 0
    %4786 = vmatpush1.bf16.msra.mxu0 %v4781
    %4787 = vmatprep.subr.bf16.mxu0 0
    %4788 = vmatpush1.bf16.msra.mxu0 %v4782
    %4789 = vmatprep.subr.bf16.mxu0 0
    %4790 = vmatpush1.bf16.msra.mxu0 0
    %4791 = vmatprep.subr.bf16.mxu0 0
    %4792 = vmatpush1.bf16.msra.mxu0 0
    %4793 = vmatprep.subr.bf16.mxu0 0
    %4794 = vmatpush1.bf16.msra.mxu0 0
    %4795 = vmatprep.subr.bf16.mxu0 0
    %4796 = vmatpush1.bf16.msra.mxu0 0
    %4797 = vmatprep.subr.bf16.mxu0 0
    %4798 = vmatpush1.bf16.msra.mxu0 0
    %4799 = vmatprep.subr.bf16.mxu0 0
    %4800 = vmatpush1.bf16.msra.mxu0 0
    %4801 = vmatprep.subr.bf16.mxu0 0
    %4802 = vmatpush1.bf16.msra.mxu0 0
    %4803 = vmatprep.subr.bf16.mxu0 0
    %4804 = vmatpush1.bf16.msra.mxu0 0
    %4805 = vmatprep.subr.bf16.mxu0 0
    %4806 = vmatpush1.bf16.msra.mxu0 0
    %4807 = vmatprep.subr.bf16.mxu0 0
    %4808 = vmatpush1.bf16.msra.mxu0 0
    %4809 = vmatprep.subr.bf16.mxu0 0
    %4810 = vmatpush1.bf16.msra.mxu0 0
    %4811 = vmatprep.subr.bf16.mxu0 0
    %4812 = vmatpush1.bf16.msra.mxu0 0
    %4813 = vmatprep.subr.bf16.mxu0 0
    %4814 = vmatpush1.bf16.msra.mxu0 0
    %4815 = vmatprep.subr.bf16.mxu0 0
    %4816 = vmatpush1.bf16.msra.mxu0 0
    %4817 = vmatprep.mubr.bf16.mxu0 0
    %4818 = vmatmul.mubr.bf16.gmra.mrb[0].mxu0 %v4698
    %v4819 = vpop.f32.mrb[0].mxu0
    %v4820 = vadd.f32 0.0, %v4819
    %v4821 = vpop.f32.mrb[0].mxu0
    %v4822 = vpop.f32.mrb[0].mxu0
    %v4823 = vpop.f32.mrb[0].mxu0
    %4824 = vdwg.mxu0
    %v4826 = vlaneseq
    %v4827 = vshrl.u32 %v4826, 7
    %v4828 = vsub.s32 0, %v4827
    %v4829 = vrot.slane %v4768, %v4828
    %v4831 = vadd.f32 %v4829, %v4820
    %v4832 = vld [vmem:[%s1882] sm:$0xf]
    %v4833 = vld [vmem:[%s1882 + $0x4] sm:$0xf]
    %v4834 = vld [vmem:[%s1882 + $0x8] sm:$0xf]
    %v4835 = vld [vmem:[%s1882 + $0xc] sm:$0xf]
    %4837 = vrot.lane.b32.xlu0 %v4767, 32
    %v4838 = vpop.permute.xlu0 %4837
    %v4843 = vunpack.c.l.b16 %v4832
    %v4844 = vunpack.c.l.b16 %v4833
    %v4845 = vunpack.c.l.b16 %v4834
    %v4846 = vunpack.c.l.b16 %v4835
    %v4847 = vpack.c.b16 %v4844, %v4843
    %v4848 = vpack.c.b16 %v4846, %v4845
    %v4852 = vsel %vm277, %v4838, 0
    %4854 = vmatprep.subr.bf16.mxu0 0
    %4855 = vmatpush1.bf16.msra.mxu0 %v4847
    %4856 = vmatprep.subr.bf16.mxu0 0
    %4857 = vmatpush1.bf16.msra.mxu0 %v4848
    %4858 = vmatprep.subr.bf16.mxu0 0
    %4859 = vmatpush1.bf16.msra.mxu0 0
    %4860 = vmatprep.subr.bf16.mxu0 0
    %4861 = vmatpush1.bf16.msra.mxu0 0
    %4862 = vmatprep.subr.bf16.mxu0 0
    %4863 = vmatpush1.bf16.msra.mxu0 0
    %4864 = vmatprep.subr.bf16.mxu0 0
    %4865 = vmatpush1.bf16.msra.mxu0 0
    %4866 = vmatprep.subr.bf16.mxu0 0
    %4867 = vmatpush1.bf16.msra.mxu0 0
    %4868 = vmatprep.subr.bf16.mxu0 0
    %4869 = vmatpush1.bf16.msra.mxu0 0
    %4870 = vmatprep.subr.bf16.mxu0 0
    %4871 = vmatpush1.bf16.msra.mxu0 0
    %4872 = vmatprep.subr.bf16.mxu0 0
    %4873 = vmatpush1.bf16.msra.mxu0 0
    %4874 = vmatprep.subr.bf16.mxu0 0
    %4875 = vmatpush1.bf16.msra.mxu0 0
    %4876 = vmatprep.subr.bf16.mxu0 0
    %4877 = vmatpush1.bf16.msra.mxu0 0
    %4878 = vmatprep.subr.bf16.mxu0 0
    %4879 = vmatpush1.bf16.msra.mxu0 0
    %4880 = vmatprep.subr.bf16.mxu0 0
    %4881 = vmatpush1.bf16.msra.mxu0 0
    %4882 = vmatprep.subr.bf16.mxu0 0
    %4883 = vmatpush1.bf16.msra.mxu0 0
    %4884 = vmatprep.subr.bf16.mxu0 0
    %4885 = vmatpush1.bf16.msra.mxu0 0
    %4886 = vmatprep.mubr.bf16.mxu0 0
    %4887 = vmatmul.mubr.bf16.gmra.mrb[0].mxu0 %v4852
    %v4888 = vpop.f32.mrb[0].mxu0
    %v4889 = vadd.f32 0.0, %v4888
    %v4890 = vpop.f32.mrb[0].mxu0
    %v4891 = vpop.f32.mrb[0].mxu0
    %v4892 = vpop.f32.mrb[0].mxu0
    %4893 = vdwg.mxu0
    %v4894 = vadd.f32 %v4831, %v4889
    %v4895 = vxor.u32 %v4894, 2147483648
    %v4896 = vmul.f32 %v4895, 1.442695
    %v4897 = vpow.pop %v4896
    %v4898 = vadd.f32 %v4897, 1.0
    %v4899 = vrcp.pop %v4898
    %v4900 = vmul.f32 1.0, %v4899
    %v4901 = vmul.f32 %v4900, 2.0
    %v4902 = vsub.f32 %v4901, 1.0
    %v4903 = vsel %vm78, %v4902, %v4900
    %v4904 = vmul.f32 %v4903, %v4250
    %4906 = vrot.lane.b32.xlu0 %v4903, 64
    %v4907 = vpop.permute.xlu0 %4906
    %v4909 = vmul.f32 %v4903, %v4907
    %4911 = vrot.lane.b32.xlu0 %v4909, 32
    %v4912 = vpop.permute.xlu0 %4911
    %v4914 = vadd.f32 %v4904, %v4912
    %v4915 = vtanh.pop %v4914
    %4917 = vrot.lane.b32.xlu0 %v4915, 64
    %v4918 = vpop.permute.xlu0 %4917
    %v4920 = vmul.f32 %v4903, %v4918
    %v4921 = vld [vmem:[%s2509] sm:$0x1]
    %v4922 = vld [vmem:[%s2511] sm:$0xf]
    %v4923 = vld [vmem:[%s2511 + $0x4] sm:$0xf]
    %v4924 = vld [vmem:[%s2511 + $0x8] sm:$0xf]
    %v4925 = vld [vmem:[%s2511 + $0xc] sm:$0xf]
    %v4930 = vunpack.c.l.b16 %v4922
    %v4931 = vunpack.c.l.b16 %v4923
    %v4932 = vunpack.c.l.b16 %v4924
    %v4933 = vunpack.c.l.b16 %v4925
    %v4934 = vpack.c.b16 %v4931, %v4930
    %v4935 = vpack.c.b16 %v4933, %v4932
    %4938 = vmatprep.subr.bf16.mxu0 0
    %4939 = vmatpush1.bf16.msra.mxu0 %v4934
    %4940 = vmatprep.subr.bf16.mxu0 0
    %4941 = vmatpush1.bf16.msra.mxu0 %v4935
    %4942 = vmatprep.subr.bf16.mxu0 0
    %4943 = vmatpush1.bf16.msra.mxu0 0
    %4944 = vmatprep.subr.bf16.mxu0 0
    %4945 = vmatpush1.bf16.msra.mxu0 0
    %4946 = vmatprep.subr.bf16.mxu0 0
    %4947 = vmatpush1.bf16.msra.mxu0 0
    %4948 = vmatprep.subr.bf16.mxu0 0
    %4949 = vmatpush1.bf16.msra.mxu0 0
    %4950 = vmatprep.subr.bf16.mxu0 0
    %4951 = vmatpush1.bf16.msra.mxu0 0
    %4952 = vmatprep.subr.bf16.mxu0 0
    %4953 = vmatpush1.bf16.msra.mxu0 0
    %4954 = vmatprep.subr.bf16.mxu0 0
    %4955 = vmatpush1.bf16.msra.mxu0 0
    %4956 = vmatprep.subr.bf16.mxu0 0
    %4957 = vmatpush1.bf16.msra.mxu0 0
    %4958 = vmatprep.subr.bf16.mxu0 0
    %4959 = vmatpush1.bf16.msra.mxu0 0
    %4960 = vmatprep.subr.bf16.mxu0 0
    %4961 = vmatpush1.bf16.msra.mxu0 0
    %4962 = vmatprep.subr.bf16.mxu0 0
    %4963 = vmatpush1.bf16.msra.mxu0 0
    %4964 = vmatprep.subr.bf16.mxu0 0
    %4965 = vmatpush1.bf16.msra.mxu0 0
    %4966 = vmatprep.subr.bf16.mxu0 0
    %4967 = vmatpush1.bf16.msra.mxu0 0
    %4968 = vmatprep.subr.bf16.mxu0 0
    %4969 = vmatpush1.bf16.msra.mxu0 0
    %4970 = vmatprep.mubr.bf16.mxu0 0
    %4971 = vmatmul.mubr.bf16.gmra.mrb[0].mxu0 %v4852
    %v4972 = vpop.f32.mrb[0].mxu0
    %v4973 = vadd.f32 0.0, %v4972
    %v4974 = vpop.f32.mrb[0].mxu0
    %v4975 = vpop.f32.mrb[0].mxu0
    %v4976 = vpop.f32.mrb[0].mxu0
    %4977 = vdwg.mxu0
    %v4979 = vlaneseq
    %v4980 = vshrl.u32 %v4979, 7
    %v4981 = vsub.s32 0, %v4980
    %v4982 = vrot.slane %v4921, %v4981
    %v4984 = vadd.f32 %v4982, %v4973
    %v4985 = vld [vmem:[%s2575] sm:$0xf]
    %v4986 = vld [vmem:[%s2575 + $0x4] sm:$0xf]
    %v4987 = vld [vmem:[%s2575 + $0x8] sm:$0xf]
    %v4988 = vld [vmem:[%s2575 + $0xc] sm:$0xf]
    %v4993 = vunpack.c.l.b16 %v4985
    %v4994 = vunpack.c.l.b16 %v4986
    %v4995 = vunpack.c.l.b16 %v4987
    %v4996 = vunpack.c.l.b16 %v4988
    %v4997 = vpack.c.b16 %v4994, %v4993
    %v4998 = vpack.c.b16 %v4996, %v4995
    %5001 = vmatprep.subr.bf16.mxu0 0
    %5002 = vmatpush1.bf16.msra.mxu0 %v4997
    %5003 = vmatprep.subr.bf16.mxu0 0
    %5004 = vmatpush1.bf16.msra.mxu0 %v4998
    %5005 = vmatprep.subr.bf16.mxu0 0
    %5006 = vmatpush1.bf16.msra.mxu0 0
    %5007 = vmatprep.subr.bf16.mxu0 0
    %5008 = vmatpush1.bf16.msra.mxu0 0
    %5009 = vmatprep.subr.bf16.mxu0 0
    %5010 = vmatpush1.bf16.msra.mxu0 0
    %5011 = vmatprep.subr.bf16.mxu0 0
    %5012 = vmatpush1.bf16.msra.mxu0 0
    %5013 = vmatprep.subr.bf16.mxu0 0
    %5014 = vmatpush1.bf16.msra.mxu0 0
    %5015 = vmatprep.subr.bf16.mxu0 0
    %5016 = vmatpush1.bf16.msra.mxu0 0
    %5017 = vmatprep.subr.bf16.mxu0 0
    %5018 = vmatpush1.bf16.msra.mxu0 0
    %5019 = vmatprep.subr.bf16.mxu0 0
    %5020 = vmatpush1.bf16.msra.mxu0 0
    %5021 = vmatprep.subr.bf16.mxu0 0
    %5022 = vmatpush1.bf16.msra.mxu0 0
    %5023 = vmatprep.subr.bf16.mxu0 0
    %5024 = vmatpush1.bf16.msra.mxu0 0
    %5025 = vmatprep.subr.bf16.mxu0 0
    %5026 = vmatpush1.bf16.msra.mxu0 0
    %5027 = vmatprep.subr.bf16.mxu0 0
    %5028 = vmatpush1.bf16.msra.mxu0 0
    %5029 = vmatprep.subr.bf16.mxu0 0
    %5030 = vmatpush1.bf16.msra.mxu0 0
    %5031 = vmatprep.subr.bf16.mxu0 0
    %5032 = vmatpush1.bf16.msra.mxu0 0
    %5033 = vmatprep.mubr.bf16.mxu0 0
    %5034 = vmatmul.mubr.bf16.gmra.mrb[0].mxu0 %v4409
    %v5035 = vpop.f32.mrb[0].mxu0
    %v5036 = vadd.f32 0.0, %v5035
    %v5037 = vpop.f32.mrb[0].mxu0
    %v5038 = vpop.f32.mrb[0].mxu0
    %v5039 = vpop.f32.mrb[0].mxu0
    %5040 = vdwg.mxu0
    %v5041 = vadd.f32 %v4984, %v5036
    %v5042 = vxor.u32 %v5041, 2147483648
    %v5043 = vmul.f32 %v5042, 1.442695
    %v5044 = vpow.pop %v5043
    %v5045 = vadd.f32 %v5044, 1.0
    %v5046 = vrcp.pop %v5045
    %v5047 = vmul.f32 1.0, %v5046
    %v5048 = vmul.f32 %v5047, 2.0
    %v5049 = vsub.f32 %v5048, 1.0
    %v5050 = vsel %vm78, %v5049, %v5047
    %v5051 = vmul.f32 %v5050, %v4397
    %5053 = vrot.lane.b32.xlu0 %v5050, 64
    %v5054 = vpop.permute.xlu0 %5053
    %v5056 = vmul.f32 %v5050, %v5054
    %5058 = vrot.lane.b32.xlu0 %v5056, 32
    %v5059 = vpop.permute.xlu0 %5058
    %v5061 = vadd.f32 %v5051, %v5059
    %v5062 = vtanh.pop %v5061
    %5064 = vrot.lane.b32.xlu0 %v5062, 64
    %v5065 = vpop.permute.xlu0 %5064
    %v5067 = vmul.f32 %v5050, %v5065
    %v5068 = vpack.c.bf16 %v5067, %v5067
    %5070 = vrot.lane.b32.xlu0 %v5068, 32
    %v5071 = vpop.permute.xlu0 %5070
    %v5073 = vsel %vm277, %v5071, 0
    %5075 = vmatprep.subr.bf16.mxu0 0
    %5076 = vmatpush1.bf16.msra.mxu0 %v2684
    %5077 = vmatprep.subr.bf16.mxu0 0
    %5078 = vmatpush1.bf16.msra.mxu0 %v2685
    %5079 = vmatprep.subr.bf16.mxu0 0
    %5080 = vmatpush1.bf16.msra.mxu0 0
    %5081 = vmatprep.subr.bf16.mxu0 0
    %5082 = vmatpush1.bf16.msra.mxu0 0
    %5083 = vmatprep.subr.bf16.mxu0 0
    %5084 = vmatpush1.bf16.msra.mxu0 0
    %5085 = vmatprep.subr.bf16.mxu0 0
    %5086 = vmatpush1.bf16.msra.mxu0 0
    %5087 = vmatprep.subr.bf16.mxu0 0
    %5088 = vmatpush1.bf16.msra.mxu0 0
    %5089 = vmatprep.subr.bf16.mxu0 0
    %5090 = vmatpush1.bf16.msra.mxu0 0
    %5091 = vmatprep.subr.bf16.mxu0 0
    %5092 = vmatpush1.bf16.msra.mxu0 0
    %5093 = vmatprep.subr.bf16.mxu0 0
    %5094 = vmatpush1.bf16.msra.mxu0 0
    %5095 = vmatprep.subr.bf16.mxu0 0
    %5096 = vmatpush1.bf16.msra.mxu0 0
    %5097 = vmatprep.subr.bf16.mxu0 0
    %5098 = vmatpush1.bf16.msra.mxu0 0
    %5099 = vmatprep.subr.bf16.mxu0 0
    %5100 = vmatpush1.bf16.msra.mxu0 0
    %5101 = vmatprep.subr.bf16.mxu0 0
    %5102 = vmatpush1.bf16.msra.mxu0 0
    %5103 = vmatprep.subr.bf16.mxu0 0
    %5104 = vmatpush1.bf16.msra.mxu0 0
    %5105 = vmatprep.subr.bf16.mxu0 0
    %5106 = vmatpush1.bf16.msra.mxu0 0
    %5107 = vmatprep.mubr.bf16.mxu0 0
    %5108 = vmatmul.mubr.bf16.gmra.mrb[0].mxu0 %v5073
    %v5109 = vpop.f32.mrb[0].mxu0
    %v5110 = vadd.f32 %v2671, %v5109
    %v5111 = vpop.f32.mrb[0].mxu0
    %v5112 = vpop.f32.mrb[0].mxu0
    %v5113 = vpop.f32.mrb[0].mxu0
    %5114 = vdwg.mxu0
    %5115 = vst [vmem:[%s9 + $0x18] sm:$0xff] %v5110
    %v5116 = vpack.c.bf16 %v4766, %v4766
    %v5117 = vpack.c.bf16 %v4612, %v4612
    %v5118 = vld [vmem:[%s1238] sm:$0x1]
    %v5119 = vld [vmem:[%s1240] sm:$0xf]
    %v5120 = vld [vmem:[%s1240 + $0x4] sm:$0xf]
    %v5121 = vld [vmem:[%s1240 + $0x8] sm:$0xf]
    %v5122 = vld [vmem:[%s1240 + $0xc] sm:$0xf]
    %5124 = vrot.lane.b32.xlu0 %v5117, 32
    %v5125 = vpop.permute.xlu0 %5124
    %v5130 = vunpack.c.l.b16 %v5119
    %v5131 = vunpack.c.l.b16 %v5120
    %v5132 = vunpack.c.l.b16 %v5121
    %v5133 = vunpack.c.l.b16 %v5122
    %v5134 = vpack.c.b16 %v5131, %v5130
    %v5135 = vpack.c.b16 %v5133, %v5132
    %v5139 = vsel %vm277, %v5125, 0
    %5141 = vmatprep.subr.bf16.mxu0 0
    %5142 = vmatpush1.bf16.msra.mxu0 %v5134
    %5143 = vmatprep.subr.bf16.mxu0 0
    %5144 = vmatpush1.bf16.msra.mxu0 %v5135
    %5145 = vmatprep.subr.bf16.mxu0 0
    %5146 = vmatpush1.bf16.msra.mxu0 0
    %5147 = vmatprep.subr.bf16.mxu0 0
    %5148 = vmatpush1.bf16.msra.mxu0 0
    %5149 = vmatprep.subr.bf16.mxu0 0
    %5150 = vmatpush1.bf16.msra.mxu0 0
    %5151 = vmatprep.subr.bf16.mxu0 0
    %5152 = vmatpush1.bf16.msra.mxu0 0
    %5153 = vmatprep.subr.bf16.mxu0 0
    %5154 = vmatpush1.bf16.msra.mxu0 0
    %5155 = vmatprep.subr.bf16.mxu0 0
    %5156 = vmatpush1.bf16.msra.mxu0 0
    %5157 = vmatprep.subr.bf16.mxu0 0
    %5158 = vmatpush1.bf16.msra.mxu0 0
    %5159 = vmatprep.subr.bf16.mxu0 0
    %5160 = vmatpush1.bf16.msra.mxu0 0
    %5161 = vmatprep.subr.bf16.mxu0 0
    %5162 = vmatpush1.bf16.msra.mxu0 0
    %5163 = vmatprep.subr.bf16.mxu0 0
    %5164 = vmatpush1.bf16.msra.mxu0 0
    %5165 = vmatprep.subr.bf16.mxu0 0
    %5166 = vmatpush1.bf16.msra.mxu0 0
    %5167 = vmatprep.subr.bf16.mxu0 0
    %5168 = vmatpush1.bf16.msra.mxu0 0
    %5169 = vmatprep.subr.bf16.mxu0 0
    %5170 = vmatpush1.bf16.msra.mxu0 0
    %5171 = vmatprep.subr.bf16.mxu0 0
    %5172 = vmatpush1.bf16.msra.mxu0 0
    %5173 = vmatprep.mubr.bf16.mxu0 0
    %5174 = vmatmul.mubr.bf16.gmra.mrb[0].mxu0 %v5139
    %v5175 = vpop.f32.mrb[0].mxu0
    %v5176 = vadd.f32 0.0, %v5175
    %v5177 = vpop.f32.mrb[0].mxu0
    %v5178 = vpop.f32.mrb[0].mxu0
    %v5179 = vpop.f32.mrb[0].mxu0
    %5180 = vdwg.mxu0
    %v5182 = vlaneseq
    %v5183 = vshrl.u32 %v5182, 7
    %v5184 = vsub.s32 0, %v5183
    %v5185 = vrot.slane %v5118, %v5184
    %v5187 = vadd.f32 %v5185, %v5176
    %v5188 = vld [vmem:[%s1304] sm:$0xf]
    %v5189 = vld [vmem:[%s1304 + $0x4] sm:$0xf]
    %v5190 = vld [vmem:[%s1304 + $0x8] sm:$0xf]
    %v5191 = vld [vmem:[%s1304 + $0xc] sm:$0xf]
    %5193 = vrot.lane.b32.xlu0 %v5116, 32
    %v5194 = vpop.permute.xlu0 %5193
    %v5199 = vunpack.c.l.b16 %v5188
    %v5200 = vunpack.c.l.b16 %v5189
    %v5201 = vunpack.c.l.b16 %v5190
    %v5202 = vunpack.c.l.b16 %v5191
    %v5203 = vpack.c.b16 %v5200, %v5199
    %v5204 = vpack.c.b16 %v5202, %v5201
    %v5208 = vsel %vm277, %v5194, 0
    %5210 = vmatprep.subr.bf16.mxu0 0
    %5211 = vmatpush1.bf16.msra.mxu0 %v5203
    %5212 = vmatprep.subr.bf16.mxu0 0
    %5213 = vmatpush1.bf16.msra.mxu0 %v5204
    %5214 = vmatprep.subr.bf16.mxu0 0
    %5215 = vmatpush1.bf16.msra.mxu0 0
    %5216 = vmatprep.subr.bf16.mxu0 0
    %5217 = vmatpush1.bf16.msra.mxu0 0
    %5218 = vmatprep.subr.bf16.mxu0 0
    %5219 = vmatpush1.bf16.msra.mxu0 0
    %5220 = vmatprep.subr.bf16.mxu0 0
    %5221 = vmatpush1.bf16.msra.mxu0 0
    %5222 = vmatprep.subr.bf16.mxu0 0
    %5223 = vmatpush1.bf16.msra.mxu0 0
    %5224 = vmatprep.subr.bf16.mxu0 0
    %5225 = vmatpush1.bf16.msra.mxu0 0
    %5226 = vmatprep.subr.bf16.mxu0 0
    %5227 = vmatpush1.bf16.msra.mxu0 0
    %5228 = vmatprep.subr.bf16.mxu0 0
    %5229 = vmatpush1.bf16.msra.mxu0 0
    %5230 = vmatprep.subr.bf16.mxu0 0
    %5231 = vmatpush1.bf16.msra.mxu0 0
    %5232 = vmatprep.subr.bf16.mxu0 0
    %5233 = vmatpush1.bf16.msra.mxu0 0
    %5234 = vmatprep.subr.bf16.mxu0 0
    %5235 = vmatpush1.bf16.msra.mxu0 0
    %5236 = vmatprep.subr.bf16.mxu0 0
    %5237 = vmatpush1.bf16.msra.mxu0 0
    %5238 = vmatprep.subr.bf16.mxu0 0
    %5239 = vmatpush1.bf16.msra.mxu0 0
    %5240 = vmatprep.subr.bf16.mxu0 0
    %5241 = vmatpush1.bf16.msra.mxu0 0
    %5242 = vmatprep.mubr.bf16.mxu0 0
    %5243 = vmatmul.mubr.bf16.gmra.mrb[0].mxu0 %v5208
    %v5244 = vpop.f32.mrb[0].mxu0
    %v5245 = vadd.f32 0.0, %v5244
    %v5246 = vpop.f32.mrb[0].mxu0
    %v5247 = vpop.f32.mrb[0].mxu0
    %v5248 = vpop.f32.mrb[0].mxu0
    %5249 = vdwg.mxu0
    %v5250 = vadd.f32 %v5187, %v5245
    %v5251 = vxor.u32 %v5250, 2147483648
    %v5252 = vmul.f32 %v5251, 1.442695
    %v5253 = vpow.pop %v5252
    %v5254 = vadd.f32 %v5253, 1.0
    %v5255 = vrcp.pop %v5254
    %v5256 = vmul.f32 1.0, %v5255
    %v5257 = vmul.f32 %v5256, 2.0
    %v5258 = vsub.f32 %v5257, 1.0
    %v5259 = vsel %vm78, %v5258, %v5256
    %v5260 = vmul.f32 %v5259, %v4760
    %5262 = vrot.lane.b32.xlu0 %v5259, 64
    %v5263 = vpop.permute.xlu0 %5262
    %v5265 = vmul.f32 %v5259, %v5263
    %5267 = vrot.lane.b32.xlu0 %v5265, 32
    %v5268 = vpop.permute.xlu0 %5267
    %v5270 = vadd.f32 %v5260, %v5268
    %v5271 = vtanh.pop %v5270
    %5273 = vrot.lane.b32.xlu0 %v5271, 64
    %v5274 = vpop.permute.xlu0 %5273
    %v5276 = vmul.f32 %v5259, %v5274
    %v5277 = vpack.c.bf16 %v4920, %v4920
    %v5278 = vld [vmem:[%s1816] sm:$0x1]
    %v5279 = vld [vmem:[%s1818] sm:$0xf]
    %v5280 = vld [vmem:[%s1818 + $0x4] sm:$0xf]
    %v5281 = vld [vmem:[%s1818 + $0x8] sm:$0xf]
    %v5282 = vld [vmem:[%s1818 + $0xc] sm:$0xf]
    %v5287 = vunpack.c.l.b16 %v5279
    %v5288 = vunpack.c.l.b16 %v5280
    %v5289 = vunpack.c.l.b16 %v5281
    %v5290 = vunpack.c.l.b16 %v5282
    %v5291 = vpack.c.b16 %v5288, %v5287
    %v5292 = vpack.c.b16 %v5290, %v5289
    %5295 = vmatprep.subr.bf16.mxu0 0
    %5296 = vmatpush1.bf16.msra.mxu0 %v5291
    %5297 = vmatprep.subr.bf16.mxu0 0
    %5298 = vmatpush1.bf16.msra.mxu0 %v5292
    %5299 = vmatprep.subr.bf16.mxu0 0
    %5300 = vmatpush1.bf16.msra.mxu0 0
    %5301 = vmatprep.subr.bf16.mxu0 0
    %5302 = vmatpush1.bf16.msra.mxu0 0
    %5303 = vmatprep.subr.bf16.mxu0 0
    %5304 = vmatpush1.bf16.msra.mxu0 0
    %5305 = vmatprep.subr.bf16.mxu0 0
    %5306 = vmatpush1.bf16.msra.mxu0 0
    %5307 = vmatprep.subr.bf16.mxu0 0
    %5308 = vmatpush1.bf16.msra.mxu0 0
    %5309 = vmatprep.subr.bf16.mxu0 0
    %5310 = vmatpush1.bf16.msra.mxu0 0
    %5311 = vmatprep.subr.bf16.mxu0 0
    %5312 = vmatpush1.bf16.msra.mxu0 0
    %5313 = vmatprep.subr.bf16.mxu0 0
    %5314 = vmatpush1.bf16.msra.mxu0 0
    %5315 = vmatprep.subr.bf16.mxu0 0
    %5316 = vmatpush1.bf16.msra.mxu0 0
    %5317 = vmatprep.subr.bf16.mxu0 0
    %5318 = vmatpush1.bf16.msra.mxu0 0
    %5319 = vmatprep.subr.bf16.mxu0 0
    %5320 = vmatpush1.bf16.msra.mxu0 0
    %5321 = vmatprep.subr.bf16.mxu0 0
    %5322 = vmatpush1.bf16.msra.mxu0 0
    %5323 = vmatprep.subr.bf16.mxu0 0
    %5324 = vmatpush1.bf16.msra.mxu0 0
    %5325 = vmatprep.subr.bf16.mxu0 0
    %5326 = vmatpush1.bf16.msra.mxu0 0
    %5327 = vmatprep.mubr.bf16.mxu0 0
    %5328 = vmatmul.mubr.bf16.gmra.mrb[0].mxu0 %v5208
    %v5329 = vpop.f32.mrb[0].mxu0
    %v5330 = vadd.f32 0.0, %v5329
    %v5331 = vpop.f32.mrb[0].mxu0
    %v5332 = vpop.f32.mrb[0].mxu0
    %v5333 = vpop.f32.mrb[0].mxu0
    %5334 = vdwg.mxu0
    %v5336 = vlaneseq
    %v5337 = vshrl.u32 %v5336, 7
    %v5338 = vsub.s32 0, %v5337
    %v5339 = vrot.slane %v5278, %v5338
    %v5341 = vadd.f32 %v5339, %v5330
    %v5342 = vld [vmem:[%s1882] sm:$0xf]
    %v5343 = vld [vmem:[%s1882 + $0x4] sm:$0xf]
    %v5344 = vld [vmem:[%s1882 + $0x8] sm:$0xf]
    %v5345 = vld [vmem:[%s1882 + $0xc] sm:$0xf]
    %5347 = vrot.lane.b32.xlu0 %v5277, 32
    %v5348 = vpop.permute.xlu0 %5347
    %v5353 = vunpack.c.l.b16 %v5342
    %v5354 = vunpack.c.l.b16 %v5343
    %v5355 = vunpack.c.l.b16 %v5344
    %v5356 = vunpack.c.l.b16 %v5345
    %v5357 = vpack.c.b16 %v5354, %v5353
    %v5358 = vpack.c.b16 %v5356, %v5355
    %v5362 = vsel %vm277, %v5348, 0
    %5364 = vmatprep.subr.bf16.mxu0 0
    %5365 = vmatpush1.bf16.msra.mxu0 %v5357
    %5366 = vmatprep.subr.bf16.mxu0 0
    %5367 = vmatpush1.bf16.msra.mxu0 %v5358
    %5368 = vmatprep.subr.bf16.mxu0 0
    %5369 = vmatpush1.bf16.msra.mxu0 0
    %5370 = vmatprep.subr.bf16.mxu0 0
    %5371 = vmatpush1.bf16.msra.mxu0 0
    %5372 = vmatprep.subr.bf16.mxu0 0
    %5373 = vmatpush1.bf16.msra.mxu0 0
    %5374 = vmatprep.subr.bf16.mxu0 0
    %5375 = vmatpush1.bf16.msra.mxu0 0
    %5376 = vmatprep.subr.bf16.mxu0 0
    %5377 = vmatpush1.bf16.msra.mxu0 0
    %5378 = vmatprep.subr.bf16.mxu0 0
    %5379 = vmatpush1.bf16.msra.mxu0 0
    %5380 = vmatprep.subr.bf16.mxu0 0
    %5381 = vmatpush1.bf16.msra.mxu0 0
    %5382 = vmatprep.subr.bf16.mxu0 0
    %5383 = vmatpush1.bf16.msra.mxu0 0
    %5384 = vmatprep.subr.bf16.mxu0 0
    %5385 = vmatpush1.bf16.msra.mxu0 0
    %5386 = vmatprep.subr.bf16.mxu0 0
    %5387 = vmatpush1.bf16.msra.mxu0 0
    %5388 = vmatprep.subr.bf16.mxu0 0
    %5389 = vmatpush1.bf16.msra.mxu0 0
    %5390 = vmatprep.subr.bf16.mxu0 0
    %5391 = vmatpush1.bf16.msra.mxu0 0
    %5392 = vmatprep.subr.bf16.mxu0 0
    %5393 = vmatpush1.bf16.msra.mxu0 0
    %5394 = vmatprep.subr.bf16.mxu0 0
    %5395 = vmatpush1.bf16.msra.mxu0 0
    %5396 = vmatprep.mubr.bf16.mxu0 0
    %5397 = vmatmul.mubr.bf16.gmra.mrb[0].mxu0 %v5362
    %v5398 = vpop.f32.mrb[0].mxu0
    %v5399 = vadd.f32 0.0, %v5398
    %v5400 = vpop.f32.mrb[0].mxu0
    %v5401 = vpop.f32.mrb[0].mxu0
    %v5402 = vpop.f32.mrb[0].mxu0
    %5403 = vdwg.mxu0
    %v5404 = vadd.f32 %v5341, %v5399
    %v5405 = vxor.u32 %v5404, 2147483648
    %v5406 = vmul.f32 %v5405, 1.442695
    %v5407 = vpow.pop %v5406
    %v5408 = vadd.f32 %v5407, 1.0
    %v5409 = vrcp.pop %v5408
    %v5410 = vmul.f32 1.0, %v5409
    %v5411 = vmul.f32 %v5410, 2.0
    %v5412 = vsub.f32 %v5411, 1.0
    %v5413 = vsel %vm78, %v5412, %v5410
    %v5414 = vmul.f32 %v5413, %v4914
    %5416 = vrot.lane.b32.xlu0 %v5413, 64
    %v5417 = vpop.permute.xlu0 %5416
    %v5419 = vmul.f32 %v5413, %v5417
    %5421 = vrot.lane.b32.xlu0 %v5419, 32
    %v5422 = vpop.permute.xlu0 %5421
    %v5424 = vadd.f32 %v5414, %v5422
    %v5425 = vtanh.pop %v5424
    %5427 = vrot.lane.b32.xlu0 %v5425, 64
    %v5428 = vpop.permute.xlu0 %5427
    %v5430 = vmul.f32 %v5413, %v5428
    %v5431 = vld [vmem:[%s2509] sm:$0x1]
    %v5432 = vld [vmem:[%s2511] sm:$0xf]
    %v5433 = vld [vmem:[%s2511 + $0x4] sm:$0xf]
    %v5434 = vld [vmem:[%s2511 + $0x8] sm:$0xf]
    %v5435 = vld [vmem:[%s2511 + $0xc] sm:$0xf]
    %v5440 = vunpack.c.l.b16 %v5432
    %v5441 = vunpack.c.l.b16 %v5433
    %v5442 = vunpack.c.l.b16 %v5434
    %v5443 = vunpack.c.l.b16 %v5435
    %v5444 = vpack.c.b16 %v5441, %v5440
    %v5445 = vpack.c.b16 %v5443, %v5442
    %5448 = vmatprep.subr.bf16.mxu0 0
    %5449 = vmatpush1.bf16.msra.mxu0 %v5444
    %5450 = vmatprep.subr.bf16.mxu0 0
    %5451 = vmatpush1.bf16.msra.mxu0 %v5445
    %5452 = vmatprep.subr.bf16.mxu0 0
    %5453 = vmatpush1.bf16.msra.mxu0 0
    %5454 = vmatprep.subr.bf16.mxu0 0
    %5455 = vmatpush1.bf16.msra.mxu0 0
    %5456 = vmatprep.subr.bf16.mxu0 0
    %5457 = vmatpush1.bf16.msra.mxu0 0
    %5458 = vmatprep.subr.bf16.mxu0 0
    %5459 = vmatpush1.bf16.msra.mxu0 0
    %5460 = vmatprep.subr.bf16.mxu0 0
    %5461 = vmatpush1.bf16.msra.mxu0 0
    %5462 = vmatprep.subr.bf16.mxu0 0
    %5463 = vmatpush1.bf16.msra.mxu0 0
    %5464 = vmatprep.subr.bf16.mxu0 0
    %5465 = vmatpush1.bf16.msra.mxu0 0
    %5466 = vmatprep.subr.bf16.mxu0 0
    %5467 = vmatpush1.bf16.msra.mxu0 0
    %5468 = vmatprep.subr.bf16.mxu0 0
    %5469 = vmatpush1.bf16.msra.mxu0 0
    %5470 = vmatprep.subr.bf16.mxu0 0
    %5471 = vmatpush1.bf16.msra.mxu0 0
    %5472 = vmatprep.subr.bf16.mxu0 0
    %5473 = vmatpush1.bf16.msra.mxu0 0
    %5474 = vmatprep.subr.bf16.mxu0 0
    %5475 = vmatpush1.bf16.msra.mxu0 0
    %5476 = vmatprep.subr.bf16.mxu0 0
    %5477 = vmatpush1.bf16.msra.mxu0 0
    %5478 = vmatprep.subr.bf16.mxu0 0
    %5479 = vmatpush1.bf16.msra.mxu0 0
    %5480 = vmatprep.mubr.bf16.mxu0 0
    %5481 = vmatmul.mubr.bf16.gmra.mrb[0].mxu0 %v5362
    %v5482 = vpop.f32.mrb[0].mxu0
    %v5483 = vadd.f32 0.0, %v5482
    %v5484 = vpop.f32.mrb[0].mxu0
    %v5485 = vpop.f32.mrb[0].mxu0
    %v5486 = vpop.f32.mrb[0].mxu0
    %5487 = vdwg.mxu0
    %v5489 = vlaneseq
    %v5490 = vshrl.u32 %v5489, 7
    %v5491 = vsub.s32 0, %v5490
    %v5492 = vrot.slane %v5431, %v5491
    %v5494 = vadd.f32 %v5492, %v5483
    %v5495 = vld [vmem:[%s2575] sm:$0xf]
    %v5496 = vld [vmem:[%s2575 + $0x4] sm:$0xf]
    %v5497 = vld [vmem:[%s2575 + $0x8] sm:$0xf]
    %v5498 = vld [vmem:[%s2575 + $0xc] sm:$0xf]
    %v5503 = vunpack.c.l.b16 %v5495
    %v5504 = vunpack.c.l.b16 %v5496
    %v5505 = vunpack.c.l.b16 %v5497
    %v5506 = vunpack.c.l.b16 %v5498
    %v5507 = vpack.c.b16 %v5504, %v5503
    %v5508 = vpack.c.b16 %v5506, %v5505
    %5511 = vmatprep.subr.bf16.mxu0 0
    %5512 = vmatpush1.bf16.msra.mxu0 %v5507
    %5513 = vmatprep.subr.bf16.mxu0 0
    %5514 = vmatpush1.bf16.msra.mxu0 %v5508
    %5515 = vmatprep.subr.bf16.mxu0 0
    %5516 = vmatpush1.bf16.msra.mxu0 0
    %5517 = vmatprep.subr.bf16.mxu0 0
    %5518 = vmatpush1.bf16.msra.mxu0 0
    %5519 = vmatprep.subr.bf16.mxu0 0
    %5520 = vmatpush1.bf16.msra.mxu0 0
    %5521 = vmatprep.subr.bf16.mxu0 0
    %5522 = vmatpush1.bf16.msra.mxu0 0
    %5523 = vmatprep.subr.bf16.mxu0 0
    %5524 = vmatpush1.bf16.msra.mxu0 0
    %5525 = vmatprep.subr.bf16.mxu0 0
    %5526 = vmatpush1.bf16.msra.mxu0 0
    %5527 = vmatprep.subr.bf16.mxu0 0
    %5528 = vmatpush1.bf16.msra.mxu0 0
    %5529 = vmatprep.subr.bf16.mxu0 0
    %5530 = vmatpush1.bf16.msra.mxu0 0
    %5531 = vmatprep.subr.bf16.mxu0 0
    %5532 = vmatpush1.bf16.msra.mxu0 0
    %5533 = vmatprep.subr.bf16.mxu0 0
    %5534 = vmatpush1.bf16.msra.mxu0 0
    %5535 = vmatprep.subr.bf16.mxu0 0
    %5536 = vmatpush1.bf16.msra.mxu0 0
    %5537 = vmatprep.subr.bf16.mxu0 0
    %5538 = vmatpush1.bf16.msra.mxu0 0
    %5539 = vmatprep.subr.bf16.mxu0 0
    %5540 = vmatpush1.bf16.msra.mxu0 0
    %5541 = vmatprep.subr.bf16.mxu0 0
    %5542 = vmatpush1.bf16.msra.mxu0 0
    %5543 = vmatprep.mubr.bf16.mxu0 0
    %5544 = vmatmul.mubr.bf16.gmra.mrb[0].mxu0 %v5073
    %v5545 = vpop.f32.mrb[0].mxu0
    %v5546 = vadd.f32 0.0, %v5545
    %v5547 = vpop.f32.mrb[0].mxu0
    %v5548 = vpop.f32.mrb[0].mxu0
    %v5549 = vpop.f32.mrb[0].mxu0
    %5550 = vdwg.mxu0
    %v5551 = vadd.f32 %v5494, %v5546
    %v5552 = vxor.u32 %v5551, 2147483648
    %v5553 = vmul.f32 %v5552, 1.442695
    %v5554 = vpow.pop %v5553
    %v5555 = vadd.f32 %v5554, 1.0
    %v5556 = vrcp.pop %v5555
    %v5557 = vmul.f32 1.0, %v5556
    %v5558 = vmul.f32 %v5557, 2.0
    %v5559 = vsub.f32 %v5558, 1.0
    %v5560 = vsel %vm78, %v5559, %v5557
    %v5561 = vmul.f32 %v5560, %v5061
    %5563 = vrot.lane.b32.xlu0 %v5560, 64
    %v5564 = vpop.permute.xlu0 %5563
    %v5566 = vmul.f32 %v5560, %v5564
    %5568 = vrot.lane.b32.xlu0 %v5566, 32
    %v5569 = vpop.permute.xlu0 %5568
    %v5571 = vadd.f32 %v5561, %v5569
    %v5572 = vtanh.pop %v5571
    %5574 = vrot.lane.b32.xlu0 %v5572, 64
    %v5575 = vpop.permute.xlu0 %5574
    %v5577 = vmul.f32 %v5560, %v5575
    %v5578 = vpack.c.bf16 %v5577, %v5577
    %5580 = vrot.lane.b32.xlu0 %v5578, 32
    %v5581 = vpop.permute.xlu0 %5580
    %v5583 = vsel %vm277, %v5581, 0
    %5585 = vmatprep.subr.bf16.mxu0 0
    %5586 = vmatpush1.bf16.msra.mxu0 %v2684
    %5587 = vmatprep.subr.bf16.mxu0 0
    %5588 = vmatpush1.bf16.msra.mxu0 %v2685
    %5589 = vmatprep.subr.bf16.mxu0 0
    %5590 = vmatpush1.bf16.msra.mxu0 0
    %5591 = vmatprep.subr.bf16.mxu0 0
    %5592 = vmatpush1.bf16.msra.mxu0 0
    %5593 = vmatprep.subr.bf16.mxu0 0
    %5594 = vmatpush1.bf16.msra.mxu0 0
    %5595 = vmatprep.subr.bf16.mxu0 0
    %5596 = vmatpush1.bf16.msra.mxu0 0
    %5597 = vmatprep.subr.bf16.mxu0 0
    %5598 = vmatpush1.bf16.msra.mxu0 0
    %5599 = vmatprep.subr.bf16.mxu0 0
    %5600 = vmatpush1.bf16.msra.mxu0 0
    %5601 = vmatprep.subr.bf16.mxu0 0
    %5602 = vmatpush1.bf16.msra.mxu0 0
    %5603 = vmatprep.subr.bf16.mxu0 0
    %5604 = vmatpush1.bf16.msra.mxu0 0
    %5605 = vmatprep.subr.bf16.mxu0 0
    %5606 = vmatpush1.bf16.msra.mxu0 0
    %5607 = vmatprep.subr.bf16.mxu0 0
    %5608 = vmatpush1.bf16.msra.mxu0 0
    %5609 = vmatprep.subr.bf16.mxu0 0
    %5610 = vmatpush1.bf16.msra.mxu0 0
    %5611 = vmatprep.subr.bf16.mxu0 0
    %5612 = vmatpush1.bf16.msra.mxu0 0
    %5613 = vmatprep.subr.bf16.mxu0 0
    %5614 = vmatpush1.bf16.msra.mxu0 0
    %5615 = vmatprep.subr.bf16.mxu0 0
    %5616 = vmatpush1.bf16.msra.mxu0 0
    %5617 = vmatprep.mubr.bf16.mxu0 0
    %5618 = vmatmul.mubr.bf16.gmra.mrb[0].mxu0 %v5583
    %v5619 = vpop.f32.mrb[0].mxu0
    %v5620 = vadd.f32 %v2671, %v5619
    %v5621 = vpop.f32.mrb[0].mxu0
    %v5622 = vpop.f32.mrb[0].mxu0
    %v5623 = vpop.f32.mrb[0].mxu0
    %5624 = vdwg.mxu0
    %5625 = vst [vmem:[%s9 + $0x20] sm:$0xff] %v5620
    %v5626 = vpack.c.bf16 %v5430, %v5430
    %v5627 = vpack.c.bf16 %v5276, %v5276
    %v5628 = vld [vmem:[%s1816] sm:$0x1]
    %v5629 = vld [vmem:[%s1818] sm:$0xf]
    %v5630 = vld [vmem:[%s1818 + $0x4] sm:$0xf]
    %v5631 = vld [vmem:[%s1818 + $0x8] sm:$0xf]
    %v5632 = vld [vmem:[%s1818 + $0xc] sm:$0xf]
    %5634 = vrot.lane.b32.xlu0 %v5627, 32
    %v5635 = vpop.permute.xlu0 %5634
    %v5640 = vunpack.c.l.b16 %v5629
    %v5641 = vunpack.c.l.b16 %v5630
    %v5642 = vunpack.c.l.b16 %v5631
    %v5643 = vunpack.c.l.b16 %v5632
    %v5644 = vpack.c.b16 %v5641, %v5640
    %v5645 = vpack.c.b16 %v5643, %v5642
    %v5649 = vsel %vm277, %v5635, 0
    %5651 = vmatprep.subr.bf16.mxu0 0
    %5652 = vmatpush1.bf16.msra.mxu0 %v5644
    %5653 = vmatprep.subr.bf16.mxu0 0
    %5654 = vmatpush1.bf16.msra.mxu0 %v5645
    %5655 = vmatprep.subr.bf16.mxu0 0
    %5656 = vmatpush1.bf16.msra.mxu0 0
    %5657 = vmatprep.subr.bf16.mxu0 0
    %5658 = vmatpush1.bf16.msra.mxu0 0
    %5659 = vmatprep.subr.bf16.mxu0 0
    %5660 = vmatpush1.bf16.msra.mxu0 0
    %5661 = vmatprep.subr.bf16.mxu0 0
    %5662 = vmatpush1.bf16.msra.mxu0 0
    %5663 = vmatprep.subr.bf16.mxu0 0
    %5664 = vmatpush1.bf16.msra.mxu0 0
    %5665 = vmatprep.subr.bf16.mxu0 0
    %5666 = vmatpush1.bf16.msra.mxu0 0
    %5667 = vmatprep.subr.bf16.mxu0 0
    %5668 = vmatpush1.bf16.msra.mxu0 0
    %5669 = vmatprep.subr.bf16.mxu0 0
    %5670 = vmatpush1.bf16.msra.mxu0 0
    %5671 = vmatprep.subr.bf16.mxu0 0
    %5672 = vmatpush1.bf16.msra.mxu0 0
    %5673 = vmatprep.subr.bf16.mxu0 0
    %5674 = vmatpush1.bf16.msra.mxu0 0
    %5675 = vmatprep.subr.bf16.mxu0 0
    %5676 = vmatpush1.bf16.msra.mxu0 0
    %5677 = vmatprep.subr.bf16.mxu0 0
    %5678 = vmatpush1.bf16.msra.mxu0 0
    %5679 = vmatprep.subr.bf16.mxu0 0
    %5680 = vmatpush1.bf16.msra.mxu0 0
    %5681 = vmatprep.subr.bf16.mxu0 0
    %5682 = vmatpush1.bf16.msra.mxu0 0
    %5683 = vmatprep.mubr.bf16.mxu0 0
    %5684 = vmatmul.mubr.bf16.gmra.mrb[0].mxu0 %v5649
    %v5685 = vpop.f32.mrb[0].mxu0
    %v5686 = vadd.f32 0.0, %v5685
    %v5687 = vpop.f32.mrb[0].mxu0
    %v5688 = vpop.f32.mrb[0].mxu0
    %v5689 = vpop.f32.mrb[0].mxu0
    %5690 = vdwg.mxu0
    %v5692 = vlaneseq
    %v5693 = vshrl.u32 %v5692, 7
    %v5694 = vsub.s32 0, %v5693
    %v5695 = vrot.slane %v5628, %v5694
    %v5697 = vadd.f32 %v5695, %v5686
    %v5698 = vld [vmem:[%s1882] sm:$0xf]
    %v5699 = vld [vmem:[%s1882 + $0x4] sm:$0xf]
    %v5700 = vld [vmem:[%s1882 + $0x8] sm:$0xf]
    %v5701 = vld [vmem:[%s1882 + $0xc] sm:$0xf]
    %5703 = vrot.lane.b32.xlu0 %v5626, 32
    %v5704 = vpop.permute.xlu0 %5703
    %v5709 = vunpack.c.l.b16 %v5698
    %v5710 = vunpack.c.l.b16 %v5699
    %v5711 = vunpack.c.l.b16 %v5700
    %v5712 = vunpack.c.l.b16 %v5701
    %v5713 = vpack.c.b16 %v5710, %v5709
    %v5714 = vpack.c.b16 %v5712, %v5711
    %v5718 = vsel %vm277, %v5704, 0
    %5720 = vmatprep.subr.bf16.mxu0 0
    %5721 = vmatpush1.bf16.msra.mxu0 %v5713
    %5722 = vmatprep.subr.bf16.mxu0 0
    %5723 = vmatpush1.bf16.msra.mxu0 %v5714
    %5724 = vmatprep.subr.bf16.mxu0 0
    %5725 = vmatpush1.bf16.msra.mxu0 0
    %5726 = vmatprep.subr.bf16.mxu0 0
    %5727 = vmatpush1.bf16.msra.mxu0 0
    %5728 = vmatprep.subr.bf16.mxu0 0
    %5729 = vmatpush1.bf16.msra.mxu0 0
    %5730 = vmatprep.subr.bf16.mxu0 0
    %5731 = vmatpush1.bf16.msra.mxu0 0
    %5732 = vmatprep.subr.bf16.mxu0 0
    %5733 = vmatpush1.bf16.msra.mxu0 0
    %5734 = vmatprep.subr.bf16.mxu0 0
    %5735 = vmatpush1.bf16.msra.mxu0 0
    %5736 = vmatprep.subr.bf16.mxu0 0
    %5737 = vmatpush1.bf16.msra.mxu0 0
    %5738 = vmatprep.subr.bf16.mxu0 0
    %5739 = vmatpush1.bf16.msra.mxu0 0
    %5740 = vmatprep.subr.bf16.mxu0 0
    %5741 = vmatpush1.bf16.msra.mxu0 0
    %5742 = vmatprep.subr.bf16.mxu0 0
    %5743 = vmatpush1.bf16.msra.mxu0 0
    %5744 = vmatprep.subr.bf16.mxu0 0
    %5745 = vmatpush1.bf16.msra.mxu0 0
    %5746 = vmatprep.subr.bf16.mxu0 0
    %5747 = vmatpush1.bf16.msra.mxu0 0
    %5748 = vmatprep.subr.bf16.mxu0 0
    %5749 = vmatpush1.bf16.msra.mxu0 0
    %5750 = vmatprep.subr.bf16.mxu0 0
    %5751 = vmatpush1.bf16.msra.mxu0 0
    %5752 = vmatprep.mubr.bf16.mxu0 0
    %5753 = vmatmul.mubr.bf16.gmra.mrb[0].mxu0 %v5718
    %v5754 = vpop.f32.mrb[0].mxu0
    %v5755 = vadd.f32 0.0, %v5754
    %v5756 = vpop.f32.mrb[0].mxu0
    %v5757 = vpop.f32.mrb[0].mxu0
    %v5758 = vpop.f32.mrb[0].mxu0
    %5759 = vdwg.mxu0
    %v5760 = vadd.f32 %v5697, %v5755
    %v5761 = vxor.u32 %v5760, 2147483648
    %v5762 = vmul.f32 %v5761, 1.442695
    %v5763 = vpow.pop %v5762
    %v5764 = vadd.f32 %v5763, 1.0
    %v5765 = vrcp.pop %v5764
    %v5766 = vmul.f32 1.0, %v5765
    %v5767 = vmul.f32 %v5766, 2.0
    %v5768 = vsub.f32 %v5767, 1.0
    %v5769 = vsel %vm78, %v5768, %v5766
    %v5770 = vmul.f32 %v5769, %v5424
    %5772 = vrot.lane.b32.xlu0 %v5769, 64
    %v5773 = vpop.permute.xlu0 %5772
    %v5775 = vmul.f32 %v5769, %v5773
    %5777 = vrot.lane.b32.xlu0 %v5775, 32
    %v5778 = vpop.permute.xlu0 %5777
    %v5780 = vadd.f32 %v5770, %v5778
    %v5781 = vtanh.pop %v5780
    %5783 = vrot.lane.b32.xlu0 %v5781, 64
    %v5784 = vpop.permute.xlu0 %5783
    %v5786 = vmul.f32 %v5769, %v5784
    %v5787 = vld [vmem:[%s2509] sm:$0x1]
    %v5788 = vld [vmem:[%s2511] sm:$0xf]
    %v5789 = vld [vmem:[%s2511 + $0x4] sm:$0xf]
    %v5790 = vld [vmem:[%s2511 + $0x8] sm:$0xf]
    %v5791 = vld [vmem:[%s2511 + $0xc] sm:$0xf]
    %v5796 = vunpack.c.l.b16 %v5788
    %v5797 = vunpack.c.l.b16 %v5789
    %v5798 = vunpack.c.l.b16 %v5790
    %v5799 = vunpack.c.l.b16 %v5791
    %v5800 = vpack.c.b16 %v5797, %v5796
    %v5801 = vpack.c.b16 %v5799, %v5798
    %5804 = vmatprep.subr.bf16.mxu0 0
    %5805 = vmatpush1.bf16.msra.mxu0 %v5800
    %5806 = vmatprep.subr.bf16.mxu0 0
    %5807 = vmatpush1.bf16.msra.mxu0 %v5801
    %5808 = vmatprep.subr.bf16.mxu0 0
    %5809 = vmatpush1.bf16.msra.mxu0 0
    %5810 = vmatprep.subr.bf16.mxu0 0
    %5811 = vmatpush1.bf16.msra.mxu0 0
    %5812 = vmatprep.subr.bf16.mxu0 0
    %5813 = vmatpush1.bf16.msra.mxu0 0
    %5814 = vmatprep.subr.bf16.mxu0 0
    %5815 = vmatpush1.bf16.msra.mxu0 0
    %5816 = vmatprep.subr.bf16.mxu0 0
    %5817 = vmatpush1.bf16.msra.mxu0 0
    %5818 = vmatprep.subr.bf16.mxu0 0
    %5819 = vmatpush1.bf16.msra.mxu0 0
    %5820 = vmatprep.subr.bf16.mxu0 0
    %5821 = vmatpush1.bf16.msra.mxu0 0
    %5822 = vmatprep.subr.bf16.mxu0 0
    %5823 = vmatpush1.bf16.msra.mxu0 0
    %5824 = vmatprep.subr.bf16.mxu0 0
    %5825 = vmatpush1.bf16.msra.mxu0 0
    %5826 = vmatprep.subr.bf16.mxu0 0
    %5827 = vmatpush1.bf16.msra.mxu0 0
    %5828 = vmatprep.subr.bf16.mxu0 0
    %5829 = vmatpush1.bf16.msra.mxu0 0
    %5830 = vmatprep.subr.bf16.mxu0 0
    %5831 = vmatpush1.bf16.msra.mxu0 0
    %5832 = vmatprep.subr.bf16.mxu0 0
    %5833 = vmatpush1.bf16.msra.mxu0 0
    %5834 = vmatprep.subr.bf16.mxu0 0
    %5835 = vmatpush1.bf16.msra.mxu0 0
    %5836 = vmatprep.mubr.bf16.mxu0 0
    %5837 = vmatmul.mubr.bf16.gmra.mrb[0].mxu0 %v5718
    %v5838 = vpop.f32.mrb[0].mxu0
    %v5839 = vadd.f32 0.0, %v5838
    %v5840 = vpop.f32.mrb[0].mxu0
    %v5841 = vpop.f32.mrb[0].mxu0
    %v5842 = vpop.f32.mrb[0].mxu0
    %5843 = vdwg.mxu0
    %v5845 = vlaneseq
    %v5846 = vshrl.u32 %v5845, 7
    %v5847 = vsub.s32 0, %v5846
    %v5848 = vrot.slane %v5787, %v5847
    %v5850 = vadd.f32 %v5848, %v5839
    %v5851 = vld [vmem:[%s2575] sm:$0xf]
    %v5852 = vld [vmem:[%s2575 + $0x4] sm:$0xf]
    %v5853 = vld [vmem:[%s2575 + $0x8] sm:$0xf]
    %v5854 = vld [vmem:[%s2575 + $0xc] sm:$0xf]
    %v5859 = vunpack.c.l.b16 %v5851
    %v5860 = vunpack.c.l.b16 %v5852
    %v5861 = vunpack.c.l.b16 %v5853
    %v5862 = vunpack.c.l.b16 %v5854
    %v5863 = vpack.c.b16 %v5860, %v5859
    %v5864 = vpack.c.b16 %v5862, %v5861
    %5867 = vmatprep.subr.bf16.mxu0 0
    %5868 = vmatpush1.bf16.msra.mxu0 %v5863
    %5869 = vmatprep.subr.bf16.mxu0 0
    %5870 = vmatpush1.bf16.msra.mxu0 %v5864
    %5871 = vmatprep.subr.bf16.mxu0 0
    %5872 = vmatpush1.bf16.msra.mxu0 0
    %5873 = vmatprep.subr.bf16.mxu0 0
    %5874 = vmatpush1.bf16.msra.mxu0 0
    %5875 = vmatprep.subr.bf16.mxu0 0
    %5876 = vmatpush1.bf16.msra.mxu0 0
    %5877 = vmatprep.subr.bf16.mxu0 0
    %5878 = vmatpush1.bf16.msra.mxu0 0
    %5879 = vmatprep.subr.bf16.mxu0 0
    %5880 = vmatpush1.bf16.msra.mxu0 0
    %5881 = vmatprep.subr.bf16.mxu0 0
    %5882 = vmatpush1.bf16.msra.mxu0 0
    %5883 = vmatprep.subr.bf16.mxu0 0
    %5884 = vmatpush1.bf16.msra.mxu0 0
    %5885 = vmatprep.subr.bf16.mxu0 0
    %5886 = vmatpush1.bf16.msra.mxu0 0
    %5887 = vmatprep.subr.bf16.mxu0 0
    %5888 = vmatpush1.bf16.msra.mxu0 0
    %5889 = vmatprep.subr.bf16.mxu0 0
    %5890 = vmatpush1.bf16.msra.mxu0 0
    %5891 = vmatprep.subr.bf16.mxu0 0
    %5892 = vmatpush1.bf16.msra.mxu0 0
    %5893 = vmatprep.subr.bf16.mxu0 0
    %5894 = vmatpush1.bf16.msra.mxu0 0
    %5895 = vmatprep.subr.bf16.mxu0 0
    %5896 = vmatpush1.bf16.msra.mxu0 0
    %5897 = vmatprep.subr.bf16.mxu0 0
    %5898 = vmatpush1.bf16.msra.mxu0 0
    %5899 = vmatprep.mubr.bf16.mxu0 0
    %5900 = vmatmul.mubr.bf16.gmra.mrb[0].mxu0 %v5583
    %v5901 = vpop.f32.mrb[0].mxu0
    %v5902 = vadd.f32 0.0, %v5901
    %v5903 = vpop.f32.mrb[0].mxu0
    %v5904 = vpop.f32.mrb[0].mxu0
    %v5905 = vpop.f32.mrb[0].mxu0
    %5906 = vdwg.mxu0
    %v5907 = vadd.f32 %v5850, %v5902
    %v5908 = vxor.u32 %v5907, 2147483648
    %v5909 = vmul.f32 %v5908, 1.442695
    %v5910 = vpow.pop %v5909
    %v5911 = vadd.f32 %v5910, 1.0
    %v5912 = vrcp.pop %v5911
    %v5913 = vmul.f32 1.0, %v5912
    %v5914 = vmul.f32 %v5913, 2.0
    %v5915 = vsub.f32 %v5914, 1.0
    %v5916 = vsel %vm78, %v5915, %v5913
    %v5917 = vmul.f32 %v5916, %v5571
    %5919 = vrot.lane.b32.xlu0 %v5916, 64
    %v5920 = vpop.permute.xlu0 %5919
    %v5922 = vmul.f32 %v5916, %v5920
    %5924 = vrot.lane.b32.xlu0 %v5922, 32
    %v5925 = vpop.permute.xlu0 %5924
    %v5927 = vadd.f32 %v5917, %v5925
    %v5928 = vtanh.pop %v5927
    %5930 = vrot.lane.b32.xlu0 %v5928, 64
    %v5931 = vpop.permute.xlu0 %5930
    %v5933 = vmul.f32 %v5916, %v5931
    %v5934 = vpack.c.bf16 %v5933, %v5933
    %5936 = vrot.lane.b32.xlu0 %v5934, 32
    %v5937 = vpop.permute.xlu0 %5936
    %v5939 = vsel %vm277, %v5937, 0
    %5941 = vmatprep.subr.bf16.mxu0 0
    %5942 = vmatpush1.bf16.msra.mxu0 %v2684
    %5943 = vmatprep.subr.bf16.mxu0 0
    %5944 = vmatpush1.bf16.msra.mxu0 %v2685
    %5945 = vmatprep.subr.bf16.mxu0 0
    %5946 = vmatpush1.bf16.msra.mxu0 0
    %5947 = vmatprep.subr.bf16.mxu0 0
    %5948 = vmatpush1.bf16.msra.mxu0 0
    %5949 = vmatprep.subr.bf16.mxu0 0
    %5950 = vmatpush1.bf16.msra.mxu0 0
    %5951 = vmatprep.subr.bf16.mxu0 0
    %5952 = vmatpush1.bf16.msra.mxu0 0
    %5953 = vmatprep.subr.bf16.mxu0 0
    %5954 = vmatpush1.bf16.msra.mxu0 0
    %5955 = vmatprep.subr.bf16.mxu0 0
    %5956 = vmatpush1.bf16.msra.mxu0 0
    %5957 = vmatprep.subr.bf16.mxu0 0
    %5958 = vmatpush1.bf16.msra.mxu0 0
    %5959 = vmatprep.subr.bf16.mxu0 0
    %5960 = vmatpush1.bf16.msra.mxu0 0
    %5961 = vmatprep.subr.bf16.mxu0 0
    %5962 = vmatpush1.bf16.msra.mxu0 0
    %5963 = vmatprep.subr.bf16.mxu0 0
    %5964 = vmatpush1.bf16.msra.mxu0 0
    %5965 = vmatprep.subr.bf16.mxu0 0
    %5966 = vmatpush1.bf16.msra.mxu0 0
    %5967 = vmatprep.subr.bf16.mxu0 0
    %5968 = vmatpush1.bf16.msra.mxu0 0
    %5969 = vmatprep.subr.bf16.mxu0 0
    %5970 = vmatpush1.bf16.msra.mxu0 0
    %5971 = vmatprep.subr.bf16.mxu0 0
    %5972 = vmatpush1.bf16.msra.mxu0 0
    %5973 = vmatprep.mubr.bf16.mxu0 0
    %5974 = vmatmul.mubr.bf16.gmra.mrb[0].mxu0 %v5939
    %v5975 = vpop.f32.mrb[0].mxu0
    %v5976 = vadd.f32 %v2671, %v5975
    %v5977 = vpop.f32.mrb[0].mxu0
    %v5978 = vpop.f32.mrb[0].mxu0
    %v5979 = vpop.f32.mrb[0].mxu0
    %5980 = vdwg.mxu0
    %5981 = vst [vmem:[%s9 + $0x28] sm:$0xff] %v5976
    %v5982 = vpack.c.bf16 %v5786, %v5786
    %v5983 = vld [vmem:[%s2509] sm:$0x1]
    %v5984 = vld [vmem:[%s2511] sm:$0xf]
    %v5985 = vld [vmem:[%s2511 + $0x4] sm:$0xf]
    %v5986 = vld [vmem:[%s2511 + $0x8] sm:$0xf]
    %v5987 = vld [vmem:[%s2511 + $0xc] sm:$0xf]
    %5989 = vrot.lane.b32.xlu0 %v5982, 32
    %v5990 = vpop.permute.xlu0 %5989
    %v5995 = vunpack.c.l.b16 %v5984
    %v5996 = vunpack.c.l.b16 %v5985
    %v5997 = vunpack.c.l.b16 %v5986
    %v5998 = vunpack.c.l.b16 %v5987
    %v5999 = vpack.c.b16 %v5996, %v5995
    %v6000 = vpack.c.b16 %v5998, %v5997
    %v6004 = vsel %vm277, %v5990, 0
    %6006 = vmatprep.subr.bf16.mxu0 0
    %6007 = vmatpush1.bf16.msra.mxu0 %v5999
    %6008 = vmatprep.subr.bf16.mxu0 0
    %6009 = vmatpush1.bf16.msra.mxu0 %v6000
    %6010 = vmatprep.subr.bf16.mxu0 0
    %6011 = vmatpush1.bf16.msra.mxu0 0
    %6012 = vmatprep.subr.bf16.mxu0 0
    %6013 = vmatpush1.bf16.msra.mxu0 0
    %6014 = vmatprep.subr.bf16.mxu0 0
    %6015 = vmatpush1.bf16.msra.mxu0 0
    %6016 = vmatprep.subr.bf16.mxu0 0
    %6017 = vmatpush1.bf16.msra.mxu0 0
    %6018 = vmatprep.subr.bf16.mxu0 0
    %6019 = vmatpush1.bf16.msra.mxu0 0
    %6020 = vmatprep.subr.bf16.mxu0 0
    %6021 = vmatpush1.bf16.msra.mxu0 0
    %6022 = vmatprep.subr.bf16.mxu0 0
    %6023 = vmatpush1.bf16.msra.mxu0 0
    %6024 = vmatprep.subr.bf16.mxu0 0
    %6025 = vmatpush1.bf16.msra.mxu0 0
    %6026 = vmatprep.subr.bf16.mxu0 0
    %6027 = vmatpush1.bf16.msra.mxu0 0
    %6028 = vmatprep.subr.bf16.mxu0 0
    %6029 = vmatpush1.bf16.msra.mxu0 0
    %6030 = vmatprep.subr.bf16.mxu0 0
    %6031 = vmatpush1.bf16.msra.mxu0 0
    %6032 = vmatprep.subr.bf16.mxu0 0
    %6033 = vmatpush1.bf16.msra.mxu0 0
    %6034 = vmatprep.subr.bf16.mxu0 0
    %6035 = vmatpush1.bf16.msra.mxu0 0
    %6036 = vmatprep.subr.bf16.mxu0 0
    %6037 = vmatpush1.bf16.msra.mxu0 0
    %6038 = vmatprep.mubr.bf16.mxu0 0
    %6039 = vmatmul.mubr.bf16.gmra.mrb[0].mxu0 %v6004
    %v6040 = vpop.f32.mrb[0].mxu0
    %v6041 = vadd.f32 0.0, %v6040
    %v6042 = vpop.f32.mrb[0].mxu0
    %v6043 = vpop.f32.mrb[0].mxu0
    %v6044 = vpop.f32.mrb[0].mxu0
    %6045 = vdwg.mxu0
    %v6047 = vlaneseq
    %v6048 = vshrl.u32 %v6047, 7
    %v6049 = vsub.s32 0, %v6048
    %v6050 = vrot.slane %v5983, %v6049
    %v6052 = vadd.f32 %v6050, %v6041
    %v6053 = vld [vmem:[%s2575] sm:$0xf]
    %v6054 = vld [vmem:[%s2575 + $0x4] sm:$0xf]
    %v6055 = vld [vmem:[%s2575 + $0x8] sm:$0xf]
    %v6056 = vld [vmem:[%s2575 + $0xc] sm:$0xf]
    %v6061 = vunpack.c.l.b16 %v6053
    %v6062 = vunpack.c.l.b16 %v6054
    %v6063 = vunpack.c.l.b16 %v6055
    %v6064 = vunpack.c.l.b16 %v6056
    %v6065 = vpack.c.b16 %v6062, %v6061
    %v6066 = vpack.c.b16 %v6064, %v6063
    %6069 = vmatprep.subr.bf16.mxu0 0
    %6070 = vmatpush1.bf16.msra.mxu0 %v6065
    %6071 = vmatprep.subr.bf16.mxu0 0
    %6072 = vmatpush1.bf16.msra.mxu0 %v6066
    %6073 = vmatprep.subr.bf16.mxu0 0
    %6074 = vmatpush1.bf16.msra.mxu0 0
    %6075 = vmatprep.subr.bf16.mxu0 0
    %6076 = vmatpush1.bf16.msra.mxu0 0
    %6077 = vmatprep.subr.bf16.mxu0 0
    %6078 = vmatpush1.bf16.msra.mxu0 0
    %6079 = vmatprep.subr.bf16.mxu0 0
    %6080 = vmatpush1.bf16.msra.mxu0 0
    %6081 = vmatprep.subr.bf16.mxu0 0
    %6082 = vmatpush1.bf16.msra.mxu0 0
    %6083 = vmatprep.subr.bf16.mxu0 0
    %6084 = vmatpush1.bf16.msra.mxu0 0
    %6085 = vmatprep.subr.bf16.mxu0 0
    %6086 = vmatpush1.bf16.msra.mxu0 0
    %6087 = vmatprep.subr.bf16.mxu0 0
    %6088 = vmatpush1.bf16.msra.mxu0 0
    %6089 = vmatprep.subr.bf16.mxu0 0
    %6090 = vmatpush1.bf16.msra.mxu0 0
    %6091 = vmatprep.subr.bf16.mxu0 0
    %6092 = vmatpush1.bf16.msra.mxu0 0
    %6093 = vmatprep.subr.bf16.mxu0 0
    %6094 = vmatpush1.bf16.msra.mxu0 0
    %6095 = vmatprep.subr.bf16.mxu0 0
    %6096 = vmatpush1.bf16.msra.mxu0 0
    %6097 = vmatprep.subr.bf16.mxu0 0
    %6098 = vmatpush1.bf16.msra.mxu0 0
    %6099 = vmatprep.subr.bf16.mxu0 0
    %6100 = vmatpush1.bf16.msra.mxu0 0
    %6101 = vmatprep.mubr.bf16.mxu0 0
    %6102 = vmatmul.mubr.bf16.gmra.mrb[0].mxu0 %v5939
    %v6103 = vpop.f32.mrb[0].mxu0
    %v6104 = vadd.f32 0.0, %v6103
    %v6105 = vpop.f32.mrb[0].mxu0
    %v6106 = vpop.f32.mrb[0].mxu0
    %v6107 = vpop.f32.mrb[0].mxu0
    %6108 = vdwg.mxu0
    %v6109 = vadd.f32 %v6052, %v6104
    %v6110 = vxor.u32 %v6109, 2147483648
    %v6111 = vmul.f32 %v6110, 1.442695
    %v6112 = vpow.pop %v6111
    %v6113 = vadd.f32 %v6112, 1.0
    %v6114 = vrcp.pop %v6113
    %v6115 = vmul.f32 1.0, %v6114
    %v6116 = vmul.f32 %v6115, 2.0
    %v6117 = vsub.f32 %v6116, 1.0
    %v6118 = vsel %vm78, %v6117, %v6115
    %v6119 = vmul.f32 %v6118, %v5927
    %6121 = vrot.lane.b32.xlu0 %v6118, 64
    %v6122 = vpop.permute.xlu0 %6121
    %v6124 = vmul.f32 %v6118, %v6122
    %6126 = vrot.lane.b32.xlu0 %v6124, 32
    %v6127 = vpop.permute.xlu0 %6126
    %v6129 = vadd.f32 %v6119, %v6127
    %v6130 = vtanh.pop %v6129
    %6132 = vrot.lane.b32.xlu0 %v6130, 64
    %v6133 = vpop.permute.xlu0 %6132
    %v6135 = vmul.f32 %v6118, %v6133
    %v6136 = vpack.c.bf16 %v6135, %v6135
    %6138 = vrot.lane.b32.xlu0 %v6136, 32
    %v6139 = vpop.permute.xlu0 %6138
    %v6141 = vsel %vm277, %v6139, 0
    %6143 = vmatprep.subr.bf16.mxu0 0
    %6144 = vmatpush1.bf16.msra.mxu0 %v2684
    %6145 = vmatprep.subr.bf16.mxu0 0
    %6146 = vmatpush1.bf16.msra.mxu0 %v2685
    %6147 = vmatprep.subr.bf16.mxu0 0
    %6148 = vmatpush1.bf16.msra.mxu0 0
    %6149 = vmatprep.subr.bf16.mxu0 0
    %6150 = vmatpush1.bf16.msra.mxu0 0
    %6151 = vmatprep.subr.bf16.mxu0 0
    %6152 = vmatpush1.bf16.msra.mxu0 0
    %6153 = vmatprep.subr.bf16.mxu0 0
    %6154 = vmatpush1.bf16.msra.mxu0 0
    %6155 = vmatprep.subr.bf16.mxu0 0
    %6156 = vmatpush1.bf16.msra.mxu0 0
    %6157 = vmatprep.subr.bf16.mxu0 0
    %6158 = vmatpush1.bf16.msra.mxu0 0
    %6159 = vmatprep.subr.bf16.mxu0 0
    %6160 = vmatpush1.bf16.msra.mxu0 0
    %6161 = vmatprep.subr.bf16.mxu0 0
    %6162 = vmatpush1.bf16.msra.mxu0 0
    %6163 = vmatprep.subr.bf16.mxu0 0
    %6164 = vmatpush1.bf16.msra.mxu0 0
    %6165 = vmatprep.subr.bf16.mxu0 0
    %6166 = vmatpush1.bf16.msra.mxu0 0
    %6167 = vmatprep.subr.bf16.mxu0 0
    %6168 = vmatpush1.bf16.msra.mxu0 0
    %6169 = vmatprep.subr.bf16.mxu0 0
    %6170 = vmatpush1.bf16.msra.mxu0 0
    %6171 = vmatprep.subr.bf16.mxu0 0
    %6172 = vmatpush1.bf16.msra.mxu0 0
    %6173 = vmatprep.subr.bf16.mxu0 0
    %6174 = vmatpush1.bf16.msra.mxu0 0
    %6175 = vmatprep.mubr.bf16.mxu0 0
    %6176 = vmatmul.mubr.bf16.gmra.mrb[0].mxu0 %v6141
    %v6177 = vpop.f32.mrb[0].mxu0
    %v6178 = vadd.f32 %v2671, %v6177
    %v6179 = vpop.f32.mrb[0].mxu0
    %v6180 = vpop.f32.mrb[0].mxu0
    %v6181 = vpop.f32.mrb[0].mxu0
    %6182 = vdwg.mxu0
    %6183 = vst [vmem:[%s9 + $0x30] sm:$0xff] %v6178
    // Predicated region
    $region50: #{lstm_base_forward.1} parent=1 // pred_check
      _
    $region51: #{lstm_base_forward.1} parent=1 // pred_check_branch
      %6185 = sbr.rel (0) target = $region53
    $region52: #{lstm_base_forward.1} parent=1 // pred_region
      _
    $region53: #{lstm_base_forward.1} parent=1 // pred_fallthru
      _
    // Predicated region
    $region54: #{lstm_base_forward.1} parent=1 // pred_check
      _
    $region55: #{lstm_base_forward.1} parent=1 // pred_check_branch
      %6187 = sbr.rel (0) target = $region57
    $region56: #{lstm_base_forward.1} parent=1 // pred_region
      _
    $region57: #{lstm_base_forward.1} parent=1 // pred_fallthru
      _
    %6188 = vsyncpa [#allocation4], 1
    %6189 = vsyncpa [#allocation6], 1

</llo_original>
